<compile_context>
chip_gen: v7x
topology: tpu7x:2x2x1
jax: 0.10.0
libtpu: 0.0.40
codegen_flags: <defaults>
</compile_context>

<pallas_src>
import jax
import jax.numpy as jnp
import numpy as np
from jax.experimental import pallas as pl
from jax.experimental.pallas import tpu as pltpu


# ----------------------------------------------------------------------------
# Static network geometry (v_shape[2] == 32 branch)
# ----------------------------------------------------------------------------
def _geometry(v_inc, basec, hw):
    assert hw == 32, "only the v_shape[2] == 32 branch is implemented"
    cfg = [
        # (cin, cout, k, stride, pad)
        (v_inc,     basec,     3, 1, 1),   # vnet conv1 + LeakyReLU(0.1)
        (basec,     basec,     4, 2, 1),   # conv2 + LR
        (basec,     basec * 2, 3, 1, 1),   # conv3 + LR
        (basec * 2, basec * 2, 4, 2, 1),   # conv4 + LR
        (basec * 2, basec * 4, 3, 1, 1),   # conv5 + LR
        (basec * 4, basec * 4, 4, 2, 1),   # conv6 + LR
        (basec * 4, basec * 8, 3, 1, 1),   # conv7 + LR
        (basec * 8, basec * 8, 4, 1, 0),   # conv8 (no activation)
    ]
    geoms, h = [], hw
    for li, (cin, cout, k, s, p) in enumerate(cfg):
        hp = h + 2 * p
        hout = (h + 2 * p - k) // s + 1
        p_next = cfg[li + 1][4] if li + 1 < len(cfg) else 0
        geoms.append(dict(
            cin=cin, cout=cout, k=k, s=s, p=p, p_next=p_next,
            hin=h, hp=hp, hout=hout,
            lin=hp * cin,                       # input buffer lane width
            lout=(hout + 2 * p_next) * cout,    # output lane width (pre-padded)
        ))
        h = hout
    return geoms


# ----------------------------------------------------------------------------
# Parameter creation: spectral norm + Toeplitz/bf16 weight prep (done ONCE).
# ----------------------------------------------------------------------------
def _spectral_normalize(w):
    # PyTorch spectral_norm divides by sigma_max of W.reshape(Cout, -1); the
    # exact SVD here matches the converged power-iteration value.
    sigma = np.linalg.svd(w.reshape(w.shape[0], -1), compute_uv=False)[0]
    return w / sigma


def _toeplitz_weight(w, stride, pad, p_next, w_in):
    """Fold kw taps, column stride and the next layer's column padding into
    (K, (w_in+2*pad)*Cin, (Wout+2*p_next)*Cout): one dense matrix per kh tap."""
    cout, cin, k, _ = w.shape
    wout = (w_in + 2 * pad - k) // stride + 1
    T = np.zeros((k, (w_in + 2 * pad) * cin, (wout + 2 * p_next) * cout),
                 np.float32)
    for kh in range(k):
        for kw in range(k):
            blk = w[:, :, kh, kw].T          # (cin, cout)
            for ow in range(wout):
                wi = stride * ow + kw        # padded input column
                oc = p_next + ow             # padded output column
                T[kh, wi * cin:(wi + 1) * cin, oc * cout:(oc + 1) * cout] = blk
    return T


def _tiled_bias(b, wout, p_next):
    cout = b.shape[0]
    bt = np.zeros((1, (wout + 2 * p_next) * cout), np.float32)
    for ow in range(wout):
        oc = p_next + ow
        bt[0, oc * cout:(oc + 1) * cout] = b
    return bt


def make_conve_params(key, v_inc, basec, hw=32):
    geoms = _geometry(v_inc, basec, hw)
    Ts, Bs, raw = [], [], []
    for g in geoms:
        key, wk, bk = jax.random.split(key, 3)
        w = np.asarray(jax.random.normal(
            wk, (g["cout"], g["cin"], g["k"], g["k"]), jnp.float32)) * 0.1
        b = np.asarray(jax.random.normal(bk, (g["cout"],), jnp.float32)) * 0.01
        w = _spectral_normalize(w)
        raw.append((w, b, g["k"], g["s"], g["p"]))
        Ts.append(jnp.asarray(
            _toeplitz_weight(w, g["s"], g["p"], g["p_next"], g["hin"]),
            jnp.bfloat16))
        Bs.append(jnp.asarray(_tiled_bias(b, g["hout"], g["p_next"]),
                              jnp.float32))

    c8 = basec * 8
    key, k9w, k9b, k10w, k10b = jax.random.split(key, 5)
    w9 = _spectral_normalize(
        np.asarray(jax.random.normal(k9w, (c8, c8, 1, 1), jnp.float32)) * 0.1)
    b9 = np.asarray(jax.random.normal(k9b, (c8,), jnp.float32)) * 0.01
    w10 = _spectral_normalize(
        np.asarray(jax.random.normal(k10w, (1, c8, 1, 1), jnp.float32)) * 0.1)
    b10 = np.asarray(jax.random.normal(k10b, (1,), jnp.float32)) * 0.01
    raw.append((w9, b9))
    raw.append((w10, b10))

    return dict(
        Ts=Ts, Bs=Bs,
        W9=jnp.asarray(w9[:, :, 0, 0].T, jnp.bfloat16),          # (cin, cout)
        b9=jnp.asarray(b9.reshape(1, c8), jnp.float32),
        w10=jnp.asarray(w10[:, :, 0, 0].reshape(1, c8), jnp.float32),
        b10=jnp.asarray(b10.reshape(1, 1), jnp.float32),
        geoms=geoms, raw=raw)


# ----------------------------------------------------------------------------
# Fused ConvE forward: one pallas_call, grid over the batch.
# ----------------------------------------------------------------------------
def conve_forward(x_nchw, params):
    geoms = params["geoms"]
    n_layers = len(geoms)
    s2_layers = [li for li, g in enumerate(geoms) if g["s"] == 2]
    n, cin, h, w = x_nchw.shape
    g0 = geoms[0]
    p0 = g0["p"]

    # Only XLA-side glue: lay the raw input out as (N, H, (W+2p)*Cin) rows with
    # the columns pre-padded, so the kernel can drop each sample straight into
    # its padded VMEM buffer.  One ~1.06x pass over the raw input, done once.
    xp = jnp.pad(x_nchw.astype(jnp.float32),
                 ((0, 0), (0, 0), (0, 0), (p0, p0)))
    x_prep = jnp.transpose(xp, (0, 2, 3, 1)).reshape(n, h, (w + 2 * p0) * cin)

    def kernel(*args):
        idx = 0
        x_ref = args[idx]; idx += 1
        t_refs, b_refs = [], []
        for _ in range(n_layers):
            t_refs.append(args[idx]); idx += 1
            b_refs.append(args[idx]); idx += 1
        w9_ref = args[idx]; idx += 1
        b9_ref = args[idx]; idx += 1
        w10_ref = args[idx]; idx += 1
        b10_ref = args[idx]; idx += 1
        out_ref = args[idx]; idx += 1
        a_refs = list(args[idx:idx + n_layers]); idx += n_layers
        g_refs = {li: args[idx + j] for j, li in enumerate(s2_layers)}

        # Re-zero the padded buffers every step (cheap: ~350 KB of VMEM stores)
        # so the kernel is correct under megacore 'parallel' sharding, where a
        # core may start at a non-zero program id.
        for li, g in enumerate(geoms):
            if g["p"] > 0:
                a_refs[li][...] = jnp.zeros(a_refs[li].shape, jnp.float32)

        # This sample's rows -> layer-1 padded buffer interior.
        a_refs[0][p0:p0 + g0["hin"], :] = x_ref[0]

        feat = None
        for li, g in enumerate(geoms):
            src = a_refs[li]
            k, s, hp, hout = g["k"], g["s"], g["hp"], g["hout"]
            n_even = (hp + 1) // 2
            if s == 2:
                # Parity-reorder rows (even rows first, odd rows after) so each
                # kh tap of the stride-2 conv reads a contiguous row window.
                gbuf = g_refs[li]
                for r in range(hp):
                    dst = (r // 2) if (r % 2 == 0) else (n_even + r // 2)
                    gbuf[dst:dst + 1, :] = src[r:r + 1, :]
            acc = None
            for kh in range(k):
                if s == 1:
                    lhs = src[kh:kh + hout, :]
                else:
                    base = (0 if kh % 2 == 0 else n_even) + kh // 2
                    lhs = gbuf[base:base + hout, :]
                part = jnp.dot(lhs.astype(jnp.bfloat16), t_refs[li][kh],
                               preferred_element_type=jnp.float32)
                acc = part if acc is None else acc + part
            acc = acc + b_refs[li][...]
            if li < n_layers - 1:
                acc = jnp.where(acc >= 0, acc, 0.1 * acc)     # LeakyReLU(0.1)
                pn = g["p_next"]
                a_refs[li + 1][pn:pn + hout, :] = acc         # full-lane store
            else:
                feat = acc                                    # conv8 out, (1, 8*basec)

        # enet: 1x1 conv + LeakyReLU(0.1), then 1x1 -> 1 as a lane reduction.
        hid = jnp.dot(feat.astype(jnp.bfloat16), w9_ref[...],
                      preferred_element_type=jnp.float32) + b9_ref[...]
        hid = jnp.where(hid >= 0, hid, 0.1 * hid)
        e = jnp.sum(hid * w10_ref[...], axis=-1, keepdims=True) + b10_ref[...]
        out_ref[0] = e

    def _full_spec(shape):
        nd = len(shape)
        return pl.BlockSpec(shape, lambda i, _nd=nd: (0,) * _nd)

    weight_inputs = []
    in_specs = [pl.BlockSpec((1, h, x_prep.shape[2]), lambda i: (i, 0, 0))]
    for t, bias in zip(params["Ts"], params["Bs"]):
        weight_inputs += [t, bias]
        in_specs += [_full_spec(t.shape), _full_spec(bias.shape)]
    for name in ("W9", "b9", "w10", "b10"):
        weight_inputs.append(params[name])
        in_specs.append(_full_spec(params[name].shape))

    scratch = [pltpu.VMEM((g["hp"], g["lin"]), jnp.float32) for g in geoms]
    scratch += [pltpu.VMEM((geoms[li]["hp"], geoms[li]["lin"]), jnp.float32)
                for li in s2_layers]

    out = pl.pallas_call(
        kernel,
        out_shape=jax.ShapeDtypeStruct((n, 1, 1), jnp.float32),
        grid=(n,),
        in_specs=in_specs,
        out_specs=pl.BlockSpec((1, 1, 1), lambda i: (i, 0, 0)),
        scratch_shapes=scratch,
        compiler_params=pltpu.CompilerParams(
            dimension_semantics=("parallel",),
            vmem_limit_bytes=32 * 1024 * 1024),
    )(x_prep, *weight_inputs)
    return out.reshape(n, 1, 1, 1)


# ----------------------------------------------------------------------------
# Pure-JAX f32 reference (same spectral-normalized weights) for a sanity check.
# ----------------------------------------------------------------------------
def conve_reference(x_nchw, params):
    raw = params["raw"]
    dn = ("NCHW", "OIHW", "NCHW")
    act = x_nchw.astype(jnp.float32)
    for i, (w, b, k, s, p) in enumerate(raw[:-2]):
        act = jax.lax.conv_general_dilated(act, jnp.asarray(w), (s, s),
                                           [(p, p), (p, p)],
                                           dimension_numbers=dn)
        act = act + jnp.asarray(b).reshape(1, -1, 1, 1)
        if i < len(raw) - 3:                       # no activation after conv8
            act = jnp.where(act >= 0, act, 0.1 * act)
    w9, b9 = raw[-2]
    w10, b10 = raw[-1]
    act = jax.lax.conv_general_dilated(act, jnp.asarray(w9), (1, 1),
                                       [(0, 0), (0, 0)], dimension_numbers=dn)
    act = act + jnp.asarray(b9).reshape(1, -1, 1, 1)
    act = jnp.where(act >= 0, act, 0.1 * act)
    act = jax.lax.conv_general_dilated(act, jnp.asarray(w10), (1, 1),
                                       [(0, 0), (0, 0)], dimension_numbers=dn)
    act = act + jnp.asarray(b10).reshape(1, -1, 1, 1)
    return act


if __name__ == "__main__":
    key = jax.random.PRNGKey(0)
    key, xkey, pkey = jax.random.split(key, 3)

    # Smallest valid input for this module branch: v_shape[2] == 32.
    N, V_INC, HW = 2, 4, 32
    BASEC = 8

    x = jax.random.normal(xkey, (N, V_INC, HW, HW), jnp.float32)   # NCHW
    params = make_conve_params(pkey, V_INC, BASEC, HW)

    fwd = jax.jit(lambda v: conve_forward(v, params))
    out = jax.block_until_ready(fwd(x))

    assert out.shape == (N, 1, 1, 1), out.shape
    assert bool(jnp.all(jnp.isfinite(out)))

    # Sanity check against an f32 pure-JAX reference (loose tolerance: kernel
    # matmul inputs are bf16).
    ref = jax.block_until_ready(jax.jit(lambda v: conve_reference(v, params))(x))
    err = float(jnp.max(jnp.abs(out - ref)))
    scale = float(jnp.max(jnp.abs(ref)))
    assert err <= 0.1 * (1.0 + scale), (err, scale)

    print("KERNEL_OK")
</pallas_src>

<mosaic_0001>
module attributes {stable_mosaic.version = 11 : i64} {
  func.func @kernel(%arg0: i32, %arg1: memref<1x32x136xf32, #tpu.memory_space<vmem>>, %arg2: memref<3x136x272xbf16, #tpu.memory_space<vmem>>, %arg3: memref<1x272xf32, #tpu.memory_space<vmem>>, %arg4: memref<4x272x144xbf16, #tpu.memory_space<vmem>>, %arg5: memref<1x144xf32, #tpu.memory_space<vmem>>, %arg6: memref<3x144x288xbf16, #tpu.memory_space<vmem>>, %arg7: memref<1x288xf32, #tpu.memory_space<vmem>>, %arg8: memref<4x288x160xbf16, #tpu.memory_space<vmem>>, %arg9: memref<1x160xf32, #tpu.memory_space<vmem>>, %arg10: memref<3x160x320xbf16, #tpu.memory_space<vmem>>, %arg11: memref<1x320xf32, #tpu.memory_space<vmem>>, %arg12: memref<4x320x192xbf16, #tpu.memory_space<vmem>>, %arg13: memref<1x192xf32, #tpu.memory_space<vmem>>, %arg14: memref<3x192x256xbf16, #tpu.memory_space<vmem>>, %arg15: memref<1x256xf32, #tpu.memory_space<vmem>>, %arg16: memref<4x256x64xbf16, #tpu.memory_space<vmem>>, %arg17: memref<1x64xf32, #tpu.memory_space<vmem>>, %arg18: memref<64x64xbf16, #tpu.memory_space<vmem>>, %arg19: memref<1x64xf32, #tpu.memory_space<vmem>>, %arg20: memref<1x64xf32, #tpu.memory_space<vmem>>, %arg21: memref<1x1xf32, #tpu.memory_space<vmem>>, %arg22: memref<1x1x1xf32, #tpu.memory_space<vmem>>, %arg23: memref<34x136xf32, #tpu.memory_space<vmem>>, %arg24: memref<34x272xf32, #tpu.memory_space<vmem>>, %arg25: memref<18x144xf32, #tpu.memory_space<vmem>>, %arg26: memref<18x288xf32, #tpu.memory_space<vmem>>, %arg27: memref<10x160xf32, #tpu.memory_space<vmem>>, %arg28: memref<10x320xf32, #tpu.memory_space<vmem>>, %arg29: memref<6x192xf32, #tpu.memory_space<vmem>>, %arg30: memref<4x256xf32, #tpu.memory_space<vmem>>, %arg31: memref<34x272xf32, #tpu.memory_space<vmem>>, %arg32: memref<18x288xf32, #tpu.memory_space<vmem>>, %arg33: memref<10x320xf32, #tpu.memory_space<vmem>>) attributes {dimension_semantics = [#tpu.dimension_semantics<parallel>], iteration_bounds = array<i64: 2>, scalar_prefetch = 0 : i64, scratch_operands = 11 : i64, tpu.core_type = #tpu.core_type<tc>, window_params = [{transform_indices = @transform_0, window_bounds = array<i64: 1, 32, 136>}, {pipeline_mode = #tpu.pipeline_mode<synchronous>, transform_indices = @transform_1, window_bounds = array<i64: 3, 136, 272>}, {pipeline_mode = #tpu.pipeline_mode<synchronous>, transform_indices = @transform_2, window_bounds = array<i64: 1, 272>}, {pipeline_mode = #tpu.pipeline_mode<synchronous>, transform_indices = @transform_3, window_bounds = array<i64: 4, 272, 144>}, {pipeline_mode = #tpu.pipeline_mode<synchronous>, transform_indices = @transform_4, window_bounds = array<i64: 1, 144>}, {pipeline_mode = #tpu.pipeline_mode<synchronous>, transform_indices = @transform_5, window_bounds = array<i64: 3, 144, 288>}, {pipeline_mode = #tpu.pipeline_mode<synchronous>, transform_indices = @transform_6, window_bounds = array<i64: 1, 288>}, {pipeline_mode = #tpu.pipeline_mode<synchronous>, transform_indices = @transform_7, window_bounds = array<i64: 4, 288, 160>}, {pipeline_mode = #tpu.pipeline_mode<synchronous>, transform_indices = @transform_8, window_bounds = array<i64: 1, 160>}, {pipeline_mode = #tpu.pipeline_mode<synchronous>, transform_indices = @transform_9, window_bounds = array<i64: 3, 160, 320>}, {pipeline_mode = #tpu.pipeline_mode<synchronous>, transform_indices = @transform_10, window_bounds = array<i64: 1, 320>}, {pipeline_mode = #tpu.pipeline_mode<synchronous>, transform_indices = @transform_11, window_bounds = array<i64: 4, 320, 192>}, {pipeline_mode = #tpu.pipeline_mode<synchronous>, transform_indices = @transform_12, window_bounds = array<i64: 1, 192>}, {pipeline_mode = #tpu.pipeline_mode<synchronous>, transform_indices = @transform_13, window_bounds = array<i64: 3, 192, 256>}, {pipeline_mode = #tpu.pipeline_mode<synchronous>, transform_indices = @transform_14, window_bounds = array<i64: 1, 256>}, {pipeline_mode = #tpu.pipeline_mode<synchronous>, transform_indices = @transform_15, window_bounds = array<i64: 4, 256, 64>}, {pipeline_mode = #tpu.pipeline_mode<synchronous>, transform_indices = @transform_16, window_bounds = array<i64: 1, 64>}, {pipeline_mode = #tpu.pipeline_mode<synchronous>, transform_indices = @transform_17, window_bounds = array<i64: 64, 64>}, {pipeline_mode = #tpu.pipeline_mode<synchronous>, transform_indices = @transform_18, window_bounds = array<i64: 1, 64>}, {pipeline_mode = #tpu.pipeline_mode<synchronous>, transform_indices = @transform_19, window_bounds = array<i64: 1, 64>}, {pipeline_mode = #tpu.pipeline_mode<synchronous>, transform_indices = @transform_20, window_bounds = array<i64: 1, 1>}, {transform_indices = @transform_21, window_bounds = array<i64: 1, 1, 1>}]} {
    %cst = arith.constant 0.000000e+00 : f32
    %0 = vector.broadcast %cst : f32 to vector<34x136xf32>
    %c0 = arith.constant 0 : index
    %c0_0 = arith.constant 0 : index
    %1 = vector.load %arg23[%c0, %c0_0] : memref<34x136xf32, #tpu.memory_space<vmem>>, vector<34x136xf32>
    tpu.vector_store %arg23[%c0, %c0_0], %0 {strides = array<i32>} : memref<34x136xf32, #tpu.memory_space<vmem>>, vector<34x136xf32>,
    %cst_1 = arith.constant 0.000000e+00 : f32
    %2 = vector.broadcast %cst_1 : f32 to vector<34x272xf32>
    %c0_2 = arith.constant 0 : index
    %c0_3 = arith.constant 0 : index
    %3 = vector.load %arg24[%c0_2, %c0_3] : memref<34x272xf32, #tpu.memory_space<vmem>>, vector<34x272xf32>
    tpu.vector_store %arg24[%c0_2, %c0_3], %2 {strides = array<i32>} : memref<34x272xf32, #tpu.memory_space<vmem>>, vector<34x272xf32>,
    %cst_4 = arith.constant 0.000000e+00 : f32
    %4 = vector.broadcast %cst_4 : f32 to vector<18x144xf32>
    %c0_5 = arith.constant 0 : index
    %c0_6 = arith.constant 0 : index
    %5 = vector.load %arg25[%c0_5, %c0_6] : memref<18x144xf32, #tpu.memory_space<vmem>>, vector<18x144xf32>
    tpu.vector_store %arg25[%c0_5, %c0_6], %4 {strides = array<i32>} : memref<18x144xf32, #tpu.memory_space<vmem>>, vector<18x144xf32>,
    %cst_7 = arith.constant 0.000000e+00 : f32
    %6 = vector.broadcast %cst_7 : f32 to vector<18x288xf32>
    %c0_8 = arith.constant 0 : index
    %c0_9 = arith.constant 0 : index
    %7 = vector.load %arg26[%c0_8, %c0_9] : memref<18x288xf32, #tpu.memory_space<vmem>>, vector<18x288xf32>
    tpu.vector_store %arg26[%c0_8, %c0_9], %6 {strides = array<i32>} : memref<18x288xf32, #tpu.memory_space<vmem>>, vector<18x288xf32>,
    %cst_10 = arith.constant 0.000000e+00 : f32
    %8 = vector.broadcast %cst_10 : f32 to vector<10x160xf32>
    %c0_11 = arith.constant 0 : index
    %c0_12 = arith.constant 0 : index
    %9 = vector.load %arg27[%c0_11, %c0_12] : memref<10x160xf32, #tpu.memory_space<vmem>>, vector<10x160xf32>
    tpu.vector_store %arg27[%c0_11, %c0_12], %8 {strides = array<i32>} : memref<10x160xf32, #tpu.memory_space<vmem>>, vector<10x160xf32>,
    %cst_13 = arith.constant 0.000000e+00 : f32
    %10 = vector.broadcast %cst_13 : f32 to vector<10x320xf32>
    %c0_14 = arith.constant 0 : index
    %c0_15 = arith.constant 0 : index
    %11 = vector.load %arg28[%c0_14, %c0_15] : memref<10x320xf32, #tpu.memory_space<vmem>>, vector<10x320xf32>
    tpu.vector_store %arg28[%c0_14, %c0_15], %10 {strides = array<i32>} : memref<10x320xf32, #tpu.memory_space<vmem>>, vector<10x320xf32>,
    %cst_16 = arith.constant 0.000000e+00 : f32
    %12 = vector.broadcast %cst_16 : f32 to vector<6x192xf32>
    %c0_17 = arith.constant 0 : index
    %c0_18 = arith.constant 0 : index
    %13 = vector.load %arg29[%c0_17, %c0_18] : memref<6x192xf32, #tpu.memory_space<vmem>>, vector<6x192xf32>
    tpu.vector_store %arg29[%c0_17, %c0_18], %12 {strides = array<i32>} : memref<6x192xf32, #tpu.memory_space<vmem>>, vector<6x192xf32>,
    %c0_19 = arith.constant 0 : index
    %c0_20 = arith.constant 0 : index
    %c0_21 = arith.constant 0 : index
    %14 = vector.load %arg1[%c0_19, %c0_20, %c0_21] : memref<1x32x136xf32, #tpu.memory_space<vmem>>, vector<1x32x136xf32>
    %15 = vector.shape_cast %14 : vector<1x32x136xf32> to vector<32x136xf32>
    %c1 = arith.constant 1 : index
    %c0_22 = arith.constant 0 : index
    %16 = vector.load %arg23[%c1, %c0_22] : memref<34x136xf32, #tpu.memory_space<vmem>>, vector<32x136xf32>
    tpu.vector_store %arg23[%c1, %c0_22], %15 {strides = array<i32>} : memref<34x136xf32, #tpu.memory_space<vmem>>, vector<32x136xf32>,
    %c0_23 = arith.constant 0 : index
    %c0_24 = arith.constant 0 : index
    %17 = vector.load %arg23[%c0_23, %c0_24] : memref<34x136xf32, #tpu.memory_space<vmem>>, vector<32x136xf32>
    %18 = arith.truncf %17 : vector<32x136xf32> to vector<32x136xbf16>
    %c0_25 = arith.constant 0 : index
    %c0_26 = arith.constant 0 : index
    %c0_27 = arith.constant 0 : index
    %19 = vector.load %arg2[%c0_25, %c0_26, %c0_27] : memref<3x136x272xbf16, #tpu.memory_space<vmem>>, vector<1x136x272xbf16>
    %20 = vector.shape_cast %19 : vector<1x136x272xbf16> to vector<136x272xbf16>
    %cst_28 = arith.constant dense<0.000000e+00> : vector<32x272xf32>
    %21 = tpu.matmul %18, %20, %cst_28 {dimension_numbers = #tpu.dot_dimension_numbers<[1], [0], [0], [1], [0, 0, 1, 1], [], []>} : vector<32x136xbf16>, vector<136x272xbf16>, vector<32x272xf32> -> vector<32x272xf32>
    %c1_29 = arith.constant 1 : index
    %c0_30 = arith.constant 0 : index
    %22 = vector.load %arg23[%c1_29, %c0_30] : memref<34x136xf32, #tpu.memory_space<vmem>>, vector<32x136xf32>
    %23 = arith.truncf %22 : vector<32x136xf32> to vector<32x136xbf16>
    %c1_31 = arith.constant 1 : index
    %c0_32 = arith.constant 0 : index
    %c0_33 = arith.constant 0 : index
    %24 = vector.load %arg2[%c1_31, %c0_32, %c0_33] : memref<3x136x272xbf16, #tpu.memory_space<vmem>>, vector<1x136x272xbf16>
    %25 = vector.shape_cast %24 : vector<1x136x272xbf16> to vector<136x272xbf16>
    %cst_34 = arith.constant dense<0.000000e+00> : vector<32x272xf32>
    %26 = tpu.matmul %23, %25, %cst_34 {dimension_numbers = #tpu.dot_dimension_numbers<[1], [0], [0], [1], [0, 0, 1, 1], [], []>} : vector<32x136xbf16>, vector<136x272xbf16>, vector<32x272xf32> -> vector<32x272xf32>
    %27 = arith.addf %21, %26 : vector<32x272xf32>
    %c2 = arith.constant 2 : index
    %c0_35 = arith.constant 0 : index
    %28 = vector.load %arg23[%c2, %c0_35] : memref<34x136xf32, #tpu.memory_space<vmem>>, vector<32x136xf32>
    %29 = arith.truncf %28 : vector<32x136xf32> to vector<32x136xbf16>
    %c2_36 = arith.constant 2 : index
    %c0_37 = arith.constant 0 : index
    %c0_38 = arith.constant 0 : index
    %30 = vector.load %arg2[%c2_36, %c0_37, %c0_38] : memref<3x136x272xbf16, #tpu.memory_space<vmem>>, vector<1x136x272xbf16>
    %31 = vector.shape_cast %30 : vector<1x136x272xbf16> to vector<136x272xbf16>
    %cst_39 = arith.constant dense<0.000000e+00> : vector<32x272xf32>
    %32 = tpu.matmul %29, %31, %cst_39 {dimension_numbers = #tpu.dot_dimension_numbers<[1], [0], [0], [1], [0, 0, 1, 1], [], []>} : vector<32x136xbf16>, vector<136x272xbf16>, vector<32x272xf32> -> vector<32x272xf32>
    %33 = arith.addf %27, %32 : vector<32x272xf32>
    %c0_40 = arith.constant 0 : index
    %c0_41 = arith.constant 0 : index
    %34 = vector.load %arg3[%c0_40, %c0_41] : memref<1x272xf32, #tpu.memory_space<vmem>>, vector<1x272xf32>
    %35 = vector.broadcast %34 : vector<1x272xf32> to vector<32x272xf32>
    %36 = arith.addf %33, %35 : vector<32x272xf32>
    %cst_42 = arith.constant 0.000000e+00 : f32
    %37 = vector.broadcast %cst_42 : f32 to vector<32x272xf32>
    %38 = arith.cmpf oge, %36, %37 : vector<32x272xf32>
    %cst_43 = arith.constant 1.000000e-01 : f32
    %39 = vector.broadcast %cst_43 : f32 to vector<32x272xf32>
    %40 = arith.mulf %39, %36 : vector<32x272xf32>
    %41 = arith.select %38, %36, %40 : vector<32x272xi1>, vector<32x272xf32>
    %c1_44 = arith.constant 1 : index
    %c0_45 = arith.constant 0 : index
    %42 = vector.load %arg24[%c1_44, %c0_45] : memref<34x272xf32, #tpu.memory_space<vmem>>, vector<32x272xf32>
    tpu.vector_store %arg24[%c1_44, %c0_45], %41 {strides = array<i32>} : memref<34x272xf32, #tpu.memory_space<vmem>>, vector<32x272xf32>,
    %c0_46 = arith.constant 0 : index
    %c0_47 = arith.constant 0 : index
    %43 = vector.load %arg24[%c0_46, %c0_47] : memref<34x272xf32, #tpu.memory_space<vmem>>, vector<1x272xf32>
    %c0_48 = arith.constant 0 : index
    %c0_49 = arith.constant 0 : index
    %44 = vector.load %arg31[%c0_48, %c0_49] : memref<34x272xf32, #tpu.memory_space<vmem>>, vector<1x272xf32>
    tpu.vector_store %arg31[%c0_48, %c0_49], %43 {strides = array<i32>} : memref<34x272xf32, #tpu.memory_space<vmem>>, vector<1x272xf32>,
    %c1_50 = arith.constant 1 : index
    %c0_51 = arith.constant 0 : index
    %45 = vector.load %arg24[%c1_50, %c0_51] : memref<34x272xf32, #tpu.memory_space<vmem>>, vector<1x272xf32>
    %c17 = arith.constant 17 : index
    %c0_52 = arith.constant 0 : index
    %46 = vector.load %arg31[%c17, %c0_52] : memref<34x272xf32, #tpu.memory_space<vmem>>, vector<1x272xf32>
    tpu.vector_store %arg31[%c17, %c0_52], %45 {strides = array<i32>} : memref<34x272xf32, #tpu.memory_space<vmem>>, vector<1x272xf32>,
    %c2_53 = arith.constant 2 : index
    %c0_54 = arith.constant 0 : index
    %47 = vector.load %arg24[%c2_53, %c0_54] : memref<34x272xf32, #tpu.memory_space<vmem>>, vector<1x272xf32>
    %c1_55 = arith.constant 1 : index
    %c0_56 = arith.constant 0 : index
    %48 = vector.load %arg31[%c1_55, %c0_56] : memref<34x272xf32, #tpu.memory_space<vmem>>, vector<1x272xf32>
    tpu.vector_store %arg31[%c1_55, %c0_56], %47 {strides = array<i32>} : memref<34x272xf32, #tpu.memory_space<vmem>>, vector<1x272xf32>,
    %c3 = arith.constant 3 : index
    %c0_57 = arith.constant 0 : index
    %49 = vector.load %arg24[%c3, %c0_57] : memref<34x272xf32, #tpu.memory_space<vmem>>, vector<1x272xf32>
    %c18 = arith.constant 18 : index
    %c0_58 = arith.constant 0 : index
    %50 = vector.load %arg31[%c18, %c0_58] : memref<34x272xf32, #tpu.memory_space<vmem>>, vector<1x272xf32>
    tpu.vector_store %arg31[%c18, %c0_58], %49 {strides = array<i32>} : memref<34x272xf32, #tpu.memory_space<vmem>>, vector<1x272xf32>,
    %c4 = arith.constant 4 : index
    %c0_59 = arith.constant 0 : index
    %51 = vector.load %arg24[%c4, %c0_59] : memref<34x272xf32, #tpu.memory_space<vmem>>, vector<1x272xf32>
    %c2_60 = arith.constant 2 : index
    %c0_61 = arith.constant 0 : index
    %52 = vector.load %arg31[%c2_60, %c0_61] : memref<34x272xf32, #tpu.memory_space<vmem>>, vector<1x272xf32>
    tpu.vector_store %arg31[%c2_60, %c0_61], %51 {strides = array<i32>} : memref<34x272xf32, #tpu.memory_space<vmem>>, vector<1x272xf32>,
    %c5 = arith.constant 5 : index
    %c0_62 = arith.constant 0 : index
    %53 = vector.load %arg24[%c5, %c0_62] : memref<34x272xf32, #tpu.memory_space<vmem>>, vector<1x272xf32>
    %c19 = arith.constant 19 : index
    %c0_63 = arith.constant 0 : index
    %54 = vector.load %arg31[%c19, %c0_63] : memref<34x272xf32, #tpu.memory_space<vmem>>, vector<1x272xf32>
    tpu.vector_store %arg31[%c19, %c0_63], %53 {strides = array<i32>} : memref<34x272xf32, #tpu.memory_space<vmem>>, vector<1x272xf32>,
    %c6 = arith.constant 6 : index
    %c0_64 = arith.constant 0 : index
    %55 = vector.load %arg24[%c6, %c0_64] : memref<34x272xf32, #tpu.memory_space<vmem>>, vector<1x272xf32>
    %c3_65 = arith.constant 3 : index
    %c0_66 = arith.constant 0 : index
    %56 = vector.load %arg31[%c3_65, %c0_66] : memref<34x272xf32, #tpu.memory_space<vmem>>, vector<1x272xf32>
    tpu.vector_store %arg31[%c3_65, %c0_66], %55 {strides = array<i32>} : memref<34x272xf32, #tpu.memory_space<vmem>>, vector<1x272xf32>,
    %c7 = arith.constant 7 : index
    %c0_67 = arith.constant 0 : index
    %57 = vector.load %arg24[%c7, %c0_67] : memref<34x272xf32, #tpu.memory_space<vmem>>, vector<1x272xf32>
    %c20 = arith.constant 20 : index
    %c0_68 = arith.constant 0 : index
    %58 = vector.load %arg31[%c20, %c0_68] : memref<34x272xf32, #tpu.memory_space<vmem>>, vector<1x272xf32>
    tpu.vector_store %arg31[%c20, %c0_68], %57 {strides = array<i32>} : memref<34x272xf32, #tpu.memory_space<vmem>>, vector<1x272xf32>,
    %c8 = arith.constant 8 : index
    %c0_69 = arith.constant 0 : index
    %59 = vector.load %arg24[%c8, %c0_69] : memref<34x272xf32, #tpu.memory_space<vmem>>, vector<1x272xf32>
    %c4_70 = arith.constant 4 : index
    %c0_71 = arith.constant 0 : index
    %60 = vector.load %arg31[%c4_70, %c0_71] : memref<34x272xf32, #tpu.memory_space<vmem>>, vector<1x272xf32>
    tpu.vector_store %arg31[%c4_70, %c0_71], %59 {strides = array<i32>} : memref<34x272xf32, #tpu.memory_space<vmem>>, vector<1x272xf32>,
    %c9 = arith.constant 9 : index
    %c0_72 = arith.constant 0 : index
    %61 = vector.load %arg24[%c9, %c0_72] : memref<34x272xf32, #tpu.memory_space<vmem>>, vector<1x272xf32>
    %c21 = arith.constant 21 : index
    %c0_73 = arith.constant 0 : index
    %62 = vector.load %arg31[%c21, %c0_73] : memref<34x272xf32, #tpu.memory_space<vmem>>, vector<1x272xf32>
    tpu.vector_store %arg31[%c21, %c0_73], %61 {strides = array<i32>} : memref<34x272xf32, #tpu.memory_space<vmem>>, vector<1x272xf32>,
    %c10 = arith.constant 10 : index
    %c0_74 = arith.constant 0 : index
    %63 = vector.load %arg24[%c10, %c0_74] : memref<34x272xf32, #tpu.memory_space<vmem>>, vector<1x272xf32>
    %c5_75 = arith.constant 5 : index
    %c0_76 = arith.constant 0 : index
    %64 = vector.load %arg31[%c5_75, %c0_76] : memref<34x272xf32, #tpu.memory_space<vmem>>, vector<1x272xf32>
    tpu.vector_store %arg31[%c5_75, %c0_76], %63 {strides = array<i32>} : memref<34x272xf32, #tpu.memory_space<vmem>>, vector<1x272xf32>,
    %c11 = arith.constant 11 : index
    %c0_77 = arith.constant 0 : index
    %65 = vector.load %arg24[%c11, %c0_77] : memref<34x272xf32, #tpu.memory_space<vmem>>, vector<1x272xf32>
    %c22 = arith.constant 22 : index
    %c0_78 = arith.constant 0 : index
    %66 = vector.load %arg31[%c22, %c0_78] : memref<34x272xf32, #tpu.memory_space<vmem>>, vector<1x272xf32>
    tpu.vector_store %arg31[%c22, %c0_78], %65 {strides = array<i32>} : memref<34x272xf32, #tpu.memory_space<vmem>>, vector<1x272xf32>,
    %c12 = arith.constant 12 : index
    %c0_79 = arith.constant 0 : index
    %67 = vector.load %arg24[%c12, %c0_79] : memref<34x272xf32, #tpu.memory_space<vmem>>, vector<1x272xf32>
    %c6_80 = arith.constant 6 : index
    %c0_81 = arith.constant 0 : index
    %68 = vector.load %arg31[%c6_80, %c0_81] : memref<34x272xf32, #tpu.memory_space<vmem>>, vector<1x272xf32>
    tpu.vector_store %arg31[%c6_80, %c0_81], %67 {strides = array<i32>} : memref<34x272xf32, #tpu.memory_space<vmem>>, vector<1x272xf32>,
    %c13 = arith.constant 13 : index
    %c0_82 = arith.constant 0 : index
    %69 = vector.load %arg24[%c13, %c0_82] : memref<34x272xf32, #tpu.memory_space<vmem>>, vector<1x272xf32>
    %c23 = arith.constant 23 : index
    %c0_83 = arith.constant 0 : index
    %70 = vector.load %arg31[%c23, %c0_83] : memref<34x272xf32, #tpu.memory_space<vmem>>, vector<1x272xf32>
    tpu.vector_store %arg31[%c23, %c0_83], %69 {strides = array<i32>} : memref<34x272xf32, #tpu.memory_space<vmem>>, vector<1x272xf32>,
    %c14 = arith.constant 14 : index
    %c0_84 = arith.constant 0 : index
    %71 = vector.load %arg24[%c14, %c0_84] : memref<34x272xf32, #tpu.memory_space<vmem>>, vector<1x272xf32>
    %c7_85 = arith.constant 7 : index
    %c0_86 = arith.constant 0 : index
    %72 = vector.load %arg31[%c7_85, %c0_86] : memref<34x272xf32, #tpu.memory_space<vmem>>, vector<1x272xf32>
    tpu.vector_store %arg31[%c7_85, %c0_86], %71 {strides = array<i32>} : memref<34x272xf32, #tpu.memory_space<vmem>>, vector<1x272xf32>,
    %c15 = arith.constant 15 : index
    %c0_87 = arith.constant 0 : index
    %73 = vector.load %arg24[%c15, %c0_87] : memref<34x272xf32, #tpu.memory_space<vmem>>, vector<1x272xf32>
    %c24 = arith.constant 24 : index
    %c0_88 = arith.constant 0 : index
    %74 = vector.load %arg31[%c24, %c0_88] : memref<34x272xf32, #tpu.memory_space<vmem>>, vector<1x272xf32>
    tpu.vector_store %arg31[%c24, %c0_88], %73 {strides = array<i32>} : memref<34x272xf32, #tpu.memory_space<vmem>>, vector<1x272xf32>,
    %c16 = arith.constant 16 : index
    %c0_89 = arith.constant 0 : index
    %75 = vector.load %arg24[%c16, %c0_89] : memref<34x272xf32, #tpu.memory_space<vmem>>, vector<1x272xf32>
    %c8_90 = arith.constant 8 : index
    %c0_91 = arith.constant 0 : index
    %76 = vector.load %arg31[%c8_90, %c0_91] : memref<34x272xf32, #tpu.memory_space<vmem>>, vector<1x272xf32>
    tpu.vector_store %arg31[%c8_90, %c0_91], %75 {strides = array<i32>} : memref<34x272xf32, #tpu.memory_space<vmem>>, vector<1x272xf32>,
    %c17_92 = arith.constant 17 : index
    %c0_93 = arith.constant 0 : index
    %77 = vector.load %arg24[%c17_92, %c0_93] : memref<34x272xf32, #tpu.memory_space<vmem>>, vector<1x272xf32>
    %c25 = arith.constant 25 : index
    %c0_94 = arith.constant 0 : index
    %78 = vector.load %arg31[%c25, %c0_94] : memref<34x272xf32, #tpu.memory_space<vmem>>, vector<1x272xf32>
    tpu.vector_store %arg31[%c25, %c0_94], %77 {strides = array<i32>} : memref<34x272xf32, #tpu.memory_space<vmem>>, vector<1x272xf32>,
    %c18_95 = arith.constant 18 : index
    %c0_96 = arith.constant 0 : index
    %79 = vector.load %arg24[%c18_95, %c0_96] : memref<34x272xf32, #tpu.memory_space<vmem>>, vector<1x272xf32>
    %c9_97 = arith.constant 9 : index
    %c0_98 = arith.constant 0 : index
    %80 = vector.load %arg31[%c9_97, %c0_98] : memref<34x272xf32, #tpu.memory_space<vmem>>, vector<1x272xf32>
    tpu.vector_store %arg31[%c9_97, %c0_98], %79 {strides = array<i32>} : memref<34x272xf32, #tpu.memory_space<vmem>>, vector<1x272xf32>,
    %c19_99 = arith.constant 19 : index
    %c0_100 = arith.constant 0 : index
    %81 = vector.load %arg24[%c19_99, %c0_100] : memref<34x272xf32, #tpu.memory_space<vmem>>, vector<1x272xf32>
    %c26 = arith.constant 26 : index
    %c0_101 = arith.constant 0 : index
    %82 = vector.load %arg31[%c26, %c0_101] : memref<34x272xf32, #tpu.memory_space<vmem>>, vector<1x272xf32>
    tpu.vector_store %arg31[%c26, %c0_101], %81 {strides = array<i32>} : memref<34x272xf32, #tpu.memory_space<vmem>>, vector<1x272xf32>,
    %c20_102 = arith.constant 20 : index
    %c0_103 = arith.constant 0 : index
    %83 = vector.load %arg24[%c20_102, %c0_103] : memref<34x272xf32, #tpu.memory_space<vmem>>, vector<1x272xf32>
    %c10_104 = arith.constant 10 : index
    %c0_105 = arith.constant 0 : index
    %84 = vector.load %arg31[%c10_104, %c0_105] : memref<34x272xf32, #tpu.memory_space<vmem>>, vector<1x272xf32>
    tpu.vector_store %arg31[%c10_104, %c0_105], %83 {strides = array<i32>} : memref<34x272xf32, #tpu.memory_space<vmem>>, vector<1x272xf32>,
    %c21_106 = arith.constant 21 : index
    %c0_107 = arith.constant 0 : index
    %85 = vector.load %arg24[%c21_106, %c0_107] : memref<34x272xf32, #tpu.memory_space<vmem>>, vector<1x272xf32>
    %c27 = arith.constant 27 : index
    %c0_108 = arith.constant 0 : index
    %86 = vector.load %arg31[%c27, %c0_108] : memref<34x272xf32, #tpu.memory_space<vmem>>, vector<1x272xf32>
    tpu.vector_store %arg31[%c27, %c0_108], %85 {strides = array<i32>} : memref<34x272xf32, #tpu.memory_space<vmem>>, vector<1x272xf32>,
    %c22_109 = arith.constant 22 : index
    %c0_110 = arith.constant 0 : index
    %87 = vector.load %arg24[%c22_109, %c0_110] : memref<34x272xf32, #tpu.memory_space<vmem>>, vector<1x272xf32>
    %c11_111 = arith.constant 11 : index
    %c0_112 = arith.constant 0 : index
    %88 = vector.load %arg31[%c11_111, %c0_112] : memref<34x272xf32, #tpu.memory_space<vmem>>, vector<1x272xf32>
    tpu.vector_store %arg31[%c11_111, %c0_112], %87 {strides = array<i32>} : memref<34x272xf32, #tpu.memory_space<vmem>>, vector<1x272xf32>,
    %c23_113 = arith.constant 23 : index
    %c0_114 = arith.constant 0 : index
    %89 = vector.load %arg24[%c23_113, %c0_114] : memref<34x272xf32, #tpu.memory_space<vmem>>, vector<1x272xf32>
    %c28 = arith.constant 28 : index
    %c0_115 = arith.constant 0 : index
    %90 = vector.load %arg31[%c28, %c0_115] : memref<34x272xf32, #tpu.memory_space<vmem>>, vector<1x272xf32>
    tpu.vector_store %arg31[%c28, %c0_115], %89 {strides = array<i32>} : memref<34x272xf32, #tpu.memory_space<vmem>>, vector<1x272xf32>,
    %c24_116 = arith.constant 24 : index
    %c0_117 = arith.constant 0 : index
    %91 = vector.load %arg24[%c24_116, %c0_117] : memref<34x272xf32, #tpu.memory_space<vmem>>, vector<1x272xf32>
    %c12_118 = arith.constant 12 : index
    %c0_119 = arith.constant 0 : index
    %92 = vector.load %arg31[%c12_118, %c0_119] : memref<34x272xf32, #tpu.memory_space<vmem>>, vector<1x272xf32>
    tpu.vector_store %arg31[%c12_118, %c0_119], %91 {strides = array<i32>} : memref<34x272xf32, #tpu.memory_space<vmem>>, vector<1x272xf32>,
    %c25_120 = arith.constant 25 : index
    %c0_121 = arith.constant 0 : index
    %93 = vector.load %arg24[%c25_120, %c0_121] : memref<34x272xf32, #tpu.memory_space<vmem>>, vector<1x272xf32>
    %c29 = arith.constant 29 : index
    %c0_122 = arith.constant 0 : index
    %94 = vector.load %arg31[%c29, %c0_122] : memref<34x272xf32, #tpu.memory_space<vmem>>, vector<1x272xf32>
    tpu.vector_store %arg31[%c29, %c0_122], %93 {strides = array<i32>} : memref<34x272xf32, #tpu.memory_space<vmem>>, vector<1x272xf32>,
    %c26_123 = arith.constant 26 : index
    %c0_124 = arith.constant 0 : index
    %95 = vector.load %arg24[%c26_123, %c0_124] : memref<34x272xf32, #tpu.memory_space<vmem>>, vector<1x272xf32>
    %c13_125 = arith.constant 13 : index
    %c0_126 = arith.constant 0 : index
    %96 = vector.load %arg31[%c13_125, %c0_126] : memref<34x272xf32, #tpu.memory_space<vmem>>, vector<1x272xf32>
    tpu.vector_store %arg31[%c13_125, %c0_126], %95 {strides = array<i32>} : memref<34x272xf32, #tpu.memory_space<vmem>>, vector<1x272xf32>,
    %c27_127 = arith.constant 27 : index
    %c0_128 = arith.constant 0 : index
    %97 = vector.load %arg24[%c27_127, %c0_128] : memref<34x272xf32, #tpu.memory_space<vmem>>, vector<1x272xf32>
    %c30 = arith.constant 30 : index
    %c0_129 = arith.constant 0 : index
    %98 = vector.load %arg31[%c30, %c0_129] : memref<34x272xf32, #tpu.memory_space<vmem>>, vector<1x272xf32>
    tpu.vector_store %arg31[%c30, %c0_129], %97 {strides = array<i32>} : memref<34x272xf32, #tpu.memory_space<vmem>>, vector<1x272xf32>,
    %c28_130 = arith.constant 28 : index
    %c0_131 = arith.constant 0 : index
    %99 = vector.load %arg24[%c28_130, %c0_131] : memref<34x272xf32, #tpu.memory_space<vmem>>, vector<1x272xf32>
    %c14_132 = arith.constant 14 : index
    %c0_133 = arith.constant 0 : index
    %100 = vector.load %arg31[%c14_132, %c0_133] : memref<34x272xf32, #tpu.memory_space<vmem>>, vector<1x272xf32>
    tpu.vector_store %arg31[%c14_132, %c0_133], %99 {strides = array<i32>} : memref<34x272xf32, #tpu.memory_space<vmem>>, vector<1x272xf32>,
    %c29_134 = arith.constant 29 : index
    %c0_135 = arith.constant 0 : index
    %101 = vector.load %arg24[%c29_134, %c0_135] : memref<34x272xf32, #tpu.memory_space<vmem>>, vector<1x272xf32>
    %c31 = arith.constant 31 : index
    %c0_136 = arith.constant 0 : index
    %102 = vector.load %arg31[%c31, %c0_136] : memref<34x272xf32, #tpu.memory_space<vmem>>, vector<1x272xf32>
    tpu.vector_store %arg31[%c31, %c0_136], %101 {strides = array<i32>} : memref<34x272xf32, #tpu.memory_space<vmem>>, vector<1x272xf32>,
    %c30_137 = arith.constant 30 : index
    %c0_138 = arith.constant 0 : index
    %103 = vector.load %arg24[%c30_137, %c0_138] : memref<34x272xf32, #tpu.memory_space<vmem>>, vector<1x272xf32>
    %c15_139 = arith.constant 15 : index
    %c0_140 = arith.constant 0 : index
    %104 = vector.load %arg31[%c15_139, %c0_140] : memref<34x272xf32, #tpu.memory_space<vmem>>, vector<1x272xf32>
    tpu.vector_store %arg31[%c15_139, %c0_140], %103 {strides = array<i32>} : memref<34x272xf32, #tpu.memory_space<vmem>>, vector<1x272xf32>,
    %c31_141 = arith.constant 31 : index
    %c0_142 = arith.constant 0 : index
    %105 = vector.load %arg24[%c31_141, %c0_142] : memref<34x272xf32, #tpu.memory_space<vmem>>, vector<1x272xf32>
    %c32 = arith.constant 32 : index
    %c0_143 = arith.constant 0 : index
    %106 = vector.load %arg31[%c32, %c0_143] : memref<34x272xf32, #tpu.memory_space<vmem>>, vector<1x272xf32>
    tpu.vector_store %arg31[%c32, %c0_143], %105 {strides = array<i32>} : memref<34x272xf32, #tpu.memory_space<vmem>>, vector<1x272xf32>,
    %c32_144 = arith.constant 32 : index
    %c0_145 = arith.constant 0 : index
    %107 = vector.load %arg24[%c32_144, %c0_145] : memref<34x272xf32, #tpu.memory_space<vmem>>, vector<1x272xf32>
    %c16_146 = arith.constant 16 : index
    %c0_147 = arith.constant 0 : index
    %108 = vector.load %arg31[%c16_146, %c0_147] : memref<34x272xf32, #tpu.memory_space<vmem>>, vector<1x272xf32>
    tpu.vector_store %arg31[%c16_146, %c0_147], %107 {strides = array<i32>} : memref<34x272xf32, #tpu.memory_space<vmem>>, vector<1x272xf32>,
    %c33 = arith.constant 33 : index
    %c0_148 = arith.constant 0 : index
    %109 = vector.load %arg24[%c33, %c0_148] : memref<34x272xf32, #tpu.memory_space<vmem>>, vector<1x272xf32>
    %c33_149 = arith.constant 33 : index
    %c0_150 = arith.constant 0 : index
    %110 = vector.load %arg31[%c33_149, %c0_150] : memref<34x272xf32, #tpu.memory_space<vmem>>, vector<1x272xf32>
    tpu.vector_store %arg31[%c33_149, %c0_150], %109 {strides = array<i32>} : memref<34x272xf32, #tpu.memory_space<vmem>>, vector<1x272xf32>,
    %c0_151 = arith.constant 0 : index
    %c0_152 = arith.constant 0 : index
    %111 = vector.load %arg31[%c0_151, %c0_152] : memref<34x272xf32, #tpu.memory_space<vmem>>, vector<16x272xf32>
    %112 = arith.truncf %111 : vector<16x272xf32> to vector<16x272xbf16>
    %c0_153 = arith.constant 0 : index
    %c0_154 = arith.constant 0 : index
    %c0_155 = arith.constant 0 : index
    %113 = vector.load %arg4[%c0_153, %c0_154, %c0_155] : memref<4x272x144xbf16, #tpu.memory_space<vmem>>, vector<1x272x144xbf16>
    %114 = vector.shape_cast %113 : vector<1x272x144xbf16> to vector<272x144xbf16>
    %cst_156 = arith.constant dense<0.000000e+00> : vector<16x144xf32>
    %115 = tpu.matmul %112, %114, %cst_156 {dimension_numbers = #tpu.dot_dimension_numbers<[1], [0], [0], [1], [0, 0, 1, 1], [], []>} : vector<16x272xbf16>, vector<272x144xbf16>, vector<16x144xf32> -> vector<16x144xf32>
    %c17_157 = arith.constant 17 : index
    %c0_158 = arith.constant 0 : index
    %116 = vector.load %arg31[%c17_157, %c0_158] : memref<34x272xf32, #tpu.memory_space<vmem>>, vector<16x272xf32>
    %117 = arith.truncf %116 : vector<16x272xf32> to vector<16x272xbf16>
    %c1_159 = arith.constant 1 : index
    %c0_160 = arith.constant 0 : index
    %c0_161 = arith.constant 0 : index
    %118 = vector.load %arg4[%c1_159, %c0_160, %c0_161] : memref<4x272x144xbf16, #tpu.memory_space<vmem>>, vector<1x272x144xbf16>
    %119 = vector.shape_cast %118 : vector<1x272x144xbf16> to vector<272x144xbf16>
    %cst_162 = arith.constant dense<0.000000e+00> : vector<16x144xf32>
    %120 = tpu.matmul %117, %119, %cst_162 {dimension_numbers = #tpu.dot_dimension_numbers<[1], [0], [0], [1], [0, 0, 1, 1], [], []>} : vector<16x272xbf16>, vector<272x144xbf16>, vector<16x144xf32> -> vector<16x144xf32>
    %121 = arith.addf %115, %120 : vector<16x144xf32>
    %c1_163 = arith.constant 1 : index
    %c0_164 = arith.constant 0 : index
    %122 = vector.load %arg31[%c1_163, %c0_164] : memref<34x272xf32, #tpu.memory_space<vmem>>, vector<16x272xf32>
    %123 = arith.truncf %122 : vector<16x272xf32> to vector<16x272xbf16>
    %c2_165 = arith.constant 2 : index
    %c0_166 = arith.constant 0 : index
    %c0_167 = arith.constant 0 : index
    %124 = vector.load %arg4[%c2_165, %c0_166, %c0_167] : memref<4x272x144xbf16, #tpu.memory_space<vmem>>, vector<1x272x144xbf16>
    %125 = vector.shape_cast %124 : vector<1x272x144xbf16> to vector<272x144xbf16>
    %cst_168 = arith.constant dense<0.000000e+00> : vector<16x144xf32>
    %126 = tpu.matmul %123, %125, %cst_168 {dimension_numbers = #tpu.dot_dimension_numbers<[1], [0], [0], [1], [0, 0, 1, 1], [], []>} : vector<16x272xbf16>, vector<272x144xbf16>, vector<16x144xf32> -> vector<16x144xf32>
    %127 = arith.addf %121, %126 : vector<16x144xf32>
    %c18_169 = arith.constant 18 : index
    %c0_170 = arith.constant 0 : index
    %128 = vector.load %arg31[%c18_169, %c0_170] : memref<34x272xf32, #tpu.memory_space<vmem>>, vector<16x272xf32>
    %129 = arith.truncf %128 : vector<16x272xf32> to vector<16x272xbf16>
    %c3_171 = arith.constant 3 : index
    %c0_172 = arith.constant 0 : index
    %c0_173 = arith.constant 0 : index
    %130 = vector.load %arg4[%c3_171, %c0_172, %c0_173] : memref<4x272x144xbf16, #tpu.memory_space<vmem>>, vector<1x272x144xbf16>
    %131 = vector.shape_cast %130 : vector<1x272x144xbf16> to vector<272x144xbf16>
    %cst_174 = arith.constant dense<0.000000e+00> : vector<16x144xf32>
    %132 = tpu.matmul %129, %131, %cst_174 {dimension_numbers = #tpu.dot_dimension_numbers<[1], [0], [0], [1], [0, 0, 1, 1], [], []>} : vector<16x272xbf16>, vector<272x144xbf16>, vector<16x144xf32> -> vector<16x144xf32>
    %133 = arith.addf %127, %132 : vector<16x144xf32>
    %c0_175 = arith.constant 0 : index
    %c0_176 = arith.constant 0 : index
    %134 = vector.load %arg5[%c0_175, %c0_176] : memref<1x144xf32, #tpu.memory_space<vmem>>, vector<1x144xf32>
    %135 = vector.broadcast %134 : vector<1x144xf32> to vector<16x144xf32>
    %136 = arith.addf %133, %135 : vector<16x144xf32>
    %cst_177 = arith.constant 0.000000e+00 : f32
    %137 = vector.broadcast %cst_177 : f32 to vector<16x144xf32>
    %138 = arith.cmpf oge, %136, %137 : vector<16x144xf32>
    %cst_178 = arith.constant 1.000000e-01 : f32
    %139 = vector.broadcast %cst_178 : f32 to vector<16x144xf32>
    %140 = arith.mulf %139, %136 : vector<16x144xf32>
    %141 = arith.select %138, %136, %140 : vector<16x144xi1>, vector<16x144xf32>
    %c1_179 = arith.constant 1 : index
    %c0_180 = arith.constant 0 : index
    %142 = vector.load %arg25[%c1_179, %c0_180] : memref<18x144xf32, #tpu.memory_space<vmem>>, vector<16x144xf32>
    tpu.vector_store %arg25[%c1_179, %c0_180], %141 {strides = array<i32>} : memref<18x144xf32, #tpu.memory_space<vmem>>, vector<16x144xf32>,
    %c0_181 = arith.constant 0 : index
    %c0_182 = arith.constant 0 : index
    %143 = vector.load %arg25[%c0_181, %c0_182] : memref<18x144xf32, #tpu.memory_space<vmem>>, vector<16x144xf32>
    %144 = arith.truncf %143 : vector<16x144xf32> to vector<16x144xbf16>
    %c0_183 = arith.constant 0 : index
    %c0_184 = arith.constant 0 : index
    %c0_185 = arith.constant 0 : index
    %145 = vector.load %arg6[%c0_183, %c0_184, %c0_185] : memref<3x144x288xbf16, #tpu.memory_space<vmem>>, vector<1x144x288xbf16>
    %146 = vector.shape_cast %145 : vector<1x144x288xbf16> to vector<144x288xbf16>
    %cst_186 = arith.constant dense<0.000000e+00> : vector<16x288xf32>
    %147 = tpu.matmul %144, %146, %cst_186 {dimension_numbers = #tpu.dot_dimension_numbers<[1], [0], [0], [1], [0, 0, 1, 1], [], []>} : vector<16x144xbf16>, vector<144x288xbf16>, vector<16x288xf32> -> vector<16x288xf32>
    %c1_187 = arith.constant 1 : index
    %c0_188 = arith.constant 0 : index
    %148 = vector.load %arg25[%c1_187, %c0_188] : memref<18x144xf32, #tpu.memory_space<vmem>>, vector<16x144xf32>
    %149 = arith.truncf %148 : vector<16x144xf32> to vector<16x144xbf16>
    %c1_189 = arith.constant 1 : index
    %c0_190 = arith.constant 0 : index
    %c0_191 = arith.constant 0 : index
    %150 = vector.load %arg6[%c1_189, %c0_190, %c0_191] : memref<3x144x288xbf16, #tpu.memory_space<vmem>>, vector<1x144x288xbf16>
    %151 = vector.shape_cast %150 : vector<1x144x288xbf16> to vector<144x288xbf16>
    %cst_192 = arith.constant dense<0.000000e+00> : vector<16x288xf32>
    %152 = tpu.matmul %149, %151, %cst_192 {dimension_numbers = #tpu.dot_dimension_numbers<[1], [0], [0], [1], [0, 0, 1, 1], [], []>} : vector<16x144xbf16>, vector<144x288xbf16>, vector<16x288xf32> -> vector<16x288xf32>
    %153 = arith.addf %147, %152 : vector<16x288xf32>
    %c2_193 = arith.constant 2 : index
    %c0_194 = arith.constant 0 : index
    %154 = vector.load %arg25[%c2_193, %c0_194] : memref<18x144xf32, #tpu.memory_space<vmem>>, vector<16x144xf32>
    %155 = arith.truncf %154 : vector<16x144xf32> to vector<16x144xbf16>
    %c2_195 = arith.constant 2 : index
    %c0_196 = arith.constant 0 : index
    %c0_197 = arith.constant 0 : index
    %156 = vector.load %arg6[%c2_195, %c0_196, %c0_197] : memref<3x144x288xbf16, #tpu.memory_space<vmem>>, vector<1x144x288xbf16>
    %157 = vector.shape_cast %156 : vector<1x144x288xbf16> to vector<144x288xbf16>
    %cst_198 = arith.constant dense<0.000000e+00> : vector<16x288xf32>
    %158 = tpu.matmul %155, %157, %cst_198 {dimension_numbers = #tpu.dot_dimension_numbers<[1], [0], [0], [1], [0, 0, 1, 1], [], []>} : vector<16x144xbf16>, vector<144x288xbf16>, vector<16x288xf32> -> vector<16x288xf32>
    %159 = arith.addf %153, %158 : vector<16x288xf32>
    %c0_199 = arith.constant 0 : index
    %c0_200 = arith.constant 0 : index
    %160 = vector.load %arg7[%c0_199, %c0_200] : memref<1x288xf32, #tpu.memory_space<vmem>>, vector<1x288xf32>
    %161 = vector.broadcast %160 : vector<1x288xf32> to vector<16x288xf32>
    %162 = arith.addf %159, %161 : vector<16x288xf32>
    %cst_201 = arith.constant 0.000000e+00 : f32
    %163 = vector.broadcast %cst_201 : f32 to vector<16x288xf32>
    %164 = arith.cmpf oge, %162, %163 : vector<16x288xf32>
    %cst_202 = arith.constant 1.000000e-01 : f32
    %165 = vector.broadcast %cst_202 : f32 to vector<16x288xf32>
    %166 = arith.mulf %165, %162 : vector<16x288xf32>
    %167 = arith.select %164, %162, %166 : vector<16x288xi1>, vector<16x288xf32>
    %c1_203 = arith.constant 1 : index
    %c0_204 = arith.constant 0 : index
    %168 = vector.load %arg26[%c1_203, %c0_204] : memref<18x288xf32, #tpu.memory_space<vmem>>, vector<16x288xf32>
    tpu.vector_store %arg26[%c1_203, %c0_204], %167 {strides = array<i32>} : memref<18x288xf32, #tpu.memory_space<vmem>>, vector<16x288xf32>,
    %c0_205 = arith.constant 0 : index
    %c0_206 = arith.constant 0 : index
    %169 = vector.load %arg26[%c0_205, %c0_206] : memref<18x288xf32, #tpu.memory_space<vmem>>, vector<1x288xf32>
    %c0_207 = arith.constant 0 : index
    %c0_208 = arith.constant 0 : index
    %170 = vector.load %arg32[%c0_207, %c0_208] : memref<18x288xf32, #tpu.memory_space<vmem>>, vector<1x288xf32>
    tpu.vector_store %arg32[%c0_207, %c0_208], %169 {strides = array<i32>} : memref<18x288xf32, #tpu.memory_space<vmem>>, vector<1x288xf32>,
    %c1_209 = arith.constant 1 : index
    %c0_210 = arith.constant 0 : index
    %171 = vector.load %arg26[%c1_209, %c0_210] : memref<18x288xf32, #tpu.memory_space<vmem>>, vector<1x288xf32>
    %c9_211 = arith.constant 9 : index
    %c0_212 = arith.constant 0 : index
    %172 = vector.load %arg32[%c9_211, %c0_212] : memref<18x288xf32, #tpu.memory_space<vmem>>, vector<1x288xf32>
    tpu.vector_store %arg32[%c9_211, %c0_212], %171 {strides = array<i32>} : memref<18x288xf32, #tpu.memory_space<vmem>>, vector<1x288xf32>,
    %c2_213 = arith.constant 2 : index
    %c0_214 = arith.constant 0 : index
    %173 = vector.load %arg26[%c2_213, %c0_214] : memref<18x288xf32, #tpu.memory_space<vmem>>, vector<1x288xf32>
    %c1_215 = arith.constant 1 : index
    %c0_216 = arith.constant 0 : index
    %174 = vector.load %arg32[%c1_215, %c0_216] : memref<18x288xf32, #tpu.memory_space<vmem>>, vector<1x288xf32>
    tpu.vector_store %arg32[%c1_215, %c0_216], %173 {strides = array<i32>} : memref<18x288xf32, #tpu.memory_space<vmem>>, vector<1x288xf32>,
    %c3_217 = arith.constant 3 : index
    %c0_218 = arith.constant 0 : index
    %175 = vector.load %arg26[%c3_217, %c0_218] : memref<18x288xf32, #tpu.memory_space<vmem>>, vector<1x288xf32>
    %c10_219 = arith.constant 10 : index
    %c0_220 = arith.constant 0 : index
    %176 = vector.load %arg32[%c10_219, %c0_220] : memref<18x288xf32, #tpu.memory_space<vmem>>, vector<1x288xf32>
    tpu.vector_store %arg32[%c10_219, %c0_220], %175 {strides = array<i32>} : memref<18x288xf32, #tpu.memory_space<vmem>>, vector<1x288xf32>,
    %c4_221 = arith.constant 4 : index
    %c0_222 = arith.constant 0 : index
    %177 = vector.load %arg26[%c4_221, %c0_222] : memref<18x288xf32, #tpu.memory_space<vmem>>, vector<1x288xf32>
    %c2_223 = arith.constant 2 : index
    %c0_224 = arith.constant 0 : index
    %178 = vector.load %arg32[%c2_223, %c0_224] : memref<18x288xf32, #tpu.memory_space<vmem>>, vector<1x288xf32>
    tpu.vector_store %arg32[%c2_223, %c0_224], %177 {strides = array<i32>} : memref<18x288xf32, #tpu.memory_space<vmem>>, vector<1x288xf32>,
    %c5_225 = arith.constant 5 : index
    %c0_226 = arith.constant 0 : index
    %179 = vector.load %arg26[%c5_225, %c0_226] : memref<18x288xf32, #tpu.memory_space<vmem>>, vector<1x288xf32>
    %c11_227 = arith.constant 11 : index
    %c0_228 = arith.constant 0 : index
    %180 = vector.load %arg32[%c11_227, %c0_228] : memref<18x288xf32, #tpu.memory_space<vmem>>, vector<1x288xf32>
    tpu.vector_store %arg32[%c11_227, %c0_228], %179 {strides = array<i32>} : memref<18x288xf32, #tpu.memory_space<vmem>>, vector<1x288xf32>,
    %c6_229 = arith.constant 6 : index
    %c0_230 = arith.constant 0 : index
    %181 = vector.load %arg26[%c6_229, %c0_230] : memref<18x288xf32, #tpu.memory_space<vmem>>, vector<1x288xf32>
    %c3_231 = arith.constant 3 : index
    %c0_232 = arith.constant 0 : index
    %182 = vector.load %arg32[%c3_231, %c0_232] : memref<18x288xf32, #tpu.memory_space<vmem>>, vector<1x288xf32>
    tpu.vector_store %arg32[%c3_231, %c0_232], %181 {strides = array<i32>} : memref<18x288xf32, #tpu.memory_space<vmem>>, vector<1x288xf32>,
    %c7_233 = arith.constant 7 : index
    %c0_234 = arith.constant 0 : index
    %183 = vector.load %arg26[%c7_233, %c0_234] : memref<18x288xf32, #tpu.memory_space<vmem>>, vector<1x288xf32>
    %c12_235 = arith.constant 12 : index
    %c0_236 = arith.constant 0 : index
    %184 = vector.load %arg32[%c12_235, %c0_236] : memref<18x288xf32, #tpu.memory_space<vmem>>, vector<1x288xf32>
    tpu.vector_store %arg32[%c12_235, %c0_236], %183 {strides = array<i32>} : memref<18x288xf32, #tpu.memory_space<vmem>>, vector<1x288xf32>,
    %c8_237 = arith.constant 8 : index
    %c0_238 = arith.constant 0 : index
    %185 = vector.load %arg26[%c8_237, %c0_238] : memref<18x288xf32, #tpu.memory_space<vmem>>, vector<1x288xf32>
    %c4_239 = arith.constant 4 : index
    %c0_240 = arith.constant 0 : index
    %186 = vector.load %arg32[%c4_239, %c0_240] : memref<18x288xf32, #tpu.memory_space<vmem>>, vector<1x288xf32>
    tpu.vector_store %arg32[%c4_239, %c0_240], %185 {strides = array<i32>} : memref<18x288xf32, #tpu.memory_space<vmem>>, vector<1x288xf32>,
    %c9_241 = arith.constant 9 : index
    %c0_242 = arith.constant 0 : index
    %187 = vector.load %arg26[%c9_241, %c0_242] : memref<18x288xf32, #tpu.memory_space<vmem>>, vector<1x288xf32>
    %c13_243 = arith.constant 13 : index
    %c0_244 = arith.constant 0 : index
    %188 = vector.load %arg32[%c13_243, %c0_244] : memref<18x288xf32, #tpu.memory_space<vmem>>, vector<1x288xf32>
    tpu.vector_store %arg32[%c13_243, %c0_244], %187 {strides = array<i32>} : memref<18x288xf32, #tpu.memory_space<vmem>>, vector<1x288xf32>,
    %c10_245 = arith.constant 10 : index
    %c0_246 = arith.constant 0 : index
    %189 = vector.load %arg26[%c10_245, %c0_246] : memref<18x288xf32, #tpu.memory_space<vmem>>, vector<1x288xf32>
    %c5_247 = arith.constant 5 : index
    %c0_248 = arith.constant 0 : index
    %190 = vector.load %arg32[%c5_247, %c0_248] : memref<18x288xf32, #tpu.memory_space<vmem>>, vector<1x288xf32>
    tpu.vector_store %arg32[%c5_247, %c0_248], %189 {strides = array<i32>} : memref<18x288xf32, #tpu.memory_space<vmem>>, vector<1x288xf32>,
    %c11_249 = arith.constant 11 : index
    %c0_250 = arith.constant 0 : index
    %191 = vector.load %arg26[%c11_249, %c0_250] : memref<18x288xf32, #tpu.memory_space<vmem>>, vector<1x288xf32>
    %c14_251 = arith.constant 14 : index
    %c0_252 = arith.constant 0 : index
    %192 = vector.load %arg32[%c14_251, %c0_252] : memref<18x288xf32, #tpu.memory_space<vmem>>, vector<1x288xf32>
    tpu.vector_store %arg32[%c14_251, %c0_252], %191 {strides = array<i32>} : memref<18x288xf32, #tpu.memory_space<vmem>>, vector<1x288xf32>,
    %c12_253 = arith.constant 12 : index
    %c0_254 = arith.constant 0 : index
    %193 = vector.load %arg26[%c12_253, %c0_254] : memref<18x288xf32, #tpu.memory_space<vmem>>, vector<1x288xf32>
    %c6_255 = arith.constant 6 : index
    %c0_256 = arith.constant 0 : index
    %194 = vector.load %arg32[%c6_255, %c0_256] : memref<18x288xf32, #tpu.memory_space<vmem>>, vector<1x288xf32>
    tpu.vector_store %arg32[%c6_255, %c0_256], %193 {strides = array<i32>} : memref<18x288xf32, #tpu.memory_space<vmem>>, vector<1x288xf32>,
    %c13_257 = arith.constant 13 : index
    %c0_258 = arith.constant 0 : index
    %195 = vector.load %arg26[%c13_257, %c0_258] : memref<18x288xf32, #tpu.memory_space<vmem>>, vector<1x288xf32>
    %c15_259 = arith.constant 15 : index
    %c0_260 = arith.constant 0 : index
    %196 = vector.load %arg32[%c15_259, %c0_260] : memref<18x288xf32, #tpu.memory_space<vmem>>, vector<1x288xf32>
    tpu.vector_store %arg32[%c15_259, %c0_260], %195 {strides = array<i32>} : memref<18x288xf32, #tpu.memory_space<vmem>>, vector<1x288xf32>,
    %c14_261 = arith.constant 14 : index
    %c0_262 = arith.constant 0 : index
    %197 = vector.load %arg26[%c14_261, %c0_262] : memref<18x288xf32, #tpu.memory_space<vmem>>, vector<1x288xf32>
    %c7_263 = arith.constant 7 : index
    %c0_264 = arith.constant 0 : index
    %198 = vector.load %arg32[%c7_263, %c0_264] : memref<18x288xf32, #tpu.memory_space<vmem>>, vector<1x288xf32>
    tpu.vector_store %arg32[%c7_263, %c0_264], %197 {strides = array<i32>} : memref<18x288xf32, #tpu.memory_space<vmem>>, vector<1x288xf32>,
    %c15_265 = arith.constant 15 : index
    %c0_266 = arith.constant 0 : index
    %199 = vector.load %arg26[%c15_265, %c0_266] : memref<18x288xf32, #tpu.memory_space<vmem>>, vector<1x288xf32>
    %c16_267 = arith.constant 16 : index
    %c0_268 = arith.constant 0 : index
    %200 = vector.load %arg32[%c16_267, %c0_268] : memref<18x288xf32, #tpu.memory_space<vmem>>, vector<1x288xf32>
    tpu.vector_store %arg32[%c16_267, %c0_268], %199 {strides = array<i32>} : memref<18x288xf32, #tpu.memory_space<vmem>>, vector<1x288xf32>,
    %c16_269 = arith.constant 16 : index
    %c0_270 = arith.constant 0 : index
    %201 = vector.load %arg26[%c16_269, %c0_270] : memref<18x288xf32, #tpu.memory_space<vmem>>, vector<1x288xf32>
    %c8_271 = arith.constant 8 : index
    %c0_272 = arith.constant 0 : index
    %202 = vector.load %arg32[%c8_271, %c0_272] : memref<18x288xf32, #tpu.memory_space<vmem>>, vector<1x288xf32>
    tpu.vector_store %arg32[%c8_271, %c0_272], %201 {strides = array<i32>} : memref<18x288xf32, #tpu.memory_space<vmem>>, vector<1x288xf32>,
    %c17_273 = arith.constant 17 : index
    %c0_274 = arith.constant 0 : index
    %203 = vector.load %arg26[%c17_273, %c0_274] : memref<18x288xf32, #tpu.memory_space<vmem>>, vector<1x288xf32>
    %c17_275 = arith.constant 17 : index
    %c0_276 = arith.constant 0 : index
    %204 = vector.load %arg32[%c17_275, %c0_276] : memref<18x288xf32, #tpu.memory_space<vmem>>, vector<1x288xf32>
    tpu.vector_store %arg32[%c17_275, %c0_276], %203 {strides = array<i32>} : memref<18x288xf32, #tpu.memory_space<vmem>>, vector<1x288xf32>,
    %c0_277 = arith.constant 0 : index
    %c0_278 = arith.constant 0 : index
    %205 = vector.load %arg32[%c0_277, %c0_278] : memref<18x288xf32, #tpu.memory_space<vmem>>, vector<8x288xf32>
    %206 = arith.truncf %205 : vector<8x288xf32> to vector<8x288xbf16>
    %c0_279 = arith.constant 0 : index
    %c0_280 = arith.constant 0 : index
    %c0_281 = arith.constant 0 : index
    %207 = vector.load %arg8[%c0_279, %c0_280, %c0_281] : memref<4x288x160xbf16, #tpu.memory_space<vmem>>, vector<1x288x160xbf16>
    %208 = vector.shape_cast %207 : vector<1x288x160xbf16> to vector<288x160xbf16>
    %cst_282 = arith.constant dense<0.000000e+00> : vector<8x160xf32>
    %209 = tpu.matmul %206, %208, %cst_282 {dimension_numbers = #tpu.dot_dimension_numbers<[1], [0], [0], [1], [0, 0, 1, 1], [], []>} : vector<8x288xbf16>, vector<288x160xbf16>, vector<8x160xf32> -> vector<8x160xf32>
    %c9_283 = arith.constant 9 : index
    %c0_284 = arith.constant 0 : index
    %210 = vector.load %arg32[%c9_283, %c0_284] : memref<18x288xf32, #tpu.memory_space<vmem>>, vector<8x288xf32>
    %211 = arith.truncf %210 : vector<8x288xf32> to vector<8x288xbf16>
    %c1_285 = arith.constant 1 : index
    %c0_286 = arith.constant 0 : index
    %c0_287 = arith.constant 0 : index
    %212 = vector.load %arg8[%c1_285, %c0_286, %c0_287] : memref<4x288x160xbf16, #tpu.memory_space<vmem>>, vector<1x288x160xbf16>
    %213 = vector.shape_cast %212 : vector<1x288x160xbf16> to vector<288x160xbf16>
    %cst_288 = arith.constant dense<0.000000e+00> : vector<8x160xf32>
    %214 = tpu.matmul %211, %213, %cst_288 {dimension_numbers = #tpu.dot_dimension_numbers<[1], [0], [0], [1], [0, 0, 1, 1], [], []>} : vector<8x288xbf16>, vector<288x160xbf16>, vector<8x160xf32> -> vector<8x160xf32>
    %215 = arith.addf %209, %214 : vector<8x160xf32>
    %c1_289 = arith.constant 1 : index
    %c0_290 = arith.constant 0 : index
    %216 = vector.load %arg32[%c1_289, %c0_290] : memref<18x288xf32, #tpu.memory_space<vmem>>, vector<8x288xf32>
    %217 = arith.truncf %216 : vector<8x288xf32> to vector<8x288xbf16>
    %c2_291 = arith.constant 2 : index
    %c0_292 = arith.constant 0 : index
    %c0_293 = arith.constant 0 : index
    %218 = vector.load %arg8[%c2_291, %c0_292, %c0_293] : memref<4x288x160xbf16, #tpu.memory_space<vmem>>, vector<1x288x160xbf16>
    %219 = vector.shape_cast %218 : vector<1x288x160xbf16> to vector<288x160xbf16>
    %cst_294 = arith.constant dense<0.000000e+00> : vector<8x160xf32>
    %220 = tpu.matmul %217, %219, %cst_294 {dimension_numbers = #tpu.dot_dimension_numbers<[1], [0], [0], [1], [0, 0, 1, 1], [], []>} : vector<8x288xbf16>, vector<288x160xbf16>, vector<8x160xf32> -> vector<8x160xf32>
    %221 = arith.addf %215, %220 : vector<8x160xf32>
    %c10_295 = arith.constant 10 : index
    %c0_296 = arith.constant 0 : index
    %222 = vector.load %arg32[%c10_295, %c0_296] : memref<18x288xf32, #tpu.memory_space<vmem>>, vector<8x288xf32>
    %223 = arith.truncf %222 : vector<8x288xf32> to vector<8x288xbf16>
    %c3_297 = arith.constant 3 : index
    %c0_298 = arith.constant 0 : index
    %c0_299 = arith.constant 0 : index
    %224 = vector.load %arg8[%c3_297, %c0_298, %c0_299] : memref<4x288x160xbf16, #tpu.memory_space<vmem>>, vector<1x288x160xbf16>
    %225 = vector.shape_cast %224 : vector<1x288x160xbf16> to vector<288x160xbf16>
    %cst_300 = arith.constant dense<0.000000e+00> : vector<8x160xf32>
    %226 = tpu.matmul %223, %225, %cst_300 {dimension_numbers = #tpu.dot_dimension_numbers<[1], [0], [0], [1], [0, 0, 1, 1], [], []>} : vector<8x288xbf16>, vector<288x160xbf16>, vector<8x160xf32> -> vector<8x160xf32>
    %227 = arith.addf %221, %226 : vector<8x160xf32>
    %c0_301 = arith.constant 0 : index
    %c0_302 = arith.constant 0 : index
    %228 = vector.load %arg9[%c0_301, %c0_302] : memref<1x160xf32, #tpu.memory_space<vmem>>, vector<1x160xf32>
    %229 = vector.broadcast %228 : vector<1x160xf32> to vector<8x160xf32>
    %230 = arith.addf %227, %229 : vector<8x160xf32>
    %cst_303 = arith.constant 0.000000e+00 : f32
    %231 = vector.broadcast %cst_303 : f32 to vector<8x160xf32>
    %232 = arith.cmpf oge, %230, %231 : vector<8x160xf32>
    %cst_304 = arith.constant 1.000000e-01 : f32
    %233 = vector.broadcast %cst_304 : f32 to vector<8x160xf32>
    %234 = arith.mulf %233, %230 : vector<8x160xf32>
    %235 = arith.select %232, %230, %234 : vector<8x160xi1>, vector<8x160xf32>
    %c1_305 = arith.constant 1 : index
    %c0_306 = arith.constant 0 : index
    %236 = vector.load %arg27[%c1_305, %c0_306] : memref<10x160xf32, #tpu.memory_space<vmem>>, vector<8x160xf32>
    tpu.vector_store %arg27[%c1_305, %c0_306], %235 {strides = array<i32>} : memref<10x160xf32, #tpu.memory_space<vmem>>, vector<8x160xf32>,
    %c0_307 = arith.constant 0 : index
    %c0_308 = arith.constant 0 : index
    %237 = vector.load %arg27[%c0_307, %c0_308] : memref<10x160xf32, #tpu.memory_space<vmem>>, vector<8x160xf32>
    %238 = arith.truncf %237 : vector<8x160xf32> to vector<8x160xbf16>
    %c0_309 = arith.constant 0 : index
    %c0_310 = arith.constant 0 : index
    %c0_311 = arith.constant 0 : index
    %239 = vector.load %arg10[%c0_309, %c0_310, %c0_311] : memref<3x160x320xbf16, #tpu.memory_space<vmem>>, vector<1x160x320xbf16>
    %240 = vector.shape_cast %239 : vector<1x160x320xbf16> to vector<160x320xbf16>
    %cst_312 = arith.constant dense<0.000000e+00> : vector<8x320xf32>
    %241 = tpu.matmul %238, %240, %cst_312 {dimension_numbers = #tpu.dot_dimension_numbers<[1], [0], [0], [1], [0, 0, 1, 1], [], []>} : vector<8x160xbf16>, vector<160x320xbf16>, vector<8x320xf32> -> vector<8x320xf32>
    %c1_313 = arith.constant 1 : index
    %c0_314 = arith.constant 0 : index
    %242 = vector.load %arg27[%c1_313, %c0_314] : memref<10x160xf32, #tpu.memory_space<vmem>>, vector<8x160xf32>
    %243 = arith.truncf %242 : vector<8x160xf32> to vector<8x160xbf16>
    %c1_315 = arith.constant 1 : index
    %c0_316 = arith.constant 0 : index
    %c0_317 = arith.constant 0 : index
    %244 = vector.load %arg10[%c1_315, %c0_316, %c0_317] : memref<3x160x320xbf16, #tpu.memory_space<vmem>>, vector<1x160x320xbf16>
    %245 = vector.shape_cast %244 : vector<1x160x320xbf16> to vector<160x320xbf16>
    %cst_318 = arith.constant dense<0.000000e+00> : vector<8x320xf32>
    %246 = tpu.matmul %243, %245, %cst_318 {dimension_numbers = #tpu.dot_dimension_numbers<[1], [0], [0], [1], [0, 0, 1, 1], [], []>} : vector<8x160xbf16>, vector<160x320xbf16>, vector<8x320xf32> -> vector<8x320xf32>
    %247 = arith.addf %241, %246 : vector<8x320xf32>
    %c2_319 = arith.constant 2 : index
    %c0_320 = arith.constant 0 : index
    %248 = vector.load %arg27[%c2_319, %c0_320] : memref<10x160xf32, #tpu.memory_space<vmem>>, vector<8x160xf32>
    %249 = arith.truncf %248 : vector<8x160xf32> to vector<8x160xbf16>
    %c2_321 = arith.constant 2 : index
    %c0_322 = arith.constant 0 : index
    %c0_323 = arith.constant 0 : index
    %250 = vector.load %arg10[%c2_321, %c0_322, %c0_323] : memref<3x160x320xbf16, #tpu.memory_space<vmem>>, vector<1x160x320xbf16>
    %251 = vector.shape_cast %250 : vector<1x160x320xbf16> to vector<160x320xbf16>
    %cst_324 = arith.constant dense<0.000000e+00> : vector<8x320xf32>
    %252 = tpu.matmul %249, %251, %cst_324 {dimension_numbers = #tpu.dot_dimension_numbers<[1], [0], [0], [1], [0, 0, 1, 1], [], []>} : vector<8x160xbf16>, vector<160x320xbf16>, vector<8x320xf32> -> vector<8x320xf32>
    %253 = arith.addf %247, %252 : vector<8x320xf32>
    %c0_325 = arith.constant 0 : index
    %c0_326 = arith.constant 0 : index
    %254 = vector.load %arg11[%c0_325, %c0_326] : memref<1x320xf32, #tpu.memory_space<vmem>>, vector<1x320xf32>
    %255 = vector.broadcast %254 : vector<1x320xf32> to vector<8x320xf32>
    %256 = arith.addf %253, %255 : vector<8x320xf32>
    %cst_327 = arith.constant 0.000000e+00 : f32
    %257 = vector.broadcast %cst_327 : f32 to vector<8x320xf32>
    %258 = arith.cmpf oge, %256, %257 : vector<8x320xf32>
    %cst_328 = arith.constant 1.000000e-01 : f32
    %259 = vector.broadcast %cst_328 : f32 to vector<8x320xf32>
    %260 = arith.mulf %259, %256 : vector<8x320xf32>
    %261 = arith.select %258, %256, %260 : vector<8x320xi1>, vector<8x320xf32>
    %c1_329 = arith.constant 1 : index
    %c0_330 = arith.constant 0 : index
    %262 = vector.load %arg28[%c1_329, %c0_330] : memref<10x320xf32, #tpu.memory_space<vmem>>, vector<8x320xf32>
    tpu.vector_store %arg28[%c1_329, %c0_330], %261 {strides = array<i32>} : memref<10x320xf32, #tpu.memory_space<vmem>>, vector<8x320xf32>,
    %c0_331 = arith.constant 0 : index
    %c0_332 = arith.constant 0 : index
    %263 = vector.load %arg28[%c0_331, %c0_332] : memref<10x320xf32, #tpu.memory_space<vmem>>, vector<1x320xf32>
    %c0_333 = arith.constant 0 : index
    %c0_334 = arith.constant 0 : index
    %264 = vector.load %arg33[%c0_333, %c0_334] : memref<10x320xf32, #tpu.memory_space<vmem>>, vector<1x320xf32>
    tpu.vector_store %arg33[%c0_333, %c0_334], %263 {strides = array<i32>} : memref<10x320xf32, #tpu.memory_space<vmem>>, vector<1x320xf32>,
    %c1_335 = arith.constant 1 : index
    %c0_336 = arith.constant 0 : index
    %265 = vector.load %arg28[%c1_335, %c0_336] : memref<10x320xf32, #tpu.memory_space<vmem>>, vector<1x320xf32>
    %c5_337 = arith.constant 5 : index
    %c0_338 = arith.constant 0 : index
    %266 = vector.load %arg33[%c5_337, %c0_338] : memref<10x320xf32, #tpu.memory_space<vmem>>, vector<1x320xf32>
    tpu.vector_store %arg33[%c5_337, %c0_338], %265 {strides = array<i32>} : memref<10x320xf32, #tpu.memory_space<vmem>>, vector<1x320xf32>,
    %c2_339 = arith.constant 2 : index
    %c0_340 = arith.constant 0 : index
    %267 = vector.load %arg28[%c2_339, %c0_340] : memref<10x320xf32, #tpu.memory_space<vmem>>, vector<1x320xf32>
    %c1_341 = arith.constant 1 : index
    %c0_342 = arith.constant 0 : index
    %268 = vector.load %arg33[%c1_341, %c0_342] : memref<10x320xf32, #tpu.memory_space<vmem>>, vector<1x320xf32>
    tpu.vector_store %arg33[%c1_341, %c0_342], %267 {strides = array<i32>} : memref<10x320xf32, #tpu.memory_space<vmem>>, vector<1x320xf32>,
    %c3_343 = arith.constant 3 : index
    %c0_344 = arith.constant 0 : index
    %269 = vector.load %arg28[%c3_343, %c0_344] : memref<10x320xf32, #tpu.memory_space<vmem>>, vector<1x320xf32>
    %c6_345 = arith.constant 6 : index
    %c0_346 = arith.constant 0 : index
    %270 = vector.load %arg33[%c6_345, %c0_346] : memref<10x320xf32, #tpu.memory_space<vmem>>, vector<1x320xf32>
    tpu.vector_store %arg33[%c6_345, %c0_346], %269 {strides = array<i32>} : memref<10x320xf32, #tpu.memory_space<vmem>>, vector<1x320xf32>,
    %c4_347 = arith.constant 4 : index
    %c0_348 = arith.constant 0 : index
    %271 = vector.load %arg28[%c4_347, %c0_348] : memref<10x320xf32, #tpu.memory_space<vmem>>, vector<1x320xf32>
    %c2_349 = arith.constant 2 : index
    %c0_350 = arith.constant 0 : index
    %272 = vector.load %arg33[%c2_349, %c0_350] : memref<10x320xf32, #tpu.memory_space<vmem>>, vector<1x320xf32>
    tpu.vector_store %arg33[%c2_349, %c0_350], %271 {strides = array<i32>} : memref<10x320xf32, #tpu.memory_space<vmem>>, vector<1x320xf32>,
    %c5_351 = arith.constant 5 : index
    %c0_352 = arith.constant 0 : index
    %273 = vector.load %arg28[%c5_351, %c0_352] : memref<10x320xf32, #tpu.memory_space<vmem>>, vector<1x320xf32>
    %c7_353 = arith.constant 7 : index
    %c0_354 = arith.constant 0 : index
    %274 = vector.load %arg33[%c7_353, %c0_354] : memref<10x320xf32, #tpu.memory_space<vmem>>, vector<1x320xf32>
    tpu.vector_store %arg33[%c7_353, %c0_354], %273 {strides = array<i32>} : memref<10x320xf32, #tpu.memory_space<vmem>>, vector<1x320xf32>,
    %c6_355 = arith.constant 6 : index
    %c0_356 = arith.constant 0 : index
    %275 = vector.load %arg28[%c6_355, %c0_356] : memref<10x320xf32, #tpu.memory_space<vmem>>, vector<1x320xf32>
    %c3_357 = arith.constant 3 : index
    %c0_358 = arith.constant 0 : index
    %276 = vector.load %arg33[%c3_357, %c0_358] : memref<10x320xf32, #tpu.memory_space<vmem>>, vector<1x320xf32>
    tpu.vector_store %arg33[%c3_357, %c0_358], %275 {strides = array<i32>} : memref<10x320xf32, #tpu.memory_space<vmem>>, vector<1x320xf32>,
    %c7_359 = arith.constant 7 : index
    %c0_360 = arith.constant 0 : index
    %277 = vector.load %arg28[%c7_359, %c0_360] : memref<10x320xf32, #tpu.memory_space<vmem>>, vector<1x320xf32>
    %c8_361 = arith.constant 8 : index
    %c0_362 = arith.constant 0 : index
    %278 = vector.load %arg33[%c8_361, %c0_362] : memref<10x320xf32, #tpu.memory_space<vmem>>, vector<1x320xf32>
    tpu.vector_store %arg33[%c8_361, %c0_362], %277 {strides = array<i32>} : memref<10x320xf32, #tpu.memory_space<vmem>>, vector<1x320xf32>,
    %c8_363 = arith.constant 8 : index
    %c0_364 = arith.constant 0 : index
    %279 = vector.load %arg28[%c8_363, %c0_364] : memref<10x320xf32, #tpu.memory_space<vmem>>, vector<1x320xf32>
    %c4_365 = arith.constant 4 : index
    %c0_366 = arith.constant 0 : index
    %280 = vector.load %arg33[%c4_365, %c0_366] : memref<10x320xf32, #tpu.memory_space<vmem>>, vector<1x320xf32>
    tpu.vector_store %arg33[%c4_365, %c0_366], %279 {strides = array<i32>} : memref<10x320xf32, #tpu.memory_space<vmem>>, vector<1x320xf32>,
    %c9_367 = arith.constant 9 : index
    %c0_368 = arith.constant 0 : index
    %281 = vector.load %arg28[%c9_367, %c0_368] : memref<10x320xf32, #tpu.memory_space<vmem>>, vector<1x320xf32>
    %c9_369 = arith.constant 9 : index
    %c0_370 = arith.constant 0 : index
    %282 = vector.load %arg33[%c9_369, %c0_370] : memref<10x320xf32, #tpu.memory_space<vmem>>, vector<1x320xf32>
    tpu.vector_store %arg33[%c9_369, %c0_370], %281 {strides = array<i32>} : memref<10x320xf32, #tpu.memory_space<vmem>>, vector<1x320xf32>,
    %c0_371 = arith.constant 0 : index
    %c0_372 = arith.constant 0 : index
    %283 = vector.load %arg33[%c0_371, %c0_372] : memref<10x320xf32, #tpu.memory_space<vmem>>, vector<4x320xf32>
    %284 = arith.truncf %283 : vector<4x320xf32> to vector<4x320xbf16>
    %c0_373 = arith.constant 0 : index
    %c0_374 = arith.constant 0 : index
    %c0_375 = arith.constant 0 : index
    %285 = vector.load %arg12[%c0_373, %c0_374, %c0_375] : memref<4x320x192xbf16, #tpu.memory_space<vmem>>, vector<1x320x192xbf16>
    %286 = vector.shape_cast %285 : vector<1x320x192xbf16> to vector<320x192xbf16>
    %cst_376 = arith.constant dense<0.000000e+00> : vector<4x192xf32>
    %287 = tpu.matmul %284, %286, %cst_376 {dimension_numbers = #tpu.dot_dimension_numbers<[1], [0], [0], [1], [0, 0, 1, 1], [], []>} : vector<4x320xbf16>, vector<320x192xbf16>, vector<4x192xf32> -> vector<4x192xf32>
    %c5_377 = arith.constant 5 : index
    %c0_378 = arith.constant 0 : index
    %288 = vector.load %arg33[%c5_377, %c0_378] : memref<10x320xf32, #tpu.memory_space<vmem>>, vector<4x320xf32>
    %289 = arith.truncf %288 : vector<4x320xf32> to vector<4x320xbf16>
    %c1_379 = arith.constant 1 : index
    %c0_380 = arith.constant 0 : index
    %c0_381 = arith.constant 0 : index
    %290 = vector.load %arg12[%c1_379, %c0_380, %c0_381] : memref<4x320x192xbf16, #tpu.memory_space<vmem>>, vector<1x320x192xbf16>
    %291 = vector.shape_cast %290 : vector<1x320x192xbf16> to vector<320x192xbf16>
    %cst_382 = arith.constant dense<0.000000e+00> : vector<4x192xf32>
    %292 = tpu.matmul %289, %291, %cst_382 {dimension_numbers = #tpu.dot_dimension_numbers<[1], [0], [0], [1], [0, 0, 1, 1], [], []>} : vector<4x320xbf16>, vector<320x192xbf16>, vector<4x192xf32> -> vector<4x192xf32>
    %293 = arith.addf %287, %292 : vector<4x192xf32>
    %c1_383 = arith.constant 1 : index
    %c0_384 = arith.constant 0 : index
    %294 = vector.load %arg33[%c1_383, %c0_384] : memref<10x320xf32, #tpu.memory_space<vmem>>, vector<4x320xf32>
    %295 = arith.truncf %294 : vector<4x320xf32> to vector<4x320xbf16>
    %c2_385 = arith.constant 2 : index
    %c0_386 = arith.constant 0 : index
    %c0_387 = arith.constant 0 : index
    %296 = vector.load %arg12[%c2_385, %c0_386, %c0_387] : memref<4x320x192xbf16, #tpu.memory_space<vmem>>, vector<1x320x192xbf16>
    %297 = vector.shape_cast %296 : vector<1x320x192xbf16> to vector<320x192xbf16>
    %cst_388 = arith.constant dense<0.000000e+00> : vector<4x192xf32>
    %298 = tpu.matmul %295, %297, %cst_388 {dimension_numbers = #tpu.dot_dimension_numbers<[1], [0], [0], [1], [0, 0, 1, 1], [], []>} : vector<4x320xbf16>, vector<320x192xbf16>, vector<4x192xf32> -> vector<4x192xf32>
    %299 = arith.addf %293, %298 : vector<4x192xf32>
    %c6_389 = arith.constant 6 : index
    %c0_390 = arith.constant 0 : index
    %300 = vector.load %arg33[%c6_389, %c0_390] : memref<10x320xf32, #tpu.memory_space<vmem>>, vector<4x320xf32>
    %301 = arith.truncf %300 : vector<4x320xf32> to vector<4x320xbf16>
    %c3_391 = arith.constant 3 : index
    %c0_392 = arith.constant 0 : index
    %c0_393 = arith.constant 0 : index
    %302 = vector.load %arg12[%c3_391, %c0_392, %c0_393] : memref<4x320x192xbf16, #tpu.memory_space<vmem>>, vector<1x320x192xbf16>
    %303 = vector.shape_cast %302 : vector<1x320x192xbf16> to vector<320x192xbf16>
    %cst_394 = arith.constant dense<0.000000e+00> : vector<4x192xf32>
    %304 = tpu.matmul %301, %303, %cst_394 {dimension_numbers = #tpu.dot_dimension_numbers<[1], [0], [0], [1], [0, 0, 1, 1], [], []>} : vector<4x320xbf16>, vector<320x192xbf16>, vector<4x192xf32> -> vector<4x192xf32>
    %305 = arith.addf %299, %304 : vector<4x192xf32>
    %c0_395 = arith.constant 0 : index
    %c0_396 = arith.constant 0 : index
    %306 = vector.load %arg13[%c0_395, %c0_396] : memref<1x192xf32, #tpu.memory_space<vmem>>, vector<1x192xf32>
    %307 = vector.broadcast %306 : vector<1x192xf32> to vector<4x192xf32>
    %308 = arith.addf %305, %307 : vector<4x192xf32>
    %cst_397 = arith.constant 0.000000e+00 : f32
    %309 = vector.broadcast %cst_397 : f32 to vector<4x192xf32>
    %310 = arith.cmpf oge, %308, %309 : vector<4x192xf32>
    %cst_398 = arith.constant 1.000000e-01 : f32
    %311 = vector.broadcast %cst_398 : f32 to vector<4x192xf32>
    %312 = arith.mulf %311, %308 : vector<4x192xf32>
    %313 = arith.select %310, %308, %312 : vector<4x192xi1>, vector<4x192xf32>
    %c1_399 = arith.constant 1 : index
    %c0_400 = arith.constant 0 : index
    %314 = vector.load %arg29[%c1_399, %c0_400] : memref<6x192xf32, #tpu.memory_space<vmem>>, vector<4x192xf32>
    tpu.vector_store %arg29[%c1_399, %c0_400], %313 {strides = array<i32>} : memref<6x192xf32, #tpu.memory_space<vmem>>, vector<4x192xf32>,
    %c0_401 = arith.constant 0 : index
    %c0_402 = arith.constant 0 : index
    %315 = vector.load %arg29[%c0_401, %c0_402] : memref<6x192xf32, #tpu.memory_space<vmem>>, vector<4x192xf32>
    %316 = arith.truncf %315 : vector<4x192xf32> to vector<4x192xbf16>
    %c0_403 = arith.constant 0 : index
    %c0_404 = arith.constant 0 : index
    %c0_405 = arith.constant 0 : index
    %317 = vector.load %arg14[%c0_403, %c0_404, %c0_405] : memref<3x192x256xbf16, #tpu.memory_space<vmem>>, vector<1x192x256xbf16>
    %318 = vector.shape_cast %317 : vector<1x192x256xbf16> to vector<192x256xbf16>
    %cst_406 = arith.constant dense<0.000000e+00> : vector<4x256xf32>
    %319 = tpu.matmul %316, %318, %cst_406 {dimension_numbers = #tpu.dot_dimension_numbers<[1], [0], [0], [1], [0, 0, 1, 1], [], []>} : vector<4x192xbf16>, vector<192x256xbf16>, vector<4x256xf32> -> vector<4x256xf32>
    %c1_407 = arith.constant 1 : index
    %c0_408 = arith.constant 0 : index
    %320 = vector.load %arg29[%c1_407, %c0_408] : memref<6x192xf32, #tpu.memory_space<vmem>>, vector<4x192xf32>
    %321 = arith.truncf %320 : vector<4x192xf32> to vector<4x192xbf16>
    %c1_409 = arith.constant 1 : index
    %c0_410 = arith.constant 0 : index
    %c0_411 = arith.constant 0 : index
    %322 = vector.load %arg14[%c1_409, %c0_410, %c0_411] : memref<3x192x256xbf16, #tpu.memory_space<vmem>>, vector<1x192x256xbf16>
    %323 = vector.shape_cast %322 : vector<1x192x256xbf16> to vector<192x256xbf16>
    %cst_412 = arith.constant dense<0.000000e+00> : vector<4x256xf32>
    %324 = tpu.matmul %321, %323, %cst_412 {dimension_numbers = #tpu.dot_dimension_numbers<[1], [0], [0], [1], [0, 0, 1, 1], [], []>} : vector<4x192xbf16>, vector<192x256xbf16>, vector<4x256xf32> -> vector<4x256xf32>
    %325 = arith.addf %319, %324 : vector<4x256xf32>
    %c2_413 = arith.constant 2 : index
    %c0_414 = arith.constant 0 : index
    %326 = vector.load %arg29[%c2_413, %c0_414] : memref<6x192xf32, #tpu.memory_space<vmem>>, vector<4x192xf32>
    %327 = arith.truncf %326 : vector<4x192xf32> to vector<4x192xbf16>
    %c2_415 = arith.constant 2 : index
    %c0_416 = arith.constant 0 : index
    %c0_417 = arith.constant 0 : index
    %328 = vector.load %arg14[%c2_415, %c0_416, %c0_417] : memref<3x192x256xbf16, #tpu.memory_space<vmem>>, vector<1x192x256xbf16>
    %329 = vector.shape_cast %328 : vector<1x192x256xbf16> to vector<192x256xbf16>
    %cst_418 = arith.constant dense<0.000000e+00> : vector<4x256xf32>
    %330 = tpu.matmul %327, %329, %cst_418 {dimension_numbers = #tpu.dot_dimension_numbers<[1], [0], [0], [1], [0, 0, 1, 1], [], []>} : vector<4x192xbf16>, vector<192x256xbf16>, vector<4x256xf32> -> vector<4x256xf32>
    %331 = arith.addf %325, %330 : vector<4x256xf32>
    %c0_419 = arith.constant 0 : index
    %c0_420 = arith.constant 0 : index
    %332 = vector.load %arg15[%c0_419, %c0_420] : memref<1x256xf32, #tpu.memory_space<vmem>>, vector<1x256xf32>
    %333 = vector.broadcast %332 : vector<1x256xf32> to vector<4x256xf32>
    %334 = arith.addf %331, %333 : vector<4x256xf32>
    %cst_421 = arith.constant 0.000000e+00 : f32
    %335 = vector.broadcast %cst_421 : f32 to vector<4x256xf32>
    %336 = arith.cmpf oge, %334, %335 : vector<4x256xf32>
    %cst_422 = arith.constant 1.000000e-01 : f32
    %337 = vector.broadcast %cst_422 : f32 to vector<4x256xf32>
    %338 = arith.mulf %337, %334 : vector<4x256xf32>
    %339 = arith.select %336, %334, %338 : vector<4x256xi1>, vector<4x256xf32>
    %c0_423 = arith.constant 0 : index
    %c0_424 = arith.constant 0 : index
    %340 = vector.load %arg30[%c0_423, %c0_424] : memref<4x256xf32, #tpu.memory_space<vmem>>, vector<4x256xf32>
    tpu.vector_store %arg30[%c0_423, %c0_424], %339 {strides = array<i32>} : memref<4x256xf32, #tpu.memory_space<vmem>>, vector<4x256xf32>,
    %c0_425 = arith.constant 0 : index
    %c0_426 = arith.constant 0 : index
    %341 = vector.load %arg30[%c0_425, %c0_426] : memref<4x256xf32, #tpu.memory_space<vmem>>, vector<1x256xf32>
    %342 = arith.truncf %341 : vector<1x256xf32> to vector<1x256xbf16>
    %c0_427 = arith.constant 0 : index
    %c0_428 = arith.constant 0 : index
    %c0_429 = arith.constant 0 : index
    %343 = vector.load %arg16[%c0_427, %c0_428, %c0_429] : memref<4x256x64xbf16, #tpu.memory_space<vmem>>, vector<1x256x64xbf16>
    %344 = vector.shape_cast %343 : vector<1x256x64xbf16> to vector<256x64xbf16>
    %cst_430 = arith.constant dense<0.000000e+00> : vector<1x64xf32>
    %345 = tpu.matmul %342, %344, %cst_430 {dimension_numbers = #tpu.dot_dimension_numbers<[1], [0], [0], [1], [0, 0, 1, 1], [], []>} : vector<1x256xbf16>, vector<256x64xbf16>, vector<1x64xf32> -> vector<1x64xf32>
    %c1_431 = arith.constant 1 : index
    %c0_432 = arith.constant 0 : index
    %346 = vector.load %arg30[%c1_431, %c0_432] : memref<4x256xf32, #tpu.memory_space<vmem>>, vector<1x256xf32>
    %347 = arith.truncf %346 : vector<1x256xf32> to vector<1x256xbf16>
    %c1_433 = arith.constant 1 : index
    %c0_434 = arith.constant 0 : index
    %c0_435 = arith.constant 0 : index
    %348 = vector.load %arg16[%c1_433, %c0_434, %c0_435] : memref<4x256x64xbf16, #tpu.memory_space<vmem>>, vector<1x256x64xbf16>
    %349 = vector.shape_cast %348 : vector<1x256x64xbf16> to vector<256x64xbf16>
    %cst_436 = arith.constant dense<0.000000e+00> : vector<1x64xf32>
    %350 = tpu.matmul %347, %349, %cst_436 {dimension_numbers = #tpu.dot_dimension_numbers<[1], [0], [0], [1], [0, 0, 1, 1], [], []>} : vector<1x256xbf16>, vector<256x64xbf16>, vector<1x64xf32> -> vector<1x64xf32>
    %351 = arith.addf %345, %350 : vector<1x64xf32>
    %c2_437 = arith.constant 2 : index
    %c0_438 = arith.constant 0 : index
    %352 = vector.load %arg30[%c2_437, %c0_438] : memref<4x256xf32, #tpu.memory_space<vmem>>, vector<1x256xf32>
    %353 = arith.truncf %352 : vector<1x256xf32> to vector<1x256xbf16>
    %c2_439 = arith.constant 2 : index
    %c0_440 = arith.constant 0 : index
    %c0_441 = arith.constant 0 : index
    %354 = vector.load %arg16[%c2_439, %c0_440, %c0_441] : memref<4x256x64xbf16, #tpu.memory_space<vmem>>, vector<1x256x64xbf16>
    %355 = vector.shape_cast %354 : vector<1x256x64xbf16> to vector<256x64xbf16>
    %cst_442 = arith.constant dense<0.000000e+00> : vector<1x64xf32>
    %356 = tpu.matmul %353, %355, %cst_442 {dimension_numbers = #tpu.dot_dimension_numbers<[1], [0], [0], [1], [0, 0, 1, 1], [], []>} : vector<1x256xbf16>, vector<256x64xbf16>, vector<1x64xf32> -> vector<1x64xf32>
    %357 = arith.addf %351, %356 : vector<1x64xf32>
    %c3_443 = arith.constant 3 : index
    %c0_444 = arith.constant 0 : index
    %358 = vector.load %arg30[%c3_443, %c0_444] : memref<4x256xf32, #tpu.memory_space<vmem>>, vector<1x256xf32>
    %359 = arith.truncf %358 : vector<1x256xf32> to vector<1x256xbf16>
    %c3_445 = arith.constant 3 : index
    %c0_446 = arith.constant 0 : index
    %c0_447 = arith.constant 0 : index
    %360 = vector.load %arg16[%c3_445, %c0_446, %c0_447] : memref<4x256x64xbf16, #tpu.memory_space<vmem>>, vector<1x256x64xbf16>
    %361 = vector.shape_cast %360 : vector<1x256x64xbf16> to vector<256x64xbf16>
    %cst_448 = arith.constant dense<0.000000e+00> : vector<1x64xf32>
    %362 = tpu.matmul %359, %361, %cst_448 {dimension_numbers = #tpu.dot_dimension_numbers<[1], [0], [0], [1], [0, 0, 1, 1], [], []>} : vector<1x256xbf16>, vector<256x64xbf16>, vector<1x64xf32> -> vector<1x64xf32>
    %363 = arith.addf %357, %362 : vector<1x64xf32>
    %c0_449 = arith.constant 0 : index
    %c0_450 = arith.constant 0 : index
    %364 = vector.load %arg17[%c0_449, %c0_450] : memref<1x64xf32, #tpu.memory_space<vmem>>, vector<1x64xf32>
    %365 = arith.addf %363, %364 : vector<1x64xf32>
    %366 = arith.truncf %365 : vector<1x64xf32> to vector<1x64xbf16>
    %c0_451 = arith.constant 0 : index
    %c0_452 = arith.constant 0 : index
    %367 = vector.load %arg18[%c0_451, %c0_452] : memref<64x64xbf16, #tpu.memory_space<vmem>>, vector<64x64xbf16>
    %cst_453 = arith.constant dense<0.000000e+00> : vector<1x64xf32>
    %368 = tpu.matmul %366, %367, %cst_453 {dimension_numbers = #tpu.dot_dimension_numbers<[1], [0], [0], [1], [0, 0, 1, 1], [], []>} : vector<1x64xbf16>, vector<64x64xbf16>, vector<1x64xf32> -> vector<1x64xf32>
    %c0_454 = arith.constant 0 : index
    %c0_455 = arith.constant 0 : index
    %369 = vector.load %arg19[%c0_454, %c0_455] : memref<1x64xf32, #tpu.memory_space<vmem>>, vector<1x64xf32>
    %370 = arith.addf %368, %369 : vector<1x64xf32>
    %cst_456 = arith.constant 0.000000e+00 : f32
    %371 = vector.broadcast %cst_456 : f32 to vector<1x64xf32>
    %372 = arith.cmpf oge, %370, %371 : vector<1x64xf32>
    %cst_457 = arith.constant 1.000000e-01 : f32
    %373 = vector.broadcast %cst_457 : f32 to vector<1x64xf32>
    %374 = arith.mulf %373, %370 : vector<1x64xf32>
    %375 = arith.select %372, %370, %374 : vector<1x64xi1>, vector<1x64xf32>
    %c0_458 = arith.constant 0 : index
    %c0_459 = arith.constant 0 : index
    %376 = vector.load %arg20[%c0_458, %c0_459] : memref<1x64xf32, #tpu.memory_space<vmem>>, vector<1x64xf32>
    %377 = arith.mulf %375, %376 : vector<1x64xf32>
    %cst_460 = arith.constant dense<0.000000e+00> : vector<1xf32>
    %378 = vector.multi_reduction <add>, %377, %cst_460 [1] : vector<1x64xf32> to vector<1xf32>
    %379 = vector.shape_cast %378 : vector<1xf32> to vector<1x1xf32>
    %c0_461 = arith.constant 0 : index
    %c0_462 = arith.constant 0 : index
    %380 = vector.load %arg21[%c0_461, %c0_462] : memref<1x1xf32, #tpu.memory_space<vmem>>, vector<1x1xf32>
    %381 = arith.addf %379, %380 : vector<1x1xf32>
    %c0_463 = arith.constant 0 : index
    %c0_464 = arith.constant 0 : index
    %c0_465 = arith.constant 0 : index
    %382 = vector.load %arg22[%c0_463, %c0_464, %c0_465] : memref<1x1x1xf32, #tpu.memory_space<vmem>>, vector<1x1x1xf32>
    %383 = vector.shape_cast %382 : vector<1x1x1xf32> to vector<1x1xf32>
    %384 = vector.shape_cast %381 : vector<1x1xf32> to vector<1x1x1xf32>
    tpu.vector_store %arg22[%c0_463, %c0_464, %c0_465], %384 {strides = array<i32>} : memref<1x1x1xf32, #tpu.memory_space<vmem>>, vector<1x1x1xf32>,
    return
  }
  func.func @transform_0(%arg0: i32) -> (i32, i32, i32) {
    %c0_i32 = arith.constant 0 : i32
    %c0_i32_0 = arith.constant 0 : i32
    %c0_i32_1 = arith.constant 0 : i32
    return %arg0, %c0_i32, %c0_i32_0 : i32, i32, i32
  }
  func.func @transform_1(%arg0: i32) -> (i32, i32, i32) {
    %c0_i32 = arith.constant 0 : i32
    %c0_i32_0 = arith.constant 0 : i32
    %c0_i32_1 = arith.constant 0 : i32
    %c0_i32_2 = arith.constant 0 : i32
    return %c0_i32, %c0_i32_0, %c0_i32_1 : i32, i32, i32
  }
  func.func @transform_2(%arg0: i32) -> (i32, i32) {
    %c0_i32 = arith.constant 0 : i32
    %c0_i32_0 = arith.constant 0 : i32
    %c0_i32_1 = arith.constant 0 : i32
    return %c0_i32, %c0_i32_0 : i32, i32
  }
  func.func @transform_3(%arg0: i32) -> (i32, i32, i32) {
    %c0_i32 = arith.constant 0 : i32
    %c0_i32_0 = arith.constant 0 : i32
    %c0_i32_1 = arith.constant 0 : i32
    %c0_i32_2 = arith.constant 0 : i32
    return %c0_i32, %c0_i32_0, %c0_i32_1 : i32, i32, i32
  }
  func.func @transform_4(%arg0: i32) -> (i32, i32) {
    %c0_i32 = arith.constant 0 : i32
    %c0_i32_0 = arith.constant 0 : i32
    %c0_i32_1 = arith.constant 0 : i32
    return %c0_i32, %c0_i32_0 : i32, i32
  }
  func.func @transform_5(%arg0: i32) -> (i32, i32, i32) {
    %c0_i32 = arith.constant 0 : i32
    %c0_i32_0 = arith.constant 0 : i32
    %c0_i32_1 = arith.constant 0 : i32
    %c0_i32_2 = arith.constant 0 : i32
    return %c0_i32, %c0_i32_0, %c0_i32_1 : i32, i32, i32
  }
  func.func @transform_6(%arg0: i32) -> (i32, i32) {
    %c0_i32 = arith.constant 0 : i32
    %c0_i32_0 = arith.constant 0 : i32
    %c0_i32_1 = arith.constant 0 : i32
    return %c0_i32, %c0_i32_0 : i32, i32
  }
  func.func @transform_7(%arg0: i32) -> (i32, i32, i32) {
    %c0_i32 = arith.constant 0 : i32
    %c0_i32_0 = arith.constant 0 : i32
    %c0_i32_1 = arith.constant 0 : i32
    %c0_i32_2 = arith.constant 0 : i32
    return %c0_i32, %c0_i32_0, %c0_i32_1 : i32, i32, i32
  }
  func.func @transform_8(%arg0: i32) -> (i32, i32) {
    %c0_i32 = arith.constant 0 : i32
    %c0_i32_0 = arith.constant 0 : i32
    %c0_i32_1 = arith.constant 0 : i32
    return %c0_i32, %c0_i32_0 : i32, i32
  }
  func.func @transform_9(%arg0: i32) -> (i32, i32, i32) {
    %c0_i32 = arith.constant 0 : i32
    %c0_i32_0 = arith.constant 0 : i32
    %c0_i32_1 = arith.constant 0 : i32
    %c0_i32_2 = arith.constant 0 : i32
    return %c0_i32, %c0_i32_0, %c0_i32_1 : i32, i32, i32
  }
  func.func @transform_10(%arg0: i32) -> (i32, i32) {
    %c0_i32 = arith.constant 0 : i32
    %c0_i32_0 = arith.constant 0 : i32
    %c0_i32_1 = arith.constant 0 : i32
    return %c0_i32, %c0_i32_0 : i32, i32
  }
  func.func @transform_11(%arg0: i32) -> (i32, i32, i32) {
    %c0_i32 = arith.constant 0 : i32
    %c0_i32_0 = arith.constant 0 : i32
    %c0_i32_1 = arith.constant 0 : i32
    %c0_i32_2 = arith.constant 0 : i32
    return %c0_i32, %c0_i32_0, %c0_i32_1 : i32, i32, i32
  }
  func.func @transform_12(%arg0: i32) -> (i32, i32) {
    %c0_i32 = arith.constant 0 : i32
    %c0_i32_0 = arith.constant 0 : i32
    %c0_i32_1 = arith.constant 0 : i32
    return %c0_i32, %c0_i32_0 : i32, i32
  }
  func.func @transform_13(%arg0: i32) -> (i32, i32, i32) {
    %c0_i32 = arith.constant 0 : i32
    %c0_i32_0 = arith.constant 0 : i32
    %c0_i32_1 = arith.constant 0 : i32
    %c0_i32_2 = arith.constant 0 : i32
    return %c0_i32, %c0_i32_0, %c0_i32_1 : i32, i32, i32
  }
  func.func @transform_14(%arg0: i32) -> (i32, i32) {
    %c0_i32 = arith.constant 0 : i32
    %c0_i32_0 = arith.constant 0 : i32
    %c0_i32_1 = arith.constant 0 : i32
    return %c0_i32, %c0_i32_0 : i32, i32
  }
  func.func @transform_15(%arg0: i32) -> (i32, i32, i32) {
    %c0_i32 = arith.constant 0 : i32
    %c0_i32_0 = arith.constant 0 : i32
    %c0_i32_1 = arith.constant 0 : i32
    %c0_i32_2 = arith.constant 0 : i32
    return %c0_i32, %c0_i32_0, %c0_i32_1 : i32, i32, i32
  }
  func.func @transform_16(%arg0: i32) -> (i32, i32) {
    %c0_i32 = arith.constant 0 : i32
    %c0_i32_0 = arith.constant 0 : i32
    %c0_i32_1 = arith.constant 0 : i32
    return %c0_i32, %c0_i32_0 : i32, i32
  }
  func.func @transform_17(%arg0: i32) -> (i32, i32) {
    %c0_i32 = arith.constant 0 : i32
    %c0_i32_0 = arith.constant 0 : i32
    %c0_i32_1 = arith.constant 0 : i32
    return %c0_i32, %c0_i32_0 : i32, i32
  }
  func.func @transform_18(%arg0: i32) -> (i32, i32) {
    %c0_i32 = arith.constant 0 : i32
    %c0_i32_0 = arith.constant 0 : i32
    %c0_i32_1 = arith.constant 0 : i32
    return %c0_i32, %c0_i32_0 : i32, i32
  }
  func.func @transform_19(%arg0: i32) -> (i32, i32) {
    %c0_i32 = arith.constant 0 : i32
    %c0_i32_0 = arith.constant 0 : i32
    %c0_i32_1 = arith.constant 0 : i32
    return %c0_i32, %c0_i32_0 : i32, i32
  }
  func.func @transform_20(%arg0: i32) -> (i32, i32) {
    %c0_i32 = arith.constant 0 : i32
    %c0_i32_0 = arith.constant 0 : i32
    %c0_i32_1 = arith.constant 0 : i32
    return %c0_i32, %c0_i32_0 : i32, i32
  }
  func.func @transform_21(%arg0: i32) -> (i32, i32, i32) {
    %c0_i32 = arith.constant 0 : i32
    %c0_i32_0 = arith.constant 0 : i32
    %c0_i32_1 = arith.constant 0 : i32
    return %arg0, %c0_i32, %c0_i32_0 : i32, i32, i32
  }
}

</mosaic_0001>

<llo_original>
// kernel: _lambda_.1
$region0: #{_lambda_.1}
  #allocation0 [shape = 'u32[]', space=smem, size = 0x4, offset = 0x4, fixed_abs, tag = 'smem constant byte address 0x4 - core index']
  #allocation1 [shape = 'u32[144,128]{1,0:T(1,128)}', space=vmem, size = 0x12000, scoped, tag = 'internal scratch']
  #allocation2 [shape = 'f32[34,136]{1,0:T(8,128)}', space=vmem, size = 0xa000, scoped, tag = 'scratch operand']
  #allocation3 [shape = 'f32[34,272]{1,0:T(8,128)}', space=vmem, size = 0xf000, scoped, tag = 'scratch operand']
  #allocation4 [shape = 'f32[18,144]{1,0:T(8,128)}', space=vmem, size = 0x6000, scoped, tag = 'scratch operand']
  #allocation5 [shape = 'f32[18,288]{1,0:T(8,128)}', space=vmem, size = 0x9000, scoped, tag = 'scratch operand']
  #allocation6 [shape = 'f32[10,160]{1,0:T(8,128)}', space=vmem, size = 0x4000, scoped, tag = 'scratch operand']
  #allocation7 [shape = 'f32[10,320]{1,0:T(8,128)}', space=vmem, size = 0x6000, scoped, tag = 'scratch operand']
  #allocation8 [shape = 'f32[6,192]{1,0:T(8,128)}', space=vmem, size = 0x2000, scoped, tag = 'scratch operand']
  #allocation9 [shape = 'f32[4,256]{1,0:T(4,128)}', space=vmem, size = 0x1000, scoped, tag = 'scratch operand']
  #allocation10 [shape = 'f32[34,272]{1,0:T(8,128)}', space=vmem, size = 0xf000, scoped, tag = 'scratch operand']
  #allocation11 [shape = 'f32[18,288]{1,0:T(8,128)}', space=vmem, size = 0x9000, scoped, tag = 'scratch operand']
  #allocation12 [shape = 'f32[10,320]{1,0:T(8,128)}', space=vmem, size = 0x6000, scoped, tag = 'scratch operand']
  #allocation13 [shape = 'f32[1,1]{1,0:T(1,128)S(1)}', space=vmem, size = 0x200, scoped, tag = 'scoped memory for _lambda_.1']
  %s0 = inlined_call_operand.vmem [shape: f32[2,32,136], index: 0, kind: input, shape index: {}]
  %s1 = inlined_call_operand.vmem [shape: bf16[3,136,272], index: 1, kind: input, shape index: {}]
  %s2 = inlined_call_operand.vmem [shape: f32[1,272], index: 2, kind: input, shape index: {}]
  %s3 = inlined_call_operand.vmem [shape: bf16[4,272,144], index: 3, kind: input, shape index: {}]
  %s4 = inlined_call_operand.vmem [shape: f32[1,144], index: 4, kind: input, shape index: {}]
  %s5 = inlined_call_operand.vmem [shape: bf16[3,144,288], index: 5, kind: input, shape index: {}]
  %s6 = inlined_call_operand.vmem [shape: f32[1,288], index: 6, kind: input, shape index: {}]
  %s7 = inlined_call_operand.vmem [shape: bf16[4,288,160], index: 7, kind: input, shape index: {}]
  %s8 = inlined_call_operand.vmem [shape: f32[1,160], index: 8, kind: input, shape index: {}]
  %s9 = inlined_call_operand.vmem [shape: bf16[3,160,320], index: 9, kind: input, shape index: {}]
  %s10 = inlined_call_operand.vmem [shape: f32[1,320], index: 10, kind: input, shape index: {}]
  %s11 = inlined_call_operand.vmem [shape: bf16[4,320,192], index: 11, kind: input, shape index: {}]
  %s12 = inlined_call_operand.vmem [shape: f32[1,192], index: 12, kind: input, shape index: {}]
  %s13 = inlined_call_operand.vmem [shape: bf16[3,192,256], index: 13, kind: input, shape index: {}]
  %s14 = inlined_call_operand.vmem [shape: f32[1,256], index: 14, kind: input, shape index: {}]
  %s15 = inlined_call_operand.vmem [shape: bf16[4,256,64], index: 15, kind: input, shape index: {}]
  %s16 = inlined_call_operand.vmem [shape: f32[1,64], index: 16, kind: input, shape index: {}]
  %s17 = inlined_call_operand.vmem [shape: bf16[64,64], index: 17, kind: input, shape index: {}]
  %s18 = inlined_call_operand.vmem [shape: f32[1,64], index: 18, kind: input, shape index: {}]
  %s19 = inlined_call_operand.vmem [shape: f32[1,64], index: 19, kind: input, shape index: {}]
  %s20 = inlined_call_operand.<no memory space> [shape: f32[1,1], index: 20, kind: input, shape index: {}]
  %s21 = inlined_call_operand.vmem [shape: f32[2,1,1], index: 21, kind: output, shape index: {}]
  %s22 = sld [smem:[#allocation0]]
  $region117: #{_lambda_.1} parent=0
    _
  %s24 = ssub.s32 1, %s22
  %s25 = scalar_select 0, %s24, %s22
  %v26 = vstv %s20
  %27 = vst [vmem:[#allocation13] sm:$0x1] %v26
  loop: start=0, step=1, limit=4
  $region2: #{_lambda_.1} parent=0 // loop_pre_header
    _
  $region3: #{_lambda_.1} parent=0 // loop_header
    %s29 = sphi 0, %s33
    %p30 = scmp.ge.s32.totalorder %s29, 4
    %s39 = sphi 0, %s41
    %s42 = sphi 0, %s39
    %s43 = sphi 0, %s42
    %s59 = sphi 0, %s43
    %s63 = sphi 0, %s63
    %s65 = sphi 0, %s63
    %s66 = sphi 0, %s65
    %s80 = sphi 0, %s66
    %s84 = sphi 0, %s84
    %s86 = sphi 0, %s84
    %s87 = sphi 0, %s86
    %s101 = sphi 0, %s87
    %s105 = sphi 0, %s105
    %s107 = sphi 0, %s105
    %s108 = sphi 0, %s107
    %s122 = sphi 0, %s108
    %s126 = sphi 0, %s126
    %s128 = sphi 0, %s126
    %s129 = sphi 0, %s128
    %s143 = sphi 0, %s129
    %s147 = sphi 0, %s147
    %s149 = sphi 0, %s147
    %s150 = sphi 0, %s149
    %s164 = sphi 0, %s150
    %s168 = sphi 0, %s168
    %s170 = sphi 0, %s168
    %s171 = sphi 0, %s170
    %s185 = sphi 0, %s171
    %s189 = sphi 0, %s189
    %s191 = sphi 0, %s189
    %s192 = sphi 0, %s191
    %s206 = sphi 0, %s192
    %s210 = sphi 0, %s210
    %s212 = sphi 0, %s210
    %s213 = sphi 0, %s212
    %s227 = sphi 0, %s213
    %s231 = sphi 0, %s231
    %s233 = sphi 0, %s231
    %s234 = sphi 0, %s233
    %s248 = sphi 0, %s234
    %s252 = sphi 0, %s252
    %s254 = sphi 0, %s252
    %s255 = sphi 0, %s254
    %s269 = sphi 0, %s255
    %s273 = sphi 0, %s273
    %s275 = sphi 0, %s273
    %s276 = sphi 0, %s275
    %s290 = sphi 0, %s276
    %s294 = sphi 0, %s294
    %s296 = sphi 0, %s294
    %s297 = sphi 0, %s296
    %s311 = sphi 0, %s297
    %s315 = sphi 0, %s315
    %s317 = sphi 0, %s315
    %s318 = sphi 0, %s317
    %s332 = sphi 0, %s318
    %s336 = sphi 0, %s336
    %s338 = sphi 0, %s336
    %s339 = sphi 0, %s338
    %s353 = sphi 0, %s339
    %s357 = sphi 0, %s357
    %s359 = sphi 0, %s357
    %s360 = sphi 0, %s359
    %s374 = sphi 0, %s360
    %s378 = sphi 0, %s378
    %s380 = sphi 0, %s378
    %s381 = sphi 0, %s380
    %s395 = sphi 0, %s381
    %s399 = sphi 0, %s399
    %s401 = sphi 0, %s399
    %s402 = sphi 0, %s401
    %s416 = sphi 0, %s402
    %s420 = sphi 0, %s420
    %s422 = sphi 0, %s420
    %s423 = sphi 0, %s422
    %s437 = sphi 0, %s423
    %s441 = sphi 0, %s441
    %s443 = sphi 0, %s441
    %s444 = sphi 0, %s443
    %s458 = sphi 0, %s444
    %s462 = sphi 0, %s462
    %s464 = sphi 0, %s462
    %s465 = sphi 0, %s464
    %s479 = sphi 0, %s465
    %s485 = sphi 0, %s487
    %s488 = sphi 0, %s485
    %s489 = sphi 0, %s488
    %s505 = sphi 0, %s489
  $region4: #{_lambda_.1} parent=0 // loop_header_branch
    %32 = sbr.rel (%p30) target = $region8
  $region5: #{_lambda_.1} parent=0 // loop_body
    %s34 = ssub.s32 %s29, 1
    %s35 = ssub.s32 %s29, 2
    %s36 = sadd.s32 %s29, 1
    %s37 = ssub.s32 %s29, %s36
    %p38 = scmp.eq.s32.totalorder %s37, 0
    %s40 = sadd.s32 %s39, 1
    %s41 = scalar_select %p38, %s39, %s40
    %p44 = pneg %p38
    %p45 = scmp.eq.s32.totalorder %s29, 1
    %p46 = por %p44, %p45
    %p47 = scmp.ne.s32.totalorder %s39, %s42
    %p48 = scmp.eq.s32.totalorder %s29, 0
    %p49 = por %p47, %p48
    %p50 = scmp.ne.s32.totalorder %s39, %s42
    %p51 = scmp.eq.s32.totalorder %s34, 1
    %p52 = por %p50, %p51
    %p53 = scmp.ne.s32.totalorder %s42, %s43
    %p54 = scmp.eq.s32.totalorder %s34, 0
    %p55 = por %p53, %p54
    %p56 = scmp.ne.s32.totalorder %s42, %s43
    %p57 = scmp.eq.s32.totalorder %s35, 1
    %p58 = por %p56, %p57
    %p60 = scmp.ne.s32.totalorder %s43, %s59
    %p61 = scmp.eq.s32.totalorder %s35, 0
    %p62 = por %p60, %p61
    %s64 = sadd.s32 %s63, 1
    %p67 = scmp.eq.s32.totalorder %s29, 1
    %p68 = scmp.ne.s32.totalorder %s63, %s65
    %p69 = scmp.eq.s32.totalorder %s29, 0
    %p70 = por %p68, %p69
    %p71 = scmp.ne.s32.totalorder %s63, %s65
    %p72 = scmp.eq.s32.totalorder %s34, 1
    %p73 = por %p71, %p72
    %p74 = scmp.ne.s32.totalorder %s65, %s66
    %p75 = scmp.eq.s32.totalorder %s34, 0
    %p76 = por %p74, %p75
    %p77 = scmp.ne.s32.totalorder %s65, %s66
    %p78 = scmp.eq.s32.totalorder %s35, 1
    %p79 = por %p77, %p78
    %p81 = scmp.ne.s32.totalorder %s66, %s80
    %p82 = scmp.eq.s32.totalorder %s35, 0
    %p83 = por %p81, %p82
    %s85 = sadd.s32 %s84, 1
    %p88 = scmp.eq.s32.totalorder %s29, 1
    %p89 = scmp.ne.s32.totalorder %s84, %s86
    %p90 = scmp.eq.s32.totalorder %s29, 0
    %p91 = por %p89, %p90
    %p92 = scmp.ne.s32.totalorder %s84, %s86
    %p93 = scmp.eq.s32.totalorder %s34, 1
    %p94 = por %p92, %p93
    %p95 = scmp.ne.s32.totalorder %s86, %s87
    %p96 = scmp.eq.s32.totalorder %s34, 0
    %p97 = por %p95, %p96
    %p98 = scmp.ne.s32.totalorder %s86, %s87
    %p99 = scmp.eq.s32.totalorder %s35, 1
    %p100 = por %p98, %p99
    %p102 = scmp.ne.s32.totalorder %s87, %s101
    %p103 = scmp.eq.s32.totalorder %s35, 0
    %p104 = por %p102, %p103
    %s106 = sadd.s32 %s105, 1
    %p109 = scmp.eq.s32.totalorder %s29, 1
    %p110 = scmp.ne.s32.totalorder %s105, %s107
    %p111 = scmp.eq.s32.totalorder %s29, 0
    %p112 = por %p110, %p111
    %p113 = scmp.ne.s32.totalorder %s105, %s107
    %p114 = scmp.eq.s32.totalorder %s34, 1
    %p115 = por %p113, %p114
    %p116 = scmp.ne.s32.totalorder %s107, %s108
    %p117 = scmp.eq.s32.totalorder %s34, 0
    %p118 = por %p116, %p117
    %p119 = scmp.ne.s32.totalorder %s107, %s108
    %p120 = scmp.eq.s32.totalorder %s35, 1
    %p121 = por %p119, %p120
    %p123 = scmp.ne.s32.totalorder %s108, %s122
    %p124 = scmp.eq.s32.totalorder %s35, 0
    %p125 = por %p123, %p124
    %s127 = sadd.s32 %s126, 1
    %p130 = scmp.eq.s32.totalorder %s29, 1
    %p131 = scmp.ne.s32.totalorder %s126, %s128
    %p132 = scmp.eq.s32.totalorder %s29, 0
    %p133 = por %p131, %p132
    %p134 = scmp.ne.s32.totalorder %s126, %s128
    %p135 = scmp.eq.s32.totalorder %s34, 1
    %p136 = por %p134, %p135
    %p137 = scmp.ne.s32.totalorder %s128, %s129
    %p138 = scmp.eq.s32.totalorder %s34, 0
    %p139 = por %p137, %p138
    %p140 = scmp.ne.s32.totalorder %s128, %s129
    %p141 = scmp.eq.s32.totalorder %s35, 1
    %p142 = por %p140, %p141
    %p144 = scmp.ne.s32.totalorder %s129, %s143
    %p145 = scmp.eq.s32.totalorder %s35, 0
    %p146 = por %p144, %p145
    %s148 = sadd.s32 %s147, 1
    %p151 = scmp.eq.s32.totalorder %s29, 1
    %p152 = scmp.ne.s32.totalorder %s147, %s149
    %p153 = scmp.eq.s32.totalorder %s29, 0
    %p154 = por %p152, %p153
    %p155 = scmp.ne.s32.totalorder %s147, %s149
    %p156 = scmp.eq.s32.totalorder %s34, 1
    %p157 = por %p155, %p156
    %p158 = scmp.ne.s32.totalorder %s149, %s150
    %p159 = scmp.eq.s32.totalorder %s34, 0
    %p160 = por %p158, %p159
    %p161 = scmp.ne.s32.totalorder %s149, %s150
    %p162 = scmp.eq.s32.totalorder %s35, 1
    %p163 = por %p161, %p162
    %p165 = scmp.ne.s32.totalorder %s150, %s164
    %p166 = scmp.eq.s32.totalorder %s35, 0
    %p167 = por %p165, %p166
    %s169 = sadd.s32 %s168, 1
    %p172 = scmp.eq.s32.totalorder %s29, 1
    %p173 = scmp.ne.s32.totalorder %s168, %s170
    %p174 = scmp.eq.s32.totalorder %s29, 0
    %p175 = por %p173, %p174
    %p176 = scmp.ne.s32.totalorder %s168, %s170
    %p177 = scmp.eq.s32.totalorder %s34, 1
    %p178 = por %p176, %p177
    %p179 = scmp.ne.s32.totalorder %s170, %s171
    %p180 = scmp.eq.s32.totalorder %s34, 0
    %p181 = por %p179, %p180
    %p182 = scmp.ne.s32.totalorder %s170, %s171
    %p183 = scmp.eq.s32.totalorder %s35, 1
    %p184 = por %p182, %p183
    %p186 = scmp.ne.s32.totalorder %s171, %s185
    %p187 = scmp.eq.s32.totalorder %s35, 0
    %p188 = por %p186, %p187
    %s190 = sadd.s32 %s189, 1
    %p193 = scmp.eq.s32.totalorder %s29, 1
    %p194 = scmp.ne.s32.totalorder %s189, %s191
    %p195 = scmp.eq.s32.totalorder %s29, 0
    %p196 = por %p194, %p195
    %p197 = scmp.ne.s32.totalorder %s189, %s191
    %p198 = scmp.eq.s32.totalorder %s34, 1
    %p199 = por %p197, %p198
    %p200 = scmp.ne.s32.totalorder %s191, %s192
    %p201 = scmp.eq.s32.totalorder %s34, 0
    %p202 = por %p200, %p201
    %p203 = scmp.ne.s32.totalorder %s191, %s192
    %p204 = scmp.eq.s32.totalorder %s35, 1
    %p205 = por %p203, %p204
    %p207 = scmp.ne.s32.totalorder %s192, %s206
    %p208 = scmp.eq.s32.totalorder %s35, 0
    %p209 = por %p207, %p208
    %s211 = sadd.s32 %s210, 1
    %p214 = scmp.eq.s32.totalorder %s29, 1
    %p215 = scmp.ne.s32.totalorder %s210, %s212
    %p216 = scmp.eq.s32.totalorder %s29, 0
    %p217 = por %p215, %p216
    %p218 = scmp.ne.s32.totalorder %s210, %s212
    %p219 = scmp.eq.s32.totalorder %s34, 1
    %p220 = por %p218, %p219
    %p221 = scmp.ne.s32.totalorder %s212, %s213
    %p222 = scmp.eq.s32.totalorder %s34, 0
    %p223 = por %p221, %p222
    %p224 = scmp.ne.s32.totalorder %s212, %s213
    %p225 = scmp.eq.s32.totalorder %s35, 1
    %p226 = por %p224, %p225
    %p228 = scmp.ne.s32.totalorder %s213, %s227
    %p229 = scmp.eq.s32.totalorder %s35, 0
    %p230 = por %p228, %p229
    %s232 = sadd.s32 %s231, 1
    %p235 = scmp.eq.s32.totalorder %s29, 1
    %p236 = scmp.ne.s32.totalorder %s231, %s233
    %p237 = scmp.eq.s32.totalorder %s29, 0
    %p238 = por %p236, %p237
    %p239 = scmp.ne.s32.totalorder %s231, %s233
    %p240 = scmp.eq.s32.totalorder %s34, 1
    %p241 = por %p239, %p240
    %p242 = scmp.ne.s32.totalorder %s233, %s234
    %p243 = scmp.eq.s32.totalorder %s34, 0
    %p244 = por %p242, %p243
    %p245 = scmp.ne.s32.totalorder %s233, %s234
    %p246 = scmp.eq.s32.totalorder %s35, 1
    %p247 = por %p245, %p246
    %p249 = scmp.ne.s32.totalorder %s234, %s248
    %p250 = scmp.eq.s32.totalorder %s35, 0
    %p251 = por %p249, %p250
    %s253 = sadd.s32 %s252, 1
    %p256 = scmp.eq.s32.totalorder %s29, 1
    %p257 = scmp.ne.s32.totalorder %s252, %s254
    %p258 = scmp.eq.s32.totalorder %s29, 0
    %p259 = por %p257, %p258
    %p260 = scmp.ne.s32.totalorder %s252, %s254
    %p261 = scmp.eq.s32.totalorder %s34, 1
    %p262 = por %p260, %p261
    %p263 = scmp.ne.s32.totalorder %s254, %s255
    %p264 = scmp.eq.s32.totalorder %s34, 0
    %p265 = por %p263, %p264
    %p266 = scmp.ne.s32.totalorder %s254, %s255
    %p267 = scmp.eq.s32.totalorder %s35, 1
    %p268 = por %p266, %p267
    %p270 = scmp.ne.s32.totalorder %s255, %s269
    %p271 = scmp.eq.s32.totalorder %s35, 0
    %p272 = por %p270, %p271
    %s274 = sadd.s32 %s273, 1
    %p277 = scmp.eq.s32.totalorder %s29, 1
    %p278 = scmp.ne.s32.totalorder %s273, %s275
    %p279 = scmp.eq.s32.totalorder %s29, 0
    %p280 = por %p278, %p279
    %p281 = scmp.ne.s32.totalorder %s273, %s275
    %p282 = scmp.eq.s32.totalorder %s34, 1
    %p283 = por %p281, %p282
    %p284 = scmp.ne.s32.totalorder %s275, %s276
    %p285 = scmp.eq.s32.totalorder %s34, 0
    %p286 = por %p284, %p285
    %p287 = scmp.ne.s32.totalorder %s275, %s276
    %p288 = scmp.eq.s32.totalorder %s35, 1
    %p289 = por %p287, %p288
    %p291 = scmp.ne.s32.totalorder %s276, %s290
    %p292 = scmp.eq.s32.totalorder %s35, 0
    %p293 = por %p291, %p292
    %s295 = sadd.s32 %s294, 1
    %p298 = scmp.eq.s32.totalorder %s29, 1
    %p299 = scmp.ne.s32.totalorder %s294, %s296
    %p300 = scmp.eq.s32.totalorder %s29, 0
    %p301 = por %p299, %p300
    %p302 = scmp.ne.s32.totalorder %s294, %s296
    %p303 = scmp.eq.s32.totalorder %s34, 1
    %p304 = por %p302, %p303
    %p305 = scmp.ne.s32.totalorder %s296, %s297
    %p306 = scmp.eq.s32.totalorder %s34, 0
    %p307 = por %p305, %p306
    %p308 = scmp.ne.s32.totalorder %s296, %s297
    %p309 = scmp.eq.s32.totalorder %s35, 1
    %p310 = por %p308, %p309
    %p312 = scmp.ne.s32.totalorder %s297, %s311
    %p313 = scmp.eq.s32.totalorder %s35, 0
    %p314 = por %p312, %p313
    %s316 = sadd.s32 %s315, 1
    %p319 = scmp.eq.s32.totalorder %s29, 1
    %p320 = scmp.ne.s32.totalorder %s315, %s317
    %p321 = scmp.eq.s32.totalorder %s29, 0
    %p322 = por %p320, %p321
    %p323 = scmp.ne.s32.totalorder %s315, %s317
    %p324 = scmp.eq.s32.totalorder %s34, 1
    %p325 = por %p323, %p324
    %p326 = scmp.ne.s32.totalorder %s317, %s318
    %p327 = scmp.eq.s32.totalorder %s34, 0
    %p328 = por %p326, %p327
    %p329 = scmp.ne.s32.totalorder %s317, %s318
    %p330 = scmp.eq.s32.totalorder %s35, 1
    %p331 = por %p329, %p330
    %p333 = scmp.ne.s32.totalorder %s318, %s332
    %p334 = scmp.eq.s32.totalorder %s35, 0
    %p335 = por %p333, %p334
    %s337 = sadd.s32 %s336, 1
    %p340 = scmp.eq.s32.totalorder %s29, 1
    %p341 = scmp.ne.s32.totalorder %s336, %s338
    %p342 = scmp.eq.s32.totalorder %s29, 0
    %p343 = por %p341, %p342
    %p344 = scmp.ne.s32.totalorder %s336, %s338
    %p345 = scmp.eq.s32.totalorder %s34, 1
    %p346 = por %p344, %p345
    %p347 = scmp.ne.s32.totalorder %s338, %s339
    %p348 = scmp.eq.s32.totalorder %s34, 0
    %p349 = por %p347, %p348
    %p350 = scmp.ne.s32.totalorder %s338, %s339
    %p351 = scmp.eq.s32.totalorder %s35, 1
    %p352 = por %p350, %p351
    %p354 = scmp.ne.s32.totalorder %s339, %s353
    %p355 = scmp.eq.s32.totalorder %s35, 0
    %p356 = por %p354, %p355
    %s358 = sadd.s32 %s357, 1
    %p361 = scmp.eq.s32.totalorder %s29, 1
    %p362 = scmp.ne.s32.totalorder %s357, %s359
    %p363 = scmp.eq.s32.totalorder %s29, 0
    %p364 = por %p362, %p363
    %p365 = scmp.ne.s32.totalorder %s357, %s359
    %p366 = scmp.eq.s32.totalorder %s34, 1
    %p367 = por %p365, %p366
    %p368 = scmp.ne.s32.totalorder %s359, %s360
    %p369 = scmp.eq.s32.totalorder %s34, 0
    %p370 = por %p368, %p369
    %p371 = scmp.ne.s32.totalorder %s359, %s360
    %p372 = scmp.eq.s32.totalorder %s35, 1
    %p373 = por %p371, %p372
    %p375 = scmp.ne.s32.totalorder %s360, %s374
    %p376 = scmp.eq.s32.totalorder %s35, 0
    %p377 = por %p375, %p376
    %s379 = sadd.s32 %s378, 1
    %p382 = scmp.eq.s32.totalorder %s29, 1
    %p383 = scmp.ne.s32.totalorder %s378, %s380
    %p384 = scmp.eq.s32.totalorder %s29, 0
    %p385 = por %p383, %p384
    %p386 = scmp.ne.s32.totalorder %s378, %s380
    %p387 = scmp.eq.s32.totalorder %s34, 1
    %p388 = por %p386, %p387
    %p389 = scmp.ne.s32.totalorder %s380, %s381
    %p390 = scmp.eq.s32.totalorder %s34, 0
    %p391 = por %p389, %p390
    %p392 = scmp.ne.s32.totalorder %s380, %s381
    %p393 = scmp.eq.s32.totalorder %s35, 1
    %p394 = por %p392, %p393
    %p396 = scmp.ne.s32.totalorder %s381, %s395
    %p397 = scmp.eq.s32.totalorder %s35, 0
    %p398 = por %p396, %p397
    %s400 = sadd.s32 %s399, 1
    %p403 = scmp.eq.s32.totalorder %s29, 1
    %p404 = scmp.ne.s32.totalorder %s399, %s401
    %p405 = scmp.eq.s32.totalorder %s29, 0
    %p406 = por %p404, %p405
    %p407 = scmp.ne.s32.totalorder %s399, %s401
    %p408 = scmp.eq.s32.totalorder %s34, 1
    %p409 = por %p407, %p408
    %p410 = scmp.ne.s32.totalorder %s401, %s402
    %p411 = scmp.eq.s32.totalorder %s34, 0
    %p412 = por %p410, %p411
    %p413 = scmp.ne.s32.totalorder %s401, %s402
    %p414 = scmp.eq.s32.totalorder %s35, 1
    %p415 = por %p413, %p414
    %p417 = scmp.ne.s32.totalorder %s402, %s416
    %p418 = scmp.eq.s32.totalorder %s35, 0
    %p419 = por %p417, %p418
    %s421 = sadd.s32 %s420, 1
    %p424 = scmp.eq.s32.totalorder %s29, 1
    %p425 = scmp.ne.s32.totalorder %s420, %s422
    %p426 = scmp.eq.s32.totalorder %s29, 0
    %p427 = por %p425, %p426
    %p428 = scmp.ne.s32.totalorder %s420, %s422
    %p429 = scmp.eq.s32.totalorder %s34, 1
    %p430 = por %p428, %p429
    %p431 = scmp.ne.s32.totalorder %s422, %s423
    %p432 = scmp.eq.s32.totalorder %s34, 0
    %p433 = por %p431, %p432
    %p434 = scmp.ne.s32.totalorder %s422, %s423
    %p435 = scmp.eq.s32.totalorder %s35, 1
    %p436 = por %p434, %p435
    %p438 = scmp.ne.s32.totalorder %s423, %s437
    %p439 = scmp.eq.s32.totalorder %s35, 0
    %p440 = por %p438, %p439
    %s442 = sadd.s32 %s441, 1
    %p445 = scmp.eq.s32.totalorder %s29, 1
    %p446 = scmp.ne.s32.totalorder %s441, %s443
    %p447 = scmp.eq.s32.totalorder %s29, 0
    %p448 = por %p446, %p447
    %p449 = scmp.ne.s32.totalorder %s441, %s443
    %p450 = scmp.eq.s32.totalorder %s34, 1
    %p451 = por %p449, %p450
    %p452 = scmp.ne.s32.totalorder %s443, %s444
    %p453 = scmp.eq.s32.totalorder %s34, 0
    %p454 = por %p452, %p453
    %p455 = scmp.ne.s32.totalorder %s443, %s444
    %p456 = scmp.eq.s32.totalorder %s35, 1
    %p457 = por %p455, %p456
    %p459 = scmp.ne.s32.totalorder %s444, %s458
    %p460 = scmp.eq.s32.totalorder %s35, 0
    %p461 = por %p459, %p460
    %s463 = sadd.s32 %s462, 1
    %p466 = scmp.eq.s32.totalorder %s29, 1
    %p467 = scmp.ne.s32.totalorder %s462, %s464
    %p468 = scmp.eq.s32.totalorder %s29, 0
    %p469 = por %p467, %p468
    %p470 = scmp.ne.s32.totalorder %s462, %s464
    %p471 = scmp.eq.s32.totalorder %s34, 1
    %p472 = por %p470, %p471
    %p473 = scmp.ne.s32.totalorder %s464, %s465
    %p474 = scmp.eq.s32.totalorder %s34, 0
    %p475 = por %p473, %p474
    %p476 = scmp.ne.s32.totalorder %s464, %s465
    %p477 = scmp.eq.s32.totalorder %s35, 1
    %p478 = por %p476, %p477
    %p480 = scmp.ne.s32.totalorder %s465, %s479
    %p481 = scmp.eq.s32.totalorder %s35, 0
    %p482 = por %p480, %p481
    %s483 = ssub.s32 %s29, %s36
    %p484 = scmp.eq.s32.totalorder %s483, 0
    %s486 = sadd.s32 %s485, 1
    %s487 = scalar_select %p484, %s485, %s486
    %p490 = pneg %p484
    %p491 = scmp.eq.s32.totalorder %s29, 1
    %p492 = por %p490, %p491
    %p493 = scmp.ne.s32.totalorder %s485, %s488
    %p494 = scmp.eq.s32.totalorder %s29, 0
    %p495 = por %p493, %p494
    %p496 = scmp.ne.s32.totalorder %s485, %s488
    %p497 = scmp.eq.s32.totalorder %s34, 1
    %p498 = por %p496, %p497
    %p499 = scmp.ne.s32.totalorder %s488, %s489
    %p500 = scmp.eq.s32.totalorder %s34, 0
    %p501 = por %p499, %p500
    %p502 = scmp.ne.s32.totalorder %s488, %s489
    %p503 = scmp.eq.s32.totalorder %s35, 1
    %p504 = por %p502, %p503
    %p506 = scmp.ne.s32.totalorder %s489, %s505
    %p507 = scmp.eq.s32.totalorder %s35, 0
    %p508 = por %p506, %p507
    %p509 = scmp.le.s32.totalorder 1, %s29
    %p510 = scmp.lt.s32.totalorder %s29, 3
    %p511 = pnand %p509, %p510
    %p512 = pneg %p511
    // Predicated region
    $region9: #{_lambda_.1} parent=5 // pred_check
      _
    $region10: #{_lambda_.1} parent=5 // pred_check_branch
      %514 = sbr.rel (%p511) target = $region12
    $region11: #{_lambda_.1} parent=5 // pred_region
      %s515 = ssub.s32 %s29, 1
      // Predicated region
      $region13: #{_lambda_.1} parent=11 // pred_check
        %p516 = pneg %p76
      $region14: #{_lambda_.1} parent=11 // pred_check_branch
        %518 = sbr.rel (%p516) target = $region16
      $region15: #{_lambda_.1} parent=11 // pred_region
        _
      $region16: #{_lambda_.1} parent=11 // pred_fallthru
        _
      // Predicated region
      $region17: #{_lambda_.1} parent=11 // pred_check
        %p519 = pneg %p97
      $region18: #{_lambda_.1} parent=11 // pred_check_branch
        %521 = sbr.rel (%p519) target = $region20
      $region19: #{_lambda_.1} parent=11 // pred_region
        _
      $region20: #{_lambda_.1} parent=11 // pred_fallthru
        _
      // Predicated region
      $region21: #{_lambda_.1} parent=11 // pred_check
        %p522 = pneg %p118
      $region22: #{_lambda_.1} parent=11 // pred_check_branch
        %524 = sbr.rel (%p522) target = $region24
      $region23: #{_lambda_.1} parent=11 // pred_region
        _
      $region24: #{_lambda_.1} parent=11 // pred_fallthru
        _
      // Predicated region
      $region25: #{_lambda_.1} parent=11 // pred_check
        %p525 = pneg %p139
      $region26: #{_lambda_.1} parent=11 // pred_check_branch
        %527 = sbr.rel (%p525) target = $region28
      $region27: #{_lambda_.1} parent=11 // pred_region
        _
      $region28: #{_lambda_.1} parent=11 // pred_fallthru
        _
      // Predicated region
      $region29: #{_lambda_.1} parent=11 // pred_check
        %p528 = pneg %p160
      $region30: #{_lambda_.1} parent=11 // pred_check_branch
        %530 = sbr.rel (%p528) target = $region32
      $region31: #{_lambda_.1} parent=11 // pred_region
        _
      $region32: #{_lambda_.1} parent=11 // pred_fallthru
        _
      // Predicated region
      $region33: #{_lambda_.1} parent=11 // pred_check
        %p531 = pneg %p181
      $region34: #{_lambda_.1} parent=11 // pred_check_branch
        %533 = sbr.rel (%p531) target = $region36
      $region35: #{_lambda_.1} parent=11 // pred_region
        _
      $region36: #{_lambda_.1} parent=11 // pred_fallthru
        _
      // Predicated region
      $region37: #{_lambda_.1} parent=11 // pred_check
        %p534 = pneg %p202
      $region38: #{_lambda_.1} parent=11 // pred_check_branch
        %536 = sbr.rel (%p534) target = $region40
      $region39: #{_lambda_.1} parent=11 // pred_region
        _
      $region40: #{_lambda_.1} parent=11 // pred_fallthru
        _
      // Predicated region
      $region41: #{_lambda_.1} parent=11 // pred_check
        %p537 = pneg %p223
      $region42: #{_lambda_.1} parent=11 // pred_check_branch
        %539 = sbr.rel (%p537) target = $region44
      $region43: #{_lambda_.1} parent=11 // pred_region
        _
      $region44: #{_lambda_.1} parent=11 // pred_fallthru
        _
      // Predicated region
      $region45: #{_lambda_.1} parent=11 // pred_check
        %p540 = pneg %p244
      $region46: #{_lambda_.1} parent=11 // pred_check_branch
        %542 = sbr.rel (%p540) target = $region48
      $region47: #{_lambda_.1} parent=11 // pred_region
        _
      $region48: #{_lambda_.1} parent=11 // pred_fallthru
        _
      // Predicated region
      $region49: #{_lambda_.1} parent=11 // pred_check
        %p543 = pneg %p265
      $region50: #{_lambda_.1} parent=11 // pred_check_branch
        %545 = sbr.rel (%p543) target = $region52
      $region51: #{_lambda_.1} parent=11 // pred_region
        _
      $region52: #{_lambda_.1} parent=11 // pred_fallthru
        _
      // Predicated region
      $region53: #{_lambda_.1} parent=11 // pred_check
        %p546 = pneg %p286
      $region54: #{_lambda_.1} parent=11 // pred_check_branch
        %548 = sbr.rel (%p546) target = $region56
      $region55: #{_lambda_.1} parent=11 // pred_region
        _
      $region56: #{_lambda_.1} parent=11 // pred_fallthru
        _
      // Predicated region
      $region57: #{_lambda_.1} parent=11 // pred_check
        %p549 = pneg %p307
      $region58: #{_lambda_.1} parent=11 // pred_check_branch
        %551 = sbr.rel (%p549) target = $region60
      $region59: #{_lambda_.1} parent=11 // pred_region
        _
      $region60: #{_lambda_.1} parent=11 // pred_fallthru
        _
      // Predicated region
      $region61: #{_lambda_.1} parent=11 // pred_check
        %p552 = pneg %p328
      $region62: #{_lambda_.1} parent=11 // pred_check_branch
        %554 = sbr.rel (%p552) target = $region64
      $region63: #{_lambda_.1} parent=11 // pred_region
        _
      $region64: #{_lambda_.1} parent=11 // pred_fallthru
        _
      // Predicated region
      $region65: #{_lambda_.1} parent=11 // pred_check
        %p555 = pneg %p349
      $region66: #{_lambda_.1} parent=11 // pred_check_branch
        %557 = sbr.rel (%p555) target = $region68
      $region67: #{_lambda_.1} parent=11 // pred_region
        _
      $region68: #{_lambda_.1} parent=11 // pred_fallthru
        _
      // Predicated region
      $region69: #{_lambda_.1} parent=11 // pred_check
        %p558 = pneg %p370
      $region70: #{_lambda_.1} parent=11 // pred_check_branch
        %560 = sbr.rel (%p558) target = $region72
      $region71: #{_lambda_.1} parent=11 // pred_region
        _
      $region72: #{_lambda_.1} parent=11 // pred_fallthru
        _
      // Predicated region
      $region73: #{_lambda_.1} parent=11 // pred_check
        %p561 = pneg %p391
      $region74: #{_lambda_.1} parent=11 // pred_check_branch
        %563 = sbr.rel (%p561) target = $region76
      $region75: #{_lambda_.1} parent=11 // pred_region
        _
      $region76: #{_lambda_.1} parent=11 // pred_fallthru
        _
      // Predicated region
      $region77: #{_lambda_.1} parent=11 // pred_check
        %p564 = pneg %p412
      $region78: #{_lambda_.1} parent=11 // pred_check_branch
        %566 = sbr.rel (%p564) target = $region80
      $region79: #{_lambda_.1} parent=11 // pred_region
        _
      $region80: #{_lambda_.1} parent=11 // pred_fallthru
        _
      // Predicated region
      $region81: #{_lambda_.1} parent=11 // pred_check
        %p567 = pneg %p433
      $region82: #{_lambda_.1} parent=11 // pred_check_branch
        %569 = sbr.rel (%p567) target = $region84
      $region83: #{_lambda_.1} parent=11 // pred_region
        _
      $region84: #{_lambda_.1} parent=11 // pred_fallthru
        _
      // Predicated region
      $region85: #{_lambda_.1} parent=11 // pred_check
        %p570 = pneg %p454
      $region86: #{_lambda_.1} parent=11 // pred_check_branch
        %572 = sbr.rel (%p570) target = $region88
      $region87: #{_lambda_.1} parent=11 // pred_region
        _
      $region88: #{_lambda_.1} parent=11 // pred_fallthru
        _
      // Predicated region
      $region89: #{_lambda_.1} parent=11 // pred_check
        %p573 = pneg %p475
      $region90: #{_lambda_.1} parent=11 // pred_check_branch
        %575 = sbr.rel (%p573) target = $region92
      $region91: #{_lambda_.1} parent=11 // pred_region
        _
      $region92: #{_lambda_.1} parent=11 // pred_fallthru
        _
    $region12: #{_lambda_.1} parent=5 // pred_fallthru
      _
    %p576 = scmp.lt.s32.totalorder %s29, 2
    // Predicated region
    $region93: #{_lambda_.1} parent=5 // pred_check
      %p577 = pneg %p576
    $region94: #{_lambda_.1} parent=5 // pred_check_branch
      %579 = sbr.rel (%p577) target = $region96
    $region95: #{_lambda_.1} parent=5 // pred_region
      // Predicated region
      $region97: #{_lambda_.1} parent=95 // pred_check
        %p580 = pneg %p49
      $region98: #{_lambda_.1} parent=95 // pred_check_branch
        %582 = sbr.rel (%p580) target = $region100
      $region99: #{_lambda_.1} parent=95 // pred_region
        %p583 = scmp.lt.s32.totalorder %s29, 1
        %s584 = scalar_select %p583, %s29, 1
        %s585 = smul.addr %s584, 8
        %s586 = smul.addr %s585, 8
        %s587 = scalar_lea.vmem %s0, %s586
      $region100: #{_lambda_.1} parent=95 // pred_fallthru
        _
    $region96: #{_lambda_.1} parent=5 // pred_fallthru
      _
    %p588 = scmp.le.s32.totalorder 1, %s29
    %p589 = scmp.lt.s32.totalorder %s29, 3
    %p590 = pnand %p588, %p589
    %p591 = pneg %p590
    // Predicated region
    $region101: #{_lambda_.1} parent=5 // pred_check
      _
    $region102: #{_lambda_.1} parent=5 // pred_check_branch
      %593 = sbr.rel (%p590) target = $region104
    $region103: #{_lambda_.1} parent=5 // pred_region
      %s594 = ssub.s32 %s29, 1
      %p595 = scmp.lt.s32.totalorder %s34, 1
      %s596 = scalar_select %p595, %s34, 1
      %s597 = smul.addr %s596, 8
      %s598 = smul.addr %s597, 8
      %s599 = scalar_lea.vmem %s0, %s598
      %p600 = pneg %p55
      %p601 = pneg %p52
      %p602 = pneg %p76
      %p603 = pneg %p73
      %p604 = pneg %p97
      %p605 = pneg %p94
      %p606 = pneg %p118
      %p607 = pneg %p115
      %p608 = pneg %p139
      %p609 = pneg %p136
      %p610 = pneg %p160
      %p611 = pneg %p157
      %p612 = pneg %p181
      %p613 = pneg %p178
      %p614 = pneg %p202
      %p615 = pneg %p199
      %p616 = pneg %p223
      %p617 = pneg %p220
      %p618 = pneg %p244
      %p619 = pneg %p241
      %p620 = pneg %p265
      %p621 = pneg %p262
      %p622 = pneg %p286
      %p623 = pneg %p283
      %p624 = pneg %p307
      %p625 = pneg %p304
      %p626 = pneg %p328
      %p627 = pneg %p325
      %p628 = pneg %p349
      %p629 = pneg %p346
      %p630 = pneg %p370
      %p631 = pneg %p367
      %p632 = pneg %p391
      %p633 = pneg %p388
      %p634 = pneg %p412
      %p635 = pneg %p409
      %p636 = pneg %p433
      %p637 = pneg %p430
      %p638 = pneg %p454
      %p639 = pneg %p451
      %p640 = pneg %p475
      %p641 = pneg %p472
      %p642 = pneg %p501
      %p643 = pneg %p498
      %p644 = scmp.lt.s32.totalorder %s34, 1
      %s645 = scalar_select %p644, %s34, 1
      %s646 = scalar_lea.vmem %s21, %s645
      %p647 = scmp.lt.s32.totalorder %s34, 1
      %s648 = scalar_select %p647, %s34, 1
      %s649 = smul.addr %s648, 8
      %s650 = smul.addr %s649, 8
      %s651 = scalar_lea.vmem %s0, %s650
      %p652 = scmp.lt.s32.totalorder %s34, 1
      %s653 = scalar_select %p652, %s34, 1
      %s654 = scalar_lea.vmem %s21, %s653
      %656 = vst [vmem:[#allocation2] sm:$0xff] 0.0
      %vm657 = vcmask 64512
      %658 = vst.msk [vmem:[#allocation2 + $0x8] sm:$0xff] %vm657, 0.0
      %659 = vst [vmem:[#allocation2 + $0x10] sm:$0xff] 0.0
      %660 = vst.msk [vmem:[#allocation2 + $0x18] sm:$0xff] %vm657, 0.0
      %661 = vst [vmem:[#allocation2 + $0x20] sm:$0xff] 0.0
      %662 = vst.msk [vmem:[#allocation2 + $0x28] sm:$0xff] %vm657, 0.0
      %663 = vst [vmem:[#allocation2 + $0x30] sm:$0xff] 0.0
      %664 = vst.msk [vmem:[#allocation2 + $0x38] sm:$0xff] %vm657, 0.0
      %665 = vst [vmem:[#allocation2 + $0x40] sm:$0x3] 0.0
      %vm666 = vcmask 58368
      %667 = vst.msk [vmem:[#allocation2 + $0x48] sm:$0x3] %vm666, 0.0
      %668 = vst [vmem:[#allocation3] sm:$0xff] 0.0
      %669 = vst [vmem:[#allocation3 + $0x8] sm:$0xff] 0.0
      %vm670 = vcmask 130048
      %671 = vst.msk [vmem:[#allocation3 + $0x10] sm:$0xff] %vm670, 0.0
      %672 = vst [vmem:[#allocation3 + $0x18] sm:$0xff] 0.0
      %673 = vst [vmem:[#allocation3 + $0x20] sm:$0xff] 0.0
      %674 = vst.msk [vmem:[#allocation3 + $0x28] sm:$0xff] %vm670, 0.0
      %675 = vst [vmem:[#allocation3 + $0x30] sm:$0xff] 0.0
      %676 = vst [vmem:[#allocation3 + $0x38] sm:$0xff] 0.0
      %677 = vst.msk [vmem:[#allocation3 + $0x40] sm:$0xff] %vm670, 0.0
      %678 = vst [vmem:[#allocation3 + $0x48] sm:$0xff] 0.0
      %679 = vst [vmem:[#allocation3 + $0x50] sm:$0xff] 0.0
      %680 = vst.msk [vmem:[#allocation3 + $0x58] sm:$0xff] %vm670, 0.0
      %681 = vst [vmem:[#allocation3 + $0x60] sm:$0x3] 0.0
      %682 = vst [vmem:[#allocation3 + $0x68] sm:$0x3] 0.0
      %vm683 = vcmask 123904
      %684 = vst.msk [vmem:[#allocation3 + $0x70] sm:$0x3] %vm683, 0.0
      %685 = vst [vmem:[#allocation4] sm:$0xff] 0.0
      %686 = vst.msk [vmem:[#allocation4 + $0x8] sm:$0xff] %vm670, 0.0
      %687 = vst [vmem:[#allocation4 + $0x10] sm:$0xff] 0.0
      %688 = vst.msk [vmem:[#allocation4 + $0x18] sm:$0xff] %vm670, 0.0
      %689 = vst [vmem:[#allocation4 + $0x20] sm:$0x3] 0.0
      %690 = vst.msk [vmem:[#allocation4 + $0x28] sm:$0x3] %vm683, 0.0
      %691 = vst [vmem:[#allocation5] sm:$0xff] 0.0
      %692 = vst [vmem:[#allocation5 + $0x8] sm:$0xff] 0.0
      %vm693 = vcmask 261120
      %694 = vst.msk [vmem:[#allocation5 + $0x10] sm:$0xff] %vm693, 0.0
      %695 = vst [vmem:[#allocation5 + $0x18] sm:$0xff] 0.0
      %696 = vst [vmem:[#allocation5 + $0x20] sm:$0xff] 0.0
      %697 = vst.msk [vmem:[#allocation5 + $0x28] sm:$0xff] %vm693, 0.0
      %698 = vst [vmem:[#allocation5 + $0x30] sm:$0x3] 0.0
      %699 = vst [vmem:[#allocation5 + $0x38] sm:$0x3] 0.0
      %vm700 = vcmask 254976
      %701 = vst.msk [vmem:[#allocation5 + $0x40] sm:$0x3] %vm700, 0.0
      %702 = vst [vmem:[#allocation6] sm:$0xff] 0.0
      %703 = vst.msk [vmem:[#allocation6 + $0x8] sm:$0xff] %vm693, 0.0
      %704 = vst [vmem:[#allocation6 + $0x10] sm:$0x3] 0.0
      %705 = vst.msk [vmem:[#allocation6 + $0x18] sm:$0x3] %vm700, 0.0
      %706 = vst [vmem:[#allocation7] sm:$0xff] 0.0
      %707 = vst [vmem:[#allocation7 + $0x8] sm:$0xff] 0.0
      %vm708 = vcmask 523264
      %709 = vst.msk [vmem:[#allocation7 + $0x10] sm:$0xff] %vm708, 0.0
      %710 = vst [vmem:[#allocation7 + $0x18] sm:$0x3] 0.0
      %711 = vst [vmem:[#allocation7 + $0x20] sm:$0x3] 0.0
      %vm712 = vcmask 517120
      %713 = vst.msk [vmem:[#allocation7 + $0x28] sm:$0x3] %vm712, 0.0
      %714 = vst [vmem:[#allocation8] sm:$0x3f] 0.0
      %vm715 = vcmask 521216
      %716 = vst.msk [vmem:[#allocation8 + $0x8] sm:$0x3f] %vm715, 0.0
      %v717 = vld [vmem:[%s651] sm:$0xff]
      %v718 = vld [vmem:[%s651 + $0x8] sm:$0xff]
      %v719 = vld [vmem:[%s651 + $0x10] sm:$0xff]
      %v720 = vld [vmem:[%s651 + $0x18] sm:$0xff]
      %v721 = vld [vmem:[%s651 + $0x20] sm:$0xff]
      %v722 = vld [vmem:[%s651 + $0x28] sm:$0xff]
      %v723 = vld [vmem:[%s651 + $0x30] sm:$0xff]
      %v724 = vld [vmem:[%s651 + $0x38] sm:$0xff]
      %vm733 = vcmask 1040384
      %v734 = vrot.slane %v717, 7
      %v735 = vrot.slane %v718, 7
      %v736 = vrot.slane %v719, 7
      %v737 = vsel %vm733, %v734, %v736
      %v738 = vrot.slane %v720, 7
      %v739 = vsel %vm733, %v735, %v738
      %v740 = vrot.slane %v721, 7
      %v741 = vsel %vm733, %v736, %v740
      %v742 = vrot.slane %v722, 7
      %v743 = vsel %vm733, %v738, %v742
      %v744 = vrot.slane %v723, 7
      %v745 = vsel %vm733, %v740, %v744
      %v746 = vrot.slane %v724, 7
      %v747 = vsel %vm733, %v742, %v746
      %758 = vst [vmem:[#allocation2] sm:$0xfe] %v734
      %vm759 = vcmask 64513
      %760 = vst.msk [vmem:[#allocation2 + $0x8] sm:$0xfe] %vm759, %v735
      %761 = vst [vmem:[#allocation2 + $0x10] sm:$0xff] %v737
      %762 = vst.msk [vmem:[#allocation2 + $0x18] sm:$0xff] %vm657, %v739
      %763 = vst [vmem:[#allocation2 + $0x20] sm:$0xff] %v741
      %764 = vst.msk [vmem:[#allocation2 + $0x28] sm:$0xff] %vm657, %v743
      %765 = vst [vmem:[#allocation2 + $0x30] sm:$0xff] %v745
      %766 = vst.msk [vmem:[#allocation2 + $0x38] sm:$0xff] %vm657, %v747
      %767 = vst [vmem:[#allocation2 + $0x40] sm:$0x1] %v744
      %vm768 = vcmask 57344
      %769 = vst.msk [vmem:[#allocation2 + $0x48] sm:$0x1] %vm768, %v746
      %v770 = vld [vmem:[#allocation2] sm:$0xff]
      %v771 = vld [vmem:[#allocation2 + $0x8] sm:$0xff]
      %v772 = vld [vmem:[#allocation2 + $0x10] sm:$0xff]
      %v773 = vld [vmem:[#allocation2 + $0x18] sm:$0xff]
      %v774 = vld [vmem:[#allocation2 + $0x20] sm:$0xff]
      %v775 = vld [vmem:[#allocation2 + $0x28] sm:$0xff]
      %v776 = vld [vmem:[#allocation2 + $0x30] sm:$0xff]
      %v777 = vld [vmem:[#allocation2 + $0x38] sm:$0xff]
      %v778 = vpack.c.bf16 %v772, %v770
      %v779 = vpack.c.bf16 %v773, %v771
      %v780 = vpack.c.bf16 %v776, %v774
      %v781 = vpack.c.bf16 %v777, %v775
      %v782 = vld [vmem:[%s1] sm:$0xff]
      %v783 = vld [vmem:[%s1 + $0x8] sm:$0xf]
      %v784 = vld [vmem:[%s1 + $0xc] sm:$0xff]
      %v785 = vld [vmem:[%s1 + $0x14] sm:$0xf]
      %v786 = vld [vmem:[%s1 + $0x18] sm:$0xff]
      %v787 = vld [vmem:[%s1 + $0x20] sm:$0xf]
      %v788 = vld [vmem:[%s1 + $0x24] sm:$0xff]
      %v789 = vld [vmem:[%s1 + $0x2c] sm:$0xf]
      %v790 = vld [vmem:[%s1 + $0x30] sm:$0xff]
      %v791 = vld [vmem:[%s1 + $0x38] sm:$0xf]
      %v792 = vld [vmem:[%s1 + $0x3c] sm:$0xff]
      %v793 = vld [vmem:[%s1 + $0x44] sm:$0xf]
      %v794 = vld [vmem:[%s1 + $0x48] sm:$0xff]
      %v795 = vld [vmem:[%s1 + $0x50] sm:$0xf]
      %v796 = vld [vmem:[%s1 + $0x54] sm:$0xff]
      %v797 = vld [vmem:[%s1 + $0x5c] sm:$0xf]
      %v798 = vld [vmem:[%s1 + $0x60] sm:$0xff]
      %v799 = vld [vmem:[%s1 + $0x68] sm:$0xf]
      %v800 = vld [vmem:[%s1 + $0x6c] sm:$0xff]
      %v801 = vld [vmem:[%s1 + $0x74] sm:$0xf]
      %v802 = vld [vmem:[%s1 + $0x78] sm:$0xff]
      %v803 = vld [vmem:[%s1 + $0x80] sm:$0xf]
      %v804 = vld [vmem:[%s1 + $0x84] sm:$0xff]
      %v805 = vld [vmem:[%s1 + $0x8c] sm:$0xf]
      %v806 = vld [vmem:[%s1 + $0x90] sm:$0xff]
      %v807 = vld [vmem:[%s1 + $0x98] sm:$0xf]
      %v808 = vld [vmem:[%s1 + $0x9c] sm:$0xff]
      %v809 = vld [vmem:[%s1 + $0xa4] sm:$0xf]
      %v810 = vld [vmem:[%s1 + $0xa8] sm:$0xff]
      %v811 = vld [vmem:[%s1 + $0xb0] sm:$0xf]
      %v812 = vld [vmem:[%s1 + $0xb4] sm:$0xff]
      %v813 = vld [vmem:[%s1 + $0xbc] sm:$0xf]
      %v814 = vld [vmem:[%s1 + $0xc0] sm:$0xff]
      %v815 = vld [vmem:[%s1 + $0xc8] sm:$0xf]
      %v816 = vld [vmem:[#allocation2] sm:$0xfe]
      %v817 = vld [vmem:[#allocation2 + $0x8] sm:$0xfe]
      %v818 = vld [vmem:[#allocation2 + $0x40] sm:$0x1]
      %v819 = vld [vmem:[#allocation2 + $0x48] sm:$0x1]
      %v820 = vpack.c.bf16 %v772, %v816
      %v821 = vpack.c.bf16 %v773, %v817
      %v822 = vpack.c.bf16 %v818, %v818
      %v823 = vpack.c.bf16 %v819, %v819
      %s824 = scalar_lea.vmem %s1, 204
      %v825 = vld [vmem:[%s824] sm:$0xff]
      %v826 = vld [vmem:[%s824 + $0x8] sm:$0xf]
      %v827 = vld [vmem:[%s824 + $0xc] sm:$0xff]
      %v828 = vld [vmem:[%s824 + $0x14] sm:$0xf]
      %v829 = vld [vmem:[%s824 + $0x18] sm:$0xff]
      %v830 = vld [vmem:[%s824 + $0x20] sm:$0xf]
      %v831 = vld [vmem:[%s824 + $0x24] sm:$0xff]
      %v832 = vld [vmem:[%s824 + $0x2c] sm:$0xf]
      %v833 = vld [vmem:[%s824 + $0x30] sm:$0xff]
      %v834 = vld [vmem:[%s824 + $0x38] sm:$0xf]
      %v835 = vld [vmem:[%s824 + $0x3c] sm:$0xff]
      %v836 = vld [vmem:[%s824 + $0x44] sm:$0xf]
      %v837 = vld [vmem:[%s824 + $0x48] sm:$0xff]
      %v838 = vld [vmem:[%s824 + $0x50] sm:$0xf]
      %v839 = vld [vmem:[%s824 + $0x54] sm:$0xff]
      %v840 = vld [vmem:[%s824 + $0x5c] sm:$0xf]
      %v841 = vld [vmem:[%s824 + $0x60] sm:$0xff]
      %v842 = vld [vmem:[%s824 + $0x68] sm:$0xf]
      %v843 = vld [vmem:[%s824 + $0x6c] sm:$0xff]
      %v844 = vld [vmem:[%s824 + $0x74] sm:$0xf]
      %v845 = vld [vmem:[%s824 + $0x78] sm:$0xff]
      %v846 = vld [vmem:[%s824 + $0x80] sm:$0xf]
      %v847 = vld [vmem:[%s824 + $0x84] sm:$0xff]
      %v848 = vld [vmem:[%s824 + $0x8c] sm:$0xf]
      %v849 = vld [vmem:[%s824 + $0x90] sm:$0xff]
      %v850 = vld [vmem:[%s824 + $0x98] sm:$0xf]
      %v851 = vld [vmem:[%s824 + $0x9c] sm:$0xff]
      %v852 = vld [vmem:[%s824 + $0xa4] sm:$0xf]
      %v853 = vld [vmem:[%s824 + $0xa8] sm:$0xff]
      %v854 = vld [vmem:[%s824 + $0xb0] sm:$0xf]
      %v855 = vld [vmem:[%s824 + $0xb4] sm:$0xff]
      %v856 = vld [vmem:[%s824 + $0xbc] sm:$0xf]
      %v857 = vld [vmem:[%s824 + $0xc0] sm:$0xff]
      %v858 = vld [vmem:[%s824 + $0xc8] sm:$0xf]
      %vm859 = vsmask.f32 7424
      %v861 = vshrl.u32 %v820, 16
      %v863 = vshll.u32 %v820, 16
      %v865 = vrot.slane %v863, 1
      %v866 = vor.u32 %v861, %v865
      %v868 = vshll.u32 %v780, 16
      %v870 = vrot.slane %v868, 1
      %v871 = vsel %vm859, %v866, %v870
      %v873 = vshrl.u32 %v821, 16
      %v875 = vshll.u32 %v821, 16
      %v877 = vrot.slane %v875, 1
      %v878 = vor.u32 %v873, %v877
      %v880 = vshll.u32 %v781, 16
      %v882 = vrot.slane %v880, 1
      %v883 = vsel %vm859, %v878, %v882
      %v884 = vshrl.u32 %v780, 16
      %v886 = vor.u32 %v884, %v870
      %v888 = vshll.u32 %v822, 16
      %v890 = vrot.slane %v888, 1
      %v891 = vsel %vm859, %v886, %v890
      %v892 = vshrl.u32 %v781, 16
      %v894 = vor.u32 %v892, %v882
      %v896 = vshll.u32 %v823, 16
      %v898 = vrot.slane %v896, 1
      %v899 = vsel %vm859, %v894, %v898
      %v936 = vunpack.c.l.b16 %v825
      %v937 = vunpack.c.h.b16 %v825
      %v938 = vunpack.c.l.b16 %v826
      %v939 = vunpack.c.l.b16 %v827
      %v940 = vunpack.c.h.b16 %v827
      %v941 = vunpack.c.l.b16 %v828
      %v942 = vunpack.c.l.b16 %v829
      %v943 = vunpack.c.h.b16 %v829
      %v944 = vunpack.c.l.b16 %v830
      %v945 = vunpack.c.l.b16 %v831
      %v946 = vunpack.c.h.b16 %v831
      %v947 = vunpack.c.l.b16 %v832
      %v948 = vunpack.c.l.b16 %v833
      %v949 = vunpack.c.h.b16 %v833
      %v950 = vunpack.c.l.b16 %v834
      %v951 = vunpack.c.l.b16 %v835
      %v952 = vunpack.c.h.b16 %v835
      %v953 = vunpack.c.l.b16 %v836
      %v954 = vunpack.c.l.b16 %v837
      %v955 = vunpack.c.h.b16 %v837
      %v956 = vunpack.c.l.b16 %v838
      %v957 = vunpack.c.l.b16 %v839
      %v958 = vunpack.c.h.b16 %v839
      %v959 = vunpack.c.l.b16 %v840
      %v960 = vunpack.c.l.b16 %v841
      %v961 = vunpack.c.h.b16 %v841
      %v962 = vunpack.c.l.b16 %v842
      %v963 = vunpack.c.l.b16 %v843
      %v964 = vunpack.c.h.b16 %v843
      %v965 = vunpack.c.l.b16 %v844
      %v966 = vunpack.c.l.b16 %v845
      %v967 = vunpack.c.h.b16 %v845
      %v968 = vunpack.c.l.b16 %v846
      %v969 = vunpack.c.l.b16 %v847
      %v970 = vunpack.c.h.b16 %v847
      %v971 = vunpack.c.l.b16 %v848
      %v972 = vunpack.c.l.b16 %v849
      %v973 = vunpack.c.h.b16 %v849
      %v974 = vunpack.c.l.b16 %v850
      %v975 = vunpack.c.l.b16 %v851
      %v976 = vunpack.c.h.b16 %v851
      %v977 = vunpack.c.l.b16 %v852
      %v978 = vunpack.c.l.b16 %v853
      %v979 = vunpack.c.h.b16 %v853
      %v980 = vunpack.c.l.b16 %v854
      %v981 = vunpack.c.l.b16 %v855
      %v982 = vunpack.c.h.b16 %v855
      %v983 = vunpack.c.l.b16 %v856
      %v984 = vunpack.c.l.b16 %v857
      %v985 = vunpack.c.h.b16 %v857
      %v986 = vunpack.c.l.b16 %v858
      %v987 = vpack.c.b16 %v939, %v936
      %v988 = vpack.c.b16 %v940, %v937
      %v989 = vpack.c.b16 %v941, %v938
      %v990 = vpack.c.b16 %v945, %v942
      %v991 = vpack.c.b16 %v946, %v943
      %v992 = vpack.c.b16 %v947, %v944
      %v993 = vpack.c.b16 %v951, %v948
      %v994 = vpack.c.b16 %v952, %v949
      %v995 = vpack.c.b16 %v953, %v950
      %v996 = vpack.c.b16 %v957, %v954
      %v997 = vpack.c.b16 %v958, %v955
      %v998 = vpack.c.b16 %v959, %v956
      %v999 = vpack.c.b16 %v963, %v960
      %v1000 = vpack.c.b16 %v964, %v961
      %v1001 = vpack.c.b16 %v965, %v962
      %v1002 = vpack.c.b16 %v969, %v966
      %v1003 = vpack.c.b16 %v970, %v967
      %v1004 = vpack.c.b16 %v971, %v968
      %v1005 = vpack.c.b16 %v975, %v972
      %v1006 = vpack.c.b16 %v976, %v973
      %v1007 = vpack.c.b16 %v977, %v974
      %v1008 = vpack.c.b16 %v981, %v978
      %v1009 = vpack.c.b16 %v982, %v979
      %v1010 = vpack.c.b16 %v983, %v980
      %v1011 = vpack.c.b16 %v984, %v984
      %v1012 = vpack.c.b16 %v985, %v985
      %v1013 = vpack.c.b16 %v986, %v986
      %v1039 = vsel %vm657, %v883, 0
      %v1042 = vsel %vm657, %v899, 0
      %vm1044 = vcmask 1043456
      %v1046 = vsel %vm1044, %v1011, 0
      %v1049 = vsel %vm1044, %v1012, 0
      %v1052 = vsel %vm1044, %v1013, 0
      %1054 = vmatprep.subr.bf16.mxu0 %v988
      %1055 = vmatpush1.bf16.msra.mxu0 %v987
      %1056 = vmatprep.subr.bf16.mxu0 %v991
      %1057 = vmatpush1.bf16.msra.mxu0 %v990
      %1058 = vmatprep.subr.bf16.mxu0 %v994
      %1059 = vmatpush1.bf16.msra.mxu0 %v993
      %1060 = vmatprep.subr.bf16.mxu0 %v997
      %1061 = vmatpush1.bf16.msra.mxu0 %v996
      %1062 = vmatprep.subr.bf16.mxu0 %v1000
      %1063 = vmatpush1.bf16.msra.mxu0 %v999
      %1064 = vmatprep.subr.bf16.mxu0 %v1003
      %1065 = vmatpush1.bf16.msra.mxu0 %v1002
      %1066 = vmatprep.subr.bf16.mxu0 %v1006
      %1067 = vmatpush1.bf16.msra.mxu0 %v1005
      %1068 = vmatprep.subr.bf16.mxu0 %v1009
      %1069 = vmatpush1.bf16.msra.mxu0 %v1008
      %1070 = vmatprep.subr.bf16.mxu0 %v1049
      %1071 = vmatpush1.bf16.msra.mxu0 %v1046
      %1072 = vmatprep.subr.bf16.mxu0 0
      %1073 = vmatpush1.bf16.msra.mxu0 0
      %1074 = vmatprep.subr.bf16.mxu0 0
      %1075 = vmatpush1.bf16.msra.mxu0 0
      %1076 = vmatprep.subr.bf16.mxu0 0
      %1077 = vmatpush1.bf16.msra.mxu0 0
      %1078 = vmatprep.subr.bf16.mxu0 0
      %1079 = vmatpush1.bf16.msra.mxu0 0
      %1080 = vmatprep.subr.bf16.mxu0 0
      %1081 = vmatpush1.bf16.msra.mxu0 0
      %1082 = vmatprep.subr.bf16.mxu0 0
      %1083 = vmatpush1.bf16.msra.mxu0 0
      %1084 = vmatprep.subr.bf16.mxu0 0
      %1085 = vmatpush1.bf16.msra.mxu0 0
      %1086 = vmatprep.mubr.bf16.mxu0 %v1039
      %1087 = vmatmul.mubr.bf16.gmra.mrb[0].mxu0 %v871
      %v1088 = vpop.f32.mrb[0].mxu0
      %v1089 = vadd.f32 0.0, %v1088
      %v1090 = vpop.f32.mrb[0].mxu0
      %v1091 = vadd.f32 0.0, %v1090
      %v1092 = vpop.f32.mrb[0].mxu0
      %v1093 = vadd.f32 0.0, %v1092
      %v1094 = vpop.f32.mrb[0].mxu0
      %v1095 = vadd.f32 0.0, %v1094
      %1096 = vmatprep.mubr.bf16.mxu0 %v1042
      %1097 = vmatmul.mubr.bf16.gmra.mrb[0].mxu0 %v891
      %v1098 = vpop.f32.mrb[0].mxu0
      %v1099 = vadd.f32 0.0, %v1098
      %v1100 = vpop.f32.mrb[0].mxu0
      %v1101 = vadd.f32 0.0, %v1100
      %v1102 = vpop.f32.mrb[0].mxu0
      %v1103 = vadd.f32 0.0, %v1102
      %v1104 = vpop.f32.mrb[0].mxu0
      %v1105 = vadd.f32 0.0, %v1104
      %1106 = vdwg.mxu0
      %1107 = vmatprep.subr.bf16.mxu0 0
      %1108 = vmatpush1.bf16.msra.mxu0 %v989
      %1109 = vmatprep.subr.bf16.mxu0 0
      %1110 = vmatpush1.bf16.msra.mxu0 %v992
      %1111 = vmatprep.subr.bf16.mxu0 0
      %1112 = vmatpush1.bf16.msra.mxu0 %v995
      %1113 = vmatprep.subr.bf16.mxu0 0
      %1114 = vmatpush1.bf16.msra.mxu0 %v998
      %1115 = vmatprep.subr.bf16.mxu0 0
      %1116 = vmatpush1.bf16.msra.mxu0 %v1001
      %1117 = vmatprep.subr.bf16.mxu0 0
      %1118 = vmatpush1.bf16.msra.mxu0 %v1004
      %1119 = vmatprep.subr.bf16.mxu0 0
      %1120 = vmatpush1.bf16.msra.mxu0 %v1007
      %1121 = vmatprep.subr.bf16.mxu0 0
      %1122 = vmatpush1.bf16.msra.mxu0 %v1010
      %1123 = vmatprep.subr.bf16.mxu0 0
      %1124 = vmatpush1.bf16.msra.mxu0 %v1052
      %1125 = vmatprep.subr.bf16.mxu0 0
      %1126 = vmatpush1.bf16.msra.mxu0 0
      %1127 = vmatprep.subr.bf16.mxu0 0
      %1128 = vmatpush1.bf16.msra.mxu0 0
      %1129 = vmatprep.subr.bf16.mxu0 0
      %1130 = vmatpush1.bf16.msra.mxu0 0
      %1131 = vmatprep.subr.bf16.mxu0 0
      %1132 = vmatpush1.bf16.msra.mxu0 0
      %1133 = vmatprep.subr.bf16.mxu0 0
      %1134 = vmatpush1.bf16.msra.mxu0 0
      %1135 = vmatprep.subr.bf16.mxu0 0
      %1136 = vmatpush1.bf16.msra.mxu0 0
      %1137 = vmatprep.subr.bf16.mxu0 0
      %1138 = vmatpush1.bf16.msra.mxu0 0
      %1139 = vmatprep.mubr.bf16.mxu0 %v1039
      %1140 = vmatmul.mubr.bf16.gmra.mrb[0].mxu0 %v871
      %v1141 = vpop.f32.mrb[0].mxu0
      %v1142 = vadd.f32 0.0, %v1141
      %v1143 = vpop.f32.mrb[0].mxu0
      %v1144 = vpop.f32.mrb[0].mxu0
      %v1145 = vadd.f32 0.0, %v1144
      %v1146 = vpop.f32.mrb[0].mxu0
      %1147 = vmatprep.mubr.bf16.mxu0 %v1042
      %1148 = vmatmul.mubr.bf16.gmra.mrb[0].mxu0 %v891
      %v1149 = vpop.f32.mrb[0].mxu0
      %v1150 = vadd.f32 0.0, %v1149
      %v1151 = vpop.f32.mrb[0].mxu0
      %v1152 = vpop.f32.mrb[0].mxu0
      %v1153 = vadd.f32 0.0, %v1152
      %v1154 = vpop.f32.mrb[0].mxu0
      %1155 = vdwg.mxu0
      %v1190 = vunpack.c.l.b16 %v782
      %v1191 = vunpack.c.h.b16 %v782
      %v1192 = vunpack.c.l.b16 %v783
      %v1193 = vunpack.c.l.b16 %v784
      %v1194 = vunpack.c.h.b16 %v784
      %v1195 = vunpack.c.l.b16 %v785
      %v1196 = vunpack.c.l.b16 %v786
      %v1197 = vunpack.c.h.b16 %v786
      %v1198 = vunpack.c.l.b16 %v787
      %v1199 = vunpack.c.l.b16 %v788
      %v1200 = vunpack.c.h.b16 %v788
      %v1201 = vunpack.c.l.b16 %v789
      %v1202 = vunpack.c.l.b16 %v790
      %v1203 = vunpack.c.h.b16 %v790
      %v1204 = vunpack.c.l.b16 %v791
      %v1205 = vunpack.c.l.b16 %v792
      %v1206 = vunpack.c.h.b16 %v792
      %v1207 = vunpack.c.l.b16 %v793
      %v1208 = vunpack.c.l.b16 %v794
      %v1209 = vunpack.c.h.b16 %v794
      %v1210 = vunpack.c.l.b16 %v795
      %v1211 = vunpack.c.l.b16 %v796
      %v1212 = vunpack.c.h.b16 %v796
      %v1213 = vunpack.c.l.b16 %v797
      %v1214 = vunpack.c.l.b16 %v798
      %v1215 = vunpack.c.h.b16 %v798
      %v1216 = vunpack.c.l.b16 %v799
      %v1217 = vunpack.c.l.b16 %v800
      %v1218 = vunpack.c.h.b16 %v800
      %v1219 = vunpack.c.l.b16 %v801
      %v1220 = vunpack.c.l.b16 %v802
      %v1221 = vunpack.c.h.b16 %v802
      %v1222 = vunpack.c.l.b16 %v803
      %v1223 = vunpack.c.l.b16 %v804
      %v1224 = vunpack.c.h.b16 %v804
      %v1225 = vunpack.c.l.b16 %v805
      %v1226 = vunpack.c.l.b16 %v806
      %v1227 = vunpack.c.h.b16 %v806
      %v1228 = vunpack.c.l.b16 %v807
      %v1229 = vunpack.c.l.b16 %v808
      %v1230 = vunpack.c.h.b16 %v808
      %v1231 = vunpack.c.l.b16 %v809
      %v1232 = vunpack.c.l.b16 %v810
      %v1233 = vunpack.c.h.b16 %v810
      %v1234 = vunpack.c.l.b16 %v811
      %v1235 = vunpack.c.l.b16 %v812
      %v1236 = vunpack.c.h.b16 %v812
      %v1237 = vunpack.c.l.b16 %v813
      %v1238 = vunpack.c.l.b16 %v814
      %v1239 = vunpack.c.h.b16 %v814
      %v1240 = vunpack.c.l.b16 %v815
      %v1241 = vpack.c.b16 %v1193, %v1190
      %v1242 = vpack.c.b16 %v1194, %v1191
      %v1243 = vpack.c.b16 %v1195, %v1192
      %v1244 = vpack.c.b16 %v1199, %v1196
      %v1245 = vpack.c.b16 %v1200, %v1197
      %v1246 = vpack.c.b16 %v1201, %v1198
      %v1247 = vpack.c.b16 %v1205, %v1202
      %v1248 = vpack.c.b16 %v1206, %v1203
      %v1249 = vpack.c.b16 %v1207, %v1204
      %v1250 = vpack.c.b16 %v1211, %v1208
      %v1251 = vpack.c.b16 %v1212, %v1209
      %v1252 = vpack.c.b16 %v1213, %v1210
      %v1253 = vpack.c.b16 %v1217, %v1214
      %v1254 = vpack.c.b16 %v1218, %v1215
      %v1255 = vpack.c.b16 %v1219, %v1216
      %v1256 = vpack.c.b16 %v1223, %v1220
      %v1257 = vpack.c.b16 %v1224, %v1221
      %v1258 = vpack.c.b16 %v1225, %v1222
      %v1259 = vpack.c.b16 %v1229, %v1226
      %v1260 = vpack.c.b16 %v1230, %v1227
      %v1261 = vpack.c.b16 %v1231, %v1228
      %v1262 = vpack.c.b16 %v1235, %v1232
      %v1263 = vpack.c.b16 %v1236, %v1233
      %v1264 = vpack.c.b16 %v1237, %v1234
      %v1265 = vpack.c.b16 %v1238, %v1238
      %v1266 = vpack.c.b16 %v1239, %v1239
      %v1267 = vpack.c.b16 %v1240, %v1240
      %v1293 = vsel %vm657, %v779, 0
      %v1295 = vsel %vm657, %v781, 0
      %v1298 = vsel %vm1044, %v1265, 0
      %v1301 = vsel %vm1044, %v1266, 0
      %v1304 = vsel %vm1044, %v1267, 0
      %1306 = vmatprep.subr.bf16.mxu0 %v1242
      %1307 = vmatpush1.bf16.msra.mxu0 %v1241
      %1308 = vmatprep.subr.bf16.mxu0 %v1245
      %1309 = vmatpush1.bf16.msra.mxu0 %v1244
      %1310 = vmatprep.subr.bf16.mxu0 %v1248
      %1311 = vmatpush1.bf16.msra.mxu0 %v1247
      %1312 = vmatprep.subr.bf16.mxu0 %v1251
      %1313 = vmatpush1.bf16.msra.mxu0 %v1250
      %1314 = vmatprep.subr.bf16.mxu0 %v1254
      %1315 = vmatpush1.bf16.msra.mxu0 %v1253
      %1316 = vmatprep.subr.bf16.mxu0 %v1257
      %1317 = vmatpush1.bf16.msra.mxu0 %v1256
      %1318 = vmatprep.subr.bf16.mxu0 %v1260
      %1319 = vmatpush1.bf16.msra.mxu0 %v1259
      %1320 = vmatprep.subr.bf16.mxu0 %v1263
      %1321 = vmatpush1.bf16.msra.mxu0 %v1262
      %1322 = vmatprep.subr.bf16.mxu0 %v1301
      %1323 = vmatpush1.bf16.msra.mxu0 %v1298
      %1324 = vmatprep.subr.bf16.mxu0 0
      %1325 = vmatpush1.bf16.msra.mxu0 0
      %1326 = vmatprep.subr.bf16.mxu0 0
      %1327 = vmatpush1.bf16.msra.mxu0 0
      %1328 = vmatprep.subr.bf16.mxu0 0
      %1329 = vmatpush1.bf16.msra.mxu0 0
      %1330 = vmatprep.subr.bf16.mxu0 0
      %1331 = vmatpush1.bf16.msra.mxu0 0
      %1332 = vmatprep.subr.bf16.mxu0 0
      %1333 = vmatpush1.bf16.msra.mxu0 0
      %1334 = vmatprep.subr.bf16.mxu0 0
      %1335 = vmatpush1.bf16.msra.mxu0 0
      %1336 = vmatprep.subr.bf16.mxu0 0
      %1337 = vmatpush1.bf16.msra.mxu0 0
      %1338 = vmatprep.mubr.bf16.mxu0 %v1293
      %1339 = vmatmul.mubr.bf16.gmra.mrb[0].mxu0 %v778
      %v1340 = vpop.f32.mrb[0].mxu0
      %v1341 = vadd.f32 %v1089, %v1340
      %v1342 = vpop.f32.mrb[0].mxu0
      %v1343 = vadd.f32 %v1091, %v1342
      %v1344 = vpop.f32.mrb[0].mxu0
      %v1345 = vadd.f32 %v1093, %v1344
      %v1346 = vpop.f32.mrb[0].mxu0
      %v1347 = vadd.f32 %v1095, %v1346
      %1348 = vmatprep.mubr.bf16.mxu0 %v1295
      %1349 = vmatmul.mubr.bf16.gmra.mrb[0].mxu0 %v780
      %v1350 = vpop.f32.mrb[0].mxu0
      %v1351 = vadd.f32 %v1099, %v1350
      %v1352 = vpop.f32.mrb[0].mxu0
      %v1353 = vadd.f32 %v1101, %v1352
      %v1354 = vpop.f32.mrb[0].mxu0
      %v1355 = vadd.f32 %v1103, %v1354
      %v1356 = vpop.f32.mrb[0].mxu0
      %v1357 = vadd.f32 %v1105, %v1356
      %1358 = vdwg.mxu0
      %1359 = vmatprep.subr.bf16.mxu0 0
      %1360 = vmatpush1.bf16.msra.mxu0 %v1243
      %1361 = vmatprep.subr.bf16.mxu0 0
      %1362 = vmatpush1.bf16.msra.mxu0 %v1246
      %1363 = vmatprep.subr.bf16.mxu0 0
      %1364 = vmatpush1.bf16.msra.mxu0 %v1249
      %1365 = vmatprep.subr.bf16.mxu0 0
      %1366 = vmatpush1.bf16.msra.mxu0 %v1252
      %1367 = vmatprep.subr.bf16.mxu0 0
      %1368 = vmatpush1.bf16.msra.mxu0 %v1255
      %1369 = vmatprep.subr.bf16.mxu0 0
      %1370 = vmatpush1.bf16.msra.mxu0 %v1258
      %1371 = vmatprep.subr.bf16.mxu0 0
      %1372 = vmatpush1.bf16.msra.mxu0 %v1261
      %1373 = vmatprep.subr.bf16.mxu0 0
      %1374 = vmatpush1.bf16.msra.mxu0 %v1264
      %1375 = vmatprep.subr.bf16.mxu0 0
      %1376 = vmatpush1.bf16.msra.mxu0 %v1304
      %1377 = vmatprep.subr.bf16.mxu0 0
      %1378 = vmatpush1.bf16.msra.mxu0 0
      %1379 = vmatprep.subr.bf16.mxu0 0
      %1380 = vmatpush1.bf16.msra.mxu0 0
      %1381 = vmatprep.subr.bf16.mxu0 0
      %1382 = vmatpush1.bf16.msra.mxu0 0
      %1383 = vmatprep.subr.bf16.mxu0 0
      %1384 = vmatpush1.bf16.msra.mxu0 0
      %1385 = vmatprep.subr.bf16.mxu0 0
      %1386 = vmatpush1.bf16.msra.mxu0 0
      %1387 = vmatprep.subr.bf16.mxu0 0
      %1388 = vmatpush1.bf16.msra.mxu0 0
      %1389 = vmatprep.subr.bf16.mxu0 0
      %1390 = vmatpush1.bf16.msra.mxu0 0
      %1391 = vmatprep.mubr.bf16.mxu0 %v1293
      %1392 = vmatmul.mubr.bf16.gmra.mrb[0].mxu0 %v778
      %v1393 = vpop.f32.mrb[0].mxu0
      %v1394 = vadd.f32 %v1142, %v1393
      %v1395 = vpop.f32.mrb[0].mxu0
      %v1396 = vpop.f32.mrb[0].mxu0
      %v1397 = vadd.f32 %v1145, %v1396
      %v1398 = vpop.f32.mrb[0].mxu0
      %1399 = vmatprep.mubr.bf16.mxu0 %v1295
      %1400 = vmatmul.mubr.bf16.gmra.mrb[0].mxu0 %v780
      %v1401 = vpop.f32.mrb[0].mxu0
      %v1402 = vadd.f32 %v1150, %v1401
      %v1403 = vpop.f32.mrb[0].mxu0
      %v1404 = vpop.f32.mrb[0].mxu0
      %v1405 = vadd.f32 %v1153, %v1404
      %v1406 = vpop.f32.mrb[0].mxu0
      %1407 = vdwg.mxu0
      %v1408 = vld [vmem:[#allocation2] sm:$0xfc]
      %v1409 = vld [vmem:[#allocation2 + $0x8] sm:$0xfc]
      %v1410 = vld [vmem:[#allocation2 + $0x40] sm:$0x3]
      %v1411 = vld [vmem:[#allocation2 + $0x48] sm:$0x3]
      %v1412 = vpack.c.bf16 %v772, %v1408
      %v1413 = vpack.c.bf16 %v773, %v1409
      %v1414 = vpack.c.bf16 %v1410, %v1410
      %v1415 = vpack.c.bf16 %v1411, %v1411
      %s1416 = scalar_lea.vmem %s1, 408
      %v1417 = vld [vmem:[%s1416] sm:$0xff]
      %v1418 = vld [vmem:[%s1416 + $0x8] sm:$0xf]
      %v1419 = vld [vmem:[%s1416 + $0xc] sm:$0xff]
      %v1420 = vld [vmem:[%s1416 + $0x14] sm:$0xf]
      %v1421 = vld [vmem:[%s1416 + $0x18] sm:$0xff]
      %v1422 = vld [vmem:[%s1416 + $0x20] sm:$0xf]
      %v1423 = vld [vmem:[%s1416 + $0x24] sm:$0xff]
      %v1424 = vld [vmem:[%s1416 + $0x2c] sm:$0xf]
      %v1425 = vld [vmem:[%s1416 + $0x30] sm:$0xff]
      %v1426 = vld [vmem:[%s1416 + $0x38] sm:$0xf]
      %v1427 = vld [vmem:[%s1416 + $0x3c] sm:$0xff]
      %v1428 = vld [vmem:[%s1416 + $0x44] sm:$0xf]
      %v1429 = vld [vmem:[%s1416 + $0x48] sm:$0xff]
      %v1430 = vld [vmem:[%s1416 + $0x50] sm:$0xf]
      %v1431 = vld [vmem:[%s1416 + $0x54] sm:$0xff]
      %v1432 = vld [vmem:[%s1416 + $0x5c] sm:$0xf]
      %v1433 = vld [vmem:[%s1416 + $0x60] sm:$0xff]
      %v1434 = vld [vmem:[%s1416 + $0x68] sm:$0xf]
      %v1435 = vld [vmem:[%s1416 + $0x6c] sm:$0xff]
      %v1436 = vld [vmem:[%s1416 + $0x74] sm:$0xf]
      %v1437 = vld [vmem:[%s1416 + $0x78] sm:$0xff]
      %v1438 = vld [vmem:[%s1416 + $0x80] sm:$0xf]
      %v1439 = vld [vmem:[%s1416 + $0x84] sm:$0xff]
      %v1440 = vld [vmem:[%s1416 + $0x8c] sm:$0xf]
      %v1441 = vld [vmem:[%s1416 + $0x90] sm:$0xff]
      %v1442 = vld [vmem:[%s1416 + $0x98] sm:$0xf]
      %v1443 = vld [vmem:[%s1416 + $0x9c] sm:$0xff]
      %v1444 = vld [vmem:[%s1416 + $0xa4] sm:$0xf]
      %v1445 = vld [vmem:[%s1416 + $0xa8] sm:$0xff]
      %v1446 = vld [vmem:[%s1416 + $0xb0] sm:$0xf]
      %v1447 = vld [vmem:[%s1416 + $0xb4] sm:$0xff]
      %v1448 = vld [vmem:[%s1416 + $0xbc] sm:$0xf]
      %v1449 = vld [vmem:[%s1416 + $0xc0] sm:$0xff]
      %v1450 = vld [vmem:[%s1416 + $0xc8] sm:$0xf]
      %vm1457 = vcmask 1046528
      %v1458 = vrot.slane %v1412, 1
      %v1459 = vrot.slane %v780, 1
      %v1460 = vsel %vm1457, %v1458, %v1459
      %v1461 = vrot.slane %v1413, 1
      %v1462 = vrot.slane %v781, 1
      %v1463 = vsel %vm1457, %v1461, %v1462
      %v1464 = vrot.slane %v1414, 1
      %v1465 = vsel %vm1457, %v1459, %v1464
      %v1466 = vrot.slane %v1415, 1
      %v1467 = vsel %vm1457, %v1462, %v1466
      %v1504 = vunpack.c.l.b16 %v1417
      %v1505 = vunpack.c.h.b16 %v1417
      %v1506 = vunpack.c.l.b16 %v1418
      %v1507 = vunpack.c.l.b16 %v1419
      %v1508 = vunpack.c.h.b16 %v1419
      %v1509 = vunpack.c.l.b16 %v1420
      %v1510 = vunpack.c.l.b16 %v1421
      %v1511 = vunpack.c.h.b16 %v1421
      %v1512 = vunpack.c.l.b16 %v1422
      %v1513 = vunpack.c.l.b16 %v1423
      %v1514 = vunpack.c.h.b16 %v1423
      %v1515 = vunpack.c.l.b16 %v1424
      %v1516 = vunpack.c.l.b16 %v1425
      %v1517 = vunpack.c.h.b16 %v1425
      %v1518 = vunpack.c.l.b16 %v1426
      %v1519 = vunpack.c.l.b16 %v1427
      %v1520 = vunpack.c.h.b16 %v1427
      %v1521 = vunpack.c.l.b16 %v1428
      %v1522 = vunpack.c.l.b16 %v1429
      %v1523 = vunpack.c.h.b16 %v1429
      %v1524 = vunpack.c.l.b16 %v1430
      %v1525 = vunpack.c.l.b16 %v1431
      %v1526 = vunpack.c.h.b16 %v1431
      %v1527 = vunpack.c.l.b16 %v1432
      %v1528 = vunpack.c.l.b16 %v1433
      %v1529 = vunpack.c.h.b16 %v1433
      %v1530 = vunpack.c.l.b16 %v1434
      %v1531 = vunpack.c.l.b16 %v1435
      %v1532 = vunpack.c.h.b16 %v1435
      %v1533 = vunpack.c.l.b16 %v1436
      %v1534 = vunpack.c.l.b16 %v1437
      %v1535 = vunpack.c.h.b16 %v1437
      %v1536 = vunpack.c.l.b16 %v1438
      %v1537 = vunpack.c.l.b16 %v1439
      %v1538 = vunpack.c.h.b16 %v1439
      %v1539 = vunpack.c.l.b16 %v1440
      %v1540 = vunpack.c.l.b16 %v1441
      %v1541 = vunpack.c.h.b16 %v1441
      %v1542 = vunpack.c.l.b16 %v1442
      %v1543 = vunpack.c.l.b16 %v1443
      %v1544 = vunpack.c.h.b16 %v1443
      %v1545 = vunpack.c.l.b16 %v1444
      %v1546 = vunpack.c.l.b16 %v1445
      %v1547 = vunpack.c.h.b16 %v1445
      %v1548 = vunpack.c.l.b16 %v1446
      %v1549 = vunpack.c.l.b16 %v1447
      %v1550 = vunpack.c.h.b16 %v1447
      %v1551 = vunpack.c.l.b16 %v1448
      %v1552 = vunpack.c.l.b16 %v1449
      %v1553 = vunpack.c.h.b16 %v1449
      %v1554 = vunpack.c.l.b16 %v1450
      %v1555 = vpack.c.b16 %v1507, %v1504
      %v1556 = vpack.c.b16 %v1508, %v1505
      %v1557 = vpack.c.b16 %v1509, %v1506
      %v1558 = vpack.c.b16 %v1513, %v1510
      %v1559 = vpack.c.b16 %v1514, %v1511
      %v1560 = vpack.c.b16 %v1515, %v1512
      %v1561 = vpack.c.b16 %v1519, %v1516
      %v1562 = vpack.c.b16 %v1520, %v1517
      %v1563 = vpack.c.b16 %v1521, %v1518
      %v1564 = vpack.c.b16 %v1525, %v1522
      %v1565 = vpack.c.b16 %v1526, %v1523
      %v1566 = vpack.c.b16 %v1527, %v1524
      %v1567 = vpack.c.b16 %v1531, %v1528
      %v1568 = vpack.c.b16 %v1532, %v1529
      %v1569 = vpack.c.b16 %v1533, %v1530
      %v1570 = vpack.c.b16 %v1537, %v1534
      %v1571 = vpack.c.b16 %v1538, %v1535
      %v1572 = vpack.c.b16 %v1539, %v1536
      %v1573 = vpack.c.b16 %v1543, %v1540
      %v1574 = vpack.c.b16 %v1544, %v1541
      %v1575 = vpack.c.b16 %v1545, %v1542
      %v1576 = vpack.c.b16 %v1549, %v1546
      %v1577 = vpack.c.b16 %v1550, %v1547
      %v1578 = vpack.c.b16 %v1551, %v1548
      %v1579 = vpack.c.b16 %v1552, %v1552
      %v1580 = vpack.c.b16 %v1553, %v1553
      %v1581 = vpack.c.b16 %v1554, %v1554
      %v1607 = vsel %vm657, %v1463, 0
      %v1610 = vsel %vm657, %v1467, 0
      %v1613 = vsel %vm1044, %v1579, 0
      %v1616 = vsel %vm1044, %v1580, 0
      %v1619 = vsel %vm1044, %v1581, 0
      %1621 = vmatprep.subr.bf16.mxu0 %v1556
      %1622 = vmatpush1.bf16.msra.mxu0 %v1555
      %1623 = vmatprep.subr.bf16.mxu0 %v1559
      %1624 = vmatpush1.bf16.msra.mxu0 %v1558
      %1625 = vmatprep.subr.bf16.mxu0 %v1562
      %1626 = vmatpush1.bf16.msra.mxu0 %v1561
      %1627 = vmatprep.subr.bf16.mxu0 %v1565
      %1628 = vmatpush1.bf16.msra.mxu0 %v1564
      %1629 = vmatprep.subr.bf16.mxu0 %v1568
      %1630 = vmatpush1.bf16.msra.mxu0 %v1567
      %1631 = vmatprep.subr.bf16.mxu0 %v1571
      %1632 = vmatpush1.bf16.msra.mxu0 %v1570
      %1633 = vmatprep.subr.bf16.mxu0 %v1574
      %1634 = vmatpush1.bf16.msra.mxu0 %v1573
      %1635 = vmatprep.subr.bf16.mxu0 %v1577
      %1636 = vmatpush1.bf16.msra.mxu0 %v1576
      %1637 = vmatprep.subr.bf16.mxu0 %v1616
      %1638 = vmatpush1.bf16.msra.mxu0 %v1613
      %1639 = vmatprep.subr.bf16.mxu0 0
      %1640 = vmatpush1.bf16.msra.mxu0 0
      %1641 = vmatprep.subr.bf16.mxu0 0
      %1642 = vmatpush1.bf16.msra.mxu0 0
      %1643 = vmatprep.subr.bf16.mxu0 0
      %1644 = vmatpush1.bf16.msra.mxu0 0
      %1645 = vmatprep.subr.bf16.mxu0 0
      %1646 = vmatpush1.bf16.msra.mxu0 0
      %1647 = vmatprep.subr.bf16.mxu0 0
      %1648 = vmatpush1.bf16.msra.mxu0 0
      %1649 = vmatprep.subr.bf16.mxu0 0
      %1650 = vmatpush1.bf16.msra.mxu0 0
      %1651 = vmatprep.subr.bf16.mxu0 0
      %1652 = vmatpush1.bf16.msra.mxu0 0
      %1653 = vmatprep.mubr.bf16.mxu0 %v1607
      %1654 = vmatmul.mubr.bf16.gmra.mrb[0].mxu0 %v1460
      %v1655 = vpop.f32.mrb[0].mxu0
      %v1656 = vadd.f32 0.0, %v1655
      %v1657 = vpop.f32.mrb[0].mxu0
      %v1658 = vadd.f32 0.0, %v1657
      %v1659 = vpop.f32.mrb[0].mxu0
      %v1660 = vadd.f32 0.0, %v1659
      %v1661 = vpop.f32.mrb[0].mxu0
      %v1662 = vadd.f32 0.0, %v1661
      %1663 = vmatprep.mubr.bf16.mxu0 %v1610
      %1664 = vmatmul.mubr.bf16.gmra.mrb[0].mxu0 %v1465
      %v1665 = vpop.f32.mrb[0].mxu0
      %v1666 = vadd.f32 0.0, %v1665
      %v1667 = vpop.f32.mrb[0].mxu0
      %v1668 = vadd.f32 0.0, %v1667
      %v1669 = vpop.f32.mrb[0].mxu0
      %v1670 = vadd.f32 0.0, %v1669
      %v1671 = vpop.f32.mrb[0].mxu0
      %v1672 = vadd.f32 0.0, %v1671
      %1673 = vdwg.mxu0
      %1674 = vmatprep.subr.bf16.mxu0 0
      %1675 = vmatpush1.bf16.msra.mxu0 %v1557
      %1676 = vmatprep.subr.bf16.mxu0 0
      %1677 = vmatpush1.bf16.msra.mxu0 %v1560
      %1678 = vmatprep.subr.bf16.mxu0 0
      %1679 = vmatpush1.bf16.msra.mxu0 %v1563
      %1680 = vmatprep.subr.bf16.mxu0 0
      %1681 = vmatpush1.bf16.msra.mxu0 %v1566
      %1682 = vmatprep.subr.bf16.mxu0 0
      %1683 = vmatpush1.bf16.msra.mxu0 %v1569
      %1684 = vmatprep.subr.bf16.mxu0 0
      %1685 = vmatpush1.bf16.msra.mxu0 %v1572
      %1686 = vmatprep.subr.bf16.mxu0 0
      %1687 = vmatpush1.bf16.msra.mxu0 %v1575
      %1688 = vmatprep.subr.bf16.mxu0 0
      %1689 = vmatpush1.bf16.msra.mxu0 %v1578
      %1690 = vmatprep.subr.bf16.mxu0 0
      %1691 = vmatpush1.bf16.msra.mxu0 %v1619
      %1692 = vmatprep.subr.bf16.mxu0 0
      %1693 = vmatpush1.bf16.msra.mxu0 0
      %1694 = vmatprep.subr.bf16.mxu0 0
      %1695 = vmatpush1.bf16.msra.mxu0 0
      %1696 = vmatprep.subr.bf16.mxu0 0
      %1697 = vmatpush1.bf16.msra.mxu0 0
      %1698 = vmatprep.subr.bf16.mxu0 0
      %1699 = vmatpush1.bf16.msra.mxu0 0
      %1700 = vmatprep.subr.bf16.mxu0 0
      %1701 = vmatpush1.bf16.msra.mxu0 0
      %1702 = vmatprep.subr.bf16.mxu0 0
      %1703 = vmatpush1.bf16.msra.mxu0 0
      %1704 = vmatprep.subr.bf16.mxu0 0
      %1705 = vmatpush1.bf16.msra.mxu0 0
      %1706 = vmatprep.mubr.bf16.mxu0 %v1607
      %1707 = vmatmul.mubr.bf16.gmra.mrb[0].mxu0 %v1460
      %v1708 = vpop.f32.mrb[0].mxu0
      %v1709 = vadd.f32 0.0, %v1708
      %v1710 = vpop.f32.mrb[0].mxu0
      %v1711 = vpop.f32.mrb[0].mxu0
      %v1712 = vadd.f32 0.0, %v1711
      %v1713 = vpop.f32.mrb[0].mxu0
      %1714 = vmatprep.mubr.bf16.mxu0 %v1610
      %1715 = vmatmul.mubr.bf16.gmra.mrb[0].mxu0 %v1465
      %v1716 = vpop.f32.mrb[0].mxu0
      %v1717 = vadd.f32 0.0, %v1716
      %v1718 = vpop.f32.mrb[0].mxu0
      %v1719 = vpop.f32.mrb[0].mxu0
      %v1720 = vadd.f32 0.0, %v1719
      %v1721 = vpop.f32.mrb[0].mxu0
      %1722 = vdwg.mxu0
      %v1723 = vadd.f32 %v1341, %v1656
      %v1724 = vadd.f32 %v1343, %v1658
      %v1725 = vadd.f32 %v1394, %v1709
      %v1726 = vadd.f32 %v1345, %v1660
      %v1727 = vadd.f32 %v1347, %v1662
      %v1728 = vadd.f32 %v1397, %v1712
      %v1729 = vadd.f32 %v1351, %v1666
      %v1730 = vadd.f32 %v1353, %v1668
      %v1731 = vadd.f32 %v1402, %v1717
      %v1732 = vadd.f32 %v1355, %v1670
      %v1733 = vadd.f32 %v1357, %v1672
      %v1734 = vadd.f32 %v1405, %v1720
      %v1735 = vld [vmem:[%s2] sm:$0x7]
      %v1737 = vlaneseq
      %v1738 = vshrl.u32 %v1737, 7
      %v1739 = vsub.s32 0, %v1738
      %v1740 = vrot.slane %v1735, %v1739
      %v1741 = vlaneseq
      %v1742 = vshrl.u32 %v1741, 7
      %v1743 = vsub.s32 1, %v1742
      %v1744 = vrot.slane %v1735, %v1743
      %v1745 = vlaneseq
      %v1746 = vshrl.u32 %v1745, 7
      %v1747 = vsub.s32 2, %v1746
      %v1748 = vrot.slane %v1735, %v1747
      %v1752 = vadd.f32 %v1723, %v1740
      %v1753 = vadd.f32 %v1724, %v1744
      %v1754 = vadd.f32 %v1725, %v1748
      %v1755 = vadd.f32 %v1726, %v1740
      %v1756 = vadd.f32 %v1727, %v1744
      %v1757 = vadd.f32 %v1728, %v1748
      %v1758 = vadd.f32 %v1729, %v1740
      %v1759 = vadd.f32 %v1730, %v1744
      %v1760 = vadd.f32 %v1731, %v1748
      %v1761 = vadd.f32 %v1732, %v1740
      %v1762 = vadd.f32 %v1733, %v1744
      %v1763 = vadd.f32 %v1734, %v1748
      %vm1764 = vcmp.ge.f32.partialorder %v1752, 0.0
      %vm1765 = vcmp.ge.f32.partialorder %v1753, 0.0
      %vm1766 = vcmp.ge.f32.partialorder %v1754, 0.0
      %vm1767 = vcmp.ge.f32.partialorder %v1755, 0.0
      %vm1768 = vcmp.ge.f32.partialorder %v1756, 0.0
      %vm1769 = vcmp.ge.f32.partialorder %v1757, 0.0
      %vm1770 = vcmp.ge.f32.partialorder %v1758, 0.0
      %vm1771 = vcmp.ge.f32.partialorder %v1759, 0.0
      %vm1772 = vcmp.ge.f32.partialorder %v1760, 0.0
      %vm1773 = vcmp.ge.f32.partialorder %v1761, 0.0
      %vm1774 = vcmp.ge.f32.partialorder %v1762, 0.0
      %vm1775 = vcmp.ge.f32.partialorder %v1763, 0.0
      %v1776 = vmul.f32 %v1752, 0.1
      %v1777 = vmul.f32 %v1753, 0.1
      %v1778 = vmul.f32 %v1754, 0.1
      %v1779 = vmul.f32 %v1755, 0.1
      %v1780 = vmul.f32 %v1756, 0.1
      %v1781 = vmul.f32 %v1757, 0.1
      %v1782 = vmul.f32 %v1758, 0.1
      %v1783 = vmul.f32 %v1759, 0.1
      %v1784 = vmul.f32 %v1760, 0.1
      %v1785 = vmul.f32 %v1761, 0.1
      %v1786 = vmul.f32 %v1762, 0.1
      %v1787 = vmul.f32 %v1763, 0.1
      %v1788 = vsel %vm1764, %v1752, %v1776
      %v1789 = vsel %vm1765, %v1753, %v1777
      %v1790 = vsel %vm1766, %v1754, %v1778
      %v1791 = vsel %vm1767, %v1755, %v1779
      %v1792 = vsel %vm1768, %v1756, %v1780
      %v1793 = vsel %vm1769, %v1757, %v1781
      %v1794 = vsel %vm1770, %v1758, %v1782
      %v1795 = vsel %vm1771, %v1759, %v1783
      %v1796 = vsel %vm1772, %v1760, %v1784
      %v1797 = vsel %vm1773, %v1761, %v1785
      %v1798 = vsel %vm1774, %v1762, %v1786
      %v1799 = vsel %vm1775, %v1763, %v1787
      %v1812 = vrot.slane %v1788, 7
      %v1813 = vrot.slane %v1789, 7
      %v1814 = vrot.slane %v1790, 7
      %v1815 = vrot.slane %v1791, 7
      %v1816 = vsel %vm733, %v1812, %v1815
      %v1817 = vrot.slane %v1792, 7
      %v1818 = vsel %vm733, %v1813, %v1817
      %v1819 = vrot.slane %v1793, 7
      %v1820 = vsel %vm733, %v1814, %v1819
      %v1821 = vrot.slane %v1794, 7
      %v1822 = vsel %vm733, %v1815, %v1821
      %v1823 = vrot.slane %v1795, 7
      %v1824 = vsel %vm733, %v1817, %v1823
      %v1825 = vrot.slane %v1796, 7
      %v1826 = vsel %vm733, %v1819, %v1825
      %v1827 = vrot.slane %v1797, 7
      %v1828 = vsel %vm733, %v1821, %v1827
      %v1829 = vrot.slane %v1798, 7
      %v1830 = vsel %vm733, %v1823, %v1829
      %v1831 = vrot.slane %v1799, 7
      %v1832 = vsel %vm733, %v1825, %v1831
      %1848 = vst [vmem:[#allocation3] sm:$0xfe] %v1812
      %1849 = vst [vmem:[#allocation3 + $0x8] sm:$0xfe] %v1813
      %vm1850 = vcmask 130049
      %1851 = vst.msk [vmem:[#allocation3 + $0x10] sm:$0xfe] %vm1850, %v1814
      %1852 = vst [vmem:[#allocation3 + $0x18] sm:$0xff] %v1816
      %1853 = vst [vmem:[#allocation3 + $0x20] sm:$0xff] %v1818
      %1854 = vst.msk [vmem:[#allocation3 + $0x28] sm:$0xff] %vm670, %v1820
      %1855 = vst [vmem:[#allocation3 + $0x30] sm:$0xff] %v1822
      %1856 = vst [vmem:[#allocation3 + $0x38] sm:$0xff] %v1824
      %1857 = vst.msk [vmem:[#allocation3 + $0x40] sm:$0xff] %vm670, %v1826
      %1858 = vst [vmem:[#allocation3 + $0x48] sm:$0xff] %v1828
      %1859 = vst [vmem:[#allocation3 + $0x50] sm:$0xff] %v1830
      %1860 = vst.msk [vmem:[#allocation3 + $0x58] sm:$0xff] %vm670, %v1832
      %1861 = vst [vmem:[#allocation3 + $0x60] sm:$0x1] %v1827
      %1862 = vst [vmem:[#allocation3 + $0x68] sm:$0x1] %v1829
      %vm1863 = vcmask 122880
      %1864 = vst.msk [vmem:[#allocation3 + $0x70] sm:$0x1] %vm1863, %v1831
      %v1865 = vld [vmem:[#allocation3] ss:$8 sm:$0x7]
      %v1866 = vlaneseq
      %vm1867 = vcmp.ge.s32.totalorder %v1866, 0
      %vm1868 = vcmp.lt.s32.totalorder %v1866, 272
      %vm1869 = vmand %vm1867, %vm1868
      %1870 = vst.msk [vmem:[#allocation10] ss:$8 sm:$0x7] %vm1869, %v1865
      %1871 = vst.msk [vmem:[#allocation10] ss:$8 sm:$0x0] %vm1869, %v1865
      %s1872 = scalar_lea.vmem [#allocation3], 1
      %v1873 = vld [vmem:[%s1872] ss:$8 sm:$0x7]
      %s1874 = scalar_lea.vmem [#allocation10], 49
      %1875 = vst.msk [vmem:[%s1874] ss:$8 sm:$0x7] %vm1869, %v1873
      %1876 = vst.msk [vmem:[%s1874] ss:$8 sm:$0x0] %vm1869, %v1873
      %s1877 = scalar_lea.vmem [#allocation3], 2
      %v1878 = vld [vmem:[%s1877] ss:$8 sm:$0x7]
      %s1879 = scalar_lea.vmem [#allocation10], 1
      %1880 = vst.msk [vmem:[%s1879] ss:$8 sm:$0x7] %vm1869, %v1878
      %1881 = vst.msk [vmem:[%s1879] ss:$8 sm:$0x0] %vm1869, %v1878
      %s1882 = scalar_lea.vmem [#allocation3], 3
      %v1883 = vld [vmem:[%s1882] ss:$8 sm:$0x7]
      %s1884 = scalar_lea.vmem [#allocation10], 50
      %1885 = vst.msk [vmem:[%s1884] ss:$8 sm:$0x7] %vm1869, %v1883
      %1886 = vst.msk [vmem:[%s1884] ss:$8 sm:$0x0] %vm1869, %v1883
      %s1887 = scalar_lea.vmem [#allocation3], 4
      %v1888 = vld [vmem:[%s1887] ss:$8 sm:$0x7]
      %s1889 = scalar_lea.vmem [#allocation10], 2
      %1890 = vst.msk [vmem:[%s1889] ss:$8 sm:$0x7] %vm1869, %v1888
      %1891 = vst.msk [vmem:[%s1889] ss:$8 sm:$0x0] %vm1869, %v1888
      %s1892 = scalar_lea.vmem [#allocation3], 5
      %v1893 = vld [vmem:[%s1892] ss:$8 sm:$0x7]
      %s1894 = scalar_lea.vmem [#allocation10], 51
      %1895 = vst.msk [vmem:[%s1894] ss:$8 sm:$0x7] %vm1869, %v1893
      %1896 = vst.msk [vmem:[%s1894] ss:$8 sm:$0x0] %vm1869, %v1893
      %s1897 = scalar_lea.vmem [#allocation3], 6
      %v1898 = vld [vmem:[%s1897] ss:$8 sm:$0x7]
      %s1899 = scalar_lea.vmem [#allocation10], 3
      %1900 = vst.msk [vmem:[%s1899] ss:$8 sm:$0x7] %vm1869, %v1898
      %1901 = vst.msk [vmem:[%s1899] ss:$8 sm:$0x0] %vm1869, %v1898
      %s1902 = scalar_lea.vmem [#allocation3], 7
      %v1903 = vld [vmem:[%s1902] ss:$8 sm:$0x7]
      %s1904 = scalar_lea.vmem [#allocation10], 52
      %1905 = vst.msk [vmem:[%s1904] ss:$8 sm:$0x7] %vm1869, %v1903
      %1906 = vst.msk [vmem:[%s1904] ss:$8 sm:$0x0] %vm1869, %v1903
      %s1907 = scalar_lea.vmem [#allocation3], 24
      %v1908 = vld [vmem:[%s1907] ss:$8 sm:$0x7]
      %s1909 = scalar_lea.vmem [#allocation10], 4
      %1910 = vst.msk [vmem:[%s1909] ss:$8 sm:$0x7] %vm1869, %v1908
      %1911 = vst.msk [vmem:[%s1909] ss:$8 sm:$0x0] %vm1869, %v1908
      %s1912 = scalar_lea.vmem [#allocation3], 25
      %v1913 = vld [vmem:[%s1912] ss:$8 sm:$0x7]
      %s1914 = scalar_lea.vmem [#allocation10], 53
      %1915 = vst.msk [vmem:[%s1914] ss:$8 sm:$0x7] %vm1869, %v1913
      %1916 = vst.msk [vmem:[%s1914] ss:$8 sm:$0x0] %vm1869, %v1913
      %s1917 = scalar_lea.vmem [#allocation3], 26
      %v1918 = vld [vmem:[%s1917] ss:$8 sm:$0x7]
      %s1919 = scalar_lea.vmem [#allocation10], 5
      %1920 = vst.msk [vmem:[%s1919] ss:$8 sm:$0x7] %vm1869, %v1918
      %1921 = vst.msk [vmem:[%s1919] ss:$8 sm:$0x0] %vm1869, %v1918
      %s1922 = scalar_lea.vmem [#allocation3], 27
      %v1923 = vld [vmem:[%s1922] ss:$8 sm:$0x7]
      %s1924 = scalar_lea.vmem [#allocation10], 54
      %1925 = vst.msk [vmem:[%s1924] ss:$8 sm:$0x7] %vm1869, %v1923
      %1926 = vst.msk [vmem:[%s1924] ss:$8 sm:$0x0] %vm1869, %v1923
      %s1927 = scalar_lea.vmem [#allocation3], 28
      %v1928 = vld [vmem:[%s1927] ss:$8 sm:$0x7]
      %s1929 = scalar_lea.vmem [#allocation10], 6
      %1930 = vst.msk [vmem:[%s1929] ss:$8 sm:$0x7] %vm1869, %v1928
      %1931 = vst.msk [vmem:[%s1929] ss:$8 sm:$0x0] %vm1869, %v1928
      %s1932 = scalar_lea.vmem [#allocation3], 29
      %v1933 = vld [vmem:[%s1932] ss:$8 sm:$0x7]
      %s1934 = scalar_lea.vmem [#allocation10], 55
      %1935 = vst.msk [vmem:[%s1934] ss:$8 sm:$0x7] %vm1869, %v1933
      %1936 = vst.msk [vmem:[%s1934] ss:$8 sm:$0x0] %vm1869, %v1933
      %s1937 = scalar_lea.vmem [#allocation3], 30
      %v1938 = vld [vmem:[%s1937] ss:$8 sm:$0x7]
      %s1939 = scalar_lea.vmem [#allocation10], 7
      %1940 = vst.msk [vmem:[%s1939] ss:$8 sm:$0x7] %vm1869, %v1938
      %1941 = vst.msk [vmem:[%s1939] ss:$8 sm:$0x0] %vm1869, %v1938
      %s1942 = scalar_lea.vmem [#allocation3], 31
      %v1943 = vld [vmem:[%s1942] ss:$8 sm:$0x7]
      %s1944 = scalar_lea.vmem [#allocation10], 72
      %1945 = vst.msk [vmem:[%s1944] ss:$8 sm:$0x7] %vm1869, %v1943
      %1946 = vst.msk [vmem:[%s1944] ss:$8 sm:$0x0] %vm1869, %v1943
      %s1947 = scalar_lea.vmem [#allocation3], 48
      %v1948 = vld [vmem:[%s1947] ss:$8 sm:$0x7]
      %s1949 = scalar_lea.vmem [#allocation10], 24
      %1950 = vst.msk [vmem:[%s1949] ss:$8 sm:$0x7] %vm1869, %v1948
      %1951 = vst.msk [vmem:[%s1949] ss:$8 sm:$0x0] %vm1869, %v1948
      %s1952 = scalar_lea.vmem [#allocation3], 49
      %v1953 = vld [vmem:[%s1952] ss:$8 sm:$0x7]
      %s1954 = scalar_lea.vmem [#allocation10], 73
      %1955 = vst.msk [vmem:[%s1954] ss:$8 sm:$0x7] %vm1869, %v1953
      %1956 = vst.msk [vmem:[%s1954] ss:$8 sm:$0x0] %vm1869, %v1953
      %s1957 = scalar_lea.vmem [#allocation3], 50
      %v1958 = vld [vmem:[%s1957] ss:$8 sm:$0x7]
      %s1959 = scalar_lea.vmem [#allocation10], 25
      %1960 = vst.msk [vmem:[%s1959] ss:$8 sm:$0x7] %vm1869, %v1958
      %1961 = vst.msk [vmem:[%s1959] ss:$8 sm:$0x0] %vm1869, %v1958
      %s1962 = scalar_lea.vmem [#allocation3], 51
      %v1963 = vld [vmem:[%s1962] ss:$8 sm:$0x7]
      %s1964 = scalar_lea.vmem [#allocation10], 74
      %1965 = vst.msk [vmem:[%s1964] ss:$8 sm:$0x7] %vm1869, %v1963
      %1966 = vst.msk [vmem:[%s1964] ss:$8 sm:$0x0] %vm1869, %v1963
      %s1967 = scalar_lea.vmem [#allocation3], 52
      %v1968 = vld [vmem:[%s1967] ss:$8 sm:$0x7]
      %s1969 = scalar_lea.vmem [#allocation10], 26
      %1970 = vst.msk [vmem:[%s1969] ss:$8 sm:$0x7] %vm1869, %v1968
      %1971 = vst.msk [vmem:[%s1969] ss:$8 sm:$0x0] %vm1869, %v1968
      %s1972 = scalar_lea.vmem [#allocation3], 53
      %v1973 = vld [vmem:[%s1972] ss:$8 sm:$0x7]
      %s1974 = scalar_lea.vmem [#allocation10], 75
      %1975 = vst.msk [vmem:[%s1974] ss:$8 sm:$0x7] %vm1869, %v1973
      %1976 = vst.msk [vmem:[%s1974] ss:$8 sm:$0x0] %vm1869, %v1973
      %s1977 = scalar_lea.vmem [#allocation3], 54
      %v1978 = vld [vmem:[%s1977] ss:$8 sm:$0x7]
      %s1979 = scalar_lea.vmem [#allocation10], 27
      %1980 = vst.msk [vmem:[%s1979] ss:$8 sm:$0x7] %vm1869, %v1978
      %1981 = vst.msk [vmem:[%s1979] ss:$8 sm:$0x0] %vm1869, %v1978
      %s1982 = scalar_lea.vmem [#allocation3], 55
      %v1983 = vld [vmem:[%s1982] ss:$8 sm:$0x7]
      %s1984 = scalar_lea.vmem [#allocation10], 76
      %1985 = vst.msk [vmem:[%s1984] ss:$8 sm:$0x7] %vm1869, %v1983
      %1986 = vst.msk [vmem:[%s1984] ss:$8 sm:$0x0] %vm1869, %v1983
      %s1987 = scalar_lea.vmem [#allocation3], 72
      %v1988 = vld [vmem:[%s1987] ss:$8 sm:$0x7]
      %s1989 = scalar_lea.vmem [#allocation10], 28
      %1990 = vst.msk [vmem:[%s1989] ss:$8 sm:$0x7] %vm1869, %v1988
      %1991 = vst.msk [vmem:[%s1989] ss:$8 sm:$0x0] %vm1869, %v1988
      %s1992 = scalar_lea.vmem [#allocation3], 73
      %v1993 = vld [vmem:[%s1992] ss:$8 sm:$0x7]
      %s1994 = scalar_lea.vmem [#allocation10], 77
      %1995 = vst.msk [vmem:[%s1994] ss:$8 sm:$0x7] %vm1869, %v1993
      %1996 = vst.msk [vmem:[%s1994] ss:$8 sm:$0x0] %vm1869, %v1993
      %s1997 = scalar_lea.vmem [#allocation3], 74
      %v1998 = vld [vmem:[%s1997] ss:$8 sm:$0x7]
      %s1999 = scalar_lea.vmem [#allocation10], 29
      %2000 = vst.msk [vmem:[%s1999] ss:$8 sm:$0x7] %vm1869, %v1998
      %2001 = vst.msk [vmem:[%s1999] ss:$8 sm:$0x0] %vm1869, %v1998
      %s2002 = scalar_lea.vmem [#allocation3], 75
      %v2003 = vld [vmem:[%s2002] ss:$8 sm:$0x7]
      %s2004 = scalar_lea.vmem [#allocation10], 78
      %2005 = vst.msk [vmem:[%s2004] ss:$8 sm:$0x7] %vm1869, %v2003
      %2006 = vst.msk [vmem:[%s2004] ss:$8 sm:$0x0] %vm1869, %v2003
      %s2007 = scalar_lea.vmem [#allocation3], 76
      %v2008 = vld [vmem:[%s2007] ss:$8 sm:$0x7]
      %s2009 = scalar_lea.vmem [#allocation10], 30
      %2010 = vst.msk [vmem:[%s2009] ss:$8 sm:$0x7] %vm1869, %v2008
      %2011 = vst.msk [vmem:[%s2009] ss:$8 sm:$0x0] %vm1869, %v2008
      %s2012 = scalar_lea.vmem [#allocation3], 77
      %v2013 = vld [vmem:[%s2012] ss:$8 sm:$0x7]
      %s2014 = scalar_lea.vmem [#allocation10], 79
      %2015 = vst.msk [vmem:[%s2014] ss:$8 sm:$0x7] %vm1869, %v2013
      %2016 = vst.msk [vmem:[%s2014] ss:$8 sm:$0x0] %vm1869, %v2013
      %s2017 = scalar_lea.vmem [#allocation3], 78
      %v2018 = vld [vmem:[%s2017] ss:$8 sm:$0x7]
      %s2019 = scalar_lea.vmem [#allocation10], 31
      %2020 = vst.msk [vmem:[%s2019] ss:$8 sm:$0x7] %vm1869, %v2018
      %2021 = vst.msk [vmem:[%s2019] ss:$8 sm:$0x0] %vm1869, %v2018
      %s2022 = scalar_lea.vmem [#allocation3], 79
      %v2023 = vld [vmem:[%s2022] ss:$8 sm:$0x7]
      %s2024 = scalar_lea.vmem [#allocation10], 96
      %2025 = vst.msk [vmem:[%s2024] ss:$8 sm:$0x7] %vm1869, %v2023
      %2026 = vst.msk [vmem:[%s2024] ss:$8 sm:$0x0] %vm1869, %v2023
      %s2027 = scalar_lea.vmem [#allocation3], 96
      %v2028 = vld [vmem:[%s2027] ss:$8 sm:$0x7]
      %s2029 = scalar_lea.vmem [#allocation10], 48
      %2030 = vst.msk [vmem:[%s2029] ss:$8 sm:$0x7] %vm1869, %v2028
      %2031 = vst.msk [vmem:[%s2029] ss:$8 sm:$0x0] %vm1869, %v2028
      %s2032 = scalar_lea.vmem [#allocation3], 97
      %v2033 = vld [vmem:[%s2032] ss:$8 sm:$0x7]
      %s2034 = scalar_lea.vmem [#allocation10], 97
      %2035 = vst.msk [vmem:[%s2034] ss:$8 sm:$0x7] %vm1869, %v2033
      %2036 = vst.msk [vmem:[%s2034] ss:$8 sm:$0x0] %vm1869, %v2033
      %v2037 = vld [vmem:[#allocation10] sm:$0xff]
      %v2038 = vld [vmem:[#allocation10 + $0x8] sm:$0xff]
      %v2039 = vld [vmem:[#allocation10 + $0x10] sm:$0xff]
      %v2040 = vld [vmem:[#allocation10 + $0x18] sm:$0xff]
      %v2041 = vld [vmem:[#allocation10 + $0x20] sm:$0xff]
      %v2042 = vld [vmem:[#allocation10 + $0x28] sm:$0xff]
      %v2043 = vpack.c.bf16 %v2040, %v2037
      %v2044 = vpack.c.bf16 %v2041, %v2038
      %v2045 = vpack.c.bf16 %v2042, %v2039
      %v2046 = vld [vmem:[%s3] sm:$0xff]
      %v2047 = vld [vmem:[%s3 + $0x8] sm:$0xff]
      %v2048 = vld [vmem:[%s3 + $0x10] sm:$0xff]
      %v2049 = vld [vmem:[%s3 + $0x18] sm:$0xff]
      %v2050 = vld [vmem:[%s3 + $0x20] sm:$0xff]
      %v2051 = vld [vmem:[%s3 + $0x28] sm:$0xff]
      %v2052 = vld [vmem:[%s3 + $0x30] sm:$0xff]
      %v2053 = vld [vmem:[%s3 + $0x38] sm:$0xff]
      %v2054 = vld [vmem:[%s3 + $0x40] sm:$0xff]
      %v2055 = vld [vmem:[%s3 + $0x48] sm:$0xff]
      %v2056 = vld [vmem:[%s3 + $0x50] sm:$0xff]
      %v2057 = vld [vmem:[%s3 + $0x58] sm:$0xff]
      %v2058 = vld [vmem:[%s3 + $0x60] sm:$0xff]
      %v2059 = vld [vmem:[%s3 + $0x68] sm:$0xff]
      %v2060 = vld [vmem:[%s3 + $0x70] sm:$0xff]
      %v2061 = vld [vmem:[%s3 + $0x78] sm:$0xff]
      %v2062 = vld [vmem:[%s3 + $0x80] sm:$0xff]
      %v2063 = vld [vmem:[%s3 + $0x88] sm:$0xff]
      %v2064 = vld [vmem:[%s3 + $0x90] sm:$0xff]
      %v2065 = vld [vmem:[%s3 + $0x98] sm:$0xff]
      %v2066 = vld [vmem:[%s3 + $0xa0] sm:$0xff]
      %v2067 = vld [vmem:[%s3 + $0xa8] sm:$0xff]
      %v2068 = vld [vmem:[%s3 + $0xb0] sm:$0xff]
      %v2069 = vld [vmem:[%s3 + $0xb8] sm:$0xff]
      %v2070 = vld [vmem:[%s3 + $0xc0] sm:$0xff]
      %v2071 = vld [vmem:[%s3 + $0xc8] sm:$0xff]
      %v2072 = vld [vmem:[%s3 + $0xd0] sm:$0xff]
      %v2073 = vld [vmem:[%s3 + $0xd8] sm:$0xff]
      %v2074 = vld [vmem:[%s3 + $0xe0] sm:$0xff]
      %v2075 = vld [vmem:[%s3 + $0xe8] sm:$0xff]
      %v2076 = vld [vmem:[%s3 + $0xf0] sm:$0xff]
      %v2077 = vld [vmem:[%s3 + $0xf8] sm:$0xff]
      %v2078 = vld [vmem:[%s3 + $0x100] sm:$0xff]
      %v2079 = vld [vmem:[%s3 + $0x108] sm:$0xff]
      %v2080 = vld [vmem:[#allocation10 + $0x30] sm:$0xfe]
      %v2081 = vld [vmem:[#allocation10 + $0x38] sm:$0xfe]
      %v2082 = vld [vmem:[#allocation10 + $0x40] sm:$0xfe]
      %v2083 = vld [vmem:[#allocation10 + $0x48] sm:$0xff]
      %v2084 = vld [vmem:[#allocation10 + $0x50] sm:$0xff]
      %v2085 = vld [vmem:[#allocation10 + $0x58] sm:$0xff]
      %v2086 = vld [vmem:[#allocation10 + $0x60] sm:$0x1]
      %v2087 = vld [vmem:[#allocation10 + $0x68] sm:$0x1]
      %v2088 = vld [vmem:[#allocation10 + $0x70] sm:$0x1]
      %v2089 = vpack.c.bf16 %v2083, %v2080
      %v2090 = vpack.c.bf16 %v2084, %v2081
      %v2091 = vpack.c.bf16 %v2085, %v2082
      %v2092 = vpack.c.bf16 %v2086, %v2086
      %v2093 = vpack.c.bf16 %v2087, %v2087
      %v2094 = vpack.c.bf16 %v2088, %v2088
      %s2095 = scalar_lea.vmem %s3, 272
      %v2096 = vld [vmem:[%s2095] sm:$0xff]
      %v2097 = vld [vmem:[%s2095 + $0x8] sm:$0xff]
      %v2098 = vld [vmem:[%s2095 + $0x10] sm:$0xff]
      %v2099 = vld [vmem:[%s2095 + $0x18] sm:$0xff]
      %v2100 = vld [vmem:[%s2095 + $0x20] sm:$0xff]
      %v2101 = vld [vmem:[%s2095 + $0x28] sm:$0xff]
      %v2102 = vld [vmem:[%s2095 + $0x30] sm:$0xff]
      %v2103 = vld [vmem:[%s2095 + $0x38] sm:$0xff]
      %v2104 = vld [vmem:[%s2095 + $0x40] sm:$0xff]
      %v2105 = vld [vmem:[%s2095 + $0x48] sm:$0xff]
      %v2106 = vld [vmem:[%s2095 + $0x50] sm:$0xff]
      %v2107 = vld [vmem:[%s2095 + $0x58] sm:$0xff]
      %v2108 = vld [vmem:[%s2095 + $0x60] sm:$0xff]
      %v2109 = vld [vmem:[%s2095 + $0x68] sm:$0xff]
      %v2110 = vld [vmem:[%s2095 + $0x70] sm:$0xff]
      %v2111 = vld [vmem:[%s2095 + $0x78] sm:$0xff]
      %v2112 = vld [vmem:[%s2095 + $0x80] sm:$0xff]
      %v2113 = vld [vmem:[%s2095 + $0x88] sm:$0xff]
      %v2114 = vld [vmem:[%s2095 + $0x90] sm:$0xff]
      %v2115 = vld [vmem:[%s2095 + $0x98] sm:$0xff]
      %v2116 = vld [vmem:[%s2095 + $0xa0] sm:$0xff]
      %v2117 = vld [vmem:[%s2095 + $0xa8] sm:$0xff]
      %v2118 = vld [vmem:[%s2095 + $0xb0] sm:$0xff]
      %v2119 = vld [vmem:[%s2095 + $0xb8] sm:$0xff]
      %v2120 = vld [vmem:[%s2095 + $0xc0] sm:$0xff]
      %v2121 = vld [vmem:[%s2095 + $0xc8] sm:$0xff]
      %v2122 = vld [vmem:[%s2095 + $0xd0] sm:$0xff]
      %v2123 = vld [vmem:[%s2095 + $0xd8] sm:$0xff]
      %v2124 = vld [vmem:[%s2095 + $0xe0] sm:$0xff]
      %v2125 = vld [vmem:[%s2095 + $0xe8] sm:$0xff]
      %v2126 = vld [vmem:[%s2095 + $0xf0] sm:$0xff]
      %v2127 = vld [vmem:[%s2095 + $0xf8] sm:$0xff]
      %v2128 = vld [vmem:[%s2095 + $0x100] sm:$0xff]
      %v2129 = vld [vmem:[%s2095 + $0x108] sm:$0xff]
      %v2131 = vshrl.u32 %v2089, 16
      %v2133 = vshll.u32 %v2089, 16
      %v2135 = vrot.slane %v2133, 1
      %v2136 = vor.u32 %v2131, %v2135
      %v2138 = vshll.u32 %v2092, 16
      %v2140 = vrot.slane %v2138, 1
      %v2141 = vsel %vm859, %v2136, %v2140
      %v2143 = vshrl.u32 %v2090, 16
      %v2145 = vshll.u32 %v2090, 16
      %v2147 = vrot.slane %v2145, 1
      %v2148 = vor.u32 %v2143, %v2147
      %v2150 = vshll.u32 %v2093, 16
      %v2152 = vrot.slane %v2150, 1
      %v2153 = vsel %vm859, %v2148, %v2152
      %v2155 = vshrl.u32 %v2091, 16
      %v2157 = vshll.u32 %v2091, 16
      %v2159 = vrot.slane %v2157, 1
      %v2160 = vor.u32 %v2155, %v2159
      %v2162 = vshll.u32 %v2094, 16
      %v2164 = vrot.slane %v2162, 1
      %v2165 = vsel %vm859, %v2160, %v2164
      %v2202 = vunpack.c.l.b16 %v2096
      %v2203 = vunpack.c.h.b16 %v2096
      %v2204 = vunpack.c.l.b16 %v2097
      %v2205 = vunpack.c.h.b16 %v2097
      %v2206 = vunpack.c.l.b16 %v2098
      %v2207 = vunpack.c.h.b16 %v2098
      %v2208 = vunpack.c.l.b16 %v2099
      %v2209 = vunpack.c.h.b16 %v2099
      %v2210 = vunpack.c.l.b16 %v2100
      %v2211 = vunpack.c.h.b16 %v2100
      %v2212 = vunpack.c.l.b16 %v2101
      %v2213 = vunpack.c.h.b16 %v2101
      %v2214 = vunpack.c.l.b16 %v2102
      %v2215 = vunpack.c.h.b16 %v2102
      %v2216 = vunpack.c.l.b16 %v2103
      %v2217 = vunpack.c.h.b16 %v2103
      %v2218 = vunpack.c.l.b16 %v2104
      %v2219 = vunpack.c.h.b16 %v2104
      %v2220 = vunpack.c.l.b16 %v2105
      %v2221 = vunpack.c.h.b16 %v2105
      %v2222 = vunpack.c.l.b16 %v2106
      %v2223 = vunpack.c.h.b16 %v2106
      %v2224 = vunpack.c.l.b16 %v2107
      %v2225 = vunpack.c.h.b16 %v2107
      %v2226 = vunpack.c.l.b16 %v2108
      %v2227 = vunpack.c.h.b16 %v2108
      %v2228 = vunpack.c.l.b16 %v2109
      %v2229 = vunpack.c.h.b16 %v2109
      %v2230 = vunpack.c.l.b16 %v2110
      %v2231 = vunpack.c.h.b16 %v2110
      %v2232 = vunpack.c.l.b16 %v2111
      %v2233 = vunpack.c.h.b16 %v2111
      %v2234 = vunpack.c.l.b16 %v2112
      %v2235 = vunpack.c.h.b16 %v2112
      %v2236 = vunpack.c.l.b16 %v2113
      %v2237 = vunpack.c.h.b16 %v2113
      %v2238 = vunpack.c.l.b16 %v2114
      %v2239 = vunpack.c.h.b16 %v2114
      %v2240 = vunpack.c.l.b16 %v2115
      %v2241 = vunpack.c.h.b16 %v2115
      %v2242 = vunpack.c.l.b16 %v2116
      %v2243 = vunpack.c.h.b16 %v2116
      %v2244 = vunpack.c.l.b16 %v2117
      %v2245 = vunpack.c.h.b16 %v2117
      %v2246 = vunpack.c.l.b16 %v2118
      %v2247 = vunpack.c.h.b16 %v2118
      %v2248 = vunpack.c.l.b16 %v2119
      %v2249 = vunpack.c.h.b16 %v2119
      %v2250 = vunpack.c.l.b16 %v2120
      %v2251 = vunpack.c.h.b16 %v2120
      %v2252 = vunpack.c.l.b16 %v2121
      %v2253 = vunpack.c.h.b16 %v2121
      %v2254 = vunpack.c.l.b16 %v2122
      %v2255 = vunpack.c.h.b16 %v2122
      %v2256 = vunpack.c.l.b16 %v2123
      %v2257 = vunpack.c.h.b16 %v2123
      %v2258 = vunpack.c.l.b16 %v2124
      %v2259 = vunpack.c.h.b16 %v2124
      %v2260 = vunpack.c.l.b16 %v2125
      %v2261 = vunpack.c.h.b16 %v2125
      %v2262 = vunpack.c.l.b16 %v2126
      %v2263 = vunpack.c.h.b16 %v2126
      %v2264 = vunpack.c.l.b16 %v2127
      %v2265 = vunpack.c.h.b16 %v2127
      %v2266 = vunpack.c.l.b16 %v2128
      %v2267 = vunpack.c.h.b16 %v2128
      %v2268 = vunpack.c.l.b16 %v2129
      %v2269 = vunpack.c.h.b16 %v2129
      %v2270 = vpack.c.b16 %v2204, %v2202
      %v2271 = vpack.c.b16 %v2205, %v2203
      %v2272 = vpack.c.b16 %v2208, %v2206
      %v2273 = vpack.c.b16 %v2209, %v2207
      %v2274 = vpack.c.b16 %v2212, %v2210
      %v2275 = vpack.c.b16 %v2213, %v2211
      %v2276 = vpack.c.b16 %v2216, %v2214
      %v2277 = vpack.c.b16 %v2217, %v2215
      %v2278 = vpack.c.b16 %v2220, %v2218
      %v2279 = vpack.c.b16 %v2221, %v2219
      %v2280 = vpack.c.b16 %v2224, %v2222
      %v2281 = vpack.c.b16 %v2225, %v2223
      %v2282 = vpack.c.b16 %v2228, %v2226
      %v2283 = vpack.c.b16 %v2229, %v2227
      %v2284 = vpack.c.b16 %v2232, %v2230
      %v2285 = vpack.c.b16 %v2233, %v2231
      %v2286 = vpack.c.b16 %v2236, %v2234
      %v2287 = vpack.c.b16 %v2237, %v2235
      %v2288 = vpack.c.b16 %v2240, %v2238
      %v2289 = vpack.c.b16 %v2241, %v2239
      %v2290 = vpack.c.b16 %v2244, %v2242
      %v2291 = vpack.c.b16 %v2245, %v2243
      %v2292 = vpack.c.b16 %v2248, %v2246
      %v2293 = vpack.c.b16 %v2249, %v2247
      %v2294 = vpack.c.b16 %v2252, %v2250
      %v2295 = vpack.c.b16 %v2253, %v2251
      %v2296 = vpack.c.b16 %v2256, %v2254
      %v2297 = vpack.c.b16 %v2257, %v2255
      %v2298 = vpack.c.b16 %v2260, %v2258
      %v2299 = vpack.c.b16 %v2261, %v2259
      %v2300 = vpack.c.b16 %v2264, %v2262
      %v2301 = vpack.c.b16 %v2265, %v2263
      %v2302 = vpack.c.b16 %v2268, %v2266
      %v2303 = vpack.c.b16 %v2269, %v2267
      %v2339 = vsel %vm670, %v2165, 0
      %2341 = vmatprep.subr.bf16.mxu0 %v2271
      %2342 = vmatpush1.bf16.msra.mxu0 %v2270
      %2343 = vmatprep.subr.bf16.mxu0 %v2273
      %2344 = vmatpush1.bf16.msra.mxu0 %v2272
      %2345 = vmatprep.subr.bf16.mxu0 %v2275
      %2346 = vmatpush1.bf16.msra.mxu0 %v2274
      %2347 = vmatprep.subr.bf16.mxu0 %v2277
      %2348 = vmatpush1.bf16.msra.mxu0 %v2276
      %2349 = vmatprep.subr.bf16.mxu0 %v2279
      %2350 = vmatpush1.bf16.msra.mxu0 %v2278
      %2351 = vmatprep.subr.bf16.mxu0 %v2281
      %2352 = vmatpush1.bf16.msra.mxu0 %v2280
      %2353 = vmatprep.subr.bf16.mxu0 %v2283
      %2354 = vmatpush1.bf16.msra.mxu0 %v2282
      %2355 = vmatprep.subr.bf16.mxu0 %v2285
      %2356 = vmatpush1.bf16.msra.mxu0 %v2284
      %2357 = vmatprep.subr.bf16.mxu0 %v2287
      %2358 = vmatpush1.bf16.msra.mxu0 %v2286
      %2359 = vmatprep.subr.bf16.mxu0 %v2289
      %2360 = vmatpush1.bf16.msra.mxu0 %v2288
      %2361 = vmatprep.subr.bf16.mxu0 %v2291
      %2362 = vmatpush1.bf16.msra.mxu0 %v2290
      %2363 = vmatprep.subr.bf16.mxu0 %v2293
      %2364 = vmatpush1.bf16.msra.mxu0 %v2292
      %2365 = vmatprep.subr.bf16.mxu0 %v2295
      %2366 = vmatpush1.bf16.msra.mxu0 %v2294
      %2367 = vmatprep.subr.bf16.mxu0 %v2297
      %2368 = vmatpush1.bf16.msra.mxu0 %v2296
      %2369 = vmatprep.subr.bf16.mxu0 %v2299
      %2370 = vmatpush1.bf16.msra.mxu0 %v2298
      %2371 = vmatprep.subr.bf16.mxu0 %v2301
      %2372 = vmatpush1.bf16.msra.mxu0 %v2300
      %2373 = vmatprep.mubr.bf16.mxu0 %v2153
      %2374 = vmatmul.mubr.bf16.gmra.mrb[0].mxu0 %v2141
      %v2375 = vpop.f32.mrb[0].mxu0
      %v2376 = vadd.f32 0.0, %v2375
      %v2377 = vpop.f32.mrb[0].mxu0
      %v2378 = vadd.f32 0.0, %v2377
      %v2379 = vpop.f32.mrb[0].mxu0
      %v2380 = vadd.f32 0.0, %v2379
      %v2381 = vpop.f32.mrb[0].mxu0
      %v2382 = vadd.f32 0.0, %v2381
      %2383 = vdwg.mxu0
      %2384 = vmatprep.subr.bf16.mxu0 %v2303
      %2385 = vmatpush1.bf16.msra.mxu0 %v2302
      %2386 = vmatprep.subr.bf16.mxu0 0
      %2387 = vmatpush1.bf16.msra.mxu0 0
      %2388 = vmatprep.subr.bf16.mxu0 0
      %2389 = vmatpush1.bf16.msra.mxu0 0
      %2390 = vmatprep.subr.bf16.mxu0 0
      %2391 = vmatpush1.bf16.msra.mxu0 0
      %2392 = vmatprep.subr.bf16.mxu0 0
      %2393 = vmatpush1.bf16.msra.mxu0 0
      %2394 = vmatprep.subr.bf16.mxu0 0
      %2395 = vmatpush1.bf16.msra.mxu0 0
      %2396 = vmatprep.subr.bf16.mxu0 0
      %2397 = vmatpush1.bf16.msra.mxu0 0
      %2398 = vmatprep.subr.bf16.mxu0 0
      %2399 = vmatpush1.bf16.msra.mxu0 0
      %2400 = vmatprep.subr.bf16.mxu0 0
      %2401 = vmatpush1.bf16.msra.mxu0 0
      %2402 = vmatprep.subr.bf16.mxu0 0
      %2403 = vmatpush1.bf16.msra.mxu0 0
      %2404 = vmatprep.subr.bf16.mxu0 0
      %2405 = vmatpush1.bf16.msra.mxu0 0
      %2406 = vmatprep.subr.bf16.mxu0 0
      %2407 = vmatpush1.bf16.msra.mxu0 0
      %2408 = vmatprep.subr.bf16.mxu0 0
      %2409 = vmatpush1.bf16.msra.mxu0 0
      %2410 = vmatprep.subr.bf16.mxu0 0
      %2411 = vmatpush1.bf16.msra.mxu0 0
      %2412 = vmatprep.subr.bf16.mxu0 0
      %2413 = vmatpush1.bf16.msra.mxu0 0
      %2414 = vmatprep.subr.bf16.mxu0 0
      %2415 = vmatpush1.bf16.msra.mxu0 0
      %2416 = vmatprep.mubr.bf16.mxu0 0
      %2417 = vmatmul.mubr.bf16.gmra.mrb[0].mxu0 %v2339
      %v2418 = vpop.f32.mrb[0].mxu0
      %v2419 = vadd.f32 %v2376, %v2418
      %v2420 = vpop.f32.mrb[0].mxu0
      %v2421 = vadd.f32 %v2378, %v2420
      %v2422 = vpop.f32.mrb[0].mxu0
      %v2423 = vadd.f32 %v2380, %v2422
      %v2424 = vpop.f32.mrb[0].mxu0
      %v2425 = vadd.f32 %v2382, %v2424
      %2426 = vdwg.mxu0
      %v2461 = vunpack.c.l.b16 %v2046
      %v2462 = vunpack.c.h.b16 %v2046
      %v2463 = vunpack.c.l.b16 %v2047
      %v2464 = vunpack.c.h.b16 %v2047
      %v2465 = vunpack.c.l.b16 %v2048
      %v2466 = vunpack.c.h.b16 %v2048
      %v2467 = vunpack.c.l.b16 %v2049
      %v2468 = vunpack.c.h.b16 %v2049
      %v2469 = vunpack.c.l.b16 %v2050
      %v2470 = vunpack.c.h.b16 %v2050
      %v2471 = vunpack.c.l.b16 %v2051
      %v2472 = vunpack.c.h.b16 %v2051
      %v2473 = vunpack.c.l.b16 %v2052
      %v2474 = vunpack.c.h.b16 %v2052
      %v2475 = vunpack.c.l.b16 %v2053
      %v2476 = vunpack.c.h.b16 %v2053
      %v2477 = vunpack.c.l.b16 %v2054
      %v2478 = vunpack.c.h.b16 %v2054
      %v2479 = vunpack.c.l.b16 %v2055
      %v2480 = vunpack.c.h.b16 %v2055
      %v2481 = vunpack.c.l.b16 %v2056
      %v2482 = vunpack.c.h.b16 %v2056
      %v2483 = vunpack.c.l.b16 %v2057
      %v2484 = vunpack.c.h.b16 %v2057
      %v2485 = vunpack.c.l.b16 %v2058
      %v2486 = vunpack.c.h.b16 %v2058
      %v2487 = vunpack.c.l.b16 %v2059
      %v2488 = vunpack.c.h.b16 %v2059
      %v2489 = vunpack.c.l.b16 %v2060
      %v2490 = vunpack.c.h.b16 %v2060
      %v2491 = vunpack.c.l.b16 %v2061
      %v2492 = vunpack.c.h.b16 %v2061
      %v2493 = vunpack.c.l.b16 %v2062
      %v2494 = vunpack.c.h.b16 %v2062
      %v2495 = vunpack.c.l.b16 %v2063
      %v2496 = vunpack.c.h.b16 %v2063
      %v2497 = vunpack.c.l.b16 %v2064
      %v2498 = vunpack.c.h.b16 %v2064
      %v2499 = vunpack.c.l.b16 %v2065
      %v2500 = vunpack.c.h.b16 %v2065
      %v2501 = vunpack.c.l.b16 %v2066
      %v2502 = vunpack.c.h.b16 %v2066
      %v2503 = vunpack.c.l.b16 %v2067
      %v2504 = vunpack.c.h.b16 %v2067
      %v2505 = vunpack.c.l.b16 %v2068
      %v2506 = vunpack.c.h.b16 %v2068
      %v2507 = vunpack.c.l.b16 %v2069
      %v2508 = vunpack.c.h.b16 %v2069
      %v2509 = vunpack.c.l.b16 %v2070
      %v2510 = vunpack.c.h.b16 %v2070
      %v2511 = vunpack.c.l.b16 %v2071
      %v2512 = vunpack.c.h.b16 %v2071
      %v2513 = vunpack.c.l.b16 %v2072
      %v2514 = vunpack.c.h.b16 %v2072
      %v2515 = vunpack.c.l.b16 %v2073
      %v2516 = vunpack.c.h.b16 %v2073
      %v2517 = vunpack.c.l.b16 %v2074
      %v2518 = vunpack.c.h.b16 %v2074
      %v2519 = vunpack.c.l.b16 %v2075
      %v2520 = vunpack.c.h.b16 %v2075
      %v2521 = vunpack.c.l.b16 %v2076
      %v2522 = vunpack.c.h.b16 %v2076
      %v2523 = vunpack.c.l.b16 %v2077
      %v2524 = vunpack.c.h.b16 %v2077
      %v2525 = vunpack.c.l.b16 %v2078
      %v2526 = vunpack.c.h.b16 %v2078
      %v2527 = vunpack.c.l.b16 %v2079
      %v2528 = vunpack.c.h.b16 %v2079
      %v2529 = vpack.c.b16 %v2463, %v2461
      %v2530 = vpack.c.b16 %v2464, %v2462
      %v2531 = vpack.c.b16 %v2467, %v2465
      %v2532 = vpack.c.b16 %v2468, %v2466
      %v2533 = vpack.c.b16 %v2471, %v2469
      %v2534 = vpack.c.b16 %v2472, %v2470
      %v2535 = vpack.c.b16 %v2475, %v2473
      %v2536 = vpack.c.b16 %v2476, %v2474
      %v2537 = vpack.c.b16 %v2479, %v2477
      %v2538 = vpack.c.b16 %v2480, %v2478
      %v2539 = vpack.c.b16 %v2483, %v2481
      %v2540 = vpack.c.b16 %v2484, %v2482
      %v2541 = vpack.c.b16 %v2487, %v2485
      %v2542 = vpack.c.b16 %v2488, %v2486
      %v2543 = vpack.c.b16 %v2491, %v2489
      %v2544 = vpack.c.b16 %v2492, %v2490
      %v2545 = vpack.c.b16 %v2495, %v2493
      %v2546 = vpack.c.b16 %v2496, %v2494
      %v2547 = vpack.c.b16 %v2499, %v2497
      %v2548 = vpack.c.b16 %v2500, %v2498
      %v2549 = vpack.c.b16 %v2503, %v2501
      %v2550 = vpack.c.b16 %v2504, %v2502
      %v2551 = vpack.c.b16 %v2507, %v2505
      %v2552 = vpack.c.b16 %v2508, %v2506
      %v2553 = vpack.c.b16 %v2511, %v2509
      %v2554 = vpack.c.b16 %v2512, %v2510
      %v2555 = vpack.c.b16 %v2515, %v2513
      %v2556 = vpack.c.b16 %v2516, %v2514
      %v2557 = vpack.c.b16 %v2519, %v2517
      %v2558 = vpack.c.b16 %v2520, %v2518
      %v2559 = vpack.c.b16 %v2523, %v2521
      %v2560 = vpack.c.b16 %v2524, %v2522
      %v2561 = vpack.c.b16 %v2527, %v2525
      %v2562 = vpack.c.b16 %v2528, %v2526
      %v2598 = vsel %vm670, %v2045, 0
      %2600 = vmatprep.subr.bf16.mxu0 %v2530
      %2601 = vmatpush1.bf16.msra.mxu0 %v2529
      %2602 = vmatprep.subr.bf16.mxu0 %v2532
      %2603 = vmatpush1.bf16.msra.mxu0 %v2531
      %2604 = vmatprep.subr.bf16.mxu0 %v2534
      %2605 = vmatpush1.bf16.msra.mxu0 %v2533
      %2606 = vmatprep.subr.bf16.mxu0 %v2536
      %2607 = vmatpush1.bf16.msra.mxu0 %v2535
      %2608 = vmatprep.subr.bf16.mxu0 %v2538
      %2609 = vmatpush1.bf16.msra.mxu0 %v2537
      %2610 = vmatprep.subr.bf16.mxu0 %v2540
      %2611 = vmatpush1.bf16.msra.mxu0 %v2539
      %2612 = vmatprep.subr.bf16.mxu0 %v2542
      %2613 = vmatpush1.bf16.msra.mxu0 %v2541
      %2614 = vmatprep.subr.bf16.mxu0 %v2544
      %2615 = vmatpush1.bf16.msra.mxu0 %v2543
      %2616 = vmatprep.subr.bf16.mxu0 %v2546
      %2617 = vmatpush1.bf16.msra.mxu0 %v2545
      %2618 = vmatprep.subr.bf16.mxu0 %v2548
      %2619 = vmatpush1.bf16.msra.mxu0 %v2547
      %2620 = vmatprep.subr.bf16.mxu0 %v2550
      %2621 = vmatpush1.bf16.msra.mxu0 %v2549
      %2622 = vmatprep.subr.bf16.mxu0 %v2552
      %2623 = vmatpush1.bf16.msra.mxu0 %v2551
      %2624 = vmatprep.subr.bf16.mxu0 %v2554
      %2625 = vmatpush1.bf16.msra.mxu0 %v2553
      %2626 = vmatprep.subr.bf16.mxu0 %v2556
      %2627 = vmatpush1.bf16.msra.mxu0 %v2555
      %2628 = vmatprep.subr.bf16.mxu0 %v2558
      %2629 = vmatpush1.bf16.msra.mxu0 %v2557
      %2630 = vmatprep.subr.bf16.mxu0 %v2560
      %2631 = vmatpush1.bf16.msra.mxu0 %v2559
      %2632 = vmatprep.mubr.bf16.mxu0 %v2044
      %2633 = vmatmul.mubr.bf16.gmra.mrb[0].mxu0 %v2043
      %v2634 = vpop.f32.mrb[0].mxu0
      %v2635 = vadd.f32 %v2419, %v2634
      %v2636 = vpop.f32.mrb[0].mxu0
      %v2637 = vadd.f32 %v2421, %v2636
      %v2638 = vpop.f32.mrb[0].mxu0
      %v2639 = vadd.f32 %v2423, %v2638
      %v2640 = vpop.f32.mrb[0].mxu0
      %v2641 = vadd.f32 %v2425, %v2640
      %2642 = vdwg.mxu0
      %2643 = vmatprep.subr.bf16.mxu0 %v2562
      %2644 = vmatpush1.bf16.msra.mxu0 %v2561
      %2645 = vmatprep.subr.bf16.mxu0 0
      %2646 = vmatpush1.bf16.msra.mxu0 0
      %2647 = vmatprep.subr.bf16.mxu0 0
      %2648 = vmatpush1.bf16.msra.mxu0 0
      %2649 = vmatprep.subr.bf16.mxu0 0
      %2650 = vmatpush1.bf16.msra.mxu0 0
      %2651 = vmatprep.subr.bf16.mxu0 0
      %2652 = vmatpush1.bf16.msra.mxu0 0
      %2653 = vmatprep.subr.bf16.mxu0 0
      %2654 = vmatpush1.bf16.msra.mxu0 0
      %2655 = vmatprep.subr.bf16.mxu0 0
      %2656 = vmatpush1.bf16.msra.mxu0 0
      %2657 = vmatprep.subr.bf16.mxu0 0
      %2658 = vmatpush1.bf16.msra.mxu0 0
      %2659 = vmatprep.subr.bf16.mxu0 0
      %2660 = vmatpush1.bf16.msra.mxu0 0
      %2661 = vmatprep.subr.bf16.mxu0 0
      %2662 = vmatpush1.bf16.msra.mxu0 0
      %2663 = vmatprep.subr.bf16.mxu0 0
      %2664 = vmatpush1.bf16.msra.mxu0 0
      %2665 = vmatprep.subr.bf16.mxu0 0
      %2666 = vmatpush1.bf16.msra.mxu0 0
      %2667 = vmatprep.subr.bf16.mxu0 0
      %2668 = vmatpush1.bf16.msra.mxu0 0
      %2669 = vmatprep.subr.bf16.mxu0 0
      %2670 = vmatpush1.bf16.msra.mxu0 0
      %2671 = vmatprep.subr.bf16.mxu0 0
      %2672 = vmatpush1.bf16.msra.mxu0 0
      %2673 = vmatprep.subr.bf16.mxu0 0
      %2674 = vmatpush1.bf16.msra.mxu0 0
      %2675 = vmatprep.mubr.bf16.mxu0 0
      %2676 = vmatmul.mubr.bf16.gmra.mrb[0].mxu0 %v2598
      %v2677 = vpop.f32.mrb[0].mxu0
      %v2678 = vadd.f32 %v2635, %v2677
      %v2679 = vpop.f32.mrb[0].mxu0
      %v2680 = vadd.f32 %v2637, %v2679
      %v2681 = vpop.f32.mrb[0].mxu0
      %v2682 = vadd.f32 %v2639, %v2681
      %v2683 = vpop.f32.mrb[0].mxu0
      %v2684 = vadd.f32 %v2641, %v2683
      %2685 = vdwg.mxu0
      %v2686 = vld [vmem:[#allocation10] sm:$0xfe]
      %v2687 = vld [vmem:[#allocation10 + $0x8] sm:$0xfe]
      %v2688 = vld [vmem:[#allocation10 + $0x10] sm:$0xfe]
      %v2689 = vld [vmem:[#allocation10 + $0x18] sm:$0xff]
      %v2690 = vld [vmem:[#allocation10 + $0x20] sm:$0xff]
      %v2691 = vld [vmem:[#allocation10 + $0x28] sm:$0xff]
      %v2692 = vld [vmem:[#allocation10 + $0x30] sm:$0x1]
      %v2693 = vld [vmem:[#allocation10 + $0x38] sm:$0x1]
      %v2694 = vld [vmem:[#allocation10 + $0x40] sm:$0x1]
      %v2695 = vpack.c.bf16 %v2689, %v2686
      %v2696 = vpack.c.bf16 %v2690, %v2687
      %v2697 = vpack.c.bf16 %v2691, %v2688
      %v2698 = vpack.c.bf16 %v2692, %v2692
      %v2699 = vpack.c.bf16 %v2693, %v2693
      %v2700 = vpack.c.bf16 %v2694, %v2694
      %s2701 = scalar_lea.vmem %s3, 544
      %v2702 = vld [vmem:[%s2701] sm:$0xff]
      %v2703 = vld [vmem:[%s2701 + $0x8] sm:$0xff]
      %v2704 = vld [vmem:[%s2701 + $0x10] sm:$0xff]
      %v2705 = vld [vmem:[%s2701 + $0x18] sm:$0xff]
      %v2706 = vld [vmem:[%s2701 + $0x20] sm:$0xff]
      %v2707 = vld [vmem:[%s2701 + $0x28] sm:$0xff]
      %v2708 = vld [vmem:[%s2701 + $0x30] sm:$0xff]
      %v2709 = vld [vmem:[%s2701 + $0x38] sm:$0xff]
      %v2710 = vld [vmem:[%s2701 + $0x40] sm:$0xff]
      %v2711 = vld [vmem:[%s2701 + $0x48] sm:$0xff]
      %v2712 = vld [vmem:[%s2701 + $0x50] sm:$0xff]
      %v2713 = vld [vmem:[%s2701 + $0x58] sm:$0xff]
      %v2714 = vld [vmem:[%s2701 + $0x60] sm:$0xff]
      %v2715 = vld [vmem:[%s2701 + $0x68] sm:$0xff]
      %v2716 = vld [vmem:[%s2701 + $0x70] sm:$0xff]
      %v2717 = vld [vmem:[%s2701 + $0x78] sm:$0xff]
      %v2718 = vld [vmem:[%s2701 + $0x80] sm:$0xff]
      %v2719 = vld [vmem:[%s2701 + $0x88] sm:$0xff]
      %v2720 = vld [vmem:[%s2701 + $0x90] sm:$0xff]
      %v2721 = vld [vmem:[%s2701 + $0x98] sm:$0xff]
      %v2722 = vld [vmem:[%s2701 + $0xa0] sm:$0xff]
      %v2723 = vld [vmem:[%s2701 + $0xa8] sm:$0xff]
      %v2724 = vld [vmem:[%s2701 + $0xb0] sm:$0xff]
      %v2725 = vld [vmem:[%s2701 + $0xb8] sm:$0xff]
      %v2726 = vld [vmem:[%s2701 + $0xc0] sm:$0xff]
      %v2727 = vld [vmem:[%s2701 + $0xc8] sm:$0xff]
      %v2728 = vld [vmem:[%s2701 + $0xd0] sm:$0xff]
      %v2729 = vld [vmem:[%s2701 + $0xd8] sm:$0xff]
      %v2730 = vld [vmem:[%s2701 + $0xe0] sm:$0xff]
      %v2731 = vld [vmem:[%s2701 + $0xe8] sm:$0xff]
      %v2732 = vld [vmem:[%s2701 + $0xf0] sm:$0xff]
      %v2733 = vld [vmem:[%s2701 + $0xf8] sm:$0xff]
      %v2734 = vld [vmem:[%s2701 + $0x100] sm:$0xff]
      %v2735 = vld [vmem:[%s2701 + $0x108] sm:$0xff]
      %v2737 = vshrl.u32 %v2695, 16
      %v2739 = vshll.u32 %v2695, 16
      %v2741 = vrot.slane %v2739, 1
      %v2742 = vor.u32 %v2737, %v2741
      %v2744 = vshll.u32 %v2698, 16
      %v2746 = vrot.slane %v2744, 1
      %v2747 = vsel %vm859, %v2742, %v2746
      %v2749 = vshrl.u32 %v2696, 16
      %v2751 = vshll.u32 %v2696, 16
      %v2753 = vrot.slane %v2751, 1
      %v2754 = vor.u32 %v2749, %v2753
      %v2756 = vshll.u32 %v2699, 16
      %v2758 = vrot.slane %v2756, 1
      %v2759 = vsel %vm859, %v2754, %v2758
      %v2761 = vshrl.u32 %v2697, 16
      %v2763 = vshll.u32 %v2697, 16
      %v2765 = vrot.slane %v2763, 1
      %v2766 = vor.u32 %v2761, %v2765
      %v2768 = vshll.u32 %v2700, 16
      %v2770 = vrot.slane %v2768, 1
      %v2771 = vsel %vm859, %v2766, %v2770
      %v2808 = vunpack.c.l.b16 %v2702
      %v2809 = vunpack.c.h.b16 %v2702
      %v2810 = vunpack.c.l.b16 %v2703
      %v2811 = vunpack.c.h.b16 %v2703
      %v2812 = vunpack.c.l.b16 %v2704
      %v2813 = vunpack.c.h.b16 %v2704
      %v2814 = vunpack.c.l.b16 %v2705
      %v2815 = vunpack.c.h.b16 %v2705
      %v2816 = vunpack.c.l.b16 %v2706
      %v2817 = vunpack.c.h.b16 %v2706
      %v2818 = vunpack.c.l.b16 %v2707
      %v2819 = vunpack.c.h.b16 %v2707
      %v2820 = vunpack.c.l.b16 %v2708
      %v2821 = vunpack.c.h.b16 %v2708
      %v2822 = vunpack.c.l.b16 %v2709
      %v2823 = vunpack.c.h.b16 %v2709
      %v2824 = vunpack.c.l.b16 %v2710
      %v2825 = vunpack.c.h.b16 %v2710
      %v2826 = vunpack.c.l.b16 %v2711
      %v2827 = vunpack.c.h.b16 %v2711
      %v2828 = vunpack.c.l.b16 %v2712
      %v2829 = vunpack.c.h.b16 %v2712
      %v2830 = vunpack.c.l.b16 %v2713
      %v2831 = vunpack.c.h.b16 %v2713
      %v2832 = vunpack.c.l.b16 %v2714
      %v2833 = vunpack.c.h.b16 %v2714
      %v2834 = vunpack.c.l.b16 %v2715
      %v2835 = vunpack.c.h.b16 %v2715
      %v2836 = vunpack.c.l.b16 %v2716
      %v2837 = vunpack.c.h.b16 %v2716
      %v2838 = vunpack.c.l.b16 %v2717
      %v2839 = vunpack.c.h.b16 %v2717
      %v2840 = vunpack.c.l.b16 %v2718
      %v2841 = vunpack.c.h.b16 %v2718
      %v2842 = vunpack.c.l.b16 %v2719
      %v2843 = vunpack.c.h.b16 %v2719
      %v2844 = vunpack.c.l.b16 %v2720
      %v2845 = vunpack.c.h.b16 %v2720
      %v2846 = vunpack.c.l.b16 %v2721
      %v2847 = vunpack.c.h.b16 %v2721
      %v2848 = vunpack.c.l.b16 %v2722
      %v2849 = vunpack.c.h.b16 %v2722
      %v2850 = vunpack.c.l.b16 %v2723
      %v2851 = vunpack.c.h.b16 %v2723
      %v2852 = vunpack.c.l.b16 %v2724
      %v2853 = vunpack.c.h.b16 %v2724
      %v2854 = vunpack.c.l.b16 %v2725
      %v2855 = vunpack.c.h.b16 %v2725
      %v2856 = vunpack.c.l.b16 %v2726
      %v2857 = vunpack.c.h.b16 %v2726
      %v2858 = vunpack.c.l.b16 %v2727
      %v2859 = vunpack.c.h.b16 %v2727
      %v2860 = vunpack.c.l.b16 %v2728
      %v2861 = vunpack.c.h.b16 %v2728
      %v2862 = vunpack.c.l.b16 %v2729
      %v2863 = vunpack.c.h.b16 %v2729
      %v2864 = vunpack.c.l.b16 %v2730
      %v2865 = vunpack.c.h.b16 %v2730
      %v2866 = vunpack.c.l.b16 %v2731
      %v2867 = vunpack.c.h.b16 %v2731
      %v2868 = vunpack.c.l.b16 %v2732
      %v2869 = vunpack.c.h.b16 %v2732
      %v2870 = vunpack.c.l.b16 %v2733
      %v2871 = vunpack.c.h.b16 %v2733
      %v2872 = vunpack.c.l.b16 %v2734
      %v2873 = vunpack.c.h.b16 %v2734
      %v2874 = vunpack.c.l.b16 %v2735
      %v2875 = vunpack.c.h.b16 %v2735
      %v2876 = vpack.c.b16 %v2810, %v2808
      %v2877 = vpack.c.b16 %v2811, %v2809
      %v2878 = vpack.c.b16 %v2814, %v2812
      %v2879 = vpack.c.b16 %v2815, %v2813
      %v2880 = vpack.c.b16 %v2818, %v2816
      %v2881 = vpack.c.b16 %v2819, %v2817
      %v2882 = vpack.c.b16 %v2822, %v2820
      %v2883 = vpack.c.b16 %v2823, %v2821
      %v2884 = vpack.c.b16 %v2826, %v2824
      %v2885 = vpack.c.b16 %v2827, %v2825
      %v2886 = vpack.c.b16 %v2830, %v2828
      %v2887 = vpack.c.b16 %v2831, %v2829
      %v2888 = vpack.c.b16 %v2834, %v2832
      %v2889 = vpack.c.b16 %v2835, %v2833
      %v2890 = vpack.c.b16 %v2838, %v2836
      %v2891 = vpack.c.b16 %v2839, %v2837
      %v2892 = vpack.c.b16 %v2842, %v2840
      %v2893 = vpack.c.b16 %v2843, %v2841
      %v2894 = vpack.c.b16 %v2846, %v2844
      %v2895 = vpack.c.b16 %v2847, %v2845
      %v2896 = vpack.c.b16 %v2850, %v2848
      %v2897 = vpack.c.b16 %v2851, %v2849
      %v2898 = vpack.c.b16 %v2854, %v2852
      %v2899 = vpack.c.b16 %v2855, %v2853
      %v2900 = vpack.c.b16 %v2858, %v2856
      %v2901 = vpack.c.b16 %v2859, %v2857
      %v2902 = vpack.c.b16 %v2862, %v2860
      %v2903 = vpack.c.b16 %v2863, %v2861
      %v2904 = vpack.c.b16 %v2866, %v2864
      %v2905 = vpack.c.b16 %v2867, %v2865
      %v2906 = vpack.c.b16 %v2870, %v2868
      %v2907 = vpack.c.b16 %v2871, %v2869
      %v2908 = vpack.c.b16 %v2874, %v2872
      %v2909 = vpack.c.b16 %v2875, %v2873
      %v2945 = vsel %vm670, %v2771, 0
      %2947 = vmatprep.subr.bf16.mxu0 %v2877
      %2948 = vmatpush1.bf16.msra.mxu0 %v2876
      %2949 = vmatprep.subr.bf16.mxu0 %v2879
      %2950 = vmatpush1.bf16.msra.mxu0 %v2878
      %2951 = vmatprep.subr.bf16.mxu0 %v2881
      %2952 = vmatpush1.bf16.msra.mxu0 %v2880
      %2953 = vmatprep.subr.bf16.mxu0 %v2883
      %2954 = vmatpush1.bf16.msra.mxu0 %v2882
      %2955 = vmatprep.subr.bf16.mxu0 %v2885
      %2956 = vmatpush1.bf16.msra.mxu0 %v2884
      %2957 = vmatprep.subr.bf16.mxu0 %v2887
      %2958 = vmatpush1.bf16.msra.mxu0 %v2886
      %2959 = vmatprep.subr.bf16.mxu0 %v2889
      %2960 = vmatpush1.bf16.msra.mxu0 %v2888
      %2961 = vmatprep.subr.bf16.mxu0 %v2891
      %2962 = vmatpush1.bf16.msra.mxu0 %v2890
      %2963 = vmatprep.subr.bf16.mxu0 %v2893
      %2964 = vmatpush1.bf16.msra.mxu0 %v2892
      %2965 = vmatprep.subr.bf16.mxu0 %v2895
      %2966 = vmatpush1.bf16.msra.mxu0 %v2894
      %2967 = vmatprep.subr.bf16.mxu0 %v2897
      %2968 = vmatpush1.bf16.msra.mxu0 %v2896
      %2969 = vmatprep.subr.bf16.mxu0 %v2899
      %2970 = vmatpush1.bf16.msra.mxu0 %v2898
      %2971 = vmatprep.subr.bf16.mxu0 %v2901
      %2972 = vmatpush1.bf16.msra.mxu0 %v2900
      %2973 = vmatprep.subr.bf16.mxu0 %v2903
      %2974 = vmatpush1.bf16.msra.mxu0 %v2902
      %2975 = vmatprep.subr.bf16.mxu0 %v2905
      %2976 = vmatpush1.bf16.msra.mxu0 %v2904
      %2977 = vmatprep.subr.bf16.mxu0 %v2907
      %2978 = vmatpush1.bf16.msra.mxu0 %v2906
      %2979 = vmatprep.mubr.bf16.mxu0 %v2759
      %2980 = vmatmul.mubr.bf16.gmra.mrb[0].mxu0 %v2747
      %v2981 = vpop.f32.mrb[0].mxu0
      %v2982 = vadd.f32 0.0, %v2981
      %v2983 = vpop.f32.mrb[0].mxu0
      %v2984 = vadd.f32 0.0, %v2983
      %v2985 = vpop.f32.mrb[0].mxu0
      %v2986 = vadd.f32 0.0, %v2985
      %v2987 = vpop.f32.mrb[0].mxu0
      %v2988 = vadd.f32 0.0, %v2987
      %2989 = vdwg.mxu0
      %2990 = vmatprep.subr.bf16.mxu0 %v2909
      %2991 = vmatpush1.bf16.msra.mxu0 %v2908
      %2992 = vmatprep.subr.bf16.mxu0 0
      %2993 = vmatpush1.bf16.msra.mxu0 0
      %2994 = vmatprep.subr.bf16.mxu0 0
      %2995 = vmatpush1.bf16.msra.mxu0 0
      %2996 = vmatprep.subr.bf16.mxu0 0
      %2997 = vmatpush1.bf16.msra.mxu0 0
      %2998 = vmatprep.subr.bf16.mxu0 0
      %2999 = vmatpush1.bf16.msra.mxu0 0
      %3000 = vmatprep.subr.bf16.mxu0 0
      %3001 = vmatpush1.bf16.msra.mxu0 0
      %3002 = vmatprep.subr.bf16.mxu0 0
      %3003 = vmatpush1.bf16.msra.mxu0 0
      %3004 = vmatprep.subr.bf16.mxu0 0
      %3005 = vmatpush1.bf16.msra.mxu0 0
      %3006 = vmatprep.subr.bf16.mxu0 0
      %3007 = vmatpush1.bf16.msra.mxu0 0
      %3008 = vmatprep.subr.bf16.mxu0 0
      %3009 = vmatpush1.bf16.msra.mxu0 0
      %3010 = vmatprep.subr.bf16.mxu0 0
      %3011 = vmatpush1.bf16.msra.mxu0 0
      %3012 = vmatprep.subr.bf16.mxu0 0
      %3013 = vmatpush1.bf16.msra.mxu0 0
      %3014 = vmatprep.subr.bf16.mxu0 0
      %3015 = vmatpush1.bf16.msra.mxu0 0
      %3016 = vmatprep.subr.bf16.mxu0 0
      %3017 = vmatpush1.bf16.msra.mxu0 0
      %3018 = vmatprep.subr.bf16.mxu0 0
      %3019 = vmatpush1.bf16.msra.mxu0 0
      %3020 = vmatprep.subr.bf16.mxu0 0
      %3021 = vmatpush1.bf16.msra.mxu0 0
      %3022 = vmatprep.mubr.bf16.mxu0 0
      %3023 = vmatmul.mubr.bf16.gmra.mrb[0].mxu0 %v2945
      %v3024 = vpop.f32.mrb[0].mxu0
      %v3025 = vadd.f32 %v2982, %v3024
      %v3026 = vpop.f32.mrb[0].mxu0
      %v3027 = vadd.f32 %v2984, %v3026
      %v3028 = vpop.f32.mrb[0].mxu0
      %v3029 = vadd.f32 %v2986, %v3028
      %v3030 = vpop.f32.mrb[0].mxu0
      %v3031 = vadd.f32 %v2988, %v3030
      %3032 = vdwg.mxu0
      %v3033 = vadd.f32 %v2678, %v3025
      %v3034 = vadd.f32 %v2680, %v3027
      %v3035 = vadd.f32 %v2682, %v3029
      %v3036 = vadd.f32 %v2684, %v3031
      %v3037 = vld [vmem:[#allocation10 + $0x30] sm:$0xfc]
      %v3038 = vld [vmem:[#allocation10 + $0x38] sm:$0xfc]
      %v3039 = vld [vmem:[#allocation10 + $0x40] sm:$0xfc]
      %v3040 = vld [vmem:[#allocation10 + $0x60] sm:$0x3]
      %v3041 = vld [vmem:[#allocation10 + $0x68] sm:$0x3]
      %v3042 = vld [vmem:[#allocation10 + $0x70] sm:$0x3]
      %v3043 = vpack.c.bf16 %v2083, %v3037
      %v3044 = vpack.c.bf16 %v2084, %v3038
      %v3045 = vpack.c.bf16 %v2085, %v3039
      %v3046 = vpack.c.bf16 %v3040, %v3040
      %v3047 = vpack.c.bf16 %v3041, %v3041
      %v3048 = vpack.c.bf16 %v3042, %v3042
      %s3049 = scalar_lea.vmem %s3, 816
      %v3050 = vld [vmem:[%s3049] sm:$0xff]
      %v3051 = vld [vmem:[%s3049 + $0x8] sm:$0xff]
      %v3052 = vld [vmem:[%s3049 + $0x10] sm:$0xff]
      %v3053 = vld [vmem:[%s3049 + $0x18] sm:$0xff]
      %v3054 = vld [vmem:[%s3049 + $0x20] sm:$0xff]
      %v3055 = vld [vmem:[%s3049 + $0x28] sm:$0xff]
      %v3056 = vld [vmem:[%s3049 + $0x30] sm:$0xff]
      %v3057 = vld [vmem:[%s3049 + $0x38] sm:$0xff]
      %v3058 = vld [vmem:[%s3049 + $0x40] sm:$0xff]
      %v3059 = vld [vmem:[%s3049 + $0x48] sm:$0xff]
      %v3060 = vld [vmem:[%s3049 + $0x50] sm:$0xff]
      %v3061 = vld [vmem:[%s3049 + $0x58] sm:$0xff]
      %v3062 = vld [vmem:[%s3049 + $0x60] sm:$0xff]
      %v3063 = vld [vmem:[%s3049 + $0x68] sm:$0xff]
      %v3064 = vld [vmem:[%s3049 + $0x70] sm:$0xff]
      %v3065 = vld [vmem:[%s3049 + $0x78] sm:$0xff]
      %v3066 = vld [vmem:[%s3049 + $0x80] sm:$0xff]
      %v3067 = vld [vmem:[%s3049 + $0x88] sm:$0xff]
      %v3068 = vld [vmem:[%s3049 + $0x90] sm:$0xff]
      %v3069 = vld [vmem:[%s3049 + $0x98] sm:$0xff]
      %v3070 = vld [vmem:[%s3049 + $0xa0] sm:$0xff]
      %v3071 = vld [vmem:[%s3049 + $0xa8] sm:$0xff]
      %v3072 = vld [vmem:[%s3049 + $0xb0] sm:$0xff]
      %v3073 = vld [vmem:[%s3049 + $0xb8] sm:$0xff]
      %v3074 = vld [vmem:[%s3049 + $0xc0] sm:$0xff]
      %v3075 = vld [vmem:[%s3049 + $0xc8] sm:$0xff]
      %v3076 = vld [vmem:[%s3049 + $0xd0] sm:$0xff]
      %v3077 = vld [vmem:[%s3049 + $0xd8] sm:$0xff]
      %v3078 = vld [vmem:[%s3049 + $0xe0] sm:$0xff]
      %v3079 = vld [vmem:[%s3049 + $0xe8] sm:$0xff]
      %v3080 = vld [vmem:[%s3049 + $0xf0] sm:$0xff]
      %v3081 = vld [vmem:[%s3049 + $0xf8] sm:$0xff]
      %v3082 = vld [vmem:[%s3049 + $0x100] sm:$0xff]
      %v3083 = vld [vmem:[%s3049 + $0x108] sm:$0xff]
      %v3090 = vrot.slane %v3043, 1
      %v3091 = vrot.slane %v3046, 1
      %v3092 = vsel %vm1457, %v3090, %v3091
      %v3093 = vrot.slane %v3044, 1
      %v3094 = vrot.slane %v3047, 1
      %v3095 = vsel %vm1457, %v3093, %v3094
      %v3096 = vrot.slane %v3045, 1
      %v3097 = vrot.slane %v3048, 1
      %v3098 = vsel %vm1457, %v3096, %v3097
      %v3135 = vunpack.c.l.b16 %v3050
      %v3136 = vunpack.c.h.b16 %v3050
      %v3137 = vunpack.c.l.b16 %v3051
      %v3138 = vunpack.c.h.b16 %v3051
      %v3139 = vunpack.c.l.b16 %v3052
      %v3140 = vunpack.c.h.b16 %v3052
      %v3141 = vunpack.c.l.b16 %v3053
      %v3142 = vunpack.c.h.b16 %v3053
      %v3143 = vunpack.c.l.b16 %v3054
      %v3144 = vunpack.c.h.b16 %v3054
      %v3145 = vunpack.c.l.b16 %v3055
      %v3146 = vunpack.c.h.b16 %v3055
      %v3147 = vunpack.c.l.b16 %v3056
      %v3148 = vunpack.c.h.b16 %v3056
      %v3149 = vunpack.c.l.b16 %v3057
      %v3150 = vunpack.c.h.b16 %v3057
      %v3151 = vunpack.c.l.b16 %v3058
      %v3152 = vunpack.c.h.b16 %v3058
      %v3153 = vunpack.c.l.b16 %v3059
      %v3154 = vunpack.c.h.b16 %v3059
      %v3155 = vunpack.c.l.b16 %v3060
      %v3156 = vunpack.c.h.b16 %v3060
      %v3157 = vunpack.c.l.b16 %v3061
      %v3158 = vunpack.c.h.b16 %v3061
      %v3159 = vunpack.c.l.b16 %v3062
      %v3160 = vunpack.c.h.b16 %v3062
      %v3161 = vunpack.c.l.b16 %v3063
      %v3162 = vunpack.c.h.b16 %v3063
      %v3163 = vunpack.c.l.b16 %v3064
      %v3164 = vunpack.c.h.b16 %v3064
      %v3165 = vunpack.c.l.b16 %v3065
      %v3166 = vunpack.c.h.b16 %v3065
      %v3167 = vunpack.c.l.b16 %v3066
      %v3168 = vunpack.c.h.b16 %v3066
      %v3169 = vunpack.c.l.b16 %v3067
      %v3170 = vunpack.c.h.b16 %v3067
      %v3171 = vunpack.c.l.b16 %v3068
      %v3172 = vunpack.c.h.b16 %v3068
      %v3173 = vunpack.c.l.b16 %v3069
      %v3174 = vunpack.c.h.b16 %v3069
      %v3175 = vunpack.c.l.b16 %v3070
      %v3176 = vunpack.c.h.b16 %v3070
      %v3177 = vunpack.c.l.b16 %v3071
      %v3178 = vunpack.c.h.b16 %v3071
      %v3179 = vunpack.c.l.b16 %v3072
      %v3180 = vunpack.c.h.b16 %v3072
      %v3181 = vunpack.c.l.b16 %v3073
      %v3182 = vunpack.c.h.b16 %v3073
      %v3183 = vunpack.c.l.b16 %v3074
      %v3184 = vunpack.c.h.b16 %v3074
      %v3185 = vunpack.c.l.b16 %v3075
      %v3186 = vunpack.c.h.b16 %v3075
      %v3187 = vunpack.c.l.b16 %v3076
      %v3188 = vunpack.c.h.b16 %v3076
      %v3189 = vunpack.c.l.b16 %v3077
      %v3190 = vunpack.c.h.b16 %v3077
      %v3191 = vunpack.c.l.b16 %v3078
      %v3192 = vunpack.c.h.b16 %v3078
      %v3193 = vunpack.c.l.b16 %v3079
      %v3194 = vunpack.c.h.b16 %v3079
      %v3195 = vunpack.c.l.b16 %v3080
      %v3196 = vunpack.c.h.b16 %v3080
      %v3197 = vunpack.c.l.b16 %v3081
      %v3198 = vunpack.c.h.b16 %v3081
      %v3199 = vunpack.c.l.b16 %v3082
      %v3200 = vunpack.c.h.b16 %v3082
      %v3201 = vunpack.c.l.b16 %v3083
      %v3202 = vunpack.c.h.b16 %v3083
      %v3203 = vpack.c.b16 %v3137, %v3135
      %v3204 = vpack.c.b16 %v3138, %v3136
      %v3205 = vpack.c.b16 %v3141, %v3139
      %v3206 = vpack.c.b16 %v3142, %v3140
      %v3207 = vpack.c.b16 %v3145, %v3143
      %v3208 = vpack.c.b16 %v3146, %v3144
      %v3209 = vpack.c.b16 %v3149, %v3147
      %v3210 = vpack.c.b16 %v3150, %v3148
      %v3211 = vpack.c.b16 %v3153, %v3151
      %v3212 = vpack.c.b16 %v3154, %v3152
      %v3213 = vpack.c.b16 %v3157, %v3155
      %v3214 = vpack.c.b16 %v3158, %v3156
      %v3215 = vpack.c.b16 %v3161, %v3159
      %v3216 = vpack.c.b16 %v3162, %v3160
      %v3217 = vpack.c.b16 %v3165, %v3163
      %v3218 = vpack.c.b16 %v3166, %v3164
      %v3219 = vpack.c.b16 %v3169, %v3167
      %v3220 = vpack.c.b16 %v3170, %v3168
      %v3221 = vpack.c.b16 %v3173, %v3171
      %v3222 = vpack.c.b16 %v3174, %v3172
      %v3223 = vpack.c.b16 %v3177, %v3175
      %v3224 = vpack.c.b16 %v3178, %v3176
      %v3225 = vpack.c.b16 %v3181, %v3179
      %v3226 = vpack.c.b16 %v3182, %v3180
      %v3227 = vpack.c.b16 %v3185, %v3183
      %v3228 = vpack.c.b16 %v3186, %v3184
      %v3229 = vpack.c.b16 %v3189, %v3187
      %v3230 = vpack.c.b16 %v3190, %v3188
      %v3231 = vpack.c.b16 %v3193, %v3191
      %v3232 = vpack.c.b16 %v3194, %v3192
      %v3233 = vpack.c.b16 %v3197, %v3195
      %v3234 = vpack.c.b16 %v3198, %v3196
      %v3235 = vpack.c.b16 %v3201, %v3199
      %v3236 = vpack.c.b16 %v3202, %v3200
      %v3272 = vsel %vm670, %v3098, 0
      %3274 = vmatprep.subr.bf16.mxu0 %v3204
      %3275 = vmatpush1.bf16.msra.mxu0 %v3203
      %3276 = vmatprep.subr.bf16.mxu0 %v3206
      %3277 = vmatpush1.bf16.msra.mxu0 %v3205
      %3278 = vmatprep.subr.bf16.mxu0 %v3208
      %3279 = vmatpush1.bf16.msra.mxu0 %v3207
      %3280 = vmatprep.subr.bf16.mxu0 %v3210
      %3281 = vmatpush1.bf16.msra.mxu0 %v3209
      %3282 = vmatprep.subr.bf16.mxu0 %v3212
      %3283 = vmatpush1.bf16.msra.mxu0 %v3211
      %3284 = vmatprep.subr.bf16.mxu0 %v3214
      %3285 = vmatpush1.bf16.msra.mxu0 %v3213
      %3286 = vmatprep.subr.bf16.mxu0 %v3216
      %3287 = vmatpush1.bf16.msra.mxu0 %v3215
      %3288 = vmatprep.subr.bf16.mxu0 %v3218
      %3289 = vmatpush1.bf16.msra.mxu0 %v3217
      %3290 = vmatprep.subr.bf16.mxu0 %v3220
      %3291 = vmatpush1.bf16.msra.mxu0 %v3219
      %3292 = vmatprep.subr.bf16.mxu0 %v3222
      %3293 = vmatpush1.bf16.msra.mxu0 %v3221
      %3294 = vmatprep.subr.bf16.mxu0 %v3224
      %3295 = vmatpush1.bf16.msra.mxu0 %v3223
      %3296 = vmatprep.subr.bf16.mxu0 %v3226
      %3297 = vmatpush1.bf16.msra.mxu0 %v3225
      %3298 = vmatprep.subr.bf16.mxu0 %v3228
      %3299 = vmatpush1.bf16.msra.mxu0 %v3227
      %3300 = vmatprep.subr.bf16.mxu0 %v3230
      %3301 = vmatpush1.bf16.msra.mxu0 %v3229
      %3302 = vmatprep.subr.bf16.mxu0 %v3232
      %3303 = vmatpush1.bf16.msra.mxu0 %v3231
      %3304 = vmatprep.subr.bf16.mxu0 %v3234
      %3305 = vmatpush1.bf16.msra.mxu0 %v3233
      %3306 = vmatprep.mubr.bf16.mxu0 %v3095
      %3307 = vmatmul.mubr.bf16.gmra.mrb[0].mxu0 %v3092
      %v3308 = vpop.f32.mrb[0].mxu0
      %v3309 = vadd.f32 0.0, %v3308
      %v3310 = vpop.f32.mrb[0].mxu0
      %v3311 = vadd.f32 0.0, %v3310
      %v3312 = vpop.f32.mrb[0].mxu0
      %v3313 = vadd.f32 0.0, %v3312
      %v3314 = vpop.f32.mrb[0].mxu0
      %v3315 = vadd.f32 0.0, %v3314
      %3316 = vdwg.mxu0
      %3317 = vmatprep.subr.bf16.mxu0 %v3236
      %3318 = vmatpush1.bf16.msra.mxu0 %v3235
      %3319 = vmatprep.subr.bf16.mxu0 0
      %3320 = vmatpush1.bf16.msra.mxu0 0
      %3321 = vmatprep.subr.bf16.mxu0 0
      %3322 = vmatpush1.bf16.msra.mxu0 0
      %3323 = vmatprep.subr.bf16.mxu0 0
      %3324 = vmatpush1.bf16.msra.mxu0 0
      %3325 = vmatprep.subr.bf16.mxu0 0
      %3326 = vmatpush1.bf16.msra.mxu0 0
      %3327 = vmatprep.subr.bf16.mxu0 0
      %3328 = vmatpush1.bf16.msra.mxu0 0
      %3329 = vmatprep.subr.bf16.mxu0 0
      %3330 = vmatpush1.bf16.msra.mxu0 0
      %3331 = vmatprep.subr.bf16.mxu0 0
      %3332 = vmatpush1.bf16.msra.mxu0 0
      %3333 = vmatprep.subr.bf16.mxu0 0
      %3334 = vmatpush1.bf16.msra.mxu0 0
      %3335 = vmatprep.subr.bf16.mxu0 0
      %3336 = vmatpush1.bf16.msra.mxu0 0
      %3337 = vmatprep.subr.bf16.mxu0 0
      %3338 = vmatpush1.bf16.msra.mxu0 0
      %3339 = vmatprep.subr.bf16.mxu0 0
      %3340 = vmatpush1.bf16.msra.mxu0 0
      %3341 = vmatprep.subr.bf16.mxu0 0
      %3342 = vmatpush1.bf16.msra.mxu0 0
      %3343 = vmatprep.subr.bf16.mxu0 0
      %3344 = vmatpush1.bf16.msra.mxu0 0
      %3345 = vmatprep.subr.bf16.mxu0 0
      %3346 = vmatpush1.bf16.msra.mxu0 0
      %3347 = vmatprep.subr.bf16.mxu0 0
      %3348 = vmatpush1.bf16.msra.mxu0 0
      %3349 = vmatprep.mubr.bf16.mxu0 0
      %3350 = vmatmul.mubr.bf16.gmra.mrb[0].mxu0 %v3272
      %v3351 = vpop.f32.mrb[0].mxu0
      %v3352 = vadd.f32 %v3309, %v3351
      %v3353 = vpop.f32.mrb[0].mxu0
      %v3354 = vadd.f32 %v3311, %v3353
      %v3355 = vpop.f32.mrb[0].mxu0
      %v3356 = vadd.f32 %v3313, %v3355
      %v3357 = vpop.f32.mrb[0].mxu0
      %v3358 = vadd.f32 %v3315, %v3357
      %3359 = vdwg.mxu0
      %v3360 = vadd.f32 %v3033, %v3352
      %v3361 = vadd.f32 %v3034, %v3354
      %v3362 = vadd.f32 %v3035, %v3356
      %v3363 = vadd.f32 %v3036, %v3358
      %v3364 = vld [vmem:[%s4] sm:$0x3]
      %v3366 = vlaneseq
      %v3367 = vshrl.u32 %v3366, 7
      %v3368 = vsub.s32 0, %v3367
      %v3369 = vrot.slane %v3364, %v3368
      %v3370 = vlaneseq
      %v3371 = vshrl.u32 %v3370, 7
      %v3372 = vsub.s32 1, %v3371
      %v3373 = vrot.slane %v3364, %v3372
      %v3376 = vadd.f32 %v3360, %v3369
      %v3377 = vadd.f32 %v3361, %v3373
      %v3378 = vadd.f32 %v3362, %v3369
      %v3379 = vadd.f32 %v3363, %v3373
      %vm3380 = vcmp.ge.f32.partialorder %v3376, 0.0
      %vm3381 = vcmp.ge.f32.partialorder %v3377, 0.0
      %vm3382 = vcmp.ge.f32.partialorder %v3378, 0.0
      %vm3383 = vcmp.ge.f32.partialorder %v3379, 0.0
      %v3384 = vmul.f32 %v3376, 0.1
      %v3385 = vmul.f32 %v3377, 0.1
      %v3386 = vmul.f32 %v3378, 0.1
      %v3387 = vmul.f32 %v3379, 0.1
      %v3388 = vsel %vm3380, %v3376, %v3384
      %v3389 = vsel %vm3381, %v3377, %v3385
      %v3390 = vsel %vm3382, %v3378, %v3386
      %v3391 = vsel %vm3383, %v3379, %v3387
      %v3396 = vrot.slane %v3388, 7
      %v3397 = vrot.slane %v3389, 7
      %v3398 = vrot.slane %v3390, 7
      %v3399 = vsel %vm733, %v3396, %v3398
      %v3400 = vrot.slane %v3391, 7
      %v3401 = vsel %vm733, %v3397, %v3400
      %3408 = vst [vmem:[#allocation4] sm:$0xfe] %v3396
      %3409 = vst.msk [vmem:[#allocation4 + $0x8] sm:$0xfe] %vm1850, %v3397
      %3410 = vst [vmem:[#allocation4 + $0x10] sm:$0xff] %v3399
      %3411 = vst.msk [vmem:[#allocation4 + $0x18] sm:$0xff] %vm670, %v3401
      %3412 = vst [vmem:[#allocation4 + $0x20] sm:$0x1] %v3398
      %3413 = vst.msk [vmem:[#allocation4 + $0x28] sm:$0x1] %vm1863, %v3400
      %v3414 = vld [vmem:[#allocation4] sm:$0xff]
      %v3415 = vld [vmem:[#allocation4 + $0x8] sm:$0xff]
      %v3416 = vld [vmem:[#allocation4 + $0x10] sm:$0xff]
      %v3417 = vld [vmem:[#allocation4 + $0x18] sm:$0xff]
      %v3418 = vpack.c.bf16 %v3416, %v3414
      %v3419 = vpack.c.bf16 %v3417, %v3415
      %v3420 = vld [vmem:[%s5] sm:$0xff]
      %v3421 = vld [vmem:[%s5 + $0x8] sm:$0xf]
      %v3422 = vld [vmem:[%s5 + $0xc] sm:$0xff]
      %v3423 = vld [vmem:[%s5 + $0x14] sm:$0xf]
      %v3424 = vld [vmem:[%s5 + $0x18] sm:$0xff]
      %v3425 = vld [vmem:[%s5 + $0x20] sm:$0xf]
      %v3426 = vld [vmem:[%s5 + $0x24] sm:$0xff]
      %v3427 = vld [vmem:[%s5 + $0x2c] sm:$0xf]
      %v3428 = vld [vmem:[%s5 + $0x30] sm:$0xff]
      %v3429 = vld [vmem:[%s5 + $0x38] sm:$0xf]
      %v3430 = vld [vmem:[%s5 + $0x3c] sm:$0xff]
      %v3431 = vld [vmem:[%s5 + $0x44] sm:$0xf]
      %v3432 = vld [vmem:[%s5 + $0x48] sm:$0xff]
      %v3433 = vld [vmem:[%s5 + $0x50] sm:$0xf]
      %v3434 = vld [vmem:[%s5 + $0x54] sm:$0xff]
      %v3435 = vld [vmem:[%s5 + $0x5c] sm:$0xf]
      %v3436 = vld [vmem:[%s5 + $0x60] sm:$0xff]
      %v3437 = vld [vmem:[%s5 + $0x68] sm:$0xf]
      %v3438 = vld [vmem:[%s5 + $0x6c] sm:$0xff]
      %v3439 = vld [vmem:[%s5 + $0x74] sm:$0xf]
      %v3440 = vld [vmem:[%s5 + $0x78] sm:$0xff]
      %v3441 = vld [vmem:[%s5 + $0x80] sm:$0xf]
      %v3442 = vld [vmem:[%s5 + $0x84] sm:$0xff]
      %v3443 = vld [vmem:[%s5 + $0x8c] sm:$0xf]
      %v3444 = vld [vmem:[%s5 + $0x90] sm:$0xff]
      %v3445 = vld [vmem:[%s5 + $0x98] sm:$0xf]
      %v3446 = vld [vmem:[%s5 + $0x9c] sm:$0xff]
      %v3447 = vld [vmem:[%s5 + $0xa4] sm:$0xf]
      %v3448 = vld [vmem:[%s5 + $0xa8] sm:$0xff]
      %v3449 = vld [vmem:[%s5 + $0xb0] sm:$0xf]
      %v3450 = vld [vmem:[%s5 + $0xb4] sm:$0xff]
      %v3451 = vld [vmem:[%s5 + $0xbc] sm:$0xf]
      %v3452 = vld [vmem:[%s5 + $0xc0] sm:$0xff]
      %v3453 = vld [vmem:[%s5 + $0xc8] sm:$0xf]
      %v3454 = vld [vmem:[%s5 + $0xcc] sm:$0xff]
      %v3455 = vld [vmem:[%s5 + $0xd4] sm:$0xf]
      %v3456 = vld [vmem:[#allocation4] sm:$0xfe]
      %v3457 = vld [vmem:[#allocation4 + $0x8] sm:$0xfe]
      %v3458 = vld [vmem:[#allocation4 + $0x20] sm:$0x1]
      %v3459 = vld [vmem:[#allocation4 + $0x28] sm:$0x1]
      %v3460 = vpack.c.bf16 %v3416, %v3456
      %v3461 = vpack.c.bf16 %v3417, %v3457
      %v3462 = vpack.c.bf16 %v3458, %v3458
      %v3463 = vpack.c.bf16 %v3459, %v3459
      %s3464 = scalar_lea.vmem %s5, 216
      %v3465 = vld [vmem:[%s3464] sm:$0xff]
      %v3466 = vld [vmem:[%s3464 + $0x8] sm:$0xf]
      %v3467 = vld [vmem:[%s3464 + $0xc] sm:$0xff]
      %v3468 = vld [vmem:[%s3464 + $0x14] sm:$0xf]
      %v3469 = vld [vmem:[%s3464 + $0x18] sm:$0xff]
      %v3470 = vld [vmem:[%s3464 + $0x20] sm:$0xf]
      %v3471 = vld [vmem:[%s3464 + $0x24] sm:$0xff]
      %v3472 = vld [vmem:[%s3464 + $0x2c] sm:$0xf]
      %v3473 = vld [vmem:[%s3464 + $0x30] sm:$0xff]
      %v3474 = vld [vmem:[%s3464 + $0x38] sm:$0xf]
      %v3475 = vld [vmem:[%s3464 + $0x3c] sm:$0xff]
      %v3476 = vld [vmem:[%s3464 + $0x44] sm:$0xf]
      %v3477 = vld [vmem:[%s3464 + $0x48] sm:$0xff]
      %v3478 = vld [vmem:[%s3464 + $0x50] sm:$0xf]
      %v3479 = vld [vmem:[%s3464 + $0x54] sm:$0xff]
      %v3480 = vld [vmem:[%s3464 + $0x5c] sm:$0xf]
      %v3481 = vld [vmem:[%s3464 + $0x60] sm:$0xff]
      %v3482 = vld [vmem:[%s3464 + $0x68] sm:$0xf]
      %v3483 = vld [vmem:[%s3464 + $0x6c] sm:$0xff]
      %v3484 = vld [vmem:[%s3464 + $0x74] sm:$0xf]
      %v3485 = vld [vmem:[%s3464 + $0x78] sm:$0xff]
      %v3486 = vld [vmem:[%s3464 + $0x80] sm:$0xf]
      %v3487 = vld [vmem:[%s3464 + $0x84] sm:$0xff]
      %v3488 = vld [vmem:[%s3464 + $0x8c] sm:$0xf]
      %v3489 = vld [vmem:[%s3464 + $0x90] sm:$0xff]
      %v3490 = vld [vmem:[%s3464 + $0x98] sm:$0xf]
      %v3491 = vld [vmem:[%s3464 + $0x9c] sm:$0xff]
      %v3492 = vld [vmem:[%s3464 + $0xa4] sm:$0xf]
      %v3493 = vld [vmem:[%s3464 + $0xa8] sm:$0xff]
      %v3494 = vld [vmem:[%s3464 + $0xb0] sm:$0xf]
      %v3495 = vld [vmem:[%s3464 + $0xb4] sm:$0xff]
      %v3496 = vld [vmem:[%s3464 + $0xbc] sm:$0xf]
      %v3497 = vld [vmem:[%s3464 + $0xc0] sm:$0xff]
      %v3498 = vld [vmem:[%s3464 + $0xc8] sm:$0xf]
      %v3499 = vld [vmem:[%s3464 + $0xcc] sm:$0xff]
      %v3500 = vld [vmem:[%s3464 + $0xd4] sm:$0xf]
      %v3502 = vshrl.u32 %v3460, 16
      %v3504 = vshll.u32 %v3460, 16
      %v3506 = vrot.slane %v3504, 1
      %v3507 = vor.u32 %v3502, %v3506
      %v3509 = vshll.u32 %v3462, 16
      %v3511 = vrot.slane %v3509, 1
      %v3512 = vsel %vm859, %v3507, %v3511
      %v3514 = vshrl.u32 %v3461, 16
      %v3516 = vshll.u32 %v3461, 16
      %v3518 = vrot.slane %v3516, 1
      %v3519 = vor.u32 %v3514, %v3518
      %v3521 = vshll.u32 %v3463, 16
      %v3523 = vrot.slane %v3521, 1
      %v3524 = vsel %vm859, %v3519, %v3523
      %v3562 = vunpack.c.l.b16 %v3465
      %v3563 = vunpack.c.h.b16 %v3465
      %v3564 = vunpack.c.l.b16 %v3466
      %v3565 = vunpack.c.l.b16 %v3467
      %v3566 = vunpack.c.h.b16 %v3467
      %v3567 = vunpack.c.l.b16 %v3468
      %v3568 = vunpack.c.l.b16 %v3469
      %v3569 = vunpack.c.h.b16 %v3469
      %v3570 = vunpack.c.l.b16 %v3470
      %v3571 = vunpack.c.l.b16 %v3471
      %v3572 = vunpack.c.h.b16 %v3471
      %v3573 = vunpack.c.l.b16 %v3472
      %v3574 = vunpack.c.l.b16 %v3473
      %v3575 = vunpack.c.h.b16 %v3473
      %v3576 = vunpack.c.l.b16 %v3474
      %v3577 = vunpack.c.l.b16 %v3475
      %v3578 = vunpack.c.h.b16 %v3475
      %v3579 = vunpack.c.l.b16 %v3476
      %v3580 = vunpack.c.l.b16 %v3477
      %v3581 = vunpack.c.h.b16 %v3477
      %v3582 = vunpack.c.l.b16 %v3478
      %v3583 = vunpack.c.l.b16 %v3479
      %v3584 = vunpack.c.h.b16 %v3479
      %v3585 = vunpack.c.l.b16 %v3480
      %v3586 = vunpack.c.l.b16 %v3481
      %v3587 = vunpack.c.h.b16 %v3481
      %v3588 = vunpack.c.l.b16 %v3482
      %v3589 = vunpack.c.l.b16 %v3483
      %v3590 = vunpack.c.h.b16 %v3483
      %v3591 = vunpack.c.l.b16 %v3484
      %v3592 = vunpack.c.l.b16 %v3485
      %v3593 = vunpack.c.h.b16 %v3485
      %v3594 = vunpack.c.l.b16 %v3486
      %v3595 = vunpack.c.l.b16 %v3487
      %v3596 = vunpack.c.h.b16 %v3487
      %v3597 = vunpack.c.l.b16 %v3488
      %v3598 = vunpack.c.l.b16 %v3489
      %v3599 = vunpack.c.h.b16 %v3489
      %v3600 = vunpack.c.l.b16 %v3490
      %v3601 = vunpack.c.l.b16 %v3491
      %v3602 = vunpack.c.h.b16 %v3491
      %v3603 = vunpack.c.l.b16 %v3492
      %v3604 = vunpack.c.l.b16 %v3493
      %v3605 = vunpack.c.h.b16 %v3493
      %v3606 = vunpack.c.l.b16 %v3494
      %v3607 = vunpack.c.l.b16 %v3495
      %v3608 = vunpack.c.h.b16 %v3495
      %v3609 = vunpack.c.l.b16 %v3496
      %v3610 = vunpack.c.l.b16 %v3497
      %v3611 = vunpack.c.h.b16 %v3497
      %v3612 = vunpack.c.l.b16 %v3498
      %v3613 = vunpack.c.l.b16 %v3499
      %v3614 = vunpack.c.h.b16 %v3499
      %v3615 = vunpack.c.l.b16 %v3500
      %v3616 = vpack.c.b16 %v3565, %v3562
      %v3617 = vpack.c.b16 %v3566, %v3563
      %v3618 = vpack.c.b16 %v3567, %v3564
      %v3619 = vpack.c.b16 %v3571, %v3568
      %v3620 = vpack.c.b16 %v3572, %v3569
      %v3621 = vpack.c.b16 %v3573, %v3570
      %v3622 = vpack.c.b16 %v3577, %v3574
      %v3623 = vpack.c.b16 %v3578, %v3575
      %v3624 = vpack.c.b16 %v3579, %v3576
      %v3625 = vpack.c.b16 %v3583, %v3580
      %v3626 = vpack.c.b16 %v3584, %v3581
      %v3627 = vpack.c.b16 %v3585, %v3582
      %v3628 = vpack.c.b16 %v3589, %v3586
      %v3629 = vpack.c.b16 %v3590, %v3587
      %v3630 = vpack.c.b16 %v3591, %v3588
      %v3631 = vpack.c.b16 %v3595, %v3592
      %v3632 = vpack.c.b16 %v3596, %v3593
      %v3633 = vpack.c.b16 %v3597, %v3594
      %v3634 = vpack.c.b16 %v3601, %v3598
      %v3635 = vpack.c.b16 %v3602, %v3599
      %v3636 = vpack.c.b16 %v3603, %v3600
      %v3637 = vpack.c.b16 %v3607, %v3604
      %v3638 = vpack.c.b16 %v3608, %v3605
      %v3639 = vpack.c.b16 %v3609, %v3606
      %v3640 = vpack.c.b16 %v3613, %v3610
      %v3641 = vpack.c.b16 %v3614, %v3611
      %v3642 = vpack.c.b16 %v3615, %v3612
      %v3671 = vsel %vm670, %v3524, 0
      %3673 = vmatprep.subr.bf16.mxu0 %v3617
      %3674 = vmatpush1.bf16.msra.mxu0 %v3616
      %3675 = vmatprep.subr.bf16.mxu0 %v3620
      %3676 = vmatpush1.bf16.msra.mxu0 %v3619
      %3677 = vmatprep.subr.bf16.mxu0 %v3623
      %3678 = vmatpush1.bf16.msra.mxu0 %v3622
      %3679 = vmatprep.subr.bf16.mxu0 %v3626
      %3680 = vmatpush1.bf16.msra.mxu0 %v3625
      %3681 = vmatprep.subr.bf16.mxu0 %v3629
      %3682 = vmatpush1.bf16.msra.mxu0 %v3628
      %3683 = vmatprep.subr.bf16.mxu0 %v3632
      %3684 = vmatpush1.bf16.msra.mxu0 %v3631
      %3685 = vmatprep.subr.bf16.mxu0 %v3635
      %3686 = vmatpush1.bf16.msra.mxu0 %v3634
      %3687 = vmatprep.subr.bf16.mxu0 %v3638
      %3688 = vmatpush1.bf16.msra.mxu0 %v3637
      %3689 = vmatprep.subr.bf16.mxu0 %v3641
      %3690 = vmatpush1.bf16.msra.mxu0 %v3640
      %3691 = vmatprep.subr.bf16.mxu0 0
      %3692 = vmatpush1.bf16.msra.mxu0 0
      %3693 = vmatprep.subr.bf16.mxu0 0
      %3694 = vmatpush1.bf16.msra.mxu0 0
      %3695 = vmatprep.subr.bf16.mxu0 0
      %3696 = vmatpush1.bf16.msra.mxu0 0
      %3697 = vmatprep.subr.bf16.mxu0 0
      %3698 = vmatpush1.bf16.msra.mxu0 0
      %3699 = vmatprep.subr.bf16.mxu0 0
      %3700 = vmatpush1.bf16.msra.mxu0 0
      %3701 = vmatprep.subr.bf16.mxu0 0
      %3702 = vmatpush1.bf16.msra.mxu0 0
      %3703 = vmatprep.subr.bf16.mxu0 0
      %3704 = vmatpush1.bf16.msra.mxu0 0
      %3705 = vmatprep.mubr.bf16.mxu0 %v3671
      %3706 = vmatmul.mubr.bf16.gmra.mrb[0].mxu0 %v3512
      %v3707 = vpop.f32.mrb[0].mxu0
      %v3708 = vadd.f32 0.0, %v3707
      %v3709 = vpop.f32.mrb[0].mxu0
      %v3710 = vadd.f32 0.0, %v3709
      %v3711 = vpop.f32.mrb[0].mxu0
      %v3712 = vadd.f32 0.0, %v3711
      %v3713 = vpop.f32.mrb[0].mxu0
      %v3714 = vadd.f32 0.0, %v3713
      %3715 = vdwg.mxu0
      %3716 = vmatprep.subr.bf16.mxu0 0
      %3717 = vmatpush1.bf16.msra.mxu0 %v3618
      %3718 = vmatprep.subr.bf16.mxu0 0
      %3719 = vmatpush1.bf16.msra.mxu0 %v3621
      %3720 = vmatprep.subr.bf16.mxu0 0
      %3721 = vmatpush1.bf16.msra.mxu0 %v3624
      %3722 = vmatprep.subr.bf16.mxu0 0
      %3723 = vmatpush1.bf16.msra.mxu0 %v3627
      %3724 = vmatprep.subr.bf16.mxu0 0
      %3725 = vmatpush1.bf16.msra.mxu0 %v3630
      %3726 = vmatprep.subr.bf16.mxu0 0
      %3727 = vmatpush1.bf16.msra.mxu0 %v3633
      %3728 = vmatprep.subr.bf16.mxu0 0
      %3729 = vmatpush1.bf16.msra.mxu0 %v3636
      %3730 = vmatprep.subr.bf16.mxu0 0
      %3731 = vmatpush1.bf16.msra.mxu0 %v3639
      %3732 = vmatprep.subr.bf16.mxu0 0
      %3733 = vmatpush1.bf16.msra.mxu0 %v3642
      %3734 = vmatprep.subr.bf16.mxu0 0
      %3735 = vmatpush1.bf16.msra.mxu0 0
      %3736 = vmatprep.subr.bf16.mxu0 0
      %3737 = vmatpush1.bf16.msra.mxu0 0
      %3738 = vmatprep.subr.bf16.mxu0 0
      %3739 = vmatpush1.bf16.msra.mxu0 0
      %3740 = vmatprep.subr.bf16.mxu0 0
      %3741 = vmatpush1.bf16.msra.mxu0 0
      %3742 = vmatprep.subr.bf16.mxu0 0
      %3743 = vmatpush1.bf16.msra.mxu0 0
      %3744 = vmatprep.subr.bf16.mxu0 0
      %3745 = vmatpush1.bf16.msra.mxu0 0
      %3746 = vmatprep.subr.bf16.mxu0 0
      %3747 = vmatpush1.bf16.msra.mxu0 0
      %3748 = vmatprep.mubr.bf16.mxu0 %v3671
      %3749 = vmatmul.mubr.bf16.gmra.mrb[0].mxu0 %v3512
      %v3750 = vpop.f32.mrb[0].mxu0
      %v3751 = vadd.f32 0.0, %v3750
      %v3752 = vpop.f32.mrb[0].mxu0
      %v3753 = vpop.f32.mrb[0].mxu0
      %v3754 = vadd.f32 0.0, %v3753
      %v3755 = vpop.f32.mrb[0].mxu0
      %3756 = vdwg.mxu0
      %v3793 = vunpack.c.l.b16 %v3420
      %v3794 = vunpack.c.h.b16 %v3420
      %v3795 = vunpack.c.l.b16 %v3421
      %v3796 = vunpack.c.l.b16 %v3422
      %v3797 = vunpack.c.h.b16 %v3422
      %v3798 = vunpack.c.l.b16 %v3423
      %v3799 = vunpack.c.l.b16 %v3424
      %v3800 = vunpack.c.h.b16 %v3424
      %v3801 = vunpack.c.l.b16 %v3425
      %v3802 = vunpack.c.l.b16 %v3426
      %v3803 = vunpack.c.h.b16 %v3426
      %v3804 = vunpack.c.l.b16 %v3427
      %v3805 = vunpack.c.l.b16 %v3428
      %v3806 = vunpack.c.h.b16 %v3428
      %v3807 = vunpack.c.l.b16 %v3429
      %v3808 = vunpack.c.l.b16 %v3430
      %v3809 = vunpack.c.h.b16 %v3430
      %v3810 = vunpack.c.l.b16 %v3431
      %v3811 = vunpack.c.l.b16 %v3432
      %v3812 = vunpack.c.h.b16 %v3432
      %v3813 = vunpack.c.l.b16 %v3433
      %v3814 = vunpack.c.l.b16 %v3434
      %v3815 = vunpack.c.h.b16 %v3434
      %v3816 = vunpack.c.l.b16 %v3435
      %v3817 = vunpack.c.l.b16 %v3436
      %v3818 = vunpack.c.h.b16 %v3436
      %v3819 = vunpack.c.l.b16 %v3437
      %v3820 = vunpack.c.l.b16 %v3438
      %v3821 = vunpack.c.h.b16 %v3438
      %v3822 = vunpack.c.l.b16 %v3439
      %v3823 = vunpack.c.l.b16 %v3440
      %v3824 = vunpack.c.h.b16 %v3440
      %v3825 = vunpack.c.l.b16 %v3441
      %v3826 = vunpack.c.l.b16 %v3442
      %v3827 = vunpack.c.h.b16 %v3442
      %v3828 = vunpack.c.l.b16 %v3443
      %v3829 = vunpack.c.l.b16 %v3444
      %v3830 = vunpack.c.h.b16 %v3444
      %v3831 = vunpack.c.l.b16 %v3445
      %v3832 = vunpack.c.l.b16 %v3446
      %v3833 = vunpack.c.h.b16 %v3446
      %v3834 = vunpack.c.l.b16 %v3447
      %v3835 = vunpack.c.l.b16 %v3448
      %v3836 = vunpack.c.h.b16 %v3448
      %v3837 = vunpack.c.l.b16 %v3449
      %v3838 = vunpack.c.l.b16 %v3450
      %v3839 = vunpack.c.h.b16 %v3450
      %v3840 = vunpack.c.l.b16 %v3451
      %v3841 = vunpack.c.l.b16 %v3452
      %v3842 = vunpack.c.h.b16 %v3452
      %v3843 = vunpack.c.l.b16 %v3453
      %v3844 = vunpack.c.l.b16 %v3454
      %v3845 = vunpack.c.h.b16 %v3454
      %v3846 = vunpack.c.l.b16 %v3455
      %v3847 = vpack.c.b16 %v3796, %v3793
      %v3848 = vpack.c.b16 %v3797, %v3794
      %v3849 = vpack.c.b16 %v3798, %v3795
      %v3850 = vpack.c.b16 %v3802, %v3799
      %v3851 = vpack.c.b16 %v3803, %v3800
      %v3852 = vpack.c.b16 %v3804, %v3801
      %v3853 = vpack.c.b16 %v3808, %v3805
      %v3854 = vpack.c.b16 %v3809, %v3806
      %v3855 = vpack.c.b16 %v3810, %v3807
      %v3856 = vpack.c.b16 %v3814, %v3811
      %v3857 = vpack.c.b16 %v3815, %v3812
      %v3858 = vpack.c.b16 %v3816, %v3813
      %v3859 = vpack.c.b16 %v3820, %v3817
      %v3860 = vpack.c.b16 %v3821, %v3818
      %v3861 = vpack.c.b16 %v3822, %v3819
      %v3862 = vpack.c.b16 %v3826, %v3823
      %v3863 = vpack.c.b16 %v3827, %v3824
      %v3864 = vpack.c.b16 %v3828, %v3825
      %v3865 = vpack.c.b16 %v3832, %v3829
      %v3866 = vpack.c.b16 %v3833, %v3830
      %v3867 = vpack.c.b16 %v3834, %v3831
      %v3868 = vpack.c.b16 %v3838, %v3835
      %v3869 = vpack.c.b16 %v3839, %v3836
      %v3870 = vpack.c.b16 %v3840, %v3837
      %v3871 = vpack.c.b16 %v3844, %v3841
      %v3872 = vpack.c.b16 %v3845, %v3842
      %v3873 = vpack.c.b16 %v3846, %v3843
      %v3902 = vsel %vm670, %v3419, 0
      %3904 = vmatprep.subr.bf16.mxu0 %v3848
      %3905 = vmatpush1.bf16.msra.mxu0 %v3847
      %3906 = vmatprep.subr.bf16.mxu0 %v3851
      %3907 = vmatpush1.bf16.msra.mxu0 %v3850
      %3908 = vmatprep.subr.bf16.mxu0 %v3854
      %3909 = vmatpush1.bf16.msra.mxu0 %v3853
      %3910 = vmatprep.subr.bf16.mxu0 %v3857
      %3911 = vmatpush1.bf16.msra.mxu0 %v3856
      %3912 = vmatprep.subr.bf16.mxu0 %v3860
      %3913 = vmatpush1.bf16.msra.mxu0 %v3859
      %3914 = vmatprep.subr.bf16.mxu0 %v3863
      %3915 = vmatpush1.bf16.msra.mxu0 %v3862
      %3916 = vmatprep.subr.bf16.mxu0 %v3866
      %3917 = vmatpush1.bf16.msra.mxu0 %v3865
      %3918 = vmatprep.subr.bf16.mxu0 %v3869
      %3919 = vmatpush1.bf16.msra.mxu0 %v3868
      %3920 = vmatprep.subr.bf16.mxu0 %v3872
      %3921 = vmatpush1.bf16.msra.mxu0 %v3871
      %3922 = vmatprep.subr.bf16.mxu0 0
      %3923 = vmatpush1.bf16.msra.mxu0 0
      %3924 = vmatprep.subr.bf16.mxu0 0
      %3925 = vmatpush1.bf16.msra.mxu0 0
      %3926 = vmatprep.subr.bf16.mxu0 0
      %3927 = vmatpush1.bf16.msra.mxu0 0
      %3928 = vmatprep.subr.bf16.mxu0 0
      %3929 = vmatpush1.bf16.msra.mxu0 0
      %3930 = vmatprep.subr.bf16.mxu0 0
      %3931 = vmatpush1.bf16.msra.mxu0 0
      %3932 = vmatprep.subr.bf16.mxu0 0
      %3933 = vmatpush1.bf16.msra.mxu0 0
      %3934 = vmatprep.subr.bf16.mxu0 0
      %3935 = vmatpush1.bf16.msra.mxu0 0
      %3936 = vmatprep.mubr.bf16.mxu0 %v3902
      %3937 = vmatmul.mubr.bf16.gmra.mrb[0].mxu0 %v3418
      %v3938 = vpop.f32.mrb[0].mxu0
      %v3939 = vadd.f32 %v3708, %v3938
      %v3940 = vpop.f32.mrb[0].mxu0
      %v3941 = vadd.f32 %v3710, %v3940
      %v3942 = vpop.f32.mrb[0].mxu0
      %v3943 = vadd.f32 %v3712, %v3942
      %v3944 = vpop.f32.mrb[0].mxu0
      %v3945 = vadd.f32 %v3714, %v3944
      %3946 = vdwg.mxu0
      %3947 = vmatprep.subr.bf16.mxu0 0
      %3948 = vmatpush1.bf16.msra.mxu0 %v3849
      %3949 = vmatprep.subr.bf16.mxu0 0
      %3950 = vmatpush1.bf16.msra.mxu0 %v3852
      %3951 = vmatprep.subr.bf16.mxu0 0
      %3952 = vmatpush1.bf16.msra.mxu0 %v3855
      %3953 = vmatprep.subr.bf16.mxu0 0
      %3954 = vmatpush1.bf16.msra.mxu0 %v3858
      %3955 = vmatprep.subr.bf16.mxu0 0
      %3956 = vmatpush1.bf16.msra.mxu0 %v3861
      %3957 = vmatprep.subr.bf16.mxu0 0
      %3958 = vmatpush1.bf16.msra.mxu0 %v3864
      %3959 = vmatprep.subr.bf16.mxu0 0
      %3960 = vmatpush1.bf16.msra.mxu0 %v3867
      %3961 = vmatprep.subr.bf16.mxu0 0
      %3962 = vmatpush1.bf16.msra.mxu0 %v3870
      %3963 = vmatprep.subr.bf16.mxu0 0
      %3964 = vmatpush1.bf16.msra.mxu0 %v3873
      %3965 = vmatprep.subr.bf16.mxu0 0
      %3966 = vmatpush1.bf16.msra.mxu0 0
      %3967 = vmatprep.subr.bf16.mxu0 0
      %3968 = vmatpush1.bf16.msra.mxu0 0
      %3969 = vmatprep.subr.bf16.mxu0 0
      %3970 = vmatpush1.bf16.msra.mxu0 0
      %3971 = vmatprep.subr.bf16.mxu0 0
      %3972 = vmatpush1.bf16.msra.mxu0 0
      %3973 = vmatprep.subr.bf16.mxu0 0
      %3974 = vmatpush1.bf16.msra.mxu0 0
      %3975 = vmatprep.subr.bf16.mxu0 0
      %3976 = vmatpush1.bf16.msra.mxu0 0
      %3977 = vmatprep.subr.bf16.mxu0 0
      %3978 = vmatpush1.bf16.msra.mxu0 0
      %3979 = vmatprep.mubr.bf16.mxu0 %v3902
      %3980 = vmatmul.mubr.bf16.gmra.mrb[0].mxu0 %v3418
      %v3981 = vpop.f32.mrb[0].mxu0
      %v3982 = vadd.f32 %v3751, %v3981
      %v3983 = vpop.f32.mrb[0].mxu0
      %v3984 = vpop.f32.mrb[0].mxu0
      %v3985 = vadd.f32 %v3754, %v3984
      %v3986 = vpop.f32.mrb[0].mxu0
      %3987 = vdwg.mxu0
      %v3988 = vld [vmem:[#allocation4] sm:$0xfc]
      %v3989 = vld [vmem:[#allocation4 + $0x8] sm:$0xfc]
      %v3990 = vld [vmem:[#allocation4 + $0x20] sm:$0x3]
      %v3991 = vld [vmem:[#allocation4 + $0x28] sm:$0x3]
      %v3992 = vpack.c.bf16 %v3416, %v3988
      %v3993 = vpack.c.bf16 %v3417, %v3989
      %v3994 = vpack.c.bf16 %v3990, %v3990
      %v3995 = vpack.c.bf16 %v3991, %v3991
      %s3996 = scalar_lea.vmem %s5, 432
      %v3997 = vld [vmem:[%s3996] sm:$0xff]
      %v3998 = vld [vmem:[%s3996 + $0x8] sm:$0xf]
      %v3999 = vld [vmem:[%s3996 + $0xc] sm:$0xff]
      %v4000 = vld [vmem:[%s3996 + $0x14] sm:$0xf]
      %v4001 = vld [vmem:[%s3996 + $0x18] sm:$0xff]
      %v4002 = vld [vmem:[%s3996 + $0x20] sm:$0xf]
      %v4003 = vld [vmem:[%s3996 + $0x24] sm:$0xff]
      %v4004 = vld [vmem:[%s3996 + $0x2c] sm:$0xf]
      %v4005 = vld [vmem:[%s3996 + $0x30] sm:$0xff]
      %v4006 = vld [vmem:[%s3996 + $0x38] sm:$0xf]
      %v4007 = vld [vmem:[%s3996 + $0x3c] sm:$0xff]
      %v4008 = vld [vmem:[%s3996 + $0x44] sm:$0xf]
      %v4009 = vld [vmem:[%s3996 + $0x48] sm:$0xff]
      %v4010 = vld [vmem:[%s3996 + $0x50] sm:$0xf]
      %v4011 = vld [vmem:[%s3996 + $0x54] sm:$0xff]
      %v4012 = vld [vmem:[%s3996 + $0x5c] sm:$0xf]
      %v4013 = vld [vmem:[%s3996 + $0x60] sm:$0xff]
      %v4014 = vld [vmem:[%s3996 + $0x68] sm:$0xf]
      %v4015 = vld [vmem:[%s3996 + $0x6c] sm:$0xff]
      %v4016 = vld [vmem:[%s3996 + $0x74] sm:$0xf]
      %v4017 = vld [vmem:[%s3996 + $0x78] sm:$0xff]
      %v4018 = vld [vmem:[%s3996 + $0x80] sm:$0xf]
      %v4019 = vld [vmem:[%s3996 + $0x84] sm:$0xff]
      %v4020 = vld [vmem:[%s3996 + $0x8c] sm:$0xf]
      %v4021 = vld [vmem:[%s3996 + $0x90] sm:$0xff]
      %v4022 = vld [vmem:[%s3996 + $0x98] sm:$0xf]
      %v4023 = vld [vmem:[%s3996 + $0x9c] sm:$0xff]
      %v4024 = vld [vmem:[%s3996 + $0xa4] sm:$0xf]
      %v4025 = vld [vmem:[%s3996 + $0xa8] sm:$0xff]
      %v4026 = vld [vmem:[%s3996 + $0xb0] sm:$0xf]
      %v4027 = vld [vmem:[%s3996 + $0xb4] sm:$0xff]
      %v4028 = vld [vmem:[%s3996 + $0xbc] sm:$0xf]
      %v4029 = vld [vmem:[%s3996 + $0xc0] sm:$0xff]
      %v4030 = vld [vmem:[%s3996 + $0xc8] sm:$0xf]
      %v4031 = vld [vmem:[%s3996 + $0xcc] sm:$0xff]
      %v4032 = vld [vmem:[%s3996 + $0xd4] sm:$0xf]
      %v4037 = vrot.slane %v3992, 1
      %v4038 = vrot.slane %v3994, 1
      %v4039 = vsel %vm1457, %v4037, %v4038
      %v4040 = vrot.slane %v3993, 1
      %v4041 = vrot.slane %v3995, 1
      %v4042 = vsel %vm1457, %v4040, %v4041
      %v4080 = vunpack.c.l.b16 %v3997
      %v4081 = vunpack.c.h.b16 %v3997
      %v4082 = vunpack.c.l.b16 %v3998
      %v4083 = vunpack.c.l.b16 %v3999
      %v4084 = vunpack.c.h.b16 %v3999
      %v4085 = vunpack.c.l.b16 %v4000
      %v4086 = vunpack.c.l.b16 %v4001
      %v4087 = vunpack.c.h.b16 %v4001
      %v4088 = vunpack.c.l.b16 %v4002
      %v4089 = vunpack.c.l.b16 %v4003
      %v4090 = vunpack.c.h.b16 %v4003
      %v4091 = vunpack.c.l.b16 %v4004
      %v4092 = vunpack.c.l.b16 %v4005
      %v4093 = vunpack.c.h.b16 %v4005
      %v4094 = vunpack.c.l.b16 %v4006
      %v4095 = vunpack.c.l.b16 %v4007
      %v4096 = vunpack.c.h.b16 %v4007
      %v4097 = vunpack.c.l.b16 %v4008
      %v4098 = vunpack.c.l.b16 %v4009
      %v4099 = vunpack.c.h.b16 %v4009
      %v4100 = vunpack.c.l.b16 %v4010
      %v4101 = vunpack.c.l.b16 %v4011
      %v4102 = vunpack.c.h.b16 %v4011
      %v4103 = vunpack.c.l.b16 %v4012
      %v4104 = vunpack.c.l.b16 %v4013
      %v4105 = vunpack.c.h.b16 %v4013
      %v4106 = vunpack.c.l.b16 %v4014
      %v4107 = vunpack.c.l.b16 %v4015
      %v4108 = vunpack.c.h.b16 %v4015
      %v4109 = vunpack.c.l.b16 %v4016
      %v4110 = vunpack.c.l.b16 %v4017
      %v4111 = vunpack.c.h.b16 %v4017
      %v4112 = vunpack.c.l.b16 %v4018
      %v4113 = vunpack.c.l.b16 %v4019
      %v4114 = vunpack.c.h.b16 %v4019
      %v4115 = vunpack.c.l.b16 %v4020
      %v4116 = vunpack.c.l.b16 %v4021
      %v4117 = vunpack.c.h.b16 %v4021
      %v4118 = vunpack.c.l.b16 %v4022
      %v4119 = vunpack.c.l.b16 %v4023
      %v4120 = vunpack.c.h.b16 %v4023
      %v4121 = vunpack.c.l.b16 %v4024
      %v4122 = vunpack.c.l.b16 %v4025
      %v4123 = vunpack.c.h.b16 %v4025
      %v4124 = vunpack.c.l.b16 %v4026
      %v4125 = vunpack.c.l.b16 %v4027
      %v4126 = vunpack.c.h.b16 %v4027
      %v4127 = vunpack.c.l.b16 %v4028
      %v4128 = vunpack.c.l.b16 %v4029
      %v4129 = vunpack.c.h.b16 %v4029
      %v4130 = vunpack.c.l.b16 %v4030
      %v4131 = vunpack.c.l.b16 %v4031
      %v4132 = vunpack.c.h.b16 %v4031
      %v4133 = vunpack.c.l.b16 %v4032
      %v4134 = vpack.c.b16 %v4083, %v4080
      %v4135 = vpack.c.b16 %v4084, %v4081
      %v4136 = vpack.c.b16 %v4085, %v4082
      %v4137 = vpack.c.b16 %v4089, %v4086
      %v4138 = vpack.c.b16 %v4090, %v4087
      %v4139 = vpack.c.b16 %v4091, %v4088
      %v4140 = vpack.c.b16 %v4095, %v4092
      %v4141 = vpack.c.b16 %v4096, %v4093
      %v4142 = vpack.c.b16 %v4097, %v4094
      %v4143 = vpack.c.b16 %v4101, %v4098
      %v4144 = vpack.c.b16 %v4102, %v4099
      %v4145 = vpack.c.b16 %v4103, %v4100
      %v4146 = vpack.c.b16 %v4107, %v4104
      %v4147 = vpack.c.b16 %v4108, %v4105
      %v4148 = vpack.c.b16 %v4109, %v4106
      %v4149 = vpack.c.b16 %v4113, %v4110
      %v4150 = vpack.c.b16 %v4114, %v4111
      %v4151 = vpack.c.b16 %v4115, %v4112
      %v4152 = vpack.c.b16 %v4119, %v4116
      %v4153 = vpack.c.b16 %v4120, %v4117
      %v4154 = vpack.c.b16 %v4121, %v4118
      %v4155 = vpack.c.b16 %v4125, %v4122
      %v4156 = vpack.c.b16 %v4126, %v4123
      %v4157 = vpack.c.b16 %v4127, %v4124
      %v4158 = vpack.c.b16 %v4131, %v4128
      %v4159 = vpack.c.b16 %v4132, %v4129
      %v4160 = vpack.c.b16 %v4133, %v4130
      %v4189 = vsel %vm670, %v4042, 0
      %4191 = vmatprep.subr.bf16.mxu0 %v4135
      %4192 = vmatpush1.bf16.msra.mxu0 %v4134
      %4193 = vmatprep.subr.bf16.mxu0 %v4138
      %4194 = vmatpush1.bf16.msra.mxu0 %v4137
      %4195 = vmatprep.subr.bf16.mxu0 %v4141
      %4196 = vmatpush1.bf16.msra.mxu0 %v4140
      %4197 = vmatprep.subr.bf16.mxu0 %v4144
      %4198 = vmatpush1.bf16.msra.mxu0 %v4143
      %4199 = vmatprep.subr.bf16.mxu0 %v4147
      %4200 = vmatpush1.bf16.msra.mxu0 %v4146
      %4201 = vmatprep.subr.bf16.mxu0 %v4150
      %4202 = vmatpush1.bf16.msra.mxu0 %v4149
      %4203 = vmatprep.subr.bf16.mxu0 %v4153
      %4204 = vmatpush1.bf16.msra.mxu0 %v4152
      %4205 = vmatprep.subr.bf16.mxu0 %v4156
      %4206 = vmatpush1.bf16.msra.mxu0 %v4155
      %4207 = vmatprep.subr.bf16.mxu0 %v4159
      %4208 = vmatpush1.bf16.msra.mxu0 %v4158
      %4209 = vmatprep.subr.bf16.mxu0 0
      %4210 = vmatpush1.bf16.msra.mxu0 0
      %4211 = vmatprep.subr.bf16.mxu0 0
      %4212 = vmatpush1.bf16.msra.mxu0 0
      %4213 = vmatprep.subr.bf16.mxu0 0
      %4214 = vmatpush1.bf16.msra.mxu0 0
      %4215 = vmatprep.subr.bf16.mxu0 0
      %4216 = vmatpush1.bf16.msra.mxu0 0
      %4217 = vmatprep.subr.bf16.mxu0 0
      %4218 = vmatpush1.bf16.msra.mxu0 0
      %4219 = vmatprep.subr.bf16.mxu0 0
      %4220 = vmatpush1.bf16.msra.mxu0 0
      %4221 = vmatprep.subr.bf16.mxu0 0
      %4222 = vmatpush1.bf16.msra.mxu0 0
      %4223 = vmatprep.mubr.bf16.mxu0 %v4189
      %4224 = vmatmul.mubr.bf16.gmra.mrb[0].mxu0 %v4039
      %v4225 = vpop.f32.mrb[0].mxu0
      %v4226 = vadd.f32 0.0, %v4225
      %v4227 = vpop.f32.mrb[0].mxu0
      %v4228 = vadd.f32 0.0, %v4227
      %v4229 = vpop.f32.mrb[0].mxu0
      %v4230 = vadd.f32 0.0, %v4229
      %v4231 = vpop.f32.mrb[0].mxu0
      %v4232 = vadd.f32 0.0, %v4231
      %4233 = vdwg.mxu0
      %4234 = vmatprep.subr.bf16.mxu0 0
      %4235 = vmatpush1.bf16.msra.mxu0 %v4136
      %4236 = vmatprep.subr.bf16.mxu0 0
      %4237 = vmatpush1.bf16.msra.mxu0 %v4139
      %4238 = vmatprep.subr.bf16.mxu0 0
      %4239 = vmatpush1.bf16.msra.mxu0 %v4142
      %4240 = vmatprep.subr.bf16.mxu0 0
      %4241 = vmatpush1.bf16.msra.mxu0 %v4145
      %4242 = vmatprep.subr.bf16.mxu0 0
      %4243 = vmatpush1.bf16.msra.mxu0 %v4148
      %4244 = vmatprep.subr.bf16.mxu0 0
      %4245 = vmatpush1.bf16.msra.mxu0 %v4151
      %4246 = vmatprep.subr.bf16.mxu0 0
      %4247 = vmatpush1.bf16.msra.mxu0 %v4154
      %4248 = vmatprep.subr.bf16.mxu0 0
      %4249 = vmatpush1.bf16.msra.mxu0 %v4157
      %4250 = vmatprep.subr.bf16.mxu0 0
      %4251 = vmatpush1.bf16.msra.mxu0 %v4160
      %4252 = vmatprep.subr.bf16.mxu0 0
      %4253 = vmatpush1.bf16.msra.mxu0 0
      %4254 = vmatprep.subr.bf16.mxu0 0
      %4255 = vmatpush1.bf16.msra.mxu0 0
      %4256 = vmatprep.subr.bf16.mxu0 0
      %4257 = vmatpush1.bf16.msra.mxu0 0
      %4258 = vmatprep.subr.bf16.mxu0 0
      %4259 = vmatpush1.bf16.msra.mxu0 0
      %4260 = vmatprep.subr.bf16.mxu0 0
      %4261 = vmatpush1.bf16.msra.mxu0 0
      %4262 = vmatprep.subr.bf16.mxu0 0
      %4263 = vmatpush1.bf16.msra.mxu0 0
      %4264 = vmatprep.subr.bf16.mxu0 0
      %4265 = vmatpush1.bf16.msra.mxu0 0
      %4266 = vmatprep.mubr.bf16.mxu0 %v4189
      %4267 = vmatmul.mubr.bf16.gmra.mrb[0].mxu0 %v4039
      %v4268 = vpop.f32.mrb[0].mxu0
      %v4269 = vadd.f32 0.0, %v4268
      %v4270 = vpop.f32.mrb[0].mxu0
      %v4271 = vpop.f32.mrb[0].mxu0
      %v4272 = vadd.f32 0.0, %v4271
      %v4273 = vpop.f32.mrb[0].mxu0
      %4274 = vdwg.mxu0
      %v4275 = vadd.f32 %v3939, %v4226
      %v4276 = vadd.f32 %v3941, %v4228
      %v4277 = vadd.f32 %v3982, %v4269
      %v4278 = vadd.f32 %v3943, %v4230
      %v4279 = vadd.f32 %v3945, %v4232
      %v4280 = vadd.f32 %v3985, %v4272
      %v4281 = vld [vmem:[%s6] sm:$0x7]
      %v4283 = vlaneseq
      %v4284 = vshrl.u32 %v4283, 7
      %v4285 = vsub.s32 0, %v4284
      %v4286 = vrot.slane %v4281, %v4285
      %v4287 = vlaneseq
      %v4288 = vshrl.u32 %v4287, 7
      %v4289 = vsub.s32 1, %v4288
      %v4290 = vrot.slane %v4281, %v4289
      %v4291 = vlaneseq
      %v4292 = vshrl.u32 %v4291, 7
      %v4293 = vsub.s32 2, %v4292
      %v4294 = vrot.slane %v4281, %v4293
      %v4298 = vadd.f32 %v4275, %v4286
      %v4299 = vadd.f32 %v4276, %v4290
      %v4300 = vadd.f32 %v4277, %v4294
      %v4301 = vadd.f32 %v4278, %v4286
      %v4302 = vadd.f32 %v4279, %v4290
      %v4303 = vadd.f32 %v4280, %v4294
      %vm4304 = vcmp.ge.f32.partialorder %v4298, 0.0
      %vm4305 = vcmp.ge.f32.partialorder %v4299, 0.0
      %vm4306 = vcmp.ge.f32.partialorder %v4300, 0.0
      %vm4307 = vcmp.ge.f32.partialorder %v4301, 0.0
      %vm4308 = vcmp.ge.f32.partialorder %v4302, 0.0
      %vm4309 = vcmp.ge.f32.partialorder %v4303, 0.0
      %v4310 = vmul.f32 %v4298, 0.1
      %v4311 = vmul.f32 %v4299, 0.1
      %v4312 = vmul.f32 %v4300, 0.1
      %v4313 = vmul.f32 %v4301, 0.1
      %v4314 = vmul.f32 %v4302, 0.1
      %v4315 = vmul.f32 %v4303, 0.1
      %v4316 = vsel %vm4304, %v4298, %v4310
      %v4317 = vsel %vm4305, %v4299, %v4311
      %v4318 = vsel %vm4306, %v4300, %v4312
      %v4319 = vsel %vm4307, %v4301, %v4313
      %v4320 = vsel %vm4308, %v4302, %v4314
      %v4321 = vsel %vm4309, %v4303, %v4315
      %v4328 = vrot.slane %v4316, 7
      %v4329 = vrot.slane %v4317, 7
      %v4330 = vrot.slane %v4318, 7
      %v4331 = vrot.slane %v4319, 7
      %v4332 = vsel %vm733, %v4328, %v4331
      %v4333 = vrot.slane %v4320, 7
      %v4334 = vsel %vm733, %v4329, %v4333
      %v4335 = vrot.slane %v4321, 7
      %v4336 = vsel %vm733, %v4330, %v4335
      %4346 = vst [vmem:[#allocation5] sm:$0xfe] %v4328
      %4347 = vst [vmem:[#allocation5 + $0x8] sm:$0xfe] %v4329
      %vm4348 = vcmask 261121
      %4349 = vst.msk [vmem:[#allocation5 + $0x10] sm:$0xfe] %vm4348, %v4330
      %4350 = vst [vmem:[#allocation5 + $0x18] sm:$0xff] %v4332
      %4351 = vst [vmem:[#allocation5 + $0x20] sm:$0xff] %v4334
      %4352 = vst.msk [vmem:[#allocation5 + $0x28] sm:$0xff] %vm693, %v4336
      %4353 = vst [vmem:[#allocation5 + $0x30] sm:$0x1] %v4331
      %4354 = vst [vmem:[#allocation5 + $0x38] sm:$0x1] %v4333
      %vm4355 = vcmask 253952
      %4356 = vst.msk [vmem:[#allocation5 + $0x40] sm:$0x1] %vm4355, %v4335
      %v4357 = vld [vmem:[#allocation5] ss:$8 sm:$0x7]
      %vm4358 = vcmp.lt.s32.totalorder %v1866, 288
      %vm4359 = vmand %vm1867, %vm4358
      %4360 = vst.msk [vmem:[#allocation11] ss:$8 sm:$0x7] %vm4359, %v4357
      %4361 = vst.msk [vmem:[#allocation11] ss:$8 sm:$0x0] %vm4359, %v4357
      %s4362 = scalar_lea.vmem [#allocation5], 1
      %v4363 = vld [vmem:[%s4362] ss:$8 sm:$0x7]
      %s4364 = scalar_lea.vmem [#allocation11], 25
      %4365 = vst.msk [vmem:[%s4364] ss:$8 sm:$0x7] %vm4359, %v4363
      %4366 = vst.msk [vmem:[%s4364] ss:$8 sm:$0x0] %vm4359, %v4363
      %s4367 = scalar_lea.vmem [#allocation5], 2
      %v4368 = vld [vmem:[%s4367] ss:$8 sm:$0x7]
      %s4369 = scalar_lea.vmem [#allocation11], 1
      %4370 = vst.msk [vmem:[%s4369] ss:$8 sm:$0x7] %vm4359, %v4368
      %4371 = vst.msk [vmem:[%s4369] ss:$8 sm:$0x0] %vm4359, %v4368
      %s4372 = scalar_lea.vmem [#allocation5], 3
      %v4373 = vld [vmem:[%s4372] ss:$8 sm:$0x7]
      %s4374 = scalar_lea.vmem [#allocation11], 26
      %4375 = vst.msk [vmem:[%s4374] ss:$8 sm:$0x7] %vm4359, %v4373
      %4376 = vst.msk [vmem:[%s4374] ss:$8 sm:$0x0] %vm4359, %v4373
      %s4377 = scalar_lea.vmem [#allocation5], 4
      %v4378 = vld [vmem:[%s4377] ss:$8 sm:$0x7]
      %s4379 = scalar_lea.vmem [#allocation11], 2
      %4380 = vst.msk [vmem:[%s4379] ss:$8 sm:$0x7] %vm4359, %v4378
      %4381 = vst.msk [vmem:[%s4379] ss:$8 sm:$0x0] %vm4359, %v4378
      %s4382 = scalar_lea.vmem [#allocation5], 5
      %v4383 = vld [vmem:[%s4382] ss:$8 sm:$0x7]
      %s4384 = scalar_lea.vmem [#allocation11], 27
      %4385 = vst.msk [vmem:[%s4384] ss:$8 sm:$0x7] %vm4359, %v4383
      %4386 = vst.msk [vmem:[%s4384] ss:$8 sm:$0x0] %vm4359, %v4383
      %s4387 = scalar_lea.vmem [#allocation5], 6
      %v4388 = vld [vmem:[%s4387] ss:$8 sm:$0x7]
      %s4389 = scalar_lea.vmem [#allocation11], 3
      %4390 = vst.msk [vmem:[%s4389] ss:$8 sm:$0x7] %vm4359, %v4388
      %4391 = vst.msk [vmem:[%s4389] ss:$8 sm:$0x0] %vm4359, %v4388
      %s4392 = scalar_lea.vmem [#allocation5], 7
      %v4393 = vld [vmem:[%s4392] ss:$8 sm:$0x7]
      %s4394 = scalar_lea.vmem [#allocation11], 28
      %4395 = vst.msk [vmem:[%s4394] ss:$8 sm:$0x7] %vm4359, %v4393
      %4396 = vst.msk [vmem:[%s4394] ss:$8 sm:$0x0] %vm4359, %v4393
      %s4397 = scalar_lea.vmem [#allocation5], 24
      %v4398 = vld [vmem:[%s4397] ss:$8 sm:$0x7]
      %s4399 = scalar_lea.vmem [#allocation11], 4
      %4400 = vst.msk [vmem:[%s4399] ss:$8 sm:$0x7] %vm4359, %v4398
      %4401 = vst.msk [vmem:[%s4399] ss:$8 sm:$0x0] %vm4359, %v4398
      %s4402 = scalar_lea.vmem [#allocation5], 25
      %v4403 = vld [vmem:[%s4402] ss:$8 sm:$0x7]
      %s4404 = scalar_lea.vmem [#allocation11], 29
      %4405 = vst.msk [vmem:[%s4404] ss:$8 sm:$0x7] %vm4359, %v4403
      %4406 = vst.msk [vmem:[%s4404] ss:$8 sm:$0x0] %vm4359, %v4403
      %s4407 = scalar_lea.vmem [#allocation5], 26
      %v4408 = vld [vmem:[%s4407] ss:$8 sm:$0x7]
      %s4409 = scalar_lea.vmem [#allocation11], 5
      %4410 = vst.msk [vmem:[%s4409] ss:$8 sm:$0x7] %vm4359, %v4408
      %4411 = vst.msk [vmem:[%s4409] ss:$8 sm:$0x0] %vm4359, %v4408
      %s4412 = scalar_lea.vmem [#allocation5], 27
      %v4413 = vld [vmem:[%s4412] ss:$8 sm:$0x7]
      %s4414 = scalar_lea.vmem [#allocation11], 30
      %4415 = vst.msk [vmem:[%s4414] ss:$8 sm:$0x7] %vm4359, %v4413
      %4416 = vst.msk [vmem:[%s4414] ss:$8 sm:$0x0] %vm4359, %v4413
      %s4417 = scalar_lea.vmem [#allocation5], 28
      %v4418 = vld [vmem:[%s4417] ss:$8 sm:$0x7]
      %s4419 = scalar_lea.vmem [#allocation11], 6
      %4420 = vst.msk [vmem:[%s4419] ss:$8 sm:$0x7] %vm4359, %v4418
      %4421 = vst.msk [vmem:[%s4419] ss:$8 sm:$0x0] %vm4359, %v4418
      %s4422 = scalar_lea.vmem [#allocation5], 29
      %v4423 = vld [vmem:[%s4422] ss:$8 sm:$0x7]
      %s4424 = scalar_lea.vmem [#allocation11], 31
      %4425 = vst.msk [vmem:[%s4424] ss:$8 sm:$0x7] %vm4359, %v4423
      %4426 = vst.msk [vmem:[%s4424] ss:$8 sm:$0x0] %vm4359, %v4423
      %s4427 = scalar_lea.vmem [#allocation5], 30
      %v4428 = vld [vmem:[%s4427] ss:$8 sm:$0x7]
      %s4429 = scalar_lea.vmem [#allocation11], 7
      %4430 = vst.msk [vmem:[%s4429] ss:$8 sm:$0x7] %vm4359, %v4428
      %4431 = vst.msk [vmem:[%s4429] ss:$8 sm:$0x0] %vm4359, %v4428
      %s4432 = scalar_lea.vmem [#allocation5], 31
      %v4433 = vld [vmem:[%s4432] ss:$8 sm:$0x7]
      %s4434 = scalar_lea.vmem [#allocation11], 48
      %4435 = vst.msk [vmem:[%s4434] ss:$8 sm:$0x7] %vm4359, %v4433
      %4436 = vst.msk [vmem:[%s4434] ss:$8 sm:$0x0] %vm4359, %v4433
      %s4437 = scalar_lea.vmem [#allocation5], 48
      %v4438 = vld [vmem:[%s4437] ss:$8 sm:$0x7]
      %s4439 = scalar_lea.vmem [#allocation11], 24
      %4440 = vst.msk [vmem:[%s4439] ss:$8 sm:$0x7] %vm4359, %v4438
      %4441 = vst.msk [vmem:[%s4439] ss:$8 sm:$0x0] %vm4359, %v4438
      %s4442 = scalar_lea.vmem [#allocation5], 49
      %v4443 = vld [vmem:[%s4442] ss:$8 sm:$0x7]
      %s4444 = scalar_lea.vmem [#allocation11], 49
      %4445 = vst.msk [vmem:[%s4444] ss:$8 sm:$0x7] %vm4359, %v4443
      %4446 = vst.msk [vmem:[%s4444] ss:$8 sm:$0x0] %vm4359, %v4443
      %v4447 = vld [vmem:[#allocation11] sm:$0xff]
      %v4448 = vld [vmem:[#allocation11 + $0x8] sm:$0xff]
      %v4449 = vld [vmem:[#allocation11 + $0x10] sm:$0xff]
      %v4450 = vpack.c.bf16 %v4447, %v4447
      %v4451 = vpack.c.bf16 %v4448, %v4448
      %v4452 = vpack.c.bf16 %v4449, %v4449
      %v4453 = vld [vmem:[%s7] sm:$0xff]
      %v4454 = vld [vmem:[%s7 + $0x8] sm:$0xff]
      %v4455 = vld [vmem:[%s7 + $0x10] sm:$0xff]
      %v4456 = vld [vmem:[%s7 + $0x18] sm:$0xff]
      %v4457 = vld [vmem:[%s7 + $0x20] sm:$0xff]
      %v4458 = vld [vmem:[%s7 + $0x28] sm:$0xff]
      %v4459 = vld [vmem:[%s7 + $0x30] sm:$0xff]
      %v4460 = vld [vmem:[%s7 + $0x38] sm:$0xff]
      %v4461 = vld [vmem:[%s7 + $0x40] sm:$0xff]
      %v4462 = vld [vmem:[%s7 + $0x48] sm:$0xff]
      %v4463 = vld [vmem:[%s7 + $0x50] sm:$0xff]
      %v4464 = vld [vmem:[%s7 + $0x58] sm:$0xff]
      %v4465 = vld [vmem:[%s7 + $0x60] sm:$0xff]
      %v4466 = vld [vmem:[%s7 + $0x68] sm:$0xff]
      %v4467 = vld [vmem:[%s7 + $0x70] sm:$0xff]
      %v4468 = vld [vmem:[%s7 + $0x78] sm:$0xff]
      %v4469 = vld [vmem:[%s7 + $0x80] sm:$0xff]
      %v4470 = vld [vmem:[%s7 + $0x88] sm:$0xff]
      %v4471 = vld [vmem:[%s7 + $0x90] sm:$0xff]
      %v4472 = vld [vmem:[%s7 + $0x98] sm:$0xff]
      %v4473 = vld [vmem:[%s7 + $0xa0] sm:$0xff]
      %v4474 = vld [vmem:[%s7 + $0xa8] sm:$0xff]
      %v4475 = vld [vmem:[%s7 + $0xb0] sm:$0xff]
      %v4476 = vld [vmem:[%s7 + $0xb8] sm:$0xff]
      %v4477 = vld [vmem:[%s7 + $0xc0] sm:$0xff]
      %v4478 = vld [vmem:[%s7 + $0xc8] sm:$0xff]
      %v4479 = vld [vmem:[%s7 + $0xd0] sm:$0xff]
      %v4480 = vld [vmem:[%s7 + $0xd8] sm:$0xff]
      %v4481 = vld [vmem:[%s7 + $0xe0] sm:$0xff]
      %v4482 = vld [vmem:[%s7 + $0xe8] sm:$0xff]
      %v4483 = vld [vmem:[%s7 + $0xf0] sm:$0xff]
      %v4484 = vld [vmem:[%s7 + $0xf8] sm:$0xff]
      %v4485 = vld [vmem:[%s7 + $0x100] sm:$0xff]
      %v4486 = vld [vmem:[%s7 + $0x108] sm:$0xff]
      %v4487 = vld [vmem:[%s7 + $0x110] sm:$0xff]
      %v4488 = vld [vmem:[%s7 + $0x118] sm:$0xff]
      %v4489 = vld [vmem:[#allocation11 + $0x18] sm:$0xfe]
      %v4490 = vld [vmem:[#allocation11 + $0x20] sm:$0xfe]
      %v4491 = vld [vmem:[#allocation11 + $0x28] sm:$0xfe]
      %v4492 = vld [vmem:[#allocation11 + $0x30] sm:$0x1]
      %v4493 = vld [vmem:[#allocation11 + $0x38] sm:$0x1]
      %v4494 = vld [vmem:[#allocation11 + $0x40] sm:$0x1]
      %v4495 = vpack.c.bf16 %v4492, %v4489
      %v4496 = vpack.c.bf16 %v4493, %v4490
      %v4497 = vpack.c.bf16 %v4494, %v4491
      %s4498 = scalar_lea.vmem %s7, 288
      %v4499 = vld [vmem:[%s4498] sm:$0xff]
      %v4500 = vld [vmem:[%s4498 + $0x8] sm:$0xff]
      %v4501 = vld [vmem:[%s4498 + $0x10] sm:$0xff]
      %v4502 = vld [vmem:[%s4498 + $0x18] sm:$0xff]
      %v4503 = vld [vmem:[%s4498 + $0x20] sm:$0xff]
      %v4504 = vld [vmem:[%s4498 + $0x28] sm:$0xff]
      %v4505 = vld [vmem:[%s4498 + $0x30] sm:$0xff]
      %v4506 = vld [vmem:[%s4498 + $0x38] sm:$0xff]
      %v4507 = vld [vmem:[%s4498 + $0x40] sm:$0xff]
      %v4508 = vld [vmem:[%s4498 + $0x48] sm:$0xff]
      %v4509 = vld [vmem:[%s4498 + $0x50] sm:$0xff]
      %v4510 = vld [vmem:[%s4498 + $0x58] sm:$0xff]
      %v4511 = vld [vmem:[%s4498 + $0x60] sm:$0xff]
      %v4512 = vld [vmem:[%s4498 + $0x68] sm:$0xff]
      %v4513 = vld [vmem:[%s4498 + $0x70] sm:$0xff]
      %v4514 = vld [vmem:[%s4498 + $0x78] sm:$0xff]
      %v4515 = vld [vmem:[%s4498 + $0x80] sm:$0xff]
      %v4516 = vld [vmem:[%s4498 + $0x88] sm:$0xff]
      %v4517 = vld [vmem:[%s4498 + $0x90] sm:$0xff]
      %v4518 = vld [vmem:[%s4498 + $0x98] sm:$0xff]
      %v4519 = vld [vmem:[%s4498 + $0xa0] sm:$0xff]
      %v4520 = vld [vmem:[%s4498 + $0xa8] sm:$0xff]
      %v4521 = vld [vmem:[%s4498 + $0xb0] sm:$0xff]
      %v4522 = vld [vmem:[%s4498 + $0xb8] sm:$0xff]
      %v4523 = vld [vmem:[%s4498 + $0xc0] sm:$0xff]
      %v4524 = vld [vmem:[%s4498 + $0xc8] sm:$0xff]
      %v4525 = vld [vmem:[%s4498 + $0xd0] sm:$0xff]
      %v4526 = vld [vmem:[%s4498 + $0xd8] sm:$0xff]
      %v4527 = vld [vmem:[%s4498 + $0xe0] sm:$0xff]
      %v4528 = vld [vmem:[%s4498 + $0xe8] sm:$0xff]
      %v4529 = vld [vmem:[%s4498 + $0xf0] sm:$0xff]
      %v4530 = vld [vmem:[%s4498 + $0xf8] sm:$0xff]
      %v4531 = vld [vmem:[%s4498 + $0x100] sm:$0xff]
      %v4532 = vld [vmem:[%s4498 + $0x108] sm:$0xff]
      %v4533 = vld [vmem:[%s4498 + $0x110] sm:$0xff]
      %v4534 = vld [vmem:[%s4498 + $0x118] sm:$0xff]
      %v4536 = vshrl.u32 %v4495, 16
      %v4538 = vshll.u32 %v4495, 16
      %v4540 = vrot.slane %v4538, 1
      %v4541 = vor.u32 %v4536, %v4540
      %v4543 = vshrl.u32 %v4496, 16
      %v4545 = vshll.u32 %v4496, 16
      %v4547 = vrot.slane %v4545, 1
      %v4548 = vor.u32 %v4543, %v4547
      %v4550 = vshrl.u32 %v4497, 16
      %v4552 = vshll.u32 %v4497, 16
      %v4554 = vrot.slane %v4552, 1
      %v4555 = vor.u32 %v4550, %v4554
      %v4594 = vunpack.c.l.b16 %v4499
      %v4595 = vunpack.c.h.b16 %v4499
      %v4596 = vunpack.c.l.b16 %v4500
      %v4597 = vunpack.c.h.b16 %v4500
      %v4598 = vunpack.c.l.b16 %v4501
      %v4599 = vunpack.c.h.b16 %v4501
      %v4600 = vunpack.c.l.b16 %v4502
      %v4601 = vunpack.c.h.b16 %v4502
      %v4602 = vunpack.c.l.b16 %v4503
      %v4603 = vunpack.c.h.b16 %v4503
      %v4604 = vunpack.c.l.b16 %v4504
      %v4605 = vunpack.c.h.b16 %v4504
      %v4606 = vunpack.c.l.b16 %v4505
      %v4607 = vunpack.c.h.b16 %v4505
      %v4608 = vunpack.c.l.b16 %v4506
      %v4609 = vunpack.c.h.b16 %v4506
      %v4610 = vunpack.c.l.b16 %v4507
      %v4611 = vunpack.c.h.b16 %v4507
      %v4612 = vunpack.c.l.b16 %v4508
      %v4613 = vunpack.c.h.b16 %v4508
      %v4614 = vunpack.c.l.b16 %v4509
      %v4615 = vunpack.c.h.b16 %v4509
      %v4616 = vunpack.c.l.b16 %v4510
      %v4617 = vunpack.c.h.b16 %v4510
      %v4618 = vunpack.c.l.b16 %v4511
      %v4619 = vunpack.c.h.b16 %v4511
      %v4620 = vunpack.c.l.b16 %v4512
      %v4621 = vunpack.c.h.b16 %v4512
      %v4622 = vunpack.c.l.b16 %v4513
      %v4623 = vunpack.c.h.b16 %v4513
      %v4624 = vunpack.c.l.b16 %v4514
      %v4625 = vunpack.c.h.b16 %v4514
      %v4626 = vunpack.c.l.b16 %v4515
      %v4627 = vunpack.c.h.b16 %v4515
      %v4628 = vunpack.c.l.b16 %v4516
      %v4629 = vunpack.c.h.b16 %v4516
      %v4630 = vunpack.c.l.b16 %v4517
      %v4631 = vunpack.c.h.b16 %v4517
      %v4632 = vunpack.c.l.b16 %v4518
      %v4633 = vunpack.c.h.b16 %v4518
      %v4634 = vunpack.c.l.b16 %v4519
      %v4635 = vunpack.c.h.b16 %v4519
      %v4636 = vunpack.c.l.b16 %v4520
      %v4637 = vunpack.c.h.b16 %v4520
      %v4638 = vunpack.c.l.b16 %v4521
      %v4639 = vunpack.c.h.b16 %v4521
      %v4640 = vunpack.c.l.b16 %v4522
      %v4641 = vunpack.c.h.b16 %v4522
      %v4642 = vunpack.c.l.b16 %v4523
      %v4643 = vunpack.c.h.b16 %v4523
      %v4644 = vunpack.c.l.b16 %v4524
      %v4645 = vunpack.c.h.b16 %v4524
      %v4646 = vunpack.c.l.b16 %v4525
      %v4647 = vunpack.c.h.b16 %v4525
      %v4648 = vunpack.c.l.b16 %v4526
      %v4649 = vunpack.c.h.b16 %v4526
      %v4650 = vunpack.c.l.b16 %v4527
      %v4651 = vunpack.c.h.b16 %v4527
      %v4652 = vunpack.c.l.b16 %v4528
      %v4653 = vunpack.c.h.b16 %v4528
      %v4654 = vunpack.c.l.b16 %v4529
      %v4655 = vunpack.c.h.b16 %v4529
      %v4656 = vunpack.c.l.b16 %v4530
      %v4657 = vunpack.c.h.b16 %v4530
      %v4658 = vunpack.c.l.b16 %v4531
      %v4659 = vunpack.c.h.b16 %v4531
      %v4660 = vunpack.c.l.b16 %v4532
      %v4661 = vunpack.c.h.b16 %v4532
      %v4662 = vunpack.c.l.b16 %v4533
      %v4663 = vunpack.c.h.b16 %v4533
      %v4664 = vunpack.c.l.b16 %v4534
      %v4665 = vunpack.c.h.b16 %v4534
      %v4666 = vpack.c.b16 %v4596, %v4594
      %v4667 = vpack.c.b16 %v4597, %v4595
      %v4668 = vpack.c.b16 %v4600, %v4598
      %v4669 = vpack.c.b16 %v4601, %v4599
      %v4670 = vpack.c.b16 %v4604, %v4602
      %v4671 = vpack.c.b16 %v4605, %v4603
      %v4672 = vpack.c.b16 %v4608, %v4606
      %v4673 = vpack.c.b16 %v4609, %v4607
      %v4674 = vpack.c.b16 %v4612, %v4610
      %v4675 = vpack.c.b16 %v4613, %v4611
      %v4676 = vpack.c.b16 %v4616, %v4614
      %v4677 = vpack.c.b16 %v4617, %v4615
      %v4678 = vpack.c.b16 %v4620, %v4618
      %v4679 = vpack.c.b16 %v4621, %v4619
      %v4680 = vpack.c.b16 %v4624, %v4622
      %v4681 = vpack.c.b16 %v4625, %v4623
      %v4682 = vpack.c.b16 %v4628, %v4626
      %v4683 = vpack.c.b16 %v4629, %v4627
      %v4684 = vpack.c.b16 %v4632, %v4630
      %v4685 = vpack.c.b16 %v4633, %v4631
      %v4686 = vpack.c.b16 %v4636, %v4634
      %v4687 = vpack.c.b16 %v4637, %v4635
      %v4688 = vpack.c.b16 %v4640, %v4638
      %v4689 = vpack.c.b16 %v4641, %v4639
      %v4690 = vpack.c.b16 %v4644, %v4642
      %v4691 = vpack.c.b16 %v4645, %v4643
      %v4692 = vpack.c.b16 %v4648, %v4646
      %v4693 = vpack.c.b16 %v4649, %v4647
      %v4694 = vpack.c.b16 %v4652, %v4650
      %v4695 = vpack.c.b16 %v4653, %v4651
      %v4696 = vpack.c.b16 %v4656, %v4654
      %v4697 = vpack.c.b16 %v4657, %v4655
      %v4698 = vpack.c.b16 %v4660, %v4658
      %v4699 = vpack.c.b16 %v4661, %v4659
      %v4700 = vpack.c.b16 %v4664, %v4662
      %v4701 = vpack.c.b16 %v4665, %v4663
      %v4739 = vsel %vm693, %v4555, 0
      %4741 = vmatprep.subr.bf16.mxu0 %v4667
      %4742 = vmatpush1.bf16.msra.mxu0 %v4666
      %4743 = vmatprep.subr.bf16.mxu0 %v4669
      %4744 = vmatpush1.bf16.msra.mxu0 %v4668
      %4745 = vmatprep.subr.bf16.mxu0 %v4671
      %4746 = vmatpush1.bf16.msra.mxu0 %v4670
      %4747 = vmatprep.subr.bf16.mxu0 %v4673
      %4748 = vmatpush1.bf16.msra.mxu0 %v4672
      %4749 = vmatprep.subr.bf16.mxu0 %v4675
      %4750 = vmatpush1.bf16.msra.mxu0 %v4674
      %4751 = vmatprep.subr.bf16.mxu0 %v4677
      %4752 = vmatpush1.bf16.msra.mxu0 %v4676
      %4753 = vmatprep.subr.bf16.mxu0 %v4679
      %4754 = vmatpush1.bf16.msra.mxu0 %v4678
      %4755 = vmatprep.subr.bf16.mxu0 %v4681
      %4756 = vmatpush1.bf16.msra.mxu0 %v4680
      %4757 = vmatprep.subr.bf16.mxu0 %v4683
      %4758 = vmatpush1.bf16.msra.mxu0 %v4682
      %4759 = vmatprep.subr.bf16.mxu0 %v4685
      %4760 = vmatpush1.bf16.msra.mxu0 %v4684
      %4761 = vmatprep.subr.bf16.mxu0 %v4687
      %4762 = vmatpush1.bf16.msra.mxu0 %v4686
      %4763 = vmatprep.subr.bf16.mxu0 %v4689
      %4764 = vmatpush1.bf16.msra.mxu0 %v4688
      %4765 = vmatprep.subr.bf16.mxu0 %v4691
      %4766 = vmatpush1.bf16.msra.mxu0 %v4690
      %4767 = vmatprep.subr.bf16.mxu0 %v4693
      %4768 = vmatpush1.bf16.msra.mxu0 %v4692
      %4769 = vmatprep.subr.bf16.mxu0 %v4695
      %4770 = vmatpush1.bf16.msra.mxu0 %v4694
      %4771 = vmatprep.subr.bf16.mxu0 %v4697
      %4772 = vmatpush1.bf16.msra.mxu0 %v4696
      %4773 = vmatprep.mubr.bf16.mxu0 %v4548
      %4774 = vmatmul.mubr.bf16.gmra.mrb[0].mxu0 %v4541
      %v4775 = vpop.f32.mrb[0].mxu0
      %v4776 = vadd.f32 0.0, %v4775
      %v4777 = vpop.f32.mrb[0].mxu0
      %v4778 = vadd.f32 0.0, %v4777
      %v4779 = vpop.f32.mrb[0].mxu0
      %v4780 = vpop.f32.mrb[0].mxu0
      %4781 = vdwg.mxu0
      %4782 = vmatprep.subr.bf16.mxu0 %v4699
      %4783 = vmatpush1.bf16.msra.mxu0 %v4698
      %4784 = vmatprep.subr.bf16.mxu0 %v4701
      %4785 = vmatpush1.bf16.msra.mxu0 %v4700
      %4786 = vmatprep.subr.bf16.mxu0 0
      %4787 = vmatpush1.bf16.msra.mxu0 0
      %4788 = vmatprep.subr.bf16.mxu0 0
      %4789 = vmatpush1.bf16.msra.mxu0 0
      %4790 = vmatprep.subr.bf16.mxu0 0
      %4791 = vmatpush1.bf16.msra.mxu0 0
      %4792 = vmatprep.subr.bf16.mxu0 0
      %4793 = vmatpush1.bf16.msra.mxu0 0
      %4794 = vmatprep.subr.bf16.mxu0 0
      %4795 = vmatpush1.bf16.msra.mxu0 0
      %4796 = vmatprep.subr.bf16.mxu0 0
      %4797 = vmatpush1.bf16.msra.mxu0 0
      %4798 = vmatprep.subr.bf16.mxu0 0
      %4799 = vmatpush1.bf16.msra.mxu0 0
      %4800 = vmatprep.subr.bf16.mxu0 0
      %4801 = vmatpush1.bf16.msra.mxu0 0
      %4802 = vmatprep.subr.bf16.mxu0 0
      %4803 = vmatpush1.bf16.msra.mxu0 0
      %4804 = vmatprep.subr.bf16.mxu0 0
      %4805 = vmatpush1.bf16.msra.mxu0 0
      %4806 = vmatprep.subr.bf16.mxu0 0
      %4807 = vmatpush1.bf16.msra.mxu0 0
      %4808 = vmatprep.subr.bf16.mxu0 0
      %4809 = vmatpush1.bf16.msra.mxu0 0
      %4810 = vmatprep.subr.bf16.mxu0 0
      %4811 = vmatpush1.bf16.msra.mxu0 0
      %4812 = vmatprep.subr.bf16.mxu0 0
      %4813 = vmatpush1.bf16.msra.mxu0 0
      %4814 = vmatprep.mubr.bf16.mxu0 0
      %4815 = vmatmul.mubr.bf16.gmra.mrb[0].mxu0 %v4739
      %v4816 = vpop.f32.mrb[0].mxu0
      %v4817 = vadd.f32 %v4776, %v4816
      %v4818 = vpop.f32.mrb[0].mxu0
      %v4819 = vadd.f32 %v4778, %v4818
      %v4820 = vpop.f32.mrb[0].mxu0
      %v4821 = vpop.f32.mrb[0].mxu0
      %4822 = vdwg.mxu0
      %v4859 = vunpack.c.l.b16 %v4453
      %v4860 = vunpack.c.h.b16 %v4453
      %v4861 = vunpack.c.l.b16 %v4454
      %v4862 = vunpack.c.h.b16 %v4454
      %v4863 = vunpack.c.l.b16 %v4455
      %v4864 = vunpack.c.h.b16 %v4455
      %v4865 = vunpack.c.l.b16 %v4456
      %v4866 = vunpack.c.h.b16 %v4456
      %v4867 = vunpack.c.l.b16 %v4457
      %v4868 = vunpack.c.h.b16 %v4457
      %v4869 = vunpack.c.l.b16 %v4458
      %v4870 = vunpack.c.h.b16 %v4458
      %v4871 = vunpack.c.l.b16 %v4459
      %v4872 = vunpack.c.h.b16 %v4459
      %v4873 = vunpack.c.l.b16 %v4460
      %v4874 = vunpack.c.h.b16 %v4460
      %v4875 = vunpack.c.l.b16 %v4461
      %v4876 = vunpack.c.h.b16 %v4461
      %v4877 = vunpack.c.l.b16 %v4462
      %v4878 = vunpack.c.h.b16 %v4462
      %v4879 = vunpack.c.l.b16 %v4463
      %v4880 = vunpack.c.h.b16 %v4463
      %v4881 = vunpack.c.l.b16 %v4464
      %v4882 = vunpack.c.h.b16 %v4464
      %v4883 = vunpack.c.l.b16 %v4465
      %v4884 = vunpack.c.h.b16 %v4465
      %v4885 = vunpack.c.l.b16 %v4466
      %v4886 = vunpack.c.h.b16 %v4466
      %v4887 = vunpack.c.l.b16 %v4467
      %v4888 = vunpack.c.h.b16 %v4467
      %v4889 = vunpack.c.l.b16 %v4468
      %v4890 = vunpack.c.h.b16 %v4468
      %v4891 = vunpack.c.l.b16 %v4469
      %v4892 = vunpack.c.h.b16 %v4469
      %v4893 = vunpack.c.l.b16 %v4470
      %v4894 = vunpack.c.h.b16 %v4470
      %v4895 = vunpack.c.l.b16 %v4471
      %v4896 = vunpack.c.h.b16 %v4471
      %v4897 = vunpack.c.l.b16 %v4472
      %v4898 = vunpack.c.h.b16 %v4472
      %v4899 = vunpack.c.l.b16 %v4473
      %v4900 = vunpack.c.h.b16 %v4473
      %v4901 = vunpack.c.l.b16 %v4474
      %v4902 = vunpack.c.h.b16 %v4474
      %v4903 = vunpack.c.l.b16 %v4475
      %v4904 = vunpack.c.h.b16 %v4475
      %v4905 = vunpack.c.l.b16 %v4476
      %v4906 = vunpack.c.h.b16 %v4476
      %v4907 = vunpack.c.l.b16 %v4477
      %v4908 = vunpack.c.h.b16 %v4477
      %v4909 = vunpack.c.l.b16 %v4478
      %v4910 = vunpack.c.h.b16 %v4478
      %v4911 = vunpack.c.l.b16 %v4479
      %v4912 = vunpack.c.h.b16 %v4479
      %v4913 = vunpack.c.l.b16 %v4480
      %v4914 = vunpack.c.h.b16 %v4480
      %v4915 = vunpack.c.l.b16 %v4481
      %v4916 = vunpack.c.h.b16 %v4481
      %v4917 = vunpack.c.l.b16 %v4482
      %v4918 = vunpack.c.h.b16 %v4482
      %v4919 = vunpack.c.l.b16 %v4483
      %v4920 = vunpack.c.h.b16 %v4483
      %v4921 = vunpack.c.l.b16 %v4484
      %v4922 = vunpack.c.h.b16 %v4484
      %v4923 = vunpack.c.l.b16 %v4485
      %v4924 = vunpack.c.h.b16 %v4485
      %v4925 = vunpack.c.l.b16 %v4486
      %v4926 = vunpack.c.h.b16 %v4486
      %v4927 = vunpack.c.l.b16 %v4487
      %v4928 = vunpack.c.h.b16 %v4487
      %v4929 = vunpack.c.l.b16 %v4488
      %v4930 = vunpack.c.h.b16 %v4488
      %v4931 = vpack.c.b16 %v4861, %v4859
      %v4932 = vpack.c.b16 %v4862, %v4860
      %v4933 = vpack.c.b16 %v4865, %v4863
      %v4934 = vpack.c.b16 %v4866, %v4864
      %v4935 = vpack.c.b16 %v4869, %v4867
      %v4936 = vpack.c.b16 %v4870, %v4868
      %v4937 = vpack.c.b16 %v4873, %v4871
      %v4938 = vpack.c.b16 %v4874, %v4872
      %v4939 = vpack.c.b16 %v4877, %v4875
      %v4940 = vpack.c.b16 %v4878, %v4876
      %v4941 = vpack.c.b16 %v4881, %v4879
      %v4942 = vpack.c.b16 %v4882, %v4880
      %v4943 = vpack.c.b16 %v4885, %v4883
      %v4944 = vpack.c.b16 %v4886, %v4884
      %v4945 = vpack.c.b16 %v4889, %v4887
      %v4946 = vpack.c.b16 %v4890, %v4888
      %v4947 = vpack.c.b16 %v4893, %v4891
      %v4948 = vpack.c.b16 %v4894, %v4892
      %v4949 = vpack.c.b16 %v4897, %v4895
      %v4950 = vpack.c.b16 %v4898, %v4896
      %v4951 = vpack.c.b16 %v4901, %v4899
      %v4952 = vpack.c.b16 %v4902, %v4900
      %v4953 = vpack.c.b16 %v4905, %v4903
      %v4954 = vpack.c.b16 %v4906, %v4904
      %v4955 = vpack.c.b16 %v4909, %v4907
      %v4956 = vpack.c.b16 %v4910, %v4908
      %v4957 = vpack.c.b16 %v4913, %v4911
      %v4958 = vpack.c.b16 %v4914, %v4912
      %v4959 = vpack.c.b16 %v4917, %v4915
      %v4960 = vpack.c.b16 %v4918, %v4916
      %v4961 = vpack.c.b16 %v4921, %v4919
      %v4962 = vpack.c.b16 %v4922, %v4920
      %v4963 = vpack.c.b16 %v4925, %v4923
      %v4964 = vpack.c.b16 %v4926, %v4924
      %v4965 = vpack.c.b16 %v4929, %v4927
      %v4966 = vpack.c.b16 %v4930, %v4928
      %v5004 = vsel %vm693, %v4452, 0
      %5006 = vmatprep.subr.bf16.mxu0 %v4932
      %5007 = vmatpush1.bf16.msra.mxu0 %v4931
      %5008 = vmatprep.subr.bf16.mxu0 %v4934
      %5009 = vmatpush1.bf16.msra.mxu0 %v4933
      %5010 = vmatprep.subr.bf16.mxu0 %v4936
      %5011 = vmatpush1.bf16.msra.mxu0 %v4935
      %5012 = vmatprep.subr.bf16.mxu0 %v4938
      %5013 = vmatpush1.bf16.msra.mxu0 %v4937
      %5014 = vmatprep.subr.bf16.mxu0 %v4940
      %5015 = vmatpush1.bf16.msra.mxu0 %v4939
      %5016 = vmatprep.subr.bf16.mxu0 %v4942
      %5017 = vmatpush1.bf16.msra.mxu0 %v4941
      %5018 = vmatprep.subr.bf16.mxu0 %v4944
      %5019 = vmatpush1.bf16.msra.mxu0 %v4943
      %5020 = vmatprep.subr.bf16.mxu0 %v4946
      %5021 = vmatpush1.bf16.msra.mxu0 %v4945
      %5022 = vmatprep.subr.bf16.mxu0 %v4948
      %5023 = vmatpush1.bf16.msra.mxu0 %v4947
      %5024 = vmatprep.subr.bf16.mxu0 %v4950
      %5025 = vmatpush1.bf16.msra.mxu0 %v4949
      %5026 = vmatprep.subr.bf16.mxu0 %v4952
      %5027 = vmatpush1.bf16.msra.mxu0 %v4951
      %5028 = vmatprep.subr.bf16.mxu0 %v4954
      %5029 = vmatpush1.bf16.msra.mxu0 %v4953
      %5030 = vmatprep.subr.bf16.mxu0 %v4956
      %5031 = vmatpush1.bf16.msra.mxu0 %v4955
      %5032 = vmatprep.subr.bf16.mxu0 %v4958
      %5033 = vmatpush1.bf16.msra.mxu0 %v4957
      %5034 = vmatprep.subr.bf16.mxu0 %v4960
      %5035 = vmatpush1.bf16.msra.mxu0 %v4959
      %5036 = vmatprep.subr.bf16.mxu0 %v4962
      %5037 = vmatpush1.bf16.msra.mxu0 %v4961
      %5038 = vmatprep.mubr.bf16.mxu0 %v4451
      %5039 = vmatmul.mubr.bf16.gmra.mrb[0].mxu0 %v4450
      %v5040 = vpop.f32.mrb[0].mxu0
      %v5041 = vadd.f32 %v4817, %v5040
      %v5042 = vpop.f32.mrb[0].mxu0
      %v5043 = vadd.f32 %v4819, %v5042
      %v5044 = vpop.f32.mrb[0].mxu0
      %v5045 = vpop.f32.mrb[0].mxu0
      %5046 = vdwg.mxu0
      %5047 = vmatprep.subr.bf16.mxu0 %v4964
      %5048 = vmatpush1.bf16.msra.mxu0 %v4963
      %5049 = vmatprep.subr.bf16.mxu0 %v4966
      %5050 = vmatpush1.bf16.msra.mxu0 %v4965
      %5051 = vmatprep.subr.bf16.mxu0 0
      %5052 = vmatpush1.bf16.msra.mxu0 0
      %5053 = vmatprep.subr.bf16.mxu0 0
      %5054 = vmatpush1.bf16.msra.mxu0 0
      %5055 = vmatprep.subr.bf16.mxu0 0
      %5056 = vmatpush1.bf16.msra.mxu0 0
      %5057 = vmatprep.subr.bf16.mxu0 0
      %5058 = vmatpush1.bf16.msra.mxu0 0
      %5059 = vmatprep.subr.bf16.mxu0 0
      %5060 = vmatpush1.bf16.msra.mxu0 0
      %5061 = vmatprep.subr.bf16.mxu0 0
      %5062 = vmatpush1.bf16.msra.mxu0 0
      %5063 = vmatprep.subr.bf16.mxu0 0
      %5064 = vmatpush1.bf16.msra.mxu0 0
      %5065 = vmatprep.subr.bf16.mxu0 0
      %5066 = vmatpush1.bf16.msra.mxu0 0
      %5067 = vmatprep.subr.bf16.mxu0 0
      %5068 = vmatpush1.bf16.msra.mxu0 0
      %5069 = vmatprep.subr.bf16.mxu0 0
      %5070 = vmatpush1.bf16.msra.mxu0 0
      %5071 = vmatprep.subr.bf16.mxu0 0
      %5072 = vmatpush1.bf16.msra.mxu0 0
      %5073 = vmatprep.subr.bf16.mxu0 0
      %5074 = vmatpush1.bf16.msra.mxu0 0
      %5075 = vmatprep.subr.bf16.mxu0 0
      %5076 = vmatpush1.bf16.msra.mxu0 0
      %5077 = vmatprep.subr.bf16.mxu0 0
      %5078 = vmatpush1.bf16.msra.mxu0 0
      %5079 = vmatprep.mubr.bf16.mxu0 0
      %5080 = vmatmul.mubr.bf16.gmra.mrb[0].mxu0 %v5004
      %v5081 = vpop.f32.mrb[0].mxu0
      %v5082 = vadd.f32 %v5041, %v5081
      %v5083 = vpop.f32.mrb[0].mxu0
      %v5084 = vadd.f32 %v5043, %v5083
      %v5085 = vpop.f32.mrb[0].mxu0
      %v5086 = vpop.f32.mrb[0].mxu0
      %5087 = vdwg.mxu0
      %v5088 = vld [vmem:[#allocation11] sm:$0xfe]
      %v5089 = vld [vmem:[#allocation11 + $0x8] sm:$0xfe]
      %v5090 = vld [vmem:[#allocation11 + $0x10] sm:$0xfe]
      %v5091 = vld [vmem:[#allocation11 + $0x18] sm:$0x1]
      %v5092 = vld [vmem:[#allocation11 + $0x20] sm:$0x1]
      %v5093 = vld [vmem:[#allocation11 + $0x28] sm:$0x1]
      %v5094 = vpack.c.bf16 %v5091, %v5088
      %v5095 = vpack.c.bf16 %v5092, %v5089
      %v5096 = vpack.c.bf16 %v5093, %v5090
      %s5097 = scalar_lea.vmem %s7, 576
      %v5098 = vld [vmem:[%s5097] sm:$0xff]
      %v5099 = vld [vmem:[%s5097 + $0x8] sm:$0xff]
      %v5100 = vld [vmem:[%s5097 + $0x10] sm:$0xff]
      %v5101 = vld [vmem:[%s5097 + $0x18] sm:$0xff]
      %v5102 = vld [vmem:[%s5097 + $0x20] sm:$0xff]
      %v5103 = vld [vmem:[%s5097 + $0x28] sm:$0xff]
      %v5104 = vld [vmem:[%s5097 + $0x30] sm:$0xff]
      %v5105 = vld [vmem:[%s5097 + $0x38] sm:$0xff]
      %v5106 = vld [vmem:[%s5097 + $0x40] sm:$0xff]
      %v5107 = vld [vmem:[%s5097 + $0x48] sm:$0xff]
      %v5108 = vld [vmem:[%s5097 + $0x50] sm:$0xff]
      %v5109 = vld [vmem:[%s5097 + $0x58] sm:$0xff]
      %v5110 = vld [vmem:[%s5097 + $0x60] sm:$0xff]
      %v5111 = vld [vmem:[%s5097 + $0x68] sm:$0xff]
      %v5112 = vld [vmem:[%s5097 + $0x70] sm:$0xff]
      %v5113 = vld [vmem:[%s5097 + $0x78] sm:$0xff]
      %v5114 = vld [vmem:[%s5097 + $0x80] sm:$0xff]
      %v5115 = vld [vmem:[%s5097 + $0x88] sm:$0xff]
      %v5116 = vld [vmem:[%s5097 + $0x90] sm:$0xff]
      %v5117 = vld [vmem:[%s5097 + $0x98] sm:$0xff]
      %v5118 = vld [vmem:[%s5097 + $0xa0] sm:$0xff]
      %v5119 = vld [vmem:[%s5097 + $0xa8] sm:$0xff]
      %v5120 = vld [vmem:[%s5097 + $0xb0] sm:$0xff]
      %v5121 = vld [vmem:[%s5097 + $0xb8] sm:$0xff]
      %v5122 = vld [vmem:[%s5097 + $0xc0] sm:$0xff]
      %v5123 = vld [vmem:[%s5097 + $0xc8] sm:$0xff]
      %v5124 = vld [vmem:[%s5097 + $0xd0] sm:$0xff]
      %v5125 = vld [vmem:[%s5097 + $0xd8] sm:$0xff]
      %v5126 = vld [vmem:[%s5097 + $0xe0] sm:$0xff]
      %v5127 = vld [vmem:[%s5097 + $0xe8] sm:$0xff]
      %v5128 = vld [vmem:[%s5097 + $0xf0] sm:$0xff]
      %v5129 = vld [vmem:[%s5097 + $0xf8] sm:$0xff]
      %v5130 = vld [vmem:[%s5097 + $0x100] sm:$0xff]
      %v5131 = vld [vmem:[%s5097 + $0x108] sm:$0xff]
      %v5132 = vld [vmem:[%s5097 + $0x110] sm:$0xff]
      %v5133 = vld [vmem:[%s5097 + $0x118] sm:$0xff]
      %v5135 = vshrl.u32 %v5094, 16
      %v5137 = vshll.u32 %v5094, 16
      %v5139 = vrot.slane %v5137, 1
      %v5140 = vor.u32 %v5135, %v5139
      %v5142 = vshrl.u32 %v5095, 16
      %v5144 = vshll.u32 %v5095, 16
      %v5146 = vrot.slane %v5144, 1
      %v5147 = vor.u32 %v5142, %v5146
      %v5149 = vshrl.u32 %v5096, 16
      %v5151 = vshll.u32 %v5096, 16
      %v5153 = vrot.slane %v5151, 1
      %v5154 = vor.u32 %v5149, %v5153
      %v5193 = vunpack.c.l.b16 %v5098
      %v5194 = vunpack.c.h.b16 %v5098
      %v5195 = vunpack.c.l.b16 %v5099
      %v5196 = vunpack.c.h.b16 %v5099
      %v5197 = vunpack.c.l.b16 %v5100
      %v5198 = vunpack.c.h.b16 %v5100
      %v5199 = vunpack.c.l.b16 %v5101
      %v5200 = vunpack.c.h.b16 %v5101
      %v5201 = vunpack.c.l.b16 %v5102
      %v5202 = vunpack.c.h.b16 %v5102
      %v5203 = vunpack.c.l.b16 %v5103
      %v5204 = vunpack.c.h.b16 %v5103
      %v5205 = vunpack.c.l.b16 %v5104
      %v5206 = vunpack.c.h.b16 %v5104
      %v5207 = vunpack.c.l.b16 %v5105
      %v5208 = vunpack.c.h.b16 %v5105
      %v5209 = vunpack.c.l.b16 %v5106
      %v5210 = vunpack.c.h.b16 %v5106
      %v5211 = vunpack.c.l.b16 %v5107
      %v5212 = vunpack.c.h.b16 %v5107
      %v5213 = vunpack.c.l.b16 %v5108
      %v5214 = vunpack.c.h.b16 %v5108
      %v5215 = vunpack.c.l.b16 %v5109
      %v5216 = vunpack.c.h.b16 %v5109
      %v5217 = vunpack.c.l.b16 %v5110
      %v5218 = vunpack.c.h.b16 %v5110
      %v5219 = vunpack.c.l.b16 %v5111
      %v5220 = vunpack.c.h.b16 %v5111
      %v5221 = vunpack.c.l.b16 %v5112
      %v5222 = vunpack.c.h.b16 %v5112
      %v5223 = vunpack.c.l.b16 %v5113
      %v5224 = vunpack.c.h.b16 %v5113
      %v5225 = vunpack.c.l.b16 %v5114
      %v5226 = vunpack.c.h.b16 %v5114
      %v5227 = vunpack.c.l.b16 %v5115
      %v5228 = vunpack.c.h.b16 %v5115
      %v5229 = vunpack.c.l.b16 %v5116
      %v5230 = vunpack.c.h.b16 %v5116
      %v5231 = vunpack.c.l.b16 %v5117
      %v5232 = vunpack.c.h.b16 %v5117
      %v5233 = vunpack.c.l.b16 %v5118
      %v5234 = vunpack.c.h.b16 %v5118
      %v5235 = vunpack.c.l.b16 %v5119
      %v5236 = vunpack.c.h.b16 %v5119
      %v5237 = vunpack.c.l.b16 %v5120
      %v5238 = vunpack.c.h.b16 %v5120
      %v5239 = vunpack.c.l.b16 %v5121
      %v5240 = vunpack.c.h.b16 %v5121
      %v5241 = vunpack.c.l.b16 %v5122
      %v5242 = vunpack.c.h.b16 %v5122
      %v5243 = vunpack.c.l.b16 %v5123
      %v5244 = vunpack.c.h.b16 %v5123
      %v5245 = vunpack.c.l.b16 %v5124
      %v5246 = vunpack.c.h.b16 %v5124
      %v5247 = vunpack.c.l.b16 %v5125
      %v5248 = vunpack.c.h.b16 %v5125
      %v5249 = vunpack.c.l.b16 %v5126
      %v5250 = vunpack.c.h.b16 %v5126
      %v5251 = vunpack.c.l.b16 %v5127
      %v5252 = vunpack.c.h.b16 %v5127
      %v5253 = vunpack.c.l.b16 %v5128
      %v5254 = vunpack.c.h.b16 %v5128
      %v5255 = vunpack.c.l.b16 %v5129
      %v5256 = vunpack.c.h.b16 %v5129
      %v5257 = vunpack.c.l.b16 %v5130
      %v5258 = vunpack.c.h.b16 %v5130
      %v5259 = vunpack.c.l.b16 %v5131
      %v5260 = vunpack.c.h.b16 %v5131
      %v5261 = vunpack.c.l.b16 %v5132
      %v5262 = vunpack.c.h.b16 %v5132
      %v5263 = vunpack.c.l.b16 %v5133
      %v5264 = vunpack.c.h.b16 %v5133
      %v5265 = vpack.c.b16 %v5195, %v5193
      %v5266 = vpack.c.b16 %v5196, %v5194
      %v5267 = vpack.c.b16 %v5199, %v5197
      %v5268 = vpack.c.b16 %v5200, %v5198
      %v5269 = vpack.c.b16 %v5203, %v5201
      %v5270 = vpack.c.b16 %v5204, %v5202
      %v5271 = vpack.c.b16 %v5207, %v5205
      %v5272 = vpack.c.b16 %v5208, %v5206
      %v5273 = vpack.c.b16 %v5211, %v5209
      %v5274 = vpack.c.b16 %v5212, %v5210
      %v5275 = vpack.c.b16 %v5215, %v5213
      %v5276 = vpack.c.b16 %v5216, %v5214
      %v5277 = vpack.c.b16 %v5219, %v5217
      %v5278 = vpack.c.b16 %v5220, %v5218
      %v5279 = vpack.c.b16 %v5223, %v5221
      %v5280 = vpack.c.b16 %v5224, %v5222
      %v5281 = vpack.c.b16 %v5227, %v5225
      %v5282 = vpack.c.b16 %v5228, %v5226
      %v5283 = vpack.c.b16 %v5231, %v5229
      %v5284 = vpack.c.b16 %v5232, %v5230
      %v5285 = vpack.c.b16 %v5235, %v5233
      %v5286 = vpack.c.b16 %v5236, %v5234
      %v5287 = vpack.c.b16 %v5239, %v5237
      %v5288 = vpack.c.b16 %v5240, %v5238
      %v5289 = vpack.c.b16 %v5243, %v5241
      %v5290 = vpack.c.b16 %v5244, %v5242
      %v5291 = vpack.c.b16 %v5247, %v5245
      %v5292 = vpack.c.b16 %v5248, %v5246
      %v5293 = vpack.c.b16 %v5251, %v5249
      %v5294 = vpack.c.b16 %v5252, %v5250
      %v5295 = vpack.c.b16 %v5255, %v5253
      %v5296 = vpack.c.b16 %v5256, %v5254
      %v5297 = vpack.c.b16 %v5259, %v5257
      %v5298 = vpack.c.b16 %v5260, %v5258
      %v5299 = vpack.c.b16 %v5263, %v5261
      %v5300 = vpack.c.b16 %v5264, %v5262
      %v5338 = vsel %vm693, %v5154, 0
      %5340 = vmatprep.subr.bf16.mxu0 %v5266
      %5341 = vmatpush1.bf16.msra.mxu0 %v5265
      %5342 = vmatprep.subr.bf16.mxu0 %v5268
      %5343 = vmatpush1.bf16.msra.mxu0 %v5267
      %5344 = vmatprep.subr.bf16.mxu0 %v5270
      %5345 = vmatpush1.bf16.msra.mxu0 %v5269
      %5346 = vmatprep.subr.bf16.mxu0 %v5272
      %5347 = vmatpush1.bf16.msra.mxu0 %v5271
      %5348 = vmatprep.subr.bf16.mxu0 %v5274
      %5349 = vmatpush1.bf16.msra.mxu0 %v5273
      %5350 = vmatprep.subr.bf16.mxu0 %v5276
      %5351 = vmatpush1.bf16.msra.mxu0 %v5275
      %5352 = vmatprep.subr.bf16.mxu0 %v5278
      %5353 = vmatpush1.bf16.msra.mxu0 %v5277
      %5354 = vmatprep.subr.bf16.mxu0 %v5280
      %5355 = vmatpush1.bf16.msra.mxu0 %v5279
      %5356 = vmatprep.subr.bf16.mxu0 %v5282
      %5357 = vmatpush1.bf16.msra.mxu0 %v5281
      %5358 = vmatprep.subr.bf16.mxu0 %v5284
      %5359 = vmatpush1.bf16.msra.mxu0 %v5283
      %5360 = vmatprep.subr.bf16.mxu0 %v5286
      %5361 = vmatpush1.bf16.msra.mxu0 %v5285
      %5362 = vmatprep.subr.bf16.mxu0 %v5288
      %5363 = vmatpush1.bf16.msra.mxu0 %v5287
      %5364 = vmatprep.subr.bf16.mxu0 %v5290
      %5365 = vmatpush1.bf16.msra.mxu0 %v5289
      %5366 = vmatprep.subr.bf16.mxu0 %v5292
      %5367 = vmatpush1.bf16.msra.mxu0 %v5291
      %5368 = vmatprep.subr.bf16.mxu0 %v5294
      %5369 = vmatpush1.bf16.msra.mxu0 %v5293
      %5370 = vmatprep.subr.bf16.mxu0 %v5296
      %5371 = vmatpush1.bf16.msra.mxu0 %v5295
      %5372 = vmatprep.mubr.bf16.mxu0 %v5147
      %5373 = vmatmul.mubr.bf16.gmra.mrb[0].mxu0 %v5140
      %v5374 = vpop.f32.mrb[0].mxu0
      %v5375 = vadd.f32 0.0, %v5374
      %v5376 = vpop.f32.mrb[0].mxu0
      %v5377 = vadd.f32 0.0, %v5376
      %v5378 = vpop.f32.mrb[0].mxu0
      %v5379 = vpop.f32.mrb[0].mxu0
      %5380 = vdwg.mxu0
      %5381 = vmatprep.subr.bf16.mxu0 %v5298
      %5382 = vmatpush1.bf16.msra.mxu0 %v5297
      %5383 = vmatprep.subr.bf16.mxu0 %v5300
      %5384 = vmatpush1.bf16.msra.mxu0 %v5299
      %5385 = vmatprep.subr.bf16.mxu0 0
      %5386 = vmatpush1.bf16.msra.mxu0 0
      %5387 = vmatprep.subr.bf16.mxu0 0
      %5388 = vmatpush1.bf16.msra.mxu0 0
      %5389 = vmatprep.subr.bf16.mxu0 0
      %5390 = vmatpush1.bf16.msra.mxu0 0
      %5391 = vmatprep.subr.bf16.mxu0 0
      %5392 = vmatpush1.bf16.msra.mxu0 0
      %5393 = vmatprep.subr.bf16.mxu0 0
      %5394 = vmatpush1.bf16.msra.mxu0 0
      %5395 = vmatprep.subr.bf16.mxu0 0
      %5396 = vmatpush1.bf16.msra.mxu0 0
      %5397 = vmatprep.subr.bf16.mxu0 0
      %5398 = vmatpush1.bf16.msra.mxu0 0
      %5399 = vmatprep.subr.bf16.mxu0 0
      %5400 = vmatpush1.bf16.msra.mxu0 0
      %5401 = vmatprep.subr.bf16.mxu0 0
      %5402 = vmatpush1.bf16.msra.mxu0 0
      %5403 = vmatprep.subr.bf16.mxu0 0
      %5404 = vmatpush1.bf16.msra.mxu0 0
      %5405 = vmatprep.subr.bf16.mxu0 0
      %5406 = vmatpush1.bf16.msra.mxu0 0
      %5407 = vmatprep.subr.bf16.mxu0 0
      %5408 = vmatpush1.bf16.msra.mxu0 0
      %5409 = vmatprep.subr.bf16.mxu0 0
      %5410 = vmatpush1.bf16.msra.mxu0 0
      %5411 = vmatprep.subr.bf16.mxu0 0
      %5412 = vmatpush1.bf16.msra.mxu0 0
      %5413 = vmatprep.mubr.bf16.mxu0 0
      %5414 = vmatmul.mubr.bf16.gmra.mrb[0].mxu0 %v5338
      %v5415 = vpop.f32.mrb[0].mxu0
      %v5416 = vadd.f32 %v5375, %v5415
      %v5417 = vpop.f32.mrb[0].mxu0
      %v5418 = vadd.f32 %v5377, %v5417
      %v5419 = vpop.f32.mrb[0].mxu0
      %v5420 = vpop.f32.mrb[0].mxu0
      %5421 = vdwg.mxu0
      %v5422 = vadd.f32 %v5082, %v5416
      %v5423 = vadd.f32 %v5084, %v5418
      %v5424 = vld [vmem:[#allocation11 + $0x18] sm:$0xfc]
      %v5425 = vld [vmem:[#allocation11 + $0x20] sm:$0xfc]
      %v5426 = vld [vmem:[#allocation11 + $0x28] sm:$0xfc]
      %v5427 = vld [vmem:[#allocation11 + $0x30] sm:$0x3]
      %v5428 = vld [vmem:[#allocation11 + $0x38] sm:$0x3]
      %v5429 = vld [vmem:[#allocation11 + $0x40] sm:$0x3]
      %v5430 = vpack.c.bf16 %v5427, %v5424
      %v5431 = vpack.c.bf16 %v5428, %v5425
      %v5432 = vpack.c.bf16 %v5429, %v5426
      %s5433 = scalar_lea.vmem %s7, 864
      %v5434 = vld [vmem:[%s5433] sm:$0xff]
      %v5435 = vld [vmem:[%s5433 + $0x8] sm:$0xff]
      %v5436 = vld [vmem:[%s5433 + $0x10] sm:$0xff]
      %v5437 = vld [vmem:[%s5433 + $0x18] sm:$0xff]
      %v5438 = vld [vmem:[%s5433 + $0x20] sm:$0xff]
      %v5439 = vld [vmem:[%s5433 + $0x28] sm:$0xff]
      %v5440 = vld [vmem:[%s5433 + $0x30] sm:$0xff]
      %v5441 = vld [vmem:[%s5433 + $0x38] sm:$0xff]
      %v5442 = vld [vmem:[%s5433 + $0x40] sm:$0xff]
      %v5443 = vld [vmem:[%s5433 + $0x48] sm:$0xff]
      %v5444 = vld [vmem:[%s5433 + $0x50] sm:$0xff]
      %v5445 = vld [vmem:[%s5433 + $0x58] sm:$0xff]
      %v5446 = vld [vmem:[%s5433 + $0x60] sm:$0xff]
      %v5447 = vld [vmem:[%s5433 + $0x68] sm:$0xff]
      %v5448 = vld [vmem:[%s5433 + $0x70] sm:$0xff]
      %v5449 = vld [vmem:[%s5433 + $0x78] sm:$0xff]
      %v5450 = vld [vmem:[%s5433 + $0x80] sm:$0xff]
      %v5451 = vld [vmem:[%s5433 + $0x88] sm:$0xff]
      %v5452 = vld [vmem:[%s5433 + $0x90] sm:$0xff]
      %v5453 = vld [vmem:[%s5433 + $0x98] sm:$0xff]
      %v5454 = vld [vmem:[%s5433 + $0xa0] sm:$0xff]
      %v5455 = vld [vmem:[%s5433 + $0xa8] sm:$0xff]
      %v5456 = vld [vmem:[%s5433 + $0xb0] sm:$0xff]
      %v5457 = vld [vmem:[%s5433 + $0xb8] sm:$0xff]
      %v5458 = vld [vmem:[%s5433 + $0xc0] sm:$0xff]
      %v5459 = vld [vmem:[%s5433 + $0xc8] sm:$0xff]
      %v5460 = vld [vmem:[%s5433 + $0xd0] sm:$0xff]
      %v5461 = vld [vmem:[%s5433 + $0xd8] sm:$0xff]
      %v5462 = vld [vmem:[%s5433 + $0xe0] sm:$0xff]
      %v5463 = vld [vmem:[%s5433 + $0xe8] sm:$0xff]
      %v5464 = vld [vmem:[%s5433 + $0xf0] sm:$0xff]
      %v5465 = vld [vmem:[%s5433 + $0xf8] sm:$0xff]
      %v5466 = vld [vmem:[%s5433 + $0x100] sm:$0xff]
      %v5467 = vld [vmem:[%s5433 + $0x108] sm:$0xff]
      %v5468 = vld [vmem:[%s5433 + $0x110] sm:$0xff]
      %v5469 = vld [vmem:[%s5433 + $0x118] sm:$0xff]
      %v5473 = vrot.slane %v5430, 1
      %v5474 = vrot.slane %v5431, 1
      %v5475 = vrot.slane %v5432, 1
      %v5514 = vunpack.c.l.b16 %v5434
      %v5515 = vunpack.c.h.b16 %v5434
      %v5516 = vunpack.c.l.b16 %v5435
      %v5517 = vunpack.c.h.b16 %v5435
      %v5518 = vunpack.c.l.b16 %v5436
      %v5519 = vunpack.c.h.b16 %v5436
      %v5520 = vunpack.c.l.b16 %v5437
      %v5521 = vunpack.c.h.b16 %v5437
      %v5522 = vunpack.c.l.b16 %v5438
      %v5523 = vunpack.c.h.b16 %v5438
      %v5524 = vunpack.c.l.b16 %v5439
      %v5525 = vunpack.c.h.b16 %v5439
      %v5526 = vunpack.c.l.b16 %v5440
      %v5527 = vunpack.c.h.b16 %v5440
      %v5528 = vunpack.c.l.b16 %v5441
      %v5529 = vunpack.c.h.b16 %v5441
      %v5530 = vunpack.c.l.b16 %v5442
      %v5531 = vunpack.c.h.b16 %v5442
      %v5532 = vunpack.c.l.b16 %v5443
      %v5533 = vunpack.c.h.b16 %v5443
      %v5534 = vunpack.c.l.b16 %v5444
      %v5535 = vunpack.c.h.b16 %v5444
      %v5536 = vunpack.c.l.b16 %v5445
      %v5537 = vunpack.c.h.b16 %v5445
      %v5538 = vunpack.c.l.b16 %v5446
      %v5539 = vunpack.c.h.b16 %v5446
      %v5540 = vunpack.c.l.b16 %v5447
      %v5541 = vunpack.c.h.b16 %v5447
      %v5542 = vunpack.c.l.b16 %v5448
      %v5543 = vunpack.c.h.b16 %v5448
      %v5544 = vunpack.c.l.b16 %v5449
      %v5545 = vunpack.c.h.b16 %v5449
      %v5546 = vunpack.c.l.b16 %v5450
      %v5547 = vunpack.c.h.b16 %v5450
      %v5548 = vunpack.c.l.b16 %v5451
      %v5549 = vunpack.c.h.b16 %v5451
      %v5550 = vunpack.c.l.b16 %v5452
      %v5551 = vunpack.c.h.b16 %v5452
      %v5552 = vunpack.c.l.b16 %v5453
      %v5553 = vunpack.c.h.b16 %v5453
      %v5554 = vunpack.c.l.b16 %v5454
      %v5555 = vunpack.c.h.b16 %v5454
      %v5556 = vunpack.c.l.b16 %v5455
      %v5557 = vunpack.c.h.b16 %v5455
      %v5558 = vunpack.c.l.b16 %v5456
      %v5559 = vunpack.c.h.b16 %v5456
      %v5560 = vunpack.c.l.b16 %v5457
      %v5561 = vunpack.c.h.b16 %v5457
      %v5562 = vunpack.c.l.b16 %v5458
      %v5563 = vunpack.c.h.b16 %v5458
      %v5564 = vunpack.c.l.b16 %v5459
      %v5565 = vunpack.c.h.b16 %v5459
      %v5566 = vunpack.c.l.b16 %v5460
      %v5567 = vunpack.c.h.b16 %v5460
      %v5568 = vunpack.c.l.b16 %v5461
      %v5569 = vunpack.c.h.b16 %v5461
      %v5570 = vunpack.c.l.b16 %v5462
      %v5571 = vunpack.c.h.b16 %v5462
      %v5572 = vunpack.c.l.b16 %v5463
      %v5573 = vunpack.c.h.b16 %v5463
      %v5574 = vunpack.c.l.b16 %v5464
      %v5575 = vunpack.c.h.b16 %v5464
      %v5576 = vunpack.c.l.b16 %v5465
      %v5577 = vunpack.c.h.b16 %v5465
      %v5578 = vunpack.c.l.b16 %v5466
      %v5579 = vunpack.c.h.b16 %v5466
      %v5580 = vunpack.c.l.b16 %v5467
      %v5581 = vunpack.c.h.b16 %v5467
      %v5582 = vunpack.c.l.b16 %v5468
      %v5583 = vunpack.c.h.b16 %v5468
      %v5584 = vunpack.c.l.b16 %v5469
      %v5585 = vunpack.c.h.b16 %v5469
      %v5586 = vpack.c.b16 %v5516, %v5514
      %v5587 = vpack.c.b16 %v5517, %v5515
      %v5588 = vpack.c.b16 %v5520, %v5518
      %v5589 = vpack.c.b16 %v5521, %v5519
      %v5590 = vpack.c.b16 %v5524, %v5522
      %v5591 = vpack.c.b16 %v5525, %v5523
      %v5592 = vpack.c.b16 %v5528, %v5526
      %v5593 = vpack.c.b16 %v5529, %v5527
      %v5594 = vpack.c.b16 %v5532, %v5530
      %v5595 = vpack.c.b16 %v5533, %v5531
      %v5596 = vpack.c.b16 %v5536, %v5534
      %v5597 = vpack.c.b16 %v5537, %v5535
      %v5598 = vpack.c.b16 %v5540, %v5538
      %v5599 = vpack.c.b16 %v5541, %v5539
      %v5600 = vpack.c.b16 %v5544, %v5542
      %v5601 = vpack.c.b16 %v5545, %v5543
      %v5602 = vpack.c.b16 %v5548, %v5546
      %v5603 = vpack.c.b16 %v5549, %v5547
      %v5604 = vpack.c.b16 %v5552, %v5550
      %v5605 = vpack.c.b16 %v5553, %v5551
      %v5606 = vpack.c.b16 %v5556, %v5554
      %v5607 = vpack.c.b16 %v5557, %v5555
      %v5608 = vpack.c.b16 %v5560, %v5558
      %v5609 = vpack.c.b16 %v5561, %v5559
      %v5610 = vpack.c.b16 %v5564, %v5562
      %v5611 = vpack.c.b16 %v5565, %v5563
      %v5612 = vpack.c.b16 %v5568, %v5566
      %v5613 = vpack.c.b16 %v5569, %v5567
      %v5614 = vpack.c.b16 %v5572, %v5570
      %v5615 = vpack.c.b16 %v5573, %v5571
      %v5616 = vpack.c.b16 %v5576, %v5574
      %v5617 = vpack.c.b16 %v5577, %v5575
      %v5618 = vpack.c.b16 %v5580, %v5578
      %v5619 = vpack.c.b16 %v5581, %v5579
      %v5620 = vpack.c.b16 %v5584, %v5582
      %v5621 = vpack.c.b16 %v5585, %v5583
      %v5659 = vsel %vm693, %v5475, 0
      %5661 = vmatprep.subr.bf16.mxu0 %v5587
      %5662 = vmatpush1.bf16.msra.mxu0 %v5586
      %5663 = vmatprep.subr.bf16.mxu0 %v5589
      %5664 = vmatpush1.bf16.msra.mxu0 %v5588
      %5665 = vmatprep.subr.bf16.mxu0 %v5591
      %5666 = vmatpush1.bf16.msra.mxu0 %v5590
      %5667 = vmatprep.subr.bf16.mxu0 %v5593
      %5668 = vmatpush1.bf16.msra.mxu0 %v5592
      %5669 = vmatprep.subr.bf16.mxu0 %v5595
      %5670 = vmatpush1.bf16.msra.mxu0 %v5594
      %5671 = vmatprep.subr.bf16.mxu0 %v5597
      %5672 = vmatpush1.bf16.msra.mxu0 %v5596
      %5673 = vmatprep.subr.bf16.mxu0 %v5599
      %5674 = vmatpush1.bf16.msra.mxu0 %v5598
      %5675 = vmatprep.subr.bf16.mxu0 %v5601
      %5676 = vmatpush1.bf16.msra.mxu0 %v5600
      %5677 = vmatprep.subr.bf16.mxu0 %v5603
      %5678 = vmatpush1.bf16.msra.mxu0 %v5602
      %5679 = vmatprep.subr.bf16.mxu0 %v5605
      %5680 = vmatpush1.bf16.msra.mxu0 %v5604
      %5681 = vmatprep.subr.bf16.mxu0 %v5607
      %5682 = vmatpush1.bf16.msra.mxu0 %v5606
      %5683 = vmatprep.subr.bf16.mxu0 %v5609
      %5684 = vmatpush1.bf16.msra.mxu0 %v5608
      %5685 = vmatprep.subr.bf16.mxu0 %v5611
      %5686 = vmatpush1.bf16.msra.mxu0 %v5610
      %5687 = vmatprep.subr.bf16.mxu0 %v5613
      %5688 = vmatpush1.bf16.msra.mxu0 %v5612
      %5689 = vmatprep.subr.bf16.mxu0 %v5615
      %5690 = vmatpush1.bf16.msra.mxu0 %v5614
      %5691 = vmatprep.subr.bf16.mxu0 %v5617
      %5692 = vmatpush1.bf16.msra.mxu0 %v5616
      %5693 = vmatprep.mubr.bf16.mxu0 %v5474
      %5694 = vmatmul.mubr.bf16.gmra.mrb[0].mxu0 %v5473
      %v5695 = vpop.f32.mrb[0].mxu0
      %v5696 = vadd.f32 0.0, %v5695
      %v5697 = vpop.f32.mrb[0].mxu0
      %v5698 = vadd.f32 0.0, %v5697
      %v5699 = vpop.f32.mrb[0].mxu0
      %v5700 = vpop.f32.mrb[0].mxu0
      %5701 = vdwg.mxu0
      %5702 = vmatprep.subr.bf16.mxu0 %v5619
      %5703 = vmatpush1.bf16.msra.mxu0 %v5618
      %5704 = vmatprep.subr.bf16.mxu0 %v5621
      %5705 = vmatpush1.bf16.msra.mxu0 %v5620
      %5706 = vmatprep.subr.bf16.mxu0 0
      %5707 = vmatpush1.bf16.msra.mxu0 0
      %5708 = vmatprep.subr.bf16.mxu0 0
      %5709 = vmatpush1.bf16.msra.mxu0 0
      %5710 = vmatprep.subr.bf16.mxu0 0
      %5711 = vmatpush1.bf16.msra.mxu0 0
      %5712 = vmatprep.subr.bf16.mxu0 0
      %5713 = vmatpush1.bf16.msra.mxu0 0
      %5714 = vmatprep.subr.bf16.mxu0 0
      %5715 = vmatpush1.bf16.msra.mxu0 0
      %5716 = vmatprep.subr.bf16.mxu0 0
      %5717 = vmatpush1.bf16.msra.mxu0 0
      %5718 = vmatprep.subr.bf16.mxu0 0
      %5719 = vmatpush1.bf16.msra.mxu0 0
      %5720 = vmatprep.subr.bf16.mxu0 0
      %5721 = vmatpush1.bf16.msra.mxu0 0
      %5722 = vmatprep.subr.bf16.mxu0 0
      %5723 = vmatpush1.bf16.msra.mxu0 0
      %5724 = vmatprep.subr.bf16.mxu0 0
      %5725 = vmatpush1.bf16.msra.mxu0 0
      %5726 = vmatprep.subr.bf16.mxu0 0
      %5727 = vmatpush1.bf16.msra.mxu0 0
      %5728 = vmatprep.subr.bf16.mxu0 0
      %5729 = vmatpush1.bf16.msra.mxu0 0
      %5730 = vmatprep.subr.bf16.mxu0 0
      %5731 = vmatpush1.bf16.msra.mxu0 0
      %5732 = vmatprep.subr.bf16.mxu0 0
      %5733 = vmatpush1.bf16.msra.mxu0 0
      %5734 = vmatprep.mubr.bf16.mxu0 0
      %5735 = vmatmul.mubr.bf16.gmra.mrb[0].mxu0 %v5659
      %v5736 = vpop.f32.mrb[0].mxu0
      %v5737 = vadd.f32 %v5696, %v5736
      %v5738 = vpop.f32.mrb[0].mxu0
      %v5739 = vadd.f32 %v5698, %v5738
      %v5740 = vpop.f32.mrb[0].mxu0
      %v5741 = vpop.f32.mrb[0].mxu0
      %5742 = vdwg.mxu0
      %v5743 = vadd.f32 %v5422, %v5737
      %v5744 = vadd.f32 %v5423, %v5739
      %v5745 = vld [vmem:[%s8] sm:$0x3]
      %v5747 = vlaneseq
      %v5748 = vshrl.u32 %v5747, 7
      %v5749 = vsub.s32 0, %v5748
      %v5750 = vrot.slane %v5745, %v5749
      %v5751 = vlaneseq
      %v5752 = vshrl.u32 %v5751, 7
      %v5753 = vsub.s32 1, %v5752
      %v5754 = vrot.slane %v5745, %v5753
      %v5757 = vadd.f32 %v5743, %v5750
      %v5758 = vadd.f32 %v5744, %v5754
      %vm5759 = vcmp.ge.f32.partialorder %v5757, 0.0
      %vm5760 = vcmp.ge.f32.partialorder %v5758, 0.0
      %v5761 = vmul.f32 %v5757, 0.1
      %v5762 = vmul.f32 %v5758, 0.1
      %v5763 = vsel %vm5759, %v5757, %v5761
      %v5764 = vsel %vm5760, %v5758, %v5762
      %v5767 = vrot.slane %v5763, 7
      %v5768 = vrot.slane %v5764, 7
      %5771 = vst [vmem:[#allocation6] sm:$0xfe] %v5767
      %5772 = vst.msk [vmem:[#allocation6 + $0x8] sm:$0xfe] %vm4348, %v5768
      %5773 = vst [vmem:[#allocation6 + $0x10] sm:$0x1] %v5767
      %5774 = vst.msk [vmem:[#allocation6 + $0x18] sm:$0x1] %vm4355, %v5768
      %v5775 = vld [vmem:[#allocation6] sm:$0xff]
      %v5776 = vld [vmem:[#allocation6 + $0x8] sm:$0xff]
      %v5777 = vpack.c.bf16 %v5775, %v5775
      %v5778 = vpack.c.bf16 %v5776, %v5776
      %v5779 = vld [vmem:[%s9] sm:$0xff]
      %v5780 = vld [vmem:[%s9 + $0x8] sm:$0xf]
      %v5781 = vld [vmem:[%s9 + $0xc] sm:$0xff]
      %v5782 = vld [vmem:[%s9 + $0x14] sm:$0xf]
      %v5783 = vld [vmem:[%s9 + $0x18] sm:$0xff]
      %v5784 = vld [vmem:[%s9 + $0x20] sm:$0xf]
      %v5785 = vld [vmem:[%s9 + $0x24] sm:$0xff]
      %v5786 = vld [vmem:[%s9 + $0x2c] sm:$0xf]
      %v5787 = vld [vmem:[%s9 + $0x30] sm:$0xff]
      %v5788 = vld [vmem:[%s9 + $0x38] sm:$0xf]
      %v5789 = vld [vmem:[%s9 + $0x3c] sm:$0xff]
      %v5790 = vld [vmem:[%s9 + $0x44] sm:$0xf]
      %v5791 = vld [vmem:[%s9 + $0x48] sm:$0xff]
      %v5792 = vld [vmem:[%s9 + $0x50] sm:$0xf]
      %v5793 = vld [vmem:[%s9 + $0x54] sm:$0xff]
      %v5794 = vld [vmem:[%s9 + $0x5c] sm:$0xf]
      %v5795 = vld [vmem:[%s9 + $0x60] sm:$0xff]
      %v5796 = vld [vmem:[%s9 + $0x68] sm:$0xf]
      %v5797 = vld [vmem:[%s9 + $0x6c] sm:$0xff]
      %v5798 = vld [vmem:[%s9 + $0x74] sm:$0xf]
      %v5799 = vld [vmem:[%s9 + $0x78] sm:$0xff]
      %v5800 = vld [vmem:[%s9 + $0x80] sm:$0xf]
      %v5801 = vld [vmem:[%s9 + $0x84] sm:$0xff]
      %v5802 = vld [vmem:[%s9 + $0x8c] sm:$0xf]
      %v5803 = vld [vmem:[%s9 + $0x90] sm:$0xff]
      %v5804 = vld [vmem:[%s9 + $0x98] sm:$0xf]
      %v5805 = vld [vmem:[%s9 + $0x9c] sm:$0xff]
      %v5806 = vld [vmem:[%s9 + $0xa4] sm:$0xf]
      %v5807 = vld [vmem:[%s9 + $0xa8] sm:$0xff]
      %v5808 = vld [vmem:[%s9 + $0xb0] sm:$0xf]
      %v5809 = vld [vmem:[%s9 + $0xb4] sm:$0xff]
      %v5810 = vld [vmem:[%s9 + $0xbc] sm:$0xf]
      %v5811 = vld [vmem:[%s9 + $0xc0] sm:$0xff]
      %v5812 = vld [vmem:[%s9 + $0xc8] sm:$0xf]
      %v5813 = vld [vmem:[%s9 + $0xcc] sm:$0xff]
      %v5814 = vld [vmem:[%s9 + $0xd4] sm:$0xf]
      %v5815 = vld [vmem:[%s9 + $0xd8] sm:$0xff]
      %v5816 = vld [vmem:[%s9 + $0xe0] sm:$0xf]
      %v5817 = vld [vmem:[%s9 + $0xe4] sm:$0xff]
      %v5818 = vld [vmem:[%s9 + $0xec] sm:$0xf]
      %v5819 = vld [vmem:[#allocation6] sm:$0xfe]
      %v5820 = vld [vmem:[#allocation6 + $0x8] sm:$0xfe]
      %v5821 = vld [vmem:[#allocation6 + $0x10] sm:$0x1]
      %v5822 = vld [vmem:[#allocation6 + $0x18] sm:$0x1]
      %v5823 = vpack.c.bf16 %v5821, %v5819
      %v5824 = vpack.c.bf16 %v5822, %v5820
      %s5825 = scalar_lea.vmem %s9, 240
      %v5826 = vld [vmem:[%s5825] sm:$0xff]
      %v5827 = vld [vmem:[%s5825 + $0x8] sm:$0xf]
      %v5828 = vld [vmem:[%s5825 + $0xc] sm:$0xff]
      %v5829 = vld [vmem:[%s5825 + $0x14] sm:$0xf]
      %v5830 = vld [vmem:[%s5825 + $0x18] sm:$0xff]
      %v5831 = vld [vmem:[%s5825 + $0x20] sm:$0xf]
      %v5832 = vld [vmem:[%s5825 + $0x24] sm:$0xff]
      %v5833 = vld [vmem:[%s5825 + $0x2c] sm:$0xf]
      %v5834 = vld [vmem:[%s5825 + $0x30] sm:$0xff]
      %v5835 = vld [vmem:[%s5825 + $0x38] sm:$0xf]
      %v5836 = vld [vmem:[%s5825 + $0x3c] sm:$0xff]
      %v5837 = vld [vmem:[%s5825 + $0x44] sm:$0xf]
      %v5838 = vld [vmem:[%s5825 + $0x48] sm:$0xff]
      %v5839 = vld [vmem:[%s5825 + $0x50] sm:$0xf]
      %v5840 = vld [vmem:[%s5825 + $0x54] sm:$0xff]
      %v5841 = vld [vmem:[%s5825 + $0x5c] sm:$0xf]
      %v5842 = vld [vmem:[%s5825 + $0x60] sm:$0xff]
      %v5843 = vld [vmem:[%s5825 + $0x68] sm:$0xf]
      %v5844 = vld [vmem:[%s5825 + $0x6c] sm:$0xff]
      %v5845 = vld [vmem:[%s5825 + $0x74] sm:$0xf]
      %v5846 = vld [vmem:[%s5825 + $0x78] sm:$0xff]
      %v5847 = vld [vmem:[%s5825 + $0x80] sm:$0xf]
      %v5848 = vld [vmem:[%s5825 + $0x84] sm:$0xff]
      %v5849 = vld [vmem:[%s5825 + $0x8c] sm:$0xf]
      %v5850 = vld [vmem:[%s5825 + $0x90] sm:$0xff]
      %v5851 = vld [vmem:[%s5825 + $0x98] sm:$0xf]
      %v5852 = vld [vmem:[%s5825 + $0x9c] sm:$0xff]
      %v5853 = vld [vmem:[%s5825 + $0xa4] sm:$0xf]
      %v5854 = vld [vmem:[%s5825 + $0xa8] sm:$0xff]
      %v5855 = vld [vmem:[%s5825 + $0xb0] sm:$0xf]
      %v5856 = vld [vmem:[%s5825 + $0xb4] sm:$0xff]
      %v5857 = vld [vmem:[%s5825 + $0xbc] sm:$0xf]
      %v5858 = vld [vmem:[%s5825 + $0xc0] sm:$0xff]
      %v5859 = vld [vmem:[%s5825 + $0xc8] sm:$0xf]
      %v5860 = vld [vmem:[%s5825 + $0xcc] sm:$0xff]
      %v5861 = vld [vmem:[%s5825 + $0xd4] sm:$0xf]
      %v5862 = vld [vmem:[%s5825 + $0xd8] sm:$0xff]
      %v5863 = vld [vmem:[%s5825 + $0xe0] sm:$0xf]
      %v5864 = vld [vmem:[%s5825 + $0xe4] sm:$0xff]
      %v5865 = vld [vmem:[%s5825 + $0xec] sm:$0xf]
      %v5867 = vshrl.u32 %v5823, 16
      %v5869 = vshll.u32 %v5823, 16
      %v5871 = vrot.slane %v5869, 1
      %v5872 = vor.u32 %v5867, %v5871
      %v5874 = vshrl.u32 %v5824, 16
      %v5876 = vshll.u32 %v5824, 16
      %v5878 = vrot.slane %v5876, 1
      %v5879 = vor.u32 %v5874, %v5878
      %v5921 = vunpack.c.l.b16 %v5826
      %v5922 = vunpack.c.h.b16 %v5826
      %v5923 = vunpack.c.l.b16 %v5827
      %v5924 = vunpack.c.l.b16 %v5828
      %v5925 = vunpack.c.h.b16 %v5828
      %v5926 = vunpack.c.l.b16 %v5829
      %v5927 = vunpack.c.l.b16 %v5830
      %v5928 = vunpack.c.h.b16 %v5830
      %v5929 = vunpack.c.l.b16 %v5831
      %v5930 = vunpack.c.l.b16 %v5832
      %v5931 = vunpack.c.h.b16 %v5832
      %v5932 = vunpack.c.l.b16 %v5833
      %v5933 = vunpack.c.l.b16 %v5834
      %v5934 = vunpack.c.h.b16 %v5834
      %v5935 = vunpack.c.l.b16 %v5835
      %v5936 = vunpack.c.l.b16 %v5836
      %v5937 = vunpack.c.h.b16 %v5836
      %v5938 = vunpack.c.l.b16 %v5837
      %v5939 = vunpack.c.l.b16 %v5838
      %v5940 = vunpack.c.h.b16 %v5838
      %v5941 = vunpack.c.l.b16 %v5839
      %v5942 = vunpack.c.l.b16 %v5840
      %v5943 = vunpack.c.h.b16 %v5840
      %v5944 = vunpack.c.l.b16 %v5841
      %v5945 = vunpack.c.l.b16 %v5842
      %v5946 = vunpack.c.h.b16 %v5842
      %v5947 = vunpack.c.l.b16 %v5843
      %v5948 = vunpack.c.l.b16 %v5844
      %v5949 = vunpack.c.h.b16 %v5844
      %v5950 = vunpack.c.l.b16 %v5845
      %v5951 = vunpack.c.l.b16 %v5846
      %v5952 = vunpack.c.h.b16 %v5846
      %v5953 = vunpack.c.l.b16 %v5847
      %v5954 = vunpack.c.l.b16 %v5848
      %v5955 = vunpack.c.h.b16 %v5848
      %v5956 = vunpack.c.l.b16 %v5849
      %v5957 = vunpack.c.l.b16 %v5850
      %v5958 = vunpack.c.h.b16 %v5850
      %v5959 = vunpack.c.l.b16 %v5851
      %v5960 = vunpack.c.l.b16 %v5852
      %v5961 = vunpack.c.h.b16 %v5852
      %v5962 = vunpack.c.l.b16 %v5853
      %v5963 = vunpack.c.l.b16 %v5854
      %v5964 = vunpack.c.h.b16 %v5854
      %v5965 = vunpack.c.l.b16 %v5855
      %v5966 = vunpack.c.l.b16 %v5856
      %v5967 = vunpack.c.h.b16 %v5856
      %v5968 = vunpack.c.l.b16 %v5857
      %v5969 = vunpack.c.l.b16 %v5858
      %v5970 = vunpack.c.h.b16 %v5858
      %v5971 = vunpack.c.l.b16 %v5859
      %v5972 = vunpack.c.l.b16 %v5860
      %v5973 = vunpack.c.h.b16 %v5860
      %v5974 = vunpack.c.l.b16 %v5861
      %v5975 = vunpack.c.l.b16 %v5862
      %v5976 = vunpack.c.h.b16 %v5862
      %v5977 = vunpack.c.l.b16 %v5863
      %v5978 = vunpack.c.l.b16 %v5864
      %v5979 = vunpack.c.h.b16 %v5864
      %v5980 = vunpack.c.l.b16 %v5865
      %v5981 = vpack.c.b16 %v5924, %v5921
      %v5982 = vpack.c.b16 %v5925, %v5922
      %v5983 = vpack.c.b16 %v5926, %v5923
      %v5984 = vpack.c.b16 %v5930, %v5927
      %v5985 = vpack.c.b16 %v5931, %v5928
      %v5986 = vpack.c.b16 %v5932, %v5929
      %v5987 = vpack.c.b16 %v5936, %v5933
      %v5988 = vpack.c.b16 %v5937, %v5934
      %v5989 = vpack.c.b16 %v5938, %v5935
      %v5990 = vpack.c.b16 %v5942, %v5939
      %v5991 = vpack.c.b16 %v5943, %v5940
      %v5992 = vpack.c.b16 %v5944, %v5941
      %v5993 = vpack.c.b16 %v5948, %v5945
      %v5994 = vpack.c.b16 %v5949, %v5946
      %v5995 = vpack.c.b16 %v5950, %v5947
      %v5996 = vpack.c.b16 %v5954, %v5951
      %v5997 = vpack.c.b16 %v5955, %v5952
      %v5998 = vpack.c.b16 %v5956, %v5953
      %v5999 = vpack.c.b16 %v5960, %v5957
      %v6000 = vpack.c.b16 %v5961, %v5958
      %v6001 = vpack.c.b16 %v5962, %v5959
      %v6002 = vpack.c.b16 %v5966, %v5963
      %v6003 = vpack.c.b16 %v5967, %v5964
      %v6004 = vpack.c.b16 %v5968, %v5965
      %v6005 = vpack.c.b16 %v5972, %v5969
      %v6006 = vpack.c.b16 %v5973, %v5970
      %v6007 = vpack.c.b16 %v5974, %v5971
      %v6008 = vpack.c.b16 %v5978, %v5975
      %v6009 = vpack.c.b16 %v5979, %v5976
      %v6010 = vpack.c.b16 %v5980, %v5977
      %v6042 = vsel %vm693, %v5879, 0
      %6044 = vmatprep.subr.bf16.mxu0 %v5982
      %6045 = vmatpush1.bf16.msra.mxu0 %v5981
      %6046 = vmatprep.subr.bf16.mxu0 %v5985
      %6047 = vmatpush1.bf16.msra.mxu0 %v5984
      %6048 = vmatprep.subr.bf16.mxu0 %v5988
      %6049 = vmatpush1.bf16.msra.mxu0 %v5987
      %6050 = vmatprep.subr.bf16.mxu0 %v5991
      %6051 = vmatpush1.bf16.msra.mxu0 %v5990
      %6052 = vmatprep.subr.bf16.mxu0 %v5994
      %6053 = vmatpush1.bf16.msra.mxu0 %v5993
      %6054 = vmatprep.subr.bf16.mxu0 %v5997
      %6055 = vmatpush1.bf16.msra.mxu0 %v5996
      %6056 = vmatprep.subr.bf16.mxu0 %v6000
      %6057 = vmatpush1.bf16.msra.mxu0 %v5999
      %6058 = vmatprep.subr.bf16.mxu0 %v6003
      %6059 = vmatpush1.bf16.msra.mxu0 %v6002
      %6060 = vmatprep.subr.bf16.mxu0 %v6006
      %6061 = vmatpush1.bf16.msra.mxu0 %v6005
      %6062 = vmatprep.subr.bf16.mxu0 %v6009
      %6063 = vmatpush1.bf16.msra.mxu0 %v6008
      %6064 = vmatprep.subr.bf16.mxu0 0
      %6065 = vmatpush1.bf16.msra.mxu0 0
      %6066 = vmatprep.subr.bf16.mxu0 0
      %6067 = vmatpush1.bf16.msra.mxu0 0
      %6068 = vmatprep.subr.bf16.mxu0 0
      %6069 = vmatpush1.bf16.msra.mxu0 0
      %6070 = vmatprep.subr.bf16.mxu0 0
      %6071 = vmatpush1.bf16.msra.mxu0 0
      %6072 = vmatprep.subr.bf16.mxu0 0
      %6073 = vmatpush1.bf16.msra.mxu0 0
      %6074 = vmatprep.subr.bf16.mxu0 0
      %6075 = vmatpush1.bf16.msra.mxu0 0
      %6076 = vmatprep.mubr.bf16.mxu0 %v6042
      %6077 = vmatmul.mubr.bf16.gmra.mrb[0].mxu0 %v5872
      %v6078 = vpop.f32.mrb[0].mxu0
      %v6079 = vadd.f32 0.0, %v6078
      %v6080 = vpop.f32.mrb[0].mxu0
      %v6081 = vadd.f32 0.0, %v6080
      %v6082 = vpop.f32.mrb[0].mxu0
      %v6083 = vpop.f32.mrb[0].mxu0
      %6084 = vdwg.mxu0
      %6085 = vmatprep.subr.bf16.mxu0 0
      %6086 = vmatpush1.bf16.msra.mxu0 %v5983
      %6087 = vmatprep.subr.bf16.mxu0 0
      %6088 = vmatpush1.bf16.msra.mxu0 %v5986
      %6089 = vmatprep.subr.bf16.mxu0 0
      %6090 = vmatpush1.bf16.msra.mxu0 %v5989
      %6091 = vmatprep.subr.bf16.mxu0 0
      %6092 = vmatpush1.bf16.msra.mxu0 %v5992
      %6093 = vmatprep.subr.bf16.mxu0 0
      %6094 = vmatpush1.bf16.msra.mxu0 %v5995
      %6095 = vmatprep.subr.bf16.mxu0 0
      %6096 = vmatpush1.bf16.msra.mxu0 %v5998
      %6097 = vmatprep.subr.bf16.mxu0 0
      %6098 = vmatpush1.bf16.msra.mxu0 %v6001
      %6099 = vmatprep.subr.bf16.mxu0 0
      %6100 = vmatpush1.bf16.msra.mxu0 %v6004
      %6101 = vmatprep.subr.bf16.mxu0 0
      %6102 = vmatpush1.bf16.msra.mxu0 %v6007
      %6103 = vmatprep.subr.bf16.mxu0 0
      %6104 = vmatpush1.bf16.msra.mxu0 %v6010
      %6105 = vmatprep.subr.bf16.mxu0 0
      %6106 = vmatpush1.bf16.msra.mxu0 0
      %6107 = vmatprep.subr.bf16.mxu0 0
      %6108 = vmatpush1.bf16.msra.mxu0 0
      %6109 = vmatprep.subr.bf16.mxu0 0
      %6110 = vmatpush1.bf16.msra.mxu0 0
      %6111 = vmatprep.subr.bf16.mxu0 0
      %6112 = vmatpush1.bf16.msra.mxu0 0
      %6113 = vmatprep.subr.bf16.mxu0 0
      %6114 = vmatpush1.bf16.msra.mxu0 0
      %6115 = vmatprep.subr.bf16.mxu0 0
      %6116 = vmatpush1.bf16.msra.mxu0 0
      %6117 = vmatprep.mubr.bf16.mxu0 %v6042
      %6118 = vmatmul.mubr.bf16.gmra.mrb[0].mxu0 %v5872
      %v6119 = vpop.f32.mrb[0].mxu0
      %v6120 = vadd.f32 0.0, %v6119
      %v6121 = vpop.f32.mrb[0].mxu0
      %v6122 = vpop.f32.mrb[0].mxu0
      %v6123 = vpop.f32.mrb[0].mxu0
      %6124 = vdwg.mxu0
      %v6165 = vunpack.c.l.b16 %v5779
      %v6166 = vunpack.c.h.b16 %v5779
      %v6167 = vunpack.c.l.b16 %v5780
      %v6168 = vunpack.c.l.b16 %v5781
      %v6169 = vunpack.c.h.b16 %v5781
      %v6170 = vunpack.c.l.b16 %v5782
      %v6171 = vunpack.c.l.b16 %v5783
      %v6172 = vunpack.c.h.b16 %v5783
      %v6173 = vunpack.c.l.b16 %v5784
      %v6174 = vunpack.c.l.b16 %v5785
      %v6175 = vunpack.c.h.b16 %v5785
      %v6176 = vunpack.c.l.b16 %v5786
      %v6177 = vunpack.c.l.b16 %v5787
      %v6178 = vunpack.c.h.b16 %v5787
      %v6179 = vunpack.c.l.b16 %v5788
      %v6180 = vunpack.c.l.b16 %v5789
      %v6181 = vunpack.c.h.b16 %v5789
      %v6182 = vunpack.c.l.b16 %v5790
      %v6183 = vunpack.c.l.b16 %v5791
      %v6184 = vunpack.c.h.b16 %v5791
      %v6185 = vunpack.c.l.b16 %v5792
      %v6186 = vunpack.c.l.b16 %v5793
      %v6187 = vunpack.c.h.b16 %v5793
      %v6188 = vunpack.c.l.b16 %v5794
      %v6189 = vunpack.c.l.b16 %v5795
      %v6190 = vunpack.c.h.b16 %v5795
      %v6191 = vunpack.c.l.b16 %v5796
      %v6192 = vunpack.c.l.b16 %v5797
      %v6193 = vunpack.c.h.b16 %v5797
      %v6194 = vunpack.c.l.b16 %v5798
      %v6195 = vunpack.c.l.b16 %v5799
      %v6196 = vunpack.c.h.b16 %v5799
      %v6197 = vunpack.c.l.b16 %v5800
      %v6198 = vunpack.c.l.b16 %v5801
      %v6199 = vunpack.c.h.b16 %v5801
      %v6200 = vunpack.c.l.b16 %v5802
      %v6201 = vunpack.c.l.b16 %v5803
      %v6202 = vunpack.c.h.b16 %v5803
      %v6203 = vunpack.c.l.b16 %v5804
      %v6204 = vunpack.c.l.b16 %v5805
      %v6205 = vunpack.c.h.b16 %v5805
      %v6206 = vunpack.c.l.b16 %v5806
      %v6207 = vunpack.c.l.b16 %v5807
      %v6208 = vunpack.c.h.b16 %v5807
      %v6209 = vunpack.c.l.b16 %v5808
      %v6210 = vunpack.c.l.b16 %v5809
      %v6211 = vunpack.c.h.b16 %v5809
      %v6212 = vunpack.c.l.b16 %v5810
      %v6213 = vunpack.c.l.b16 %v5811
      %v6214 = vunpack.c.h.b16 %v5811
      %v6215 = vunpack.c.l.b16 %v5812
      %v6216 = vunpack.c.l.b16 %v5813
      %v6217 = vunpack.c.h.b16 %v5813
      %v6218 = vunpack.c.l.b16 %v5814
      %v6219 = vunpack.c.l.b16 %v5815
      %v6220 = vunpack.c.h.b16 %v5815
      %v6221 = vunpack.c.l.b16 %v5816
      %v6222 = vunpack.c.l.b16 %v5817
      %v6223 = vunpack.c.h.b16 %v5817
      %v6224 = vunpack.c.l.b16 %v5818
      %v6225 = vpack.c.b16 %v6168, %v6165
      %v6226 = vpack.c.b16 %v6169, %v6166
      %v6227 = vpack.c.b16 %v6170, %v6167
      %v6228 = vpack.c.b16 %v6174, %v6171
      %v6229 = vpack.c.b16 %v6175, %v6172
      %v6230 = vpack.c.b16 %v6176, %v6173
      %v6231 = vpack.c.b16 %v6180, %v6177
      %v6232 = vpack.c.b16 %v6181, %v6178
      %v6233 = vpack.c.b16 %v6182, %v6179
      %v6234 = vpack.c.b16 %v6186, %v6183
      %v6235 = vpack.c.b16 %v6187, %v6184
      %v6236 = vpack.c.b16 %v6188, %v6185
      %v6237 = vpack.c.b16 %v6192, %v6189
      %v6238 = vpack.c.b16 %v6193, %v6190
      %v6239 = vpack.c.b16 %v6194, %v6191
      %v6240 = vpack.c.b16 %v6198, %v6195
      %v6241 = vpack.c.b16 %v6199, %v6196
      %v6242 = vpack.c.b16 %v6200, %v6197
      %v6243 = vpack.c.b16 %v6204, %v6201
      %v6244 = vpack.c.b16 %v6205, %v6202
      %v6245 = vpack.c.b16 %v6206, %v6203
      %v6246 = vpack.c.b16 %v6210, %v6207
      %v6247 = vpack.c.b16 %v6211, %v6208
      %v6248 = vpack.c.b16 %v6212, %v6209
      %v6249 = vpack.c.b16 %v6216, %v6213
      %v6250 = vpack.c.b16 %v6217, %v6214
      %v6251 = vpack.c.b16 %v6218, %v6215
      %v6252 = vpack.c.b16 %v6222, %v6219
      %v6253 = vpack.c.b16 %v6223, %v6220
      %v6254 = vpack.c.b16 %v6224, %v6221
      %v6286 = vsel %vm693, %v5778, 0
      %6288 = vmatprep.subr.bf16.mxu0 %v6226
      %6289 = vmatpush1.bf16.msra.mxu0 %v6225
      %6290 = vmatprep.subr.bf16.mxu0 %v6229
      %6291 = vmatpush1.bf16.msra.mxu0 %v6228
      %6292 = vmatprep.subr.bf16.mxu0 %v6232
      %6293 = vmatpush1.bf16.msra.mxu0 %v6231
      %6294 = vmatprep.subr.bf16.mxu0 %v6235
      %6295 = vmatpush1.bf16.msra.mxu0 %v6234
      %6296 = vmatprep.subr.bf16.mxu0 %v6238
      %6297 = vmatpush1.bf16.msra.mxu0 %v6237
      %6298 = vmatprep.subr.bf16.mxu0 %v6241
      %6299 = vmatpush1.bf16.msra.mxu0 %v6240
      %6300 = vmatprep.subr.bf16.mxu0 %v6244
      %6301 = vmatpush1.bf16.msra.mxu0 %v6243
      %6302 = vmatprep.subr.bf16.mxu0 %v6247
      %6303 = vmatpush1.bf16.msra.mxu0 %v6246
      %6304 = vmatprep.subr.bf16.mxu0 %v6250
      %6305 = vmatpush1.bf16.msra.mxu0 %v6249
      %6306 = vmatprep.subr.bf16.mxu0 %v6253
      %6307 = vmatpush1.bf16.msra.mxu0 %v6252
      %6308 = vmatprep.subr.bf16.mxu0 0
      %6309 = vmatpush1.bf16.msra.mxu0 0
      %6310 = vmatprep.subr.bf16.mxu0 0
      %6311 = vmatpush1.bf16.msra.mxu0 0
      %6312 = vmatprep.subr.bf16.mxu0 0
      %6313 = vmatpush1.bf16.msra.mxu0 0
      %6314 = vmatprep.subr.bf16.mxu0 0
      %6315 = vmatpush1.bf16.msra.mxu0 0
      %6316 = vmatprep.subr.bf16.mxu0 0
      %6317 = vmatpush1.bf16.msra.mxu0 0
      %6318 = vmatprep.subr.bf16.mxu0 0
      %6319 = vmatpush1.bf16.msra.mxu0 0
      %6320 = vmatprep.mubr.bf16.mxu0 %v6286
      %6321 = vmatmul.mubr.bf16.gmra.mrb[0].mxu0 %v5777
      %v6322 = vpop.f32.mrb[0].mxu0
      %v6323 = vadd.f32 %v6079, %v6322
      %v6324 = vpop.f32.mrb[0].mxu0
      %v6325 = vadd.f32 %v6081, %v6324
      %v6326 = vpop.f32.mrb[0].mxu0
      %v6327 = vpop.f32.mrb[0].mxu0
      %6328 = vdwg.mxu0
      %6329 = vmatprep.subr.bf16.mxu0 0
      %6330 = vmatpush1.bf16.msra.mxu0 %v6227
      %6331 = vmatprep.subr.bf16.mxu0 0
      %6332 = vmatpush1.bf16.msra.mxu0 %v6230
      %6333 = vmatprep.subr.bf16.mxu0 0
      %6334 = vmatpush1.bf16.msra.mxu0 %v6233
      %6335 = vmatprep.subr.bf16.mxu0 0
      %6336 = vmatpush1.bf16.msra.mxu0 %v6236
      %6337 = vmatprep.subr.bf16.mxu0 0
      %6338 = vmatpush1.bf16.msra.mxu0 %v6239
      %6339 = vmatprep.subr.bf16.mxu0 0
      %6340 = vmatpush1.bf16.msra.mxu0 %v6242
      %6341 = vmatprep.subr.bf16.mxu0 0
      %6342 = vmatpush1.bf16.msra.mxu0 %v6245
      %6343 = vmatprep.subr.bf16.mxu0 0
      %6344 = vmatpush1.bf16.msra.mxu0 %v6248
      %6345 = vmatprep.subr.bf16.mxu0 0
      %6346 = vmatpush1.bf16.msra.mxu0 %v6251
      %6347 = vmatprep.subr.bf16.mxu0 0
      %6348 = vmatpush1.bf16.msra.mxu0 %v6254
      %6349 = vmatprep.subr.bf16.mxu0 0
      %6350 = vmatpush1.bf16.msra.mxu0 0
      %6351 = vmatprep.subr.bf16.mxu0 0
      %6352 = vmatpush1.bf16.msra.mxu0 0
      %6353 = vmatprep.subr.bf16.mxu0 0
      %6354 = vmatpush1.bf16.msra.mxu0 0
      %6355 = vmatprep.subr.bf16.mxu0 0
      %6356 = vmatpush1.bf16.msra.mxu0 0
      %6357 = vmatprep.subr.bf16.mxu0 0
      %6358 = vmatpush1.bf16.msra.mxu0 0
      %6359 = vmatprep.subr.bf16.mxu0 0
      %6360 = vmatpush1.bf16.msra.mxu0 0
      %6361 = vmatprep.mubr.bf16.mxu0 %v6286
      %6362 = vmatmul.mubr.bf16.gmra.mrb[0].mxu0 %v5777
      %v6363 = vpop.f32.mrb[0].mxu0
      %v6364 = vadd.f32 %v6120, %v6363
      %v6365 = vpop.f32.mrb[0].mxu0
      %v6366 = vpop.f32.mrb[0].mxu0
      %v6367 = vpop.f32.mrb[0].mxu0
      %6368 = vdwg.mxu0
      %v6369 = vld [vmem:[#allocation6] sm:$0xfc]
      %v6370 = vld [vmem:[#allocation6 + $0x8] sm:$0xfc]
      %v6371 = vld [vmem:[#allocation6 + $0x10] sm:$0x3]
      %v6372 = vld [vmem:[#allocation6 + $0x18] sm:$0x3]
      %v6373 = vpack.c.bf16 %v6371, %v6369
      %v6374 = vpack.c.bf16 %v6372, %v6370
      %s6375 = scalar_lea.vmem %s9, 480
      %v6376 = vld [vmem:[%s6375] sm:$0xff]
      %v6377 = vld [vmem:[%s6375 + $0x8] sm:$0xf]
      %v6378 = vld [vmem:[%s6375 + $0xc] sm:$0xff]
      %v6379 = vld [vmem:[%s6375 + $0x14] sm:$0xf]
      %v6380 = vld [vmem:[%s6375 + $0x18] sm:$0xff]
      %v6381 = vld [vmem:[%s6375 + $0x20] sm:$0xf]
      %v6382 = vld [vmem:[%s6375 + $0x24] sm:$0xff]
      %v6383 = vld [vmem:[%s6375 + $0x2c] sm:$0xf]
      %v6384 = vld [vmem:[%s6375 + $0x30] sm:$0xff]
      %v6385 = vld [vmem:[%s6375 + $0x38] sm:$0xf]
      %v6386 = vld [vmem:[%s6375 + $0x3c] sm:$0xff]
      %v6387 = vld [vmem:[%s6375 + $0x44] sm:$0xf]
      %v6388 = vld [vmem:[%s6375 + $0x48] sm:$0xff]
      %v6389 = vld [vmem:[%s6375 + $0x50] sm:$0xf]
      %v6390 = vld [vmem:[%s6375 + $0x54] sm:$0xff]
      %v6391 = vld [vmem:[%s6375 + $0x5c] sm:$0xf]
      %v6392 = vld [vmem:[%s6375 + $0x60] sm:$0xff]
      %v6393 = vld [vmem:[%s6375 + $0x68] sm:$0xf]
      %v6394 = vld [vmem:[%s6375 + $0x6c] sm:$0xff]
      %v6395 = vld [vmem:[%s6375 + $0x74] sm:$0xf]
      %v6396 = vld [vmem:[%s6375 + $0x78] sm:$0xff]
      %v6397 = vld [vmem:[%s6375 + $0x80] sm:$0xf]
      %v6398 = vld [vmem:[%s6375 + $0x84] sm:$0xff]
      %v6399 = vld [vmem:[%s6375 + $0x8c] sm:$0xf]
      %v6400 = vld [vmem:[%s6375 + $0x90] sm:$0xff]
      %v6401 = vld [vmem:[%s6375 + $0x98] sm:$0xf]
      %v6402 = vld [vmem:[%s6375 + $0x9c] sm:$0xff]
      %v6403 = vld [vmem:[%s6375 + $0xa4] sm:$0xf]
      %v6404 = vld [vmem:[%s6375 + $0xa8] sm:$0xff]
      %v6405 = vld [vmem:[%s6375 + $0xb0] sm:$0xf]
      %v6406 = vld [vmem:[%s6375 + $0xb4] sm:$0xff]
      %v6407 = vld [vmem:[%s6375 + $0xbc] sm:$0xf]
      %v6408 = vld [vmem:[%s6375 + $0xc0] sm:$0xff]
      %v6409 = vld [vmem:[%s6375 + $0xc8] sm:$0xf]
      %v6410 = vld [vmem:[%s6375 + $0xcc] sm:$0xff]
      %v6411 = vld [vmem:[%s6375 + $0xd4] sm:$0xf]
      %v6412 = vld [vmem:[%s6375 + $0xd8] sm:$0xff]
      %v6413 = vld [vmem:[%s6375 + $0xe0] sm:$0xf]
      %v6414 = vld [vmem:[%s6375 + $0xe4] sm:$0xff]
      %v6415 = vld [vmem:[%s6375 + $0xec] sm:$0xf]
      %v6418 = vrot.slane %v6373, 1
      %v6419 = vrot.slane %v6374, 1
      %v6461 = vunpack.c.l.b16 %v6376
      %v6462 = vunpack.c.h.b16 %v6376
      %v6463 = vunpack.c.l.b16 %v6377
      %v6464 = vunpack.c.l.b16 %v6378
      %v6465 = vunpack.c.h.b16 %v6378
      %v6466 = vunpack.c.l.b16 %v6379
      %v6467 = vunpack.c.l.b16 %v6380
      %v6468 = vunpack.c.h.b16 %v6380
      %v6469 = vunpack.c.l.b16 %v6381
      %v6470 = vunpack.c.l.b16 %v6382
      %v6471 = vunpack.c.h.b16 %v6382
      %v6472 = vunpack.c.l.b16 %v6383
      %v6473 = vunpack.c.l.b16 %v6384
      %v6474 = vunpack.c.h.b16 %v6384
      %v6475 = vunpack.c.l.b16 %v6385
      %v6476 = vunpack.c.l.b16 %v6386
      %v6477 = vunpack.c.h.b16 %v6386
      %v6478 = vunpack.c.l.b16 %v6387
      %v6479 = vunpack.c.l.b16 %v6388
      %v6480 = vunpack.c.h.b16 %v6388
      %v6481 = vunpack.c.l.b16 %v6389
      %v6482 = vunpack.c.l.b16 %v6390
      %v6483 = vunpack.c.h.b16 %v6390
      %v6484 = vunpack.c.l.b16 %v6391
      %v6485 = vunpack.c.l.b16 %v6392
      %v6486 = vunpack.c.h.b16 %v6392
      %v6487 = vunpack.c.l.b16 %v6393
      %v6488 = vunpack.c.l.b16 %v6394
      %v6489 = vunpack.c.h.b16 %v6394
      %v6490 = vunpack.c.l.b16 %v6395
      %v6491 = vunpack.c.l.b16 %v6396
      %v6492 = vunpack.c.h.b16 %v6396
      %v6493 = vunpack.c.l.b16 %v6397
      %v6494 = vunpack.c.l.b16 %v6398
      %v6495 = vunpack.c.h.b16 %v6398
      %v6496 = vunpack.c.l.b16 %v6399
      %v6497 = vunpack.c.l.b16 %v6400
      %v6498 = vunpack.c.h.b16 %v6400
      %v6499 = vunpack.c.l.b16 %v6401
      %v6500 = vunpack.c.l.b16 %v6402
      %v6501 = vunpack.c.h.b16 %v6402
      %v6502 = vunpack.c.l.b16 %v6403
      %v6503 = vunpack.c.l.b16 %v6404
      %v6504 = vunpack.c.h.b16 %v6404
      %v6505 = vunpack.c.l.b16 %v6405
      %v6506 = vunpack.c.l.b16 %v6406
      %v6507 = vunpack.c.h.b16 %v6406
      %v6508 = vunpack.c.l.b16 %v6407
      %v6509 = vunpack.c.l.b16 %v6408
      %v6510 = vunpack.c.h.b16 %v6408
      %v6511 = vunpack.c.l.b16 %v6409
      %v6512 = vunpack.c.l.b16 %v6410
      %v6513 = vunpack.c.h.b16 %v6410
      %v6514 = vunpack.c.l.b16 %v6411
      %v6515 = vunpack.c.l.b16 %v6412
      %v6516 = vunpack.c.h.b16 %v6412
      %v6517 = vunpack.c.l.b16 %v6413
      %v6518 = vunpack.c.l.b16 %v6414
      %v6519 = vunpack.c.h.b16 %v6414
      %v6520 = vunpack.c.l.b16 %v6415
      %v6521 = vpack.c.b16 %v6464, %v6461
      %v6522 = vpack.c.b16 %v6465, %v6462
      %v6523 = vpack.c.b16 %v6466, %v6463
      %v6524 = vpack.c.b16 %v6470, %v6467
      %v6525 = vpack.c.b16 %v6471, %v6468
      %v6526 = vpack.c.b16 %v6472, %v6469
      %v6527 = vpack.c.b16 %v6476, %v6473
      %v6528 = vpack.c.b16 %v6477, %v6474
      %v6529 = vpack.c.b16 %v6478, %v6475
      %v6530 = vpack.c.b16 %v6482, %v6479
      %v6531 = vpack.c.b16 %v6483, %v6480
      %v6532 = vpack.c.b16 %v6484, %v6481
      %v6533 = vpack.c.b16 %v6488, %v6485
      %v6534 = vpack.c.b16 %v6489, %v6486
      %v6535 = vpack.c.b16 %v6490, %v6487
      %v6536 = vpack.c.b16 %v6494, %v6491
      %v6537 = vpack.c.b16 %v6495, %v6492
      %v6538 = vpack.c.b16 %v6496, %v6493
      %v6539 = vpack.c.b16 %v6500, %v6497
      %v6540 = vpack.c.b16 %v6501, %v6498
      %v6541 = vpack.c.b16 %v6502, %v6499
      %v6542 = vpack.c.b16 %v6506, %v6503
      %v6543 = vpack.c.b16 %v6507, %v6504
      %v6544 = vpack.c.b16 %v6508, %v6505
      %v6545 = vpack.c.b16 %v6512, %v6509
      %v6546 = vpack.c.b16 %v6513, %v6510
      %v6547 = vpack.c.b16 %v6514, %v6511
      %v6548 = vpack.c.b16 %v6518, %v6515
      %v6549 = vpack.c.b16 %v6519, %v6516
      %v6550 = vpack.c.b16 %v6520, %v6517
      %v6582 = vsel %vm693, %v6419, 0
      %6584 = vmatprep.subr.bf16.mxu0 %v6522
      %6585 = vmatpush1.bf16.msra.mxu0 %v6521
      %6586 = vmatprep.subr.bf16.mxu0 %v6525
      %6587 = vmatpush1.bf16.msra.mxu0 %v6524
      %6588 = vmatprep.subr.bf16.mxu0 %v6528
      %6589 = vmatpush1.bf16.msra.mxu0 %v6527
      %6590 = vmatprep.subr.bf16.mxu0 %v6531
      %6591 = vmatpush1.bf16.msra.mxu0 %v6530
      %6592 = vmatprep.subr.bf16.mxu0 %v6534
      %6593 = vmatpush1.bf16.msra.mxu0 %v6533
      %6594 = vmatprep.subr.bf16.mxu0 %v6537
      %6595 = vmatpush1.bf16.msra.mxu0 %v6536
      %6596 = vmatprep.subr.bf16.mxu0 %v6540
      %6597 = vmatpush1.bf16.msra.mxu0 %v6539
      %6598 = vmatprep.subr.bf16.mxu0 %v6543
      %6599 = vmatpush1.bf16.msra.mxu0 %v6542
      %6600 = vmatprep.subr.bf16.mxu0 %v6546
      %6601 = vmatpush1.bf16.msra.mxu0 %v6545
      %6602 = vmatprep.subr.bf16.mxu0 %v6549
      %6603 = vmatpush1.bf16.msra.mxu0 %v6548
      %6604 = vmatprep.subr.bf16.mxu0 0
      %6605 = vmatpush1.bf16.msra.mxu0 0
      %6606 = vmatprep.subr.bf16.mxu0 0
      %6607 = vmatpush1.bf16.msra.mxu0 0
      %6608 = vmatprep.subr.bf16.mxu0 0
      %6609 = vmatpush1.bf16.msra.mxu0 0
      %6610 = vmatprep.subr.bf16.mxu0 0
      %6611 = vmatpush1.bf16.msra.mxu0 0
      %6612 = vmatprep.subr.bf16.mxu0 0
      %6613 = vmatpush1.bf16.msra.mxu0 0
      %6614 = vmatprep.subr.bf16.mxu0 0
      %6615 = vmatpush1.bf16.msra.mxu0 0
      %6616 = vmatprep.mubr.bf16.mxu0 %v6582
      %6617 = vmatmul.mubr.bf16.gmra.mrb[0].mxu0 %v6418
      %v6618 = vpop.f32.mrb[0].mxu0
      %v6619 = vadd.f32 0.0, %v6618
      %v6620 = vpop.f32.mrb[0].mxu0
      %v6621 = vadd.f32 0.0, %v6620
      %v6622 = vpop.f32.mrb[0].mxu0
      %v6623 = vpop.f32.mrb[0].mxu0
      %6624 = vdwg.mxu0
      %6625 = vmatprep.subr.bf16.mxu0 0
      %6626 = vmatpush1.bf16.msra.mxu0 %v6523
      %6627 = vmatprep.subr.bf16.mxu0 0
      %6628 = vmatpush1.bf16.msra.mxu0 %v6526
      %6629 = vmatprep.subr.bf16.mxu0 0
      %6630 = vmatpush1.bf16.msra.mxu0 %v6529
      %6631 = vmatprep.subr.bf16.mxu0 0
      %6632 = vmatpush1.bf16.msra.mxu0 %v6532
      %6633 = vmatprep.subr.bf16.mxu0 0
      %6634 = vmatpush1.bf16.msra.mxu0 %v6535
      %6635 = vmatprep.subr.bf16.mxu0 0
      %6636 = vmatpush1.bf16.msra.mxu0 %v6538
      %6637 = vmatprep.subr.bf16.mxu0 0
      %6638 = vmatpush1.bf16.msra.mxu0 %v6541
      %6639 = vmatprep.subr.bf16.mxu0 0
      %6640 = vmatpush1.bf16.msra.mxu0 %v6544
      %6641 = vmatprep.subr.bf16.mxu0 0
      %6642 = vmatpush1.bf16.msra.mxu0 %v6547
      %6643 = vmatprep.subr.bf16.mxu0 0
      %6644 = vmatpush1.bf16.msra.mxu0 %v6550
      %6645 = vmatprep.subr.bf16.mxu0 0
      %6646 = vmatpush1.bf16.msra.mxu0 0
      %6647 = vmatprep.subr.bf16.mxu0 0
      %6648 = vmatpush1.bf16.msra.mxu0 0
      %6649 = vmatprep.subr.bf16.mxu0 0
      %6650 = vmatpush1.bf16.msra.mxu0 0
      %6651 = vmatprep.subr.bf16.mxu0 0
      %6652 = vmatpush1.bf16.msra.mxu0 0
      %6653 = vmatprep.subr.bf16.mxu0 0
      %6654 = vmatpush1.bf16.msra.mxu0 0
      %6655 = vmatprep.subr.bf16.mxu0 0
      %6656 = vmatpush1.bf16.msra.mxu0 0
      %6657 = vmatprep.mubr.bf16.mxu0 %v6582
      %6658 = vmatmul.mubr.bf16.gmra.mrb[0].mxu0 %v6418
      %v6659 = vpop.f32.mrb[0].mxu0
      %v6660 = vadd.f32 0.0, %v6659
      %v6661 = vpop.f32.mrb[0].mxu0
      %v6662 = vpop.f32.mrb[0].mxu0
      %v6663 = vpop.f32.mrb[0].mxu0
      %6664 = vdwg.mxu0
      %v6665 = vadd.f32 %v6323, %v6619
      %v6666 = vadd.f32 %v6325, %v6621
      %v6667 = vadd.f32 %v6364, %v6660
      %v6668 = vld [vmem:[%s10] sm:$0x7]
      %v6670 = vlaneseq
      %v6671 = vshrl.u32 %v6670, 7
      %v6672 = vsub.s32 0, %v6671
      %v6673 = vrot.slane %v6668, %v6672
      %v6674 = vlaneseq
      %v6675 = vshrl.u32 %v6674, 7
      %v6676 = vsub.s32 1, %v6675
      %v6677 = vrot.slane %v6668, %v6676
      %v6678 = vlaneseq
      %v6679 = vshrl.u32 %v6678, 7
      %v6680 = vsub.s32 2, %v6679
      %v6681 = vrot.slane %v6668, %v6680
      %v6685 = vadd.f32 %v6665, %v6673
      %v6686 = vadd.f32 %v6666, %v6677
      %v6687 = vadd.f32 %v6667, %v6681
      %vm6688 = vcmp.ge.f32.partialorder %v6685, 0.0
      %vm6689 = vcmp.ge.f32.partialorder %v6686, 0.0
      %vm6690 = vcmp.ge.f32.partialorder %v6687, 0.0
      %v6691 = vmul.f32 %v6685, 0.1
      %v6692 = vmul.f32 %v6686, 0.1
      %v6693 = vmul.f32 %v6687, 0.1
      %v6694 = vsel %vm6688, %v6685, %v6691
      %v6695 = vsel %vm6689, %v6686, %v6692
      %v6696 = vsel %vm6690, %v6687, %v6693
      %v6700 = vrot.slane %v6694, 7
      %v6701 = vrot.slane %v6695, 7
      %v6702 = vrot.slane %v6696, 7
      %6706 = vst [vmem:[#allocation7] sm:$0xfe] %v6700
      %6707 = vst [vmem:[#allocation7 + $0x8] sm:$0xfe] %v6701
      %vm6708 = vcmask 523265
      %6709 = vst.msk [vmem:[#allocation7 + $0x10] sm:$0xfe] %vm6708, %v6702
      %6710 = vst [vmem:[#allocation7 + $0x18] sm:$0x1] %v6700
      %6711 = vst [vmem:[#allocation7 + $0x20] sm:$0x1] %v6701
      %vm6712 = vcmask 516096
      %6713 = vst.msk [vmem:[#allocation7 + $0x28] sm:$0x1] %vm6712, %v6702
      %v6714 = vld [vmem:[#allocation7] ss:$8 sm:$0x7]
      %vm6715 = vcmp.lt.s32.totalorder %v1866, 320
      %vm6716 = vmand %vm1867, %vm6715
      %6717 = vst.msk [vmem:[#allocation12] ss:$8 sm:$0x7] %vm6716, %v6714
      %6718 = vst.msk [vmem:[#allocation12] ss:$8 sm:$0x0] %vm6716, %v6714
      %s6719 = scalar_lea.vmem [#allocation7], 1
      %v6720 = vld [vmem:[%s6719] ss:$8 sm:$0x7]
      %s6721 = scalar_lea.vmem [#allocation12], 5
      %6722 = vst.msk [vmem:[%s6721] ss:$8 sm:$0x7] %vm6716, %v6720
      %6723 = vst.msk [vmem:[%s6721] ss:$8 sm:$0x0] %vm6716, %v6720
      %s6724 = scalar_lea.vmem [#allocation7], 2
      %v6725 = vld [vmem:[%s6724] ss:$8 sm:$0x7]
      %s6726 = scalar_lea.vmem [#allocation12], 1
      %6727 = vst.msk [vmem:[%s6726] ss:$8 sm:$0x7] %vm6716, %v6725
      %6728 = vst.msk [vmem:[%s6726] ss:$8 sm:$0x0] %vm6716, %v6725
      %s6729 = scalar_lea.vmem [#allocation7], 3
      %v6730 = vld [vmem:[%s6729] ss:$8 sm:$0x7]
      %s6731 = scalar_lea.vmem [#allocation12], 6
      %6732 = vst.msk [vmem:[%s6731] ss:$8 sm:$0x7] %vm6716, %v6730
      %6733 = vst.msk [vmem:[%s6731] ss:$8 sm:$0x0] %vm6716, %v6730
      %s6734 = scalar_lea.vmem [#allocation7], 4
      %v6735 = vld [vmem:[%s6734] ss:$8 sm:$0x7]
      %s6736 = scalar_lea.vmem [#allocation12], 2
      %6737 = vst.msk [vmem:[%s6736] ss:$8 sm:$0x7] %vm6716, %v6735
      %6738 = vst.msk [vmem:[%s6736] ss:$8 sm:$0x0] %vm6716, %v6735
      %s6739 = scalar_lea.vmem [#allocation7], 5
      %v6740 = vld [vmem:[%s6739] ss:$8 sm:$0x7]
      %s6741 = scalar_lea.vmem [#allocation12], 7
      %6742 = vst.msk [vmem:[%s6741] ss:$8 sm:$0x7] %vm6716, %v6740
      %6743 = vst.msk [vmem:[%s6741] ss:$8 sm:$0x0] %vm6716, %v6740
      %s6744 = scalar_lea.vmem [#allocation7], 6
      %v6745 = vld [vmem:[%s6744] ss:$8 sm:$0x7]
      %s6746 = scalar_lea.vmem [#allocation12], 3
      %6747 = vst.msk [vmem:[%s6746] ss:$8 sm:$0x7] %vm6716, %v6745
      %6748 = vst.msk [vmem:[%s6746] ss:$8 sm:$0x0] %vm6716, %v6745
      %s6749 = scalar_lea.vmem [#allocation7], 7
      %v6750 = vld [vmem:[%s6749] ss:$8 sm:$0x7]
      %s6751 = scalar_lea.vmem [#allocation12], 24
      %6752 = vst.msk [vmem:[%s6751] ss:$8 sm:$0x7] %vm6716, %v6750
      %6753 = vst.msk [vmem:[%s6751] ss:$8 sm:$0x0] %vm6716, %v6750
      %s6754 = scalar_lea.vmem [#allocation7], 24
      %v6755 = vld [vmem:[%s6754] ss:$8 sm:$0x7]
      %s6756 = scalar_lea.vmem [#allocation12], 4
      %6757 = vst.msk [vmem:[%s6756] ss:$8 sm:$0x7] %vm6716, %v6755
      %6758 = vst.msk [vmem:[%s6756] ss:$8 sm:$0x0] %vm6716, %v6755
      %s6759 = scalar_lea.vmem [#allocation7], 25
      %v6760 = vld [vmem:[%s6759] ss:$8 sm:$0x7]
      %s6761 = scalar_lea.vmem [#allocation12], 25
      %6762 = vst.msk [vmem:[%s6761] ss:$8 sm:$0x7] %vm6716, %v6760
      %6763 = vst.msk [vmem:[%s6761] ss:$8 sm:$0x0] %vm6716, %v6760
      %v6764 = vld [vmem:[#allocation12] sm:$0xf]
      %v6765 = vld [vmem:[#allocation12 + $0x8] sm:$0xf]
      %v6766 = vld [vmem:[#allocation12 + $0x10] sm:$0xf]
      %v6767 = vpack.c.bf16 %v6764, %v6764
      %v6768 = vpack.c.bf16 %v6765, %v6765
      %v6769 = vpack.c.bf16 %v6766, %v6766
      %v6770 = vld [vmem:[%s11] sm:$0xff]
      %v6771 = vld [vmem:[%s11 + $0x8] sm:$0xff]
      %v6772 = vld [vmem:[%s11 + $0x10] sm:$0xff]
      %v6773 = vld [vmem:[%s11 + $0x18] sm:$0xff]
      %v6774 = vld [vmem:[%s11 + $0x20] sm:$0xff]
      %v6775 = vld [vmem:[%s11 + $0x28] sm:$0xff]
      %v6776 = vld [vmem:[%s11 + $0x30] sm:$0xff]
      %v6777 = vld [vmem:[%s11 + $0x38] sm:$0xff]
      %v6778 = vld [vmem:[%s11 + $0x40] sm:$0xff]
      %v6779 = vld [vmem:[%s11 + $0x48] sm:$0xff]
      %v6780 = vld [vmem:[%s11 + $0x50] sm:$0xff]
      %v6781 = vld [vmem:[%s11 + $0x58] sm:$0xff]
      %v6782 = vld [vmem:[%s11 + $0x60] sm:$0xff]
      %v6783 = vld [vmem:[%s11 + $0x68] sm:$0xff]
      %v6784 = vld [vmem:[%s11 + $0x70] sm:$0xff]
      %v6785 = vld [vmem:[%s11 + $0x78] sm:$0xff]
      %v6786 = vld [vmem:[%s11 + $0x80] sm:$0xff]
      %v6787 = vld [vmem:[%s11 + $0x88] sm:$0xff]
      %v6788 = vld [vmem:[%s11 + $0x90] sm:$0xff]
      %v6789 = vld [vmem:[%s11 + $0x98] sm:$0xff]
      %v6790 = vld [vmem:[%s11 + $0xa0] sm:$0xff]
      %v6791 = vld [vmem:[%s11 + $0xa8] sm:$0xff]
      %v6792 = vld [vmem:[%s11 + $0xb0] sm:$0xff]
      %v6793 = vld [vmem:[%s11 + $0xb8] sm:$0xff]
      %v6794 = vld [vmem:[%s11 + $0xc0] sm:$0xff]
      %v6795 = vld [vmem:[%s11 + $0xc8] sm:$0xff]
      %v6796 = vld [vmem:[%s11 + $0xd0] sm:$0xff]
      %v6797 = vld [vmem:[%s11 + $0xd8] sm:$0xff]
      %v6798 = vld [vmem:[%s11 + $0xe0] sm:$0xff]
      %v6799 = vld [vmem:[%s11 + $0xe8] sm:$0xff]
      %v6800 = vld [vmem:[%s11 + $0xf0] sm:$0xff]
      %v6801 = vld [vmem:[%s11 + $0xf8] sm:$0xff]
      %v6802 = vld [vmem:[%s11 + $0x100] sm:$0xff]
      %v6803 = vld [vmem:[%s11 + $0x108] sm:$0xff]
      %v6804 = vld [vmem:[%s11 + $0x110] sm:$0xff]
      %v6805 = vld [vmem:[%s11 + $0x118] sm:$0xff]
      %v6806 = vld [vmem:[%s11 + $0x120] sm:$0xff]
      %v6807 = vld [vmem:[%s11 + $0x128] sm:$0xff]
      %v6808 = vld [vmem:[%s11 + $0x130] sm:$0xff]
      %v6809 = vld [vmem:[%s11 + $0x138] sm:$0xff]
      %v6810 = vld [vmem:[#allocation12] sm:$0xe0]
      %v6811 = vld [vmem:[#allocation12 + $0x8] sm:$0xe0]
      %v6812 = vld [vmem:[#allocation12 + $0x10] sm:$0xe0]
      %v6813 = vld [vmem:[#allocation12 + $0x18] sm:$0x1]
      %v6814 = vld [vmem:[#allocation12 + $0x20] sm:$0x1]
      %v6815 = vld [vmem:[#allocation12 + $0x28] sm:$0x1]
      %v6816 = vpack.c.bf16 %v6813, %v6810
      %v6817 = vpack.c.bf16 %v6814, %v6811
      %v6818 = vpack.c.bf16 %v6815, %v6812
      %s6819 = scalar_lea.vmem %s11, 320
      %v6820 = vld [vmem:[%s6819] sm:$0xff]
      %v6821 = vld [vmem:[%s6819 + $0x8] sm:$0xff]
      %v6822 = vld [vmem:[%s6819 + $0x10] sm:$0xff]
      %v6823 = vld [vmem:[%s6819 + $0x18] sm:$0xff]
      %v6824 = vld [vmem:[%s6819 + $0x20] sm:$0xff]
      %v6825 = vld [vmem:[%s6819 + $0x28] sm:$0xff]
      %v6826 = vld [vmem:[%s6819 + $0x30] sm:$0xff]
      %v6827 = vld [vmem:[%s6819 + $0x38] sm:$0xff]
      %v6828 = vld [vmem:[%s6819 + $0x40] sm:$0xff]
      %v6829 = vld [vmem:[%s6819 + $0x48] sm:$0xff]
      %v6830 = vld [vmem:[%s6819 + $0x50] sm:$0xff]
      %v6831 = vld [vmem:[%s6819 + $0x58] sm:$0xff]
      %v6832 = vld [vmem:[%s6819 + $0x60] sm:$0xff]
      %v6833 = vld [vmem:[%s6819 + $0x68] sm:$0xff]
      %v6834 = vld [vmem:[%s6819 + $0x70] sm:$0xff]
      %v6835 = vld [vmem:[%s6819 + $0x78] sm:$0xff]
      %v6836 = vld [vmem:[%s6819 + $0x80] sm:$0xff]
      %v6837 = vld [vmem:[%s6819 + $0x88] sm:$0xff]
      %v6838 = vld [vmem:[%s6819 + $0x90] sm:$0xff]
      %v6839 = vld [vmem:[%s6819 + $0x98] sm:$0xff]
      %v6840 = vld [vmem:[%s6819 + $0xa0] sm:$0xff]
      %v6841 = vld [vmem:[%s6819 + $0xa8] sm:$0xff]
      %v6842 = vld [vmem:[%s6819 + $0xb0] sm:$0xff]
      %v6843 = vld [vmem:[%s6819 + $0xb8] sm:$0xff]
      %v6844 = vld [vmem:[%s6819 + $0xc0] sm:$0xff]
      %v6845 = vld [vmem:[%s6819 + $0xc8] sm:$0xff]
      %v6846 = vld [vmem:[%s6819 + $0xd0] sm:$0xff]
      %v6847 = vld [vmem:[%s6819 + $0xd8] sm:$0xff]
      %v6848 = vld [vmem:[%s6819 + $0xe0] sm:$0xff]
      %v6849 = vld [vmem:[%s6819 + $0xe8] sm:$0xff]
      %v6850 = vld [vmem:[%s6819 + $0xf0] sm:$0xff]
      %v6851 = vld [vmem:[%s6819 + $0xf8] sm:$0xff]
      %v6852 = vld [vmem:[%s6819 + $0x100] sm:$0xff]
      %v6853 = vld [vmem:[%s6819 + $0x108] sm:$0xff]
      %v6854 = vld [vmem:[%s6819 + $0x110] sm:$0xff]
      %v6855 = vld [vmem:[%s6819 + $0x118] sm:$0xff]
      %v6856 = vld [vmem:[%s6819 + $0x120] sm:$0xff]
      %v6857 = vld [vmem:[%s6819 + $0x128] sm:$0xff]
      %v6858 = vld [vmem:[%s6819 + $0x130] sm:$0xff]
      %v6859 = vld [vmem:[%s6819 + $0x138] sm:$0xff]
      %v6861 = vshrl.u32 %v6816, 16
      %v6863 = vrot.slane %v6861, 2
      %v6864 = vshll.u32 %v6816, 16
      %v6866 = vrot.slane %v6864, 3
      %v6867 = vor.u32 %v6863, %v6866
      %v6869 = vshrl.u32 %v6817, 16
      %v6871 = vrot.slane %v6869, 2
      %v6872 = vshll.u32 %v6817, 16
      %v6874 = vrot.slane %v6872, 3
      %v6875 = vor.u32 %v6871, %v6874
      %v6877 = vshrl.u32 %v6818, 16
      %v6879 = vrot.slane %v6877, 2
      %v6880 = vshll.u32 %v6818, 16
      %v6882 = vrot.slane %v6880, 3
      %v6883 = vor.u32 %v6879, %v6882
      %v6926 = vunpack.c.l.b16 %v6820
      %v6927 = vunpack.c.h.b16 %v6820
      %v6928 = vunpack.c.l.b16 %v6821
      %v6929 = vunpack.c.h.b16 %v6821
      %v6930 = vunpack.c.l.b16 %v6822
      %v6931 = vunpack.c.h.b16 %v6822
      %v6932 = vunpack.c.l.b16 %v6823
      %v6933 = vunpack.c.h.b16 %v6823
      %v6934 = vunpack.c.l.b16 %v6824
      %v6935 = vunpack.c.h.b16 %v6824
      %v6936 = vunpack.c.l.b16 %v6825
      %v6937 = vunpack.c.h.b16 %v6825
      %v6938 = vunpack.c.l.b16 %v6826
      %v6939 = vunpack.c.h.b16 %v6826
      %v6940 = vunpack.c.l.b16 %v6827
      %v6941 = vunpack.c.h.b16 %v6827
      %v6942 = vunpack.c.l.b16 %v6828
      %v6943 = vunpack.c.h.b16 %v6828
      %v6944 = vunpack.c.l.b16 %v6829
      %v6945 = vunpack.c.h.b16 %v6829
      %v6946 = vunpack.c.l.b16 %v6830
      %v6947 = vunpack.c.h.b16 %v6830
      %v6948 = vunpack.c.l.b16 %v6831
      %v6949 = vunpack.c.h.b16 %v6831
      %v6950 = vunpack.c.l.b16 %v6832
      %v6951 = vunpack.c.h.b16 %v6832
      %v6952 = vunpack.c.l.b16 %v6833
      %v6953 = vunpack.c.h.b16 %v6833
      %v6954 = vunpack.c.l.b16 %v6834
      %v6955 = vunpack.c.h.b16 %v6834
      %v6956 = vunpack.c.l.b16 %v6835
      %v6957 = vunpack.c.h.b16 %v6835
      %v6958 = vunpack.c.l.b16 %v6836
      %v6959 = vunpack.c.h.b16 %v6836
      %v6960 = vunpack.c.l.b16 %v6837
      %v6961 = vunpack.c.h.b16 %v6837
      %v6962 = vunpack.c.l.b16 %v6838
      %v6963 = vunpack.c.h.b16 %v6838
      %v6964 = vunpack.c.l.b16 %v6839
      %v6965 = vunpack.c.h.b16 %v6839
      %v6966 = vunpack.c.l.b16 %v6840
      %v6967 = vunpack.c.h.b16 %v6840
      %v6968 = vunpack.c.l.b16 %v6841
      %v6969 = vunpack.c.h.b16 %v6841
      %v6970 = vunpack.c.l.b16 %v6842
      %v6971 = vunpack.c.h.b16 %v6842
      %v6972 = vunpack.c.l.b16 %v6843
      %v6973 = vunpack.c.h.b16 %v6843
      %v6974 = vunpack.c.l.b16 %v6844
      %v6975 = vunpack.c.h.b16 %v6844
      %v6976 = vunpack.c.l.b16 %v6845
      %v6977 = vunpack.c.h.b16 %v6845
      %v6978 = vunpack.c.l.b16 %v6846
      %v6979 = vunpack.c.h.b16 %v6846
      %v6980 = vunpack.c.l.b16 %v6847
      %v6981 = vunpack.c.h.b16 %v6847
      %v6982 = vunpack.c.l.b16 %v6848
      %v6983 = vunpack.c.h.b16 %v6848
      %v6984 = vunpack.c.l.b16 %v6849
      %v6985 = vunpack.c.h.b16 %v6849
      %v6986 = vunpack.c.l.b16 %v6850
      %v6987 = vunpack.c.h.b16 %v6850
      %v6988 = vunpack.c.l.b16 %v6851
      %v6989 = vunpack.c.h.b16 %v6851
      %v6990 = vunpack.c.l.b16 %v6852
      %v6991 = vunpack.c.h.b16 %v6852
      %v6992 = vunpack.c.l.b16 %v6853
      %v6993 = vunpack.c.h.b16 %v6853
      %v6994 = vunpack.c.l.b16 %v6854
      %v6995 = vunpack.c.h.b16 %v6854
      %v6996 = vunpack.c.l.b16 %v6855
      %v6997 = vunpack.c.h.b16 %v6855
      %v6998 = vunpack.c.l.b16 %v6856
      %v6999 = vunpack.c.h.b16 %v6856
      %v7000 = vunpack.c.l.b16 %v6857
      %v7001 = vunpack.c.h.b16 %v6857
      %v7002 = vunpack.c.l.b16 %v6858
      %v7003 = vunpack.c.h.b16 %v6858
      %v7004 = vunpack.c.l.b16 %v6859
      %v7005 = vunpack.c.h.b16 %v6859
      %v7006 = vpack.c.b16 %v6928, %v6926
      %v7007 = vpack.c.b16 %v6929, %v6927
      %v7008 = vpack.c.b16 %v6932, %v6930
      %v7009 = vpack.c.b16 %v6933, %v6931
      %v7010 = vpack.c.b16 %v6936, %v6934
      %v7011 = vpack.c.b16 %v6937, %v6935
      %v7012 = vpack.c.b16 %v6940, %v6938
      %v7013 = vpack.c.b16 %v6941, %v6939
      %v7014 = vpack.c.b16 %v6944, %v6942
      %v7015 = vpack.c.b16 %v6945, %v6943
      %v7016 = vpack.c.b16 %v6948, %v6946
      %v7017 = vpack.c.b16 %v6949, %v6947
      %v7018 = vpack.c.b16 %v6952, %v6950
      %v7019 = vpack.c.b16 %v6953, %v6951
      %v7020 = vpack.c.b16 %v6956, %v6954
      %v7021 = vpack.c.b16 %v6957, %v6955
      %v7022 = vpack.c.b16 %v6960, %v6958
      %v7023 = vpack.c.b16 %v6961, %v6959
      %v7024 = vpack.c.b16 %v6964, %v6962
      %v7025 = vpack.c.b16 %v6965, %v6963
      %v7026 = vpack.c.b16 %v6968, %v6966
      %v7027 = vpack.c.b16 %v6969, %v6967
      %v7028 = vpack.c.b16 %v6972, %v6970
      %v7029 = vpack.c.b16 %v6973, %v6971
      %v7030 = vpack.c.b16 %v6976, %v6974
      %v7031 = vpack.c.b16 %v6977, %v6975
      %v7032 = vpack.c.b16 %v6980, %v6978
      %v7033 = vpack.c.b16 %v6981, %v6979
      %v7034 = vpack.c.b16 %v6984, %v6982
      %v7035 = vpack.c.b16 %v6985, %v6983
      %v7036 = vpack.c.b16 %v6988, %v6986
      %v7037 = vpack.c.b16 %v6989, %v6987
      %v7038 = vpack.c.b16 %v6992, %v6990
      %v7039 = vpack.c.b16 %v6993, %v6991
      %v7040 = vpack.c.b16 %v6996, %v6994
      %v7041 = vpack.c.b16 %v6997, %v6995
      %v7042 = vpack.c.b16 %v7000, %v6998
      %v7043 = vpack.c.b16 %v7001, %v6999
      %v7044 = vpack.c.b16 %v7004, %v7002
      %v7045 = vpack.c.b16 %v7005, %v7003
      %v7087 = vsel %vm708, %v6883, 0
      %7089 = vmatprep.subr.bf16.mxu0 %v7007
      %7090 = vmatpush1.bf16.msra.mxu0 %v7006
      %7091 = vmatprep.subr.bf16.mxu0 %v7009
      %7092 = vmatpush1.bf16.msra.mxu0 %v7008
      %7093 = vmatprep.subr.bf16.mxu0 %v7011
      %7094 = vmatpush1.bf16.msra.mxu0 %v7010
      %7095 = vmatprep.subr.bf16.mxu0 %v7013
      %7096 = vmatpush1.bf16.msra.mxu0 %v7012
      %7097 = vmatprep.subr.bf16.mxu0 %v7015
      %7098 = vmatpush1.bf16.msra.mxu0 %v7014
      %7099 = vmatprep.subr.bf16.mxu0 %v7017
      %7100 = vmatpush1.bf16.msra.mxu0 %v7016
      %7101 = vmatprep.subr.bf16.mxu0 %v7019
      %7102 = vmatpush1.bf16.msra.mxu0 %v7018
      %7103 = vmatprep.subr.bf16.mxu0 %v7021
      %7104 = vmatpush1.bf16.msra.mxu0 %v7020
      %7105 = vmatprep.subr.bf16.mxu0 %v7023
      %7106 = vmatpush1.bf16.msra.mxu0 %v7022
      %7107 = vmatprep.subr.bf16.mxu0 %v7025
      %7108 = vmatpush1.bf16.msra.mxu0 %v7024
      %7109 = vmatprep.subr.bf16.mxu0 %v7027
      %7110 = vmatpush1.bf16.msra.mxu0 %v7026
      %7111 = vmatprep.subr.bf16.mxu0 %v7029
      %7112 = vmatpush1.bf16.msra.mxu0 %v7028
      %7113 = vmatprep.subr.bf16.mxu0 %v7031
      %7114 = vmatpush1.bf16.msra.mxu0 %v7030
      %7115 = vmatprep.subr.bf16.mxu0 %v7033
      %7116 = vmatpush1.bf16.msra.mxu0 %v7032
      %7117 = vmatprep.subr.bf16.mxu0 %v7035
      %7118 = vmatpush1.bf16.msra.mxu0 %v7034
      %7119 = vmatprep.subr.bf16.mxu0 %v7037
      %7120 = vmatpush1.bf16.msra.mxu0 %v7036
      %7121 = vmatprep.mubr.bf16.mxu0 %v6875
      %7122 = vmatmul.mubr.bf16.gmra.mrb[0].mxu0 %v6867
      %v7123 = vpop.f32.mrb[0].mxu0
      %v7124 = vadd.f32 0.0, %v7123
      %v7125 = vpop.f32.mrb[0].mxu0
      %v7126 = vadd.f32 0.0, %v7125
      %v7127 = vpop.f32.mrb[0].mxu0
      %v7128 = vpop.f32.mrb[0].mxu0
      %7129 = vdwg.mxu0
      %7130 = vmatprep.subr.bf16.mxu0 %v7039
      %7131 = vmatpush1.bf16.msra.mxu0 %v7038
      %7132 = vmatprep.subr.bf16.mxu0 %v7041
      %7133 = vmatpush1.bf16.msra.mxu0 %v7040
      %7134 = vmatprep.subr.bf16.mxu0 %v7043
      %7135 = vmatpush1.bf16.msra.mxu0 %v7042
      %7136 = vmatprep.subr.bf16.mxu0 %v7045
      %7137 = vmatpush1.bf16.msra.mxu0 %v7044
      %7138 = vmatprep.subr.bf16.mxu0 0
      %7139 = vmatpush1.bf16.msra.mxu0 0
      %7140 = vmatprep.subr.bf16.mxu0 0
      %7141 = vmatpush1.bf16.msra.mxu0 0
      %7142 = vmatprep.subr.bf16.mxu0 0
      %7143 = vmatpush1.bf16.msra.mxu0 0
      %7144 = vmatprep.subr.bf16.mxu0 0
      %7145 = vmatpush1.bf16.msra.mxu0 0
      %7146 = vmatprep.subr.bf16.mxu0 0
      %7147 = vmatpush1.bf16.msra.mxu0 0
      %7148 = vmatprep.subr.bf16.mxu0 0
      %7149 = vmatpush1.bf16.msra.mxu0 0
      %7150 = vmatprep.subr.bf16.mxu0 0
      %7151 = vmatpush1.bf16.msra.mxu0 0
      %7152 = vmatprep.subr.bf16.mxu0 0
      %7153 = vmatpush1.bf16.msra.mxu0 0
      %7154 = vmatprep.subr.bf16.mxu0 0
      %7155 = vmatpush1.bf16.msra.mxu0 0
      %7156 = vmatprep.subr.bf16.mxu0 0
      %7157 = vmatpush1.bf16.msra.mxu0 0
      %7158 = vmatprep.subr.bf16.mxu0 0
      %7159 = vmatpush1.bf16.msra.mxu0 0
      %7160 = vmatprep.subr.bf16.mxu0 0
      %7161 = vmatpush1.bf16.msra.mxu0 0
      %7162 = vmatprep.mubr.bf16.mxu0 0
      %7163 = vmatmul.mubr.bf16.gmra.mrb[0].mxu0 %v7087
      %v7164 = vpop.f32.mrb[0].mxu0
      %v7165 = vadd.f32 %v7124, %v7164
      %v7166 = vpop.f32.mrb[0].mxu0
      %v7167 = vadd.f32 %v7126, %v7166
      %v7168 = vpop.f32.mrb[0].mxu0
      %v7169 = vpop.f32.mrb[0].mxu0
      %7170 = vdwg.mxu0
      %v7211 = vunpack.c.l.b16 %v6770
      %v7212 = vunpack.c.h.b16 %v6770
      %v7213 = vunpack.c.l.b16 %v6771
      %v7214 = vunpack.c.h.b16 %v6771
      %v7215 = vunpack.c.l.b16 %v6772
      %v7216 = vunpack.c.h.b16 %v6772
      %v7217 = vunpack.c.l.b16 %v6773
      %v7218 = vunpack.c.h.b16 %v6773
      %v7219 = vunpack.c.l.b16 %v6774
      %v7220 = vunpack.c.h.b16 %v6774
      %v7221 = vunpack.c.l.b16 %v6775
      %v7222 = vunpack.c.h.b16 %v6775
      %v7223 = vunpack.c.l.b16 %v6776
      %v7224 = vunpack.c.h.b16 %v6776
      %v7225 = vunpack.c.l.b16 %v6777
      %v7226 = vunpack.c.h.b16 %v6777
      %v7227 = vunpack.c.l.b16 %v6778
      %v7228 = vunpack.c.h.b16 %v6778
      %v7229 = vunpack.c.l.b16 %v6779
      %v7230 = vunpack.c.h.b16 %v6779
      %v7231 = vunpack.c.l.b16 %v6780
      %v7232 = vunpack.c.h.b16 %v6780
      %v7233 = vunpack.c.l.b16 %v6781
      %v7234 = vunpack.c.h.b16 %v6781
      %v7235 = vunpack.c.l.b16 %v6782
      %v7236 = vunpack.c.h.b16 %v6782
      %v7237 = vunpack.c.l.b16 %v6783
      %v7238 = vunpack.c.h.b16 %v6783
      %v7239 = vunpack.c.l.b16 %v6784
      %v7240 = vunpack.c.h.b16 %v6784
      %v7241 = vunpack.c.l.b16 %v6785
      %v7242 = vunpack.c.h.b16 %v6785
      %v7243 = vunpack.c.l.b16 %v6786
      %v7244 = vunpack.c.h.b16 %v6786
      %v7245 = vunpack.c.l.b16 %v6787
      %v7246 = vunpack.c.h.b16 %v6787
      %v7247 = vunpack.c.l.b16 %v6788
      %v7248 = vunpack.c.h.b16 %v6788
      %v7249 = vunpack.c.l.b16 %v6789
      %v7250 = vunpack.c.h.b16 %v6789
      %v7251 = vunpack.c.l.b16 %v6790
      %v7252 = vunpack.c.h.b16 %v6790
      %v7253 = vunpack.c.l.b16 %v6791
      %v7254 = vunpack.c.h.b16 %v6791
      %v7255 = vunpack.c.l.b16 %v6792
      %v7256 = vunpack.c.h.b16 %v6792
      %v7257 = vunpack.c.l.b16 %v6793
      %v7258 = vunpack.c.h.b16 %v6793
      %v7259 = vunpack.c.l.b16 %v6794
      %v7260 = vunpack.c.h.b16 %v6794
      %v7261 = vunpack.c.l.b16 %v6795
      %v7262 = vunpack.c.h.b16 %v6795
      %v7263 = vunpack.c.l.b16 %v6796
      %v7264 = vunpack.c.h.b16 %v6796
      %v7265 = vunpack.c.l.b16 %v6797
      %v7266 = vunpack.c.h.b16 %v6797
      %v7267 = vunpack.c.l.b16 %v6798
      %v7268 = vunpack.c.h.b16 %v6798
      %v7269 = vunpack.c.l.b16 %v6799
      %v7270 = vunpack.c.h.b16 %v6799
      %v7271 = vunpack.c.l.b16 %v6800
      %v7272 = vunpack.c.h.b16 %v6800
      %v7273 = vunpack.c.l.b16 %v6801
      %v7274 = vunpack.c.h.b16 %v6801
      %v7275 = vunpack.c.l.b16 %v6802
      %v7276 = vunpack.c.h.b16 %v6802
      %v7277 = vunpack.c.l.b16 %v6803
      %v7278 = vunpack.c.h.b16 %v6803
      %v7279 = vunpack.c.l.b16 %v6804
      %v7280 = vunpack.c.h.b16 %v6804
      %v7281 = vunpack.c.l.b16 %v6805
      %v7282 = vunpack.c.h.b16 %v6805
      %v7283 = vunpack.c.l.b16 %v6806
      %v7284 = vunpack.c.h.b16 %v6806
      %v7285 = vunpack.c.l.b16 %v6807
      %v7286 = vunpack.c.h.b16 %v6807
      %v7287 = vunpack.c.l.b16 %v6808
      %v7288 = vunpack.c.h.b16 %v6808
      %v7289 = vunpack.c.l.b16 %v6809
      %v7290 = vunpack.c.h.b16 %v6809
      %v7291 = vpack.c.b16 %v7213, %v7211
      %v7292 = vpack.c.b16 %v7214, %v7212
      %v7293 = vpack.c.b16 %v7217, %v7215
      %v7294 = vpack.c.b16 %v7218, %v7216
      %v7295 = vpack.c.b16 %v7221, %v7219
      %v7296 = vpack.c.b16 %v7222, %v7220
      %v7297 = vpack.c.b16 %v7225, %v7223
      %v7298 = vpack.c.b16 %v7226, %v7224
      %v7299 = vpack.c.b16 %v7229, %v7227
      %v7300 = vpack.c.b16 %v7230, %v7228
      %v7301 = vpack.c.b16 %v7233, %v7231
      %v7302 = vpack.c.b16 %v7234, %v7232
      %v7303 = vpack.c.b16 %v7237, %v7235
      %v7304 = vpack.c.b16 %v7238, %v7236
      %v7305 = vpack.c.b16 %v7241, %v7239
      %v7306 = vpack.c.b16 %v7242, %v7240
      %v7307 = vpack.c.b16 %v7245, %v7243
      %v7308 = vpack.c.b16 %v7246, %v7244
      %v7309 = vpack.c.b16 %v7249, %v7247
      %v7310 = vpack.c.b16 %v7250, %v7248
      %v7311 = vpack.c.b16 %v7253, %v7251
      %v7312 = vpack.c.b16 %v7254, %v7252
      %v7313 = vpack.c.b16 %v7257, %v7255
      %v7314 = vpack.c.b16 %v7258, %v7256
      %v7315 = vpack.c.b16 %v7261, %v7259
      %v7316 = vpack.c.b16 %v7262, %v7260
      %v7317 = vpack.c.b16 %v7265, %v7263
      %v7318 = vpack.c.b16 %v7266, %v7264
      %v7319 = vpack.c.b16 %v7269, %v7267
      %v7320 = vpack.c.b16 %v7270, %v7268
      %v7321 = vpack.c.b16 %v7273, %v7271
      %v7322 = vpack.c.b16 %v7274, %v7272
      %v7323 = vpack.c.b16 %v7277, %v7275
      %v7324 = vpack.c.b16 %v7278, %v7276
      %v7325 = vpack.c.b16 %v7281, %v7279
      %v7326 = vpack.c.b16 %v7282, %v7280
      %v7327 = vpack.c.b16 %v7285, %v7283
      %v7328 = vpack.c.b16 %v7286, %v7284
      %v7329 = vpack.c.b16 %v7289, %v7287
      %v7330 = vpack.c.b16 %v7290, %v7288
      %v7372 = vsel %vm708, %v6769, 0
      %7374 = vmatprep.subr.bf16.mxu0 %v7292
      %7375 = vmatpush1.bf16.msra.mxu0 %v7291
      %7376 = vmatprep.subr.bf16.mxu0 %v7294
      %7377 = vmatpush1.bf16.msra.mxu0 %v7293
      %7378 = vmatprep.subr.bf16.mxu0 %v7296
      %7379 = vmatpush1.bf16.msra.mxu0 %v7295
      %7380 = vmatprep.subr.bf16.mxu0 %v7298
      %7381 = vmatpush1.bf16.msra.mxu0 %v7297
      %7382 = vmatprep.subr.bf16.mxu0 %v7300
      %7383 = vmatpush1.bf16.msra.mxu0 %v7299
      %7384 = vmatprep.subr.bf16.mxu0 %v7302
      %7385 = vmatpush1.bf16.msra.mxu0 %v7301
      %7386 = vmatprep.subr.bf16.mxu0 %v7304
      %7387 = vmatpush1.bf16.msra.mxu0 %v7303
      %7388 = vmatprep.subr.bf16.mxu0 %v7306
      %7389 = vmatpush1.bf16.msra.mxu0 %v7305
      %7390 = vmatprep.subr.bf16.mxu0 %v7308
      %7391 = vmatpush1.bf16.msra.mxu0 %v7307
      %7392 = vmatprep.subr.bf16.mxu0 %v7310
      %7393 = vmatpush1.bf16.msra.mxu0 %v7309
      %7394 = vmatprep.subr.bf16.mxu0 %v7312
      %7395 = vmatpush1.bf16.msra.mxu0 %v7311
      %7396 = vmatprep.subr.bf16.mxu0 %v7314
      %7397 = vmatpush1.bf16.msra.mxu0 %v7313
      %7398 = vmatprep.subr.bf16.mxu0 %v7316
      %7399 = vmatpush1.bf16.msra.mxu0 %v7315
      %7400 = vmatprep.subr.bf16.mxu0 %v7318
      %7401 = vmatpush1.bf16.msra.mxu0 %v7317
      %7402 = vmatprep.subr.bf16.mxu0 %v7320
      %7403 = vmatpush1.bf16.msra.mxu0 %v7319
      %7404 = vmatprep.subr.bf16.mxu0 %v7322
      %7405 = vmatpush1.bf16.msra.mxu0 %v7321
      %7406 = vmatprep.mubr.bf16.mxu0 %v6768
      %7407 = vmatmul.mubr.bf16.gmra.mrb[0].mxu0 %v6767
      %v7408 = vpop.f32.mrb[0].mxu0
      %v7409 = vadd.f32 %v7165, %v7408
      %v7410 = vpop.f32.mrb[0].mxu0
      %v7411 = vadd.f32 %v7167, %v7410
      %v7412 = vpop.f32.mrb[0].mxu0
      %v7413 = vpop.f32.mrb[0].mxu0
      %7414 = vdwg.mxu0
      %7415 = vmatprep.subr.bf16.mxu0 %v7324
      %7416 = vmatpush1.bf16.msra.mxu0 %v7323
      %7417 = vmatprep.subr.bf16.mxu0 %v7326
      %7418 = vmatpush1.bf16.msra.mxu0 %v7325
      %7419 = vmatprep.subr.bf16.mxu0 %v7328
      %7420 = vmatpush1.bf16.msra.mxu0 %v7327
      %7421 = vmatprep.subr.bf16.mxu0 %v7330
      %7422 = vmatpush1.bf16.msra.mxu0 %v7329
      %7423 = vmatprep.subr.bf16.mxu0 0
      %7424 = vmatpush1.bf16.msra.mxu0 0
      %7425 = vmatprep.subr.bf16.mxu0 0
      %7426 = vmatpush1.bf16.msra.mxu0 0
      %7427 = vmatprep.subr.bf16.mxu0 0
      %7428 = vmatpush1.bf16.msra.mxu0 0
      %7429 = vmatprep.subr.bf16.mxu0 0
      %7430 = vmatpush1.bf16.msra.mxu0 0
      %7431 = vmatprep.subr.bf16.mxu0 0
      %7432 = vmatpush1.bf16.msra.mxu0 0
      %7433 = vmatprep.subr.bf16.mxu0 0
      %7434 = vmatpush1.bf16.msra.mxu0 0
      %7435 = vmatprep.subr.bf16.mxu0 0
      %7436 = vmatpush1.bf16.msra.mxu0 0
      %7437 = vmatprep.subr.bf16.mxu0 0
      %7438 = vmatpush1.bf16.msra.mxu0 0
      %7439 = vmatprep.subr.bf16.mxu0 0
      %7440 = vmatpush1.bf16.msra.mxu0 0
      %7441 = vmatprep.subr.bf16.mxu0 0
      %7442 = vmatpush1.bf16.msra.mxu0 0
      %7443 = vmatprep.subr.bf16.mxu0 0
      %7444 = vmatpush1.bf16.msra.mxu0 0
      %7445 = vmatprep.subr.bf16.mxu0 0
      %7446 = vmatpush1.bf16.msra.mxu0 0
      %7447 = vmatprep.mubr.bf16.mxu0 0
      %7448 = vmatmul.mubr.bf16.gmra.mrb[0].mxu0 %v7372
      %v7449 = vpop.f32.mrb[0].mxu0
      %v7450 = vadd.f32 %v7409, %v7449
      %v7451 = vpop.f32.mrb[0].mxu0
      %v7452 = vadd.f32 %v7411, %v7451
      %v7453 = vpop.f32.mrb[0].mxu0
      %v7454 = vpop.f32.mrb[0].mxu0
      %7455 = vdwg.mxu0
      %v7456 = vld [vmem:[#allocation12] sm:$0x1e]
      %v7457 = vld [vmem:[#allocation12 + $0x8] sm:$0x1e]
      %v7458 = vld [vmem:[#allocation12 + $0x10] sm:$0x1e]
      %v7459 = vpack.c.bf16 %v7456, %v7456
      %v7460 = vpack.c.bf16 %v7457, %v7457
      %v7461 = vpack.c.bf16 %v7458, %v7458
      %s7462 = scalar_lea.vmem %s11, 640
      %v7463 = vld [vmem:[%s7462] sm:$0xff]
      %v7464 = vld [vmem:[%s7462 + $0x8] sm:$0xff]
      %v7465 = vld [vmem:[%s7462 + $0x10] sm:$0xff]
      %v7466 = vld [vmem:[%s7462 + $0x18] sm:$0xff]
      %v7467 = vld [vmem:[%s7462 + $0x20] sm:$0xff]
      %v7468 = vld [vmem:[%s7462 + $0x28] sm:$0xff]
      %v7469 = vld [vmem:[%s7462 + $0x30] sm:$0xff]
      %v7470 = vld [vmem:[%s7462 + $0x38] sm:$0xff]
      %v7471 = vld [vmem:[%s7462 + $0x40] sm:$0xff]
      %v7472 = vld [vmem:[%s7462 + $0x48] sm:$0xff]
      %v7473 = vld [vmem:[%s7462 + $0x50] sm:$0xff]
      %v7474 = vld [vmem:[%s7462 + $0x58] sm:$0xff]
      %v7475 = vld [vmem:[%s7462 + $0x60] sm:$0xff]
      %v7476 = vld [vmem:[%s7462 + $0x68] sm:$0xff]
      %v7477 = vld [vmem:[%s7462 + $0x70] sm:$0xff]
      %v7478 = vld [vmem:[%s7462 + $0x78] sm:$0xff]
      %v7479 = vld [vmem:[%s7462 + $0x80] sm:$0xff]
      %v7480 = vld [vmem:[%s7462 + $0x88] sm:$0xff]
      %v7481 = vld [vmem:[%s7462 + $0x90] sm:$0xff]
      %v7482 = vld [vmem:[%s7462 + $0x98] sm:$0xff]
      %v7483 = vld [vmem:[%s7462 + $0xa0] sm:$0xff]
      %v7484 = vld [vmem:[%s7462 + $0xa8] sm:$0xff]
      %v7485 = vld [vmem:[%s7462 + $0xb0] sm:$0xff]
      %v7486 = vld [vmem:[%s7462 + $0xb8] sm:$0xff]
      %v7487 = vld [vmem:[%s7462 + $0xc0] sm:$0xff]
      %v7488 = vld [vmem:[%s7462 + $0xc8] sm:$0xff]
      %v7489 = vld [vmem:[%s7462 + $0xd0] sm:$0xff]
      %v7490 = vld [vmem:[%s7462 + $0xd8] sm:$0xff]
      %v7491 = vld [vmem:[%s7462 + $0xe0] sm:$0xff]
      %v7492 = vld [vmem:[%s7462 + $0xe8] sm:$0xff]
      %v7493 = vld [vmem:[%s7462 + $0xf0] sm:$0xff]
      %v7494 = vld [vmem:[%s7462 + $0xf8] sm:$0xff]
      %v7495 = vld [vmem:[%s7462 + $0x100] sm:$0xff]
      %v7496 = vld [vmem:[%s7462 + $0x108] sm:$0xff]
      %v7497 = vld [vmem:[%s7462 + $0x110] sm:$0xff]
      %v7498 = vld [vmem:[%s7462 + $0x118] sm:$0xff]
      %v7499 = vld [vmem:[%s7462 + $0x120] sm:$0xff]
      %v7500 = vld [vmem:[%s7462 + $0x128] sm:$0xff]
      %v7501 = vld [vmem:[%s7462 + $0x130] sm:$0xff]
      %v7502 = vld [vmem:[%s7462 + $0x138] sm:$0xff]
      %v7504 = vshrl.u32 %v7459, 16
      %v7506 = vshll.u32 %v7459, 16
      %v7508 = vrot.slane %v7506, 1
      %v7509 = vor.u32 %v7504, %v7508
      %v7511 = vshrl.u32 %v7460, 16
      %v7513 = vshll.u32 %v7460, 16
      %v7515 = vrot.slane %v7513, 1
      %v7516 = vor.u32 %v7511, %v7515
      %v7518 = vshrl.u32 %v7461, 16
      %v7520 = vshll.u32 %v7461, 16
      %v7522 = vrot.slane %v7520, 1
      %v7523 = vor.u32 %v7518, %v7522
      %v7566 = vunpack.c.l.b16 %v7463
      %v7567 = vunpack.c.h.b16 %v7463
      %v7568 = vunpack.c.l.b16 %v7464
      %v7569 = vunpack.c.h.b16 %v7464
      %v7570 = vunpack.c.l.b16 %v7465
      %v7571 = vunpack.c.h.b16 %v7465
      %v7572 = vunpack.c.l.b16 %v7466
      %v7573 = vunpack.c.h.b16 %v7466
      %v7574 = vunpack.c.l.b16 %v7467
      %v7575 = vunpack.c.h.b16 %v7467
      %v7576 = vunpack.c.l.b16 %v7468
      %v7577 = vunpack.c.h.b16 %v7468
      %v7578 = vunpack.c.l.b16 %v7469
      %v7579 = vunpack.c.h.b16 %v7469
      %v7580 = vunpack.c.l.b16 %v7470
      %v7581 = vunpack.c.h.b16 %v7470
      %v7582 = vunpack.c.l.b16 %v7471
      %v7583 = vunpack.c.h.b16 %v7471
      %v7584 = vunpack.c.l.b16 %v7472
      %v7585 = vunpack.c.h.b16 %v7472
      %v7586 = vunpack.c.l.b16 %v7473
      %v7587 = vunpack.c.h.b16 %v7473
      %v7588 = vunpack.c.l.b16 %v7474
      %v7589 = vunpack.c.h.b16 %v7474
      %v7590 = vunpack.c.l.b16 %v7475
      %v7591 = vunpack.c.h.b16 %v7475
      %v7592 = vunpack.c.l.b16 %v7476
      %v7593 = vunpack.c.h.b16 %v7476
      %v7594 = vunpack.c.l.b16 %v7477
      %v7595 = vunpack.c.h.b16 %v7477
      %v7596 = vunpack.c.l.b16 %v7478
      %v7597 = vunpack.c.h.b16 %v7478
      %v7598 = vunpack.c.l.b16 %v7479
      %v7599 = vunpack.c.h.b16 %v7479
      %v7600 = vunpack.c.l.b16 %v7480
      %v7601 = vunpack.c.h.b16 %v7480
      %v7602 = vunpack.c.l.b16 %v7481
      %v7603 = vunpack.c.h.b16 %v7481
      %v7604 = vunpack.c.l.b16 %v7482
      %v7605 = vunpack.c.h.b16 %v7482
      %v7606 = vunpack.c.l.b16 %v7483
      %v7607 = vunpack.c.h.b16 %v7483
      %v7608 = vunpack.c.l.b16 %v7484
      %v7609 = vunpack.c.h.b16 %v7484
      %v7610 = vunpack.c.l.b16 %v7485
      %v7611 = vunpack.c.h.b16 %v7485
      %v7612 = vunpack.c.l.b16 %v7486
      %v7613 = vunpack.c.h.b16 %v7486
      %v7614 = vunpack.c.l.b16 %v7487
      %v7615 = vunpack.c.h.b16 %v7487
      %v7616 = vunpack.c.l.b16 %v7488
      %v7617 = vunpack.c.h.b16 %v7488
      %v7618 = vunpack.c.l.b16 %v7489
      %v7619 = vunpack.c.h.b16 %v7489
      %v7620 = vunpack.c.l.b16 %v7490
      %v7621 = vunpack.c.h.b16 %v7490
      %v7622 = vunpack.c.l.b16 %v7491
      %v7623 = vunpack.c.h.b16 %v7491
      %v7624 = vunpack.c.l.b16 %v7492
      %v7625 = vunpack.c.h.b16 %v7492
      %v7626 = vunpack.c.l.b16 %v7493
      %v7627 = vunpack.c.h.b16 %v7493
      %v7628 = vunpack.c.l.b16 %v7494
      %v7629 = vunpack.c.h.b16 %v7494
      %v7630 = vunpack.c.l.b16 %v7495
      %v7631 = vunpack.c.h.b16 %v7495
      %v7632 = vunpack.c.l.b16 %v7496
      %v7633 = vunpack.c.h.b16 %v7496
      %v7634 = vunpack.c.l.b16 %v7497
      %v7635 = vunpack.c.h.b16 %v7497
      %v7636 = vunpack.c.l.b16 %v7498
      %v7637 = vunpack.c.h.b16 %v7498
      %v7638 = vunpack.c.l.b16 %v7499
      %v7639 = vunpack.c.h.b16 %v7499
      %v7640 = vunpack.c.l.b16 %v7500
      %v7641 = vunpack.c.h.b16 %v7500
      %v7642 = vunpack.c.l.b16 %v7501
      %v7643 = vunpack.c.h.b16 %v7501
      %v7644 = vunpack.c.l.b16 %v7502
      %v7645 = vunpack.c.h.b16 %v7502
      %v7646 = vpack.c.b16 %v7568, %v7566
      %v7647 = vpack.c.b16 %v7569, %v7567
      %v7648 = vpack.c.b16 %v7572, %v7570
      %v7649 = vpack.c.b16 %v7573, %v7571
      %v7650 = vpack.c.b16 %v7576, %v7574
      %v7651 = vpack.c.b16 %v7577, %v7575
      %v7652 = vpack.c.b16 %v7580, %v7578
      %v7653 = vpack.c.b16 %v7581, %v7579
      %v7654 = vpack.c.b16 %v7584, %v7582
      %v7655 = vpack.c.b16 %v7585, %v7583
      %v7656 = vpack.c.b16 %v7588, %v7586
      %v7657 = vpack.c.b16 %v7589, %v7587
      %v7658 = vpack.c.b16 %v7592, %v7590
      %v7659 = vpack.c.b16 %v7593, %v7591
      %v7660 = vpack.c.b16 %v7596, %v7594
      %v7661 = vpack.c.b16 %v7597, %v7595
      %v7662 = vpack.c.b16 %v7600, %v7598
      %v7663 = vpack.c.b16 %v7601, %v7599
      %v7664 = vpack.c.b16 %v7604, %v7602
      %v7665 = vpack.c.b16 %v7605, %v7603
      %v7666 = vpack.c.b16 %v7608, %v7606
      %v7667 = vpack.c.b16 %v7609, %v7607
      %v7668 = vpack.c.b16 %v7612, %v7610
      %v7669 = vpack.c.b16 %v7613, %v7611
      %v7670 = vpack.c.b16 %v7616, %v7614
      %v7671 = vpack.c.b16 %v7617, %v7615
      %v7672 = vpack.c.b16 %v7620, %v7618
      %v7673 = vpack.c.b16 %v7621, %v7619
      %v7674 = vpack.c.b16 %v7624, %v7622
      %v7675 = vpack.c.b16 %v7625, %v7623
      %v7676 = vpack.c.b16 %v7628, %v7626
      %v7677 = vpack.c.b16 %v7629, %v7627
      %v7678 = vpack.c.b16 %v7632, %v7630
      %v7679 = vpack.c.b16 %v7633, %v7631
      %v7680 = vpack.c.b16 %v7636, %v7634
      %v7681 = vpack.c.b16 %v7637, %v7635
      %v7682 = vpack.c.b16 %v7640, %v7638
      %v7683 = vpack.c.b16 %v7641, %v7639
      %v7684 = vpack.c.b16 %v7644, %v7642
      %v7685 = vpack.c.b16 %v7645, %v7643
      %v7727 = vsel %vm708, %v7523, 0
      %7729 = vmatprep.subr.bf16.mxu0 %v7647
      %7730 = vmatpush1.bf16.msra.mxu0 %v7646
      %7731 = vmatprep.subr.bf16.mxu0 %v7649
      %7732 = vmatpush1.bf16.msra.mxu0 %v7648
      %7733 = vmatprep.subr.bf16.mxu0 %v7651
      %7734 = vmatpush1.bf16.msra.mxu0 %v7650
      %7735 = vmatprep.subr.bf16.mxu0 %v7653
      %7736 = vmatpush1.bf16.msra.mxu0 %v7652
      %7737 = vmatprep.subr.bf16.mxu0 %v7655
      %7738 = vmatpush1.bf16.msra.mxu0 %v7654
      %7739 = vmatprep.subr.bf16.mxu0 %v7657
      %7740 = vmatpush1.bf16.msra.mxu0 %v7656
      %7741 = vmatprep.subr.bf16.mxu0 %v7659
      %7742 = vmatpush1.bf16.msra.mxu0 %v7658
      %7743 = vmatprep.subr.bf16.mxu0 %v7661
      %7744 = vmatpush1.bf16.msra.mxu0 %v7660
      %7745 = vmatprep.subr.bf16.mxu0 %v7663
      %7746 = vmatpush1.bf16.msra.mxu0 %v7662
      %7747 = vmatprep.subr.bf16.mxu0 %v7665
      %7748 = vmatpush1.bf16.msra.mxu0 %v7664
      %7749 = vmatprep.subr.bf16.mxu0 %v7667
      %7750 = vmatpush1.bf16.msra.mxu0 %v7666
      %7751 = vmatprep.subr.bf16.mxu0 %v7669
      %7752 = vmatpush1.bf16.msra.mxu0 %v7668
      %7753 = vmatprep.subr.bf16.mxu0 %v7671
      %7754 = vmatpush1.bf16.msra.mxu0 %v7670
      %7755 = vmatprep.subr.bf16.mxu0 %v7673
      %7756 = vmatpush1.bf16.msra.mxu0 %v7672
      %7757 = vmatprep.subr.bf16.mxu0 %v7675
      %7758 = vmatpush1.bf16.msra.mxu0 %v7674
      %7759 = vmatprep.subr.bf16.mxu0 %v7677
      %7760 = vmatpush1.bf16.msra.mxu0 %v7676
      %7761 = vmatprep.mubr.bf16.mxu0 %v7516
      %7762 = vmatmul.mubr.bf16.gmra.mrb[0].mxu0 %v7509
      %v7763 = vpop.f32.mrb[0].mxu0
      %v7764 = vadd.f32 0.0, %v7763
      %v7765 = vpop.f32.mrb[0].mxu0
      %v7766 = vadd.f32 0.0, %v7765
      %v7767 = vpop.f32.mrb[0].mxu0
      %v7768 = vpop.f32.mrb[0].mxu0
      %7769 = vdwg.mxu0
      %7770 = vmatprep.subr.bf16.mxu0 %v7679
      %7771 = vmatpush1.bf16.msra.mxu0 %v7678
      %7772 = vmatprep.subr.bf16.mxu0 %v7681
      %7773 = vmatpush1.bf16.msra.mxu0 %v7680
      %7774 = vmatprep.subr.bf16.mxu0 %v7683
      %7775 = vmatpush1.bf16.msra.mxu0 %v7682
      %7776 = vmatprep.subr.bf16.mxu0 %v7685
      %7777 = vmatpush1.bf16.msra.mxu0 %v7684
      %7778 = vmatprep.subr.bf16.mxu0 0
      %7779 = vmatpush1.bf16.msra.mxu0 0
      %7780 = vmatprep.subr.bf16.mxu0 0
      %7781 = vmatpush1.bf16.msra.mxu0 0
      %7782 = vmatprep.subr.bf16.mxu0 0
      %7783 = vmatpush1.bf16.msra.mxu0 0
      %7784 = vmatprep.subr.bf16.mxu0 0
      %7785 = vmatpush1.bf16.msra.mxu0 0
      %7786 = vmatprep.subr.bf16.mxu0 0
      %7787 = vmatpush1.bf16.msra.mxu0 0
      %7788 = vmatprep.subr.bf16.mxu0 0
      %7789 = vmatpush1.bf16.msra.mxu0 0
      %7790 = vmatprep.subr.bf16.mxu0 0
      %7791 = vmatpush1.bf16.msra.mxu0 0
      %7792 = vmatprep.subr.bf16.mxu0 0
      %7793 = vmatpush1.bf16.msra.mxu0 0
      %7794 = vmatprep.subr.bf16.mxu0 0
      %7795 = vmatpush1.bf16.msra.mxu0 0
      %7796 = vmatprep.subr.bf16.mxu0 0
      %7797 = vmatpush1.bf16.msra.mxu0 0
      %7798 = vmatprep.subr.bf16.mxu0 0
      %7799 = vmatpush1.bf16.msra.mxu0 0
      %7800 = vmatprep.subr.bf16.mxu0 0
      %7801 = vmatpush1.bf16.msra.mxu0 0
      %7802 = vmatprep.mubr.bf16.mxu0 0
      %7803 = vmatmul.mubr.bf16.gmra.mrb[0].mxu0 %v7727
      %v7804 = vpop.f32.mrb[0].mxu0
      %v7805 = vadd.f32 %v7764, %v7804
      %v7806 = vpop.f32.mrb[0].mxu0
      %v7807 = vadd.f32 %v7766, %v7806
      %v7808 = vpop.f32.mrb[0].mxu0
      %v7809 = vpop.f32.mrb[0].mxu0
      %7810 = vdwg.mxu0
      %v7811 = vadd.f32 %v7450, %v7805
      %v7812 = vadd.f32 %v7452, %v7807
      %v7813 = vld [vmem:[#allocation12] sm:$0xc0]
      %v7814 = vld [vmem:[#allocation12 + $0x8] sm:$0xc0]
      %v7815 = vld [vmem:[#allocation12 + $0x10] sm:$0xc0]
      %v7816 = vld [vmem:[#allocation12 + $0x18] sm:$0x3]
      %v7817 = vld [vmem:[#allocation12 + $0x20] sm:$0x3]
      %v7818 = vld [vmem:[#allocation12 + $0x28] sm:$0x3]
      %v7819 = vpack.c.bf16 %v7816, %v7813
      %v7820 = vpack.c.bf16 %v7817, %v7814
      %v7821 = vpack.c.bf16 %v7818, %v7815
      %s7822 = scalar_lea.vmem %s11, 960
      %v7823 = vld [vmem:[%s7822] sm:$0xff]
      %v7824 = vld [vmem:[%s7822 + $0x8] sm:$0xff]
      %v7825 = vld [vmem:[%s7822 + $0x10] sm:$0xff]
      %v7826 = vld [vmem:[%s7822 + $0x18] sm:$0xff]
      %v7827 = vld [vmem:[%s7822 + $0x20] sm:$0xff]
      %v7828 = vld [vmem:[%s7822 + $0x28] sm:$0xff]
      %v7829 = vld [vmem:[%s7822 + $0x30] sm:$0xff]
      %v7830 = vld [vmem:[%s7822 + $0x38] sm:$0xff]
      %v7831 = vld [vmem:[%s7822 + $0x40] sm:$0xff]
      %v7832 = vld [vmem:[%s7822 + $0x48] sm:$0xff]
      %v7833 = vld [vmem:[%s7822 + $0x50] sm:$0xff]
      %v7834 = vld [vmem:[%s7822 + $0x58] sm:$0xff]
      %v7835 = vld [vmem:[%s7822 + $0x60] sm:$0xff]
      %v7836 = vld [vmem:[%s7822 + $0x68] sm:$0xff]
      %v7837 = vld [vmem:[%s7822 + $0x70] sm:$0xff]
      %v7838 = vld [vmem:[%s7822 + $0x78] sm:$0xff]
      %v7839 = vld [vmem:[%s7822 + $0x80] sm:$0xff]
      %v7840 = vld [vmem:[%s7822 + $0x88] sm:$0xff]
      %v7841 = vld [vmem:[%s7822 + $0x90] sm:$0xff]
      %v7842 = vld [vmem:[%s7822 + $0x98] sm:$0xff]
      %v7843 = vld [vmem:[%s7822 + $0xa0] sm:$0xff]
      %v7844 = vld [vmem:[%s7822 + $0xa8] sm:$0xff]
      %v7845 = vld [vmem:[%s7822 + $0xb0] sm:$0xff]
      %v7846 = vld [vmem:[%s7822 + $0xb8] sm:$0xff]
      %v7847 = vld [vmem:[%s7822 + $0xc0] sm:$0xff]
      %v7848 = vld [vmem:[%s7822 + $0xc8] sm:$0xff]
      %v7849 = vld [vmem:[%s7822 + $0xd0] sm:$0xff]
      %v7850 = vld [vmem:[%s7822 + $0xd8] sm:$0xff]
      %v7851 = vld [vmem:[%s7822 + $0xe0] sm:$0xff]
      %v7852 = vld [vmem:[%s7822 + $0xe8] sm:$0xff]
      %v7853 = vld [vmem:[%s7822 + $0xf0] sm:$0xff]
      %v7854 = vld [vmem:[%s7822 + $0xf8] sm:$0xff]
      %v7855 = vld [vmem:[%s7822 + $0x100] sm:$0xff]
      %v7856 = vld [vmem:[%s7822 + $0x108] sm:$0xff]
      %v7857 = vld [vmem:[%s7822 + $0x110] sm:$0xff]
      %v7858 = vld [vmem:[%s7822 + $0x118] sm:$0xff]
      %v7859 = vld [vmem:[%s7822 + $0x120] sm:$0xff]
      %v7860 = vld [vmem:[%s7822 + $0x128] sm:$0xff]
      %v7861 = vld [vmem:[%s7822 + $0x130] sm:$0xff]
      %v7862 = vld [vmem:[%s7822 + $0x138] sm:$0xff]
      %v7866 = vrot.slane %v7819, 3
      %v7867 = vrot.slane %v7820, 3
      %v7868 = vrot.slane %v7821, 3
      %v7911 = vunpack.c.l.b16 %v7823
      %v7912 = vunpack.c.h.b16 %v7823
      %v7913 = vunpack.c.l.b16 %v7824
      %v7914 = vunpack.c.h.b16 %v7824
      %v7915 = vunpack.c.l.b16 %v7825
      %v7916 = vunpack.c.h.b16 %v7825
      %v7917 = vunpack.c.l.b16 %v7826
      %v7918 = vunpack.c.h.b16 %v7826
      %v7919 = vunpack.c.l.b16 %v7827
      %v7920 = vunpack.c.h.b16 %v7827
      %v7921 = vunpack.c.l.b16 %v7828
      %v7922 = vunpack.c.h.b16 %v7828
      %v7923 = vunpack.c.l.b16 %v7829
      %v7924 = vunpack.c.h.b16 %v7829
      %v7925 = vunpack.c.l.b16 %v7830
      %v7926 = vunpack.c.h.b16 %v7830
      %v7927 = vunpack.c.l.b16 %v7831
      %v7928 = vunpack.c.h.b16 %v7831
      %v7929 = vunpack.c.l.b16 %v7832
      %v7930 = vunpack.c.h.b16 %v7832
      %v7931 = vunpack.c.l.b16 %v7833
      %v7932 = vunpack.c.h.b16 %v7833
      %v7933 = vunpack.c.l.b16 %v7834
      %v7934 = vunpack.c.h.b16 %v7834
      %v7935 = vunpack.c.l.b16 %v7835
      %v7936 = vunpack.c.h.b16 %v7835
      %v7937 = vunpack.c.l.b16 %v7836
      %v7938 = vunpack.c.h.b16 %v7836
      %v7939 = vunpack.c.l.b16 %v7837
      %v7940 = vunpack.c.h.b16 %v7837
      %v7941 = vunpack.c.l.b16 %v7838
      %v7942 = vunpack.c.h.b16 %v7838
      %v7943 = vunpack.c.l.b16 %v7839
      %v7944 = vunpack.c.h.b16 %v7839
      %v7945 = vunpack.c.l.b16 %v7840
      %v7946 = vunpack.c.h.b16 %v7840
      %v7947 = vunpack.c.l.b16 %v7841
      %v7948 = vunpack.c.h.b16 %v7841
      %v7949 = vunpack.c.l.b16 %v7842
      %v7950 = vunpack.c.h.b16 %v7842
      %v7951 = vunpack.c.l.b16 %v7843
      %v7952 = vunpack.c.h.b16 %v7843
      %v7953 = vunpack.c.l.b16 %v7844
      %v7954 = vunpack.c.h.b16 %v7844
      %v7955 = vunpack.c.l.b16 %v7845
      %v7956 = vunpack.c.h.b16 %v7845
      %v7957 = vunpack.c.l.b16 %v7846
      %v7958 = vunpack.c.h.b16 %v7846
      %v7959 = vunpack.c.l.b16 %v7847
      %v7960 = vunpack.c.h.b16 %v7847
      %v7961 = vunpack.c.l.b16 %v7848
      %v7962 = vunpack.c.h.b16 %v7848
      %v7963 = vunpack.c.l.b16 %v7849
      %v7964 = vunpack.c.h.b16 %v7849
      %v7965 = vunpack.c.l.b16 %v7850
      %v7966 = vunpack.c.h.b16 %v7850
      %v7967 = vunpack.c.l.b16 %v7851
      %v7968 = vunpack.c.h.b16 %v7851
      %v7969 = vunpack.c.l.b16 %v7852
      %v7970 = vunpack.c.h.b16 %v7852
      %v7971 = vunpack.c.l.b16 %v7853
      %v7972 = vunpack.c.h.b16 %v7853
      %v7973 = vunpack.c.l.b16 %v7854
      %v7974 = vunpack.c.h.b16 %v7854
      %v7975 = vunpack.c.l.b16 %v7855
      %v7976 = vunpack.c.h.b16 %v7855
      %v7977 = vunpack.c.l.b16 %v7856
      %v7978 = vunpack.c.h.b16 %v7856
      %v7979 = vunpack.c.l.b16 %v7857
      %v7980 = vunpack.c.h.b16 %v7857
      %v7981 = vunpack.c.l.b16 %v7858
      %v7982 = vunpack.c.h.b16 %v7858
      %v7983 = vunpack.c.l.b16 %v7859
      %v7984 = vunpack.c.h.b16 %v7859
      %v7985 = vunpack.c.l.b16 %v7860
      %v7986 = vunpack.c.h.b16 %v7860
      %v7987 = vunpack.c.l.b16 %v7861
      %v7988 = vunpack.c.h.b16 %v7861
      %v7989 = vunpack.c.l.b16 %v7862
      %v7990 = vunpack.c.h.b16 %v7862
      %v7991 = vpack.c.b16 %v7913, %v7911
      %v7992 = vpack.c.b16 %v7914, %v7912
      %v7993 = vpack.c.b16 %v7917, %v7915
      %v7994 = vpack.c.b16 %v7918, %v7916
      %v7995 = vpack.c.b16 %v7921, %v7919
      %v7996 = vpack.c.b16 %v7922, %v7920
      %v7997 = vpack.c.b16 %v7925, %v7923
      %v7998 = vpack.c.b16 %v7926, %v7924
      %v7999 = vpack.c.b16 %v7929, %v7927
      %v8000 = vpack.c.b16 %v7930, %v7928
      %v8001 = vpack.c.b16 %v7933, %v7931
      %v8002 = vpack.c.b16 %v7934, %v7932
      %v8003 = vpack.c.b16 %v7937, %v7935
      %v8004 = vpack.c.b16 %v7938, %v7936
      %v8005 = vpack.c.b16 %v7941, %v7939
      %v8006 = vpack.c.b16 %v7942, %v7940
      %v8007 = vpack.c.b16 %v7945, %v7943
      %v8008 = vpack.c.b16 %v7946, %v7944
      %v8009 = vpack.c.b16 %v7949, %v7947
      %v8010 = vpack.c.b16 %v7950, %v7948
      %v8011 = vpack.c.b16 %v7953, %v7951
      %v8012 = vpack.c.b16 %v7954, %v7952
      %v8013 = vpack.c.b16 %v7957, %v7955
      %v8014 = vpack.c.b16 %v7958, %v7956
      %v8015 = vpack.c.b16 %v7961, %v7959
      %v8016 = vpack.c.b16 %v7962, %v7960
      %v8017 = vpack.c.b16 %v7965, %v7963
      %v8018 = vpack.c.b16 %v7966, %v7964
      %v8019 = vpack.c.b16 %v7969, %v7967
      %v8020 = vpack.c.b16 %v7970, %v7968
      %v8021 = vpack.c.b16 %v7973, %v7971
      %v8022 = vpack.c.b16 %v7974, %v7972
      %v8023 = vpack.c.b16 %v7977, %v7975
      %v8024 = vpack.c.b16 %v7978, %v7976
      %v8025 = vpack.c.b16 %v7981, %v7979
      %v8026 = vpack.c.b16 %v7982, %v7980
      %v8027 = vpack.c.b16 %v7985, %v7983
      %v8028 = vpack.c.b16 %v7986, %v7984
      %v8029 = vpack.c.b16 %v7989, %v7987
      %v8030 = vpack.c.b16 %v7990, %v7988
      %v8072 = vsel %vm708, %v7868, 0
      %8074 = vmatprep.subr.bf16.mxu0 %v7992
      %8075 = vmatpush1.bf16.msra.mxu0 %v7991
      %8076 = vmatprep.subr.bf16.mxu0 %v7994
      %8077 = vmatpush1.bf16.msra.mxu0 %v7993
      %8078 = vmatprep.subr.bf16.mxu0 %v7996
      %8079 = vmatpush1.bf16.msra.mxu0 %v7995
      %8080 = vmatprep.subr.bf16.mxu0 %v7998
      %8081 = vmatpush1.bf16.msra.mxu0 %v7997
      %8082 = vmatprep.subr.bf16.mxu0 %v8000
      %8083 = vmatpush1.bf16.msra.mxu0 %v7999
      %8084 = vmatprep.subr.bf16.mxu0 %v8002
      %8085 = vmatpush1.bf16.msra.mxu0 %v8001
      %8086 = vmatprep.subr.bf16.mxu0 %v8004
      %8087 = vmatpush1.bf16.msra.mxu0 %v8003
      %8088 = vmatprep.subr.bf16.mxu0 %v8006
      %8089 = vmatpush1.bf16.msra.mxu0 %v8005
      %8090 = vmatprep.subr.bf16.mxu0 %v8008
      %8091 = vmatpush1.bf16.msra.mxu0 %v8007
      %8092 = vmatprep.subr.bf16.mxu0 %v8010
      %8093 = vmatpush1.bf16.msra.mxu0 %v8009
      %8094 = vmatprep.subr.bf16.mxu0 %v8012
      %8095 = vmatpush1.bf16.msra.mxu0 %v8011
      %8096 = vmatprep.subr.bf16.mxu0 %v8014
      %8097 = vmatpush1.bf16.msra.mxu0 %v8013
      %8098 = vmatprep.subr.bf16.mxu0 %v8016
      %8099 = vmatpush1.bf16.msra.mxu0 %v8015
      %8100 = vmatprep.subr.bf16.mxu0 %v8018
      %8101 = vmatpush1.bf16.msra.mxu0 %v8017
      %8102 = vmatprep.subr.bf16.mxu0 %v8020
      %8103 = vmatpush1.bf16.msra.mxu0 %v8019
      %8104 = vmatprep.subr.bf16.mxu0 %v8022
      %8105 = vmatpush1.bf16.msra.mxu0 %v8021
      %8106 = vmatprep.mubr.bf16.mxu0 %v7867
      %8107 = vmatmul.mubr.bf16.gmra.mrb[0].mxu0 %v7866
      %v8108 = vpop.f32.mrb[0].mxu0
      %v8109 = vadd.f32 0.0, %v8108
      %v8110 = vpop.f32.mrb[0].mxu0
      %v8111 = vadd.f32 0.0, %v8110
      %v8112 = vpop.f32.mrb[0].mxu0
      %v8113 = vpop.f32.mrb[0].mxu0
      %8114 = vdwg.mxu0
      %8115 = vmatprep.subr.bf16.mxu0 %v8024
      %8116 = vmatpush1.bf16.msra.mxu0 %v8023
      %8117 = vmatprep.subr.bf16.mxu0 %v8026
      %8118 = vmatpush1.bf16.msra.mxu0 %v8025
      %8119 = vmatprep.subr.bf16.mxu0 %v8028
      %8120 = vmatpush1.bf16.msra.mxu0 %v8027
      %8121 = vmatprep.subr.bf16.mxu0 %v8030
      %8122 = vmatpush1.bf16.msra.mxu0 %v8029
      %8123 = vmatprep.subr.bf16.mxu0 0
      %8124 = vmatpush1.bf16.msra.mxu0 0
      %8125 = vmatprep.subr.bf16.mxu0 0
      %8126 = vmatpush1.bf16.msra.mxu0 0
      %8127 = vmatprep.subr.bf16.mxu0 0
      %8128 = vmatpush1.bf16.msra.mxu0 0
      %8129 = vmatprep.subr.bf16.mxu0 0
      %8130 = vmatpush1.bf16.msra.mxu0 0
      %8131 = vmatprep.subr.bf16.mxu0 0
      %8132 = vmatpush1.bf16.msra.mxu0 0
      %8133 = vmatprep.subr.bf16.mxu0 0
      %8134 = vmatpush1.bf16.msra.mxu0 0
      %8135 = vmatprep.subr.bf16.mxu0 0
      %8136 = vmatpush1.bf16.msra.mxu0 0
      %8137 = vmatprep.subr.bf16.mxu0 0
      %8138 = vmatpush1.bf16.msra.mxu0 0
      %8139 = vmatprep.subr.bf16.mxu0 0
      %8140 = vmatpush1.bf16.msra.mxu0 0
      %8141 = vmatprep.subr.bf16.mxu0 0
      %8142 = vmatpush1.bf16.msra.mxu0 0
      %8143 = vmatprep.subr.bf16.mxu0 0
      %8144 = vmatpush1.bf16.msra.mxu0 0
      %8145 = vmatprep.subr.bf16.mxu0 0
      %8146 = vmatpush1.bf16.msra.mxu0 0
      %8147 = vmatprep.mubr.bf16.mxu0 0
      %8148 = vmatmul.mubr.bf16.gmra.mrb[0].mxu0 %v8072
      %v8149 = vpop.f32.mrb[0].mxu0
      %v8150 = vadd.f32 %v8109, %v8149
      %v8151 = vpop.f32.mrb[0].mxu0
      %v8152 = vadd.f32 %v8111, %v8151
      %v8153 = vpop.f32.mrb[0].mxu0
      %v8154 = vpop.f32.mrb[0].mxu0
      %8155 = vdwg.mxu0
      %v8156 = vadd.f32 %v7811, %v8150
      %v8157 = vadd.f32 %v7812, %v8152
      %v8158 = vld [vmem:[%s12] sm:$0x3]
      %v8160 = vlaneseq
      %v8161 = vshrl.u32 %v8160, 7
      %v8162 = vsub.s32 0, %v8161
      %v8163 = vrot.slane %v8158, %v8162
      %v8164 = vlaneseq
      %v8165 = vshrl.u32 %v8164, 7
      %v8166 = vsub.s32 1, %v8165
      %v8167 = vrot.slane %v8158, %v8166
      %v8170 = vadd.f32 %v8156, %v8163
      %v8171 = vadd.f32 %v8157, %v8167
      %vm8172 = vcmp.ge.f32.partialorder %v8170, 0.0
      %vm8173 = vcmp.ge.f32.partialorder %v8171, 0.0
      %v8174 = vmul.f32 %v8170, 0.1
      %v8175 = vmul.f32 %v8171, 0.1
      %v8176 = vsel %vm8172, %v8170, %v8174
      %v8177 = vsel %vm8173, %v8171, %v8175
      %v8180 = vrot.slane %v8176, 7
      %v8181 = vrot.slane %v8177, 7
      %8184 = vst [vmem:[#allocation8] sm:$0x1e] %v8180
      %vm8185 = vcmask 520193
      %8186 = vst.msk [vmem:[#allocation8 + $0x8] sm:$0x1e] %vm8185, %v8181
      %v8187 = vld [vmem:[#allocation8] sm:$0xf]
      %v8188 = vld [vmem:[#allocation8 + $0x8] sm:$0xf]
      %v8189 = vpack.c.bf16 %v8187, %v8187
      %v8190 = vpack.c.bf16 %v8188, %v8188
      %v8191 = vld [vmem:[%s13] sm:$0xff]
      %v8192 = vld [vmem:[%s13 + $0x8] sm:$0xff]
      %v8193 = vld [vmem:[%s13 + $0x10] sm:$0xff]
      %v8194 = vld [vmem:[%s13 + $0x18] sm:$0xff]
      %v8195 = vld [vmem:[%s13 + $0x20] sm:$0xff]
      %v8196 = vld [vmem:[%s13 + $0x28] sm:$0xff]
      %v8197 = vld [vmem:[%s13 + $0x30] sm:$0xff]
      %v8198 = vld [vmem:[%s13 + $0x38] sm:$0xff]
      %v8199 = vld [vmem:[%s13 + $0x40] sm:$0xff]
      %v8200 = vld [vmem:[%s13 + $0x48] sm:$0xff]
      %v8201 = vld [vmem:[%s13 + $0x50] sm:$0xff]
      %v8202 = vld [vmem:[%s13 + $0x58] sm:$0xff]
      %v8203 = vld [vmem:[%s13 + $0x60] sm:$0xff]
      %v8204 = vld [vmem:[%s13 + $0x68] sm:$0xff]
      %v8205 = vld [vmem:[%s13 + $0x70] sm:$0xff]
      %v8206 = vld [vmem:[%s13 + $0x78] sm:$0xff]
      %v8207 = vld [vmem:[%s13 + $0x80] sm:$0xff]
      %v8208 = vld [vmem:[%s13 + $0x88] sm:$0xff]
      %v8209 = vld [vmem:[%s13 + $0x90] sm:$0xff]
      %v8210 = vld [vmem:[%s13 + $0x98] sm:$0xff]
      %v8211 = vld [vmem:[%s13 + $0xa0] sm:$0xff]
      %v8212 = vld [vmem:[%s13 + $0xa8] sm:$0xff]
      %v8213 = vld [vmem:[%s13 + $0xb0] sm:$0xff]
      %v8214 = vld [vmem:[%s13 + $0xb8] sm:$0xff]
      %v8215 = vld [vmem:[#allocation8] sm:$0x1e]
      %v8216 = vld [vmem:[#allocation8 + $0x8] sm:$0x1e]
      %v8217 = vpack.c.bf16 %v8215, %v8215
      %v8218 = vpack.c.bf16 %v8216, %v8216
      %s8219 = scalar_lea.vmem %s13, 192
      %v8220 = vld [vmem:[%s8219] sm:$0xff]
      %v8221 = vld [vmem:[%s8219 + $0x8] sm:$0xff]
      %v8222 = vld [vmem:[%s8219 + $0x10] sm:$0xff]
      %v8223 = vld [vmem:[%s8219 + $0x18] sm:$0xff]
      %v8224 = vld [vmem:[%s8219 + $0x20] sm:$0xff]
      %v8225 = vld [vmem:[%s8219 + $0x28] sm:$0xff]
      %v8226 = vld [vmem:[%s8219 + $0x30] sm:$0xff]
      %v8227 = vld [vmem:[%s8219 + $0x38] sm:$0xff]
      %v8228 = vld [vmem:[%s8219 + $0x40] sm:$0xff]
      %v8229 = vld [vmem:[%s8219 + $0x48] sm:$0xff]
      %v8230 = vld [vmem:[%s8219 + $0x50] sm:$0xff]
      %v8231 = vld [vmem:[%s8219 + $0x58] sm:$0xff]
      %v8232 = vld [vmem:[%s8219 + $0x60] sm:$0xff]
      %v8233 = vld [vmem:[%s8219 + $0x68] sm:$0xff]
      %v8234 = vld [vmem:[%s8219 + $0x70] sm:$0xff]
      %v8235 = vld [vmem:[%s8219 + $0x78] sm:$0xff]
      %v8236 = vld [vmem:[%s8219 + $0x80] sm:$0xff]
      %v8237 = vld [vmem:[%s8219 + $0x88] sm:$0xff]
      %v8238 = vld [vmem:[%s8219 + $0x90] sm:$0xff]
      %v8239 = vld [vmem:[%s8219 + $0x98] sm:$0xff]
      %v8240 = vld [vmem:[%s8219 + $0xa0] sm:$0xff]
      %v8241 = vld [vmem:[%s8219 + $0xa8] sm:$0xff]
      %v8242 = vld [vmem:[%s8219 + $0xb0] sm:$0xff]
      %v8243 = vld [vmem:[%s8219 + $0xb8] sm:$0xff]
      %v8245 = vshrl.u32 %v8217, 16
      %v8247 = vshll.u32 %v8217, 16
      %v8249 = vrot.slane %v8247, 1
      %v8250 = vor.u32 %v8245, %v8249
      %v8252 = vshrl.u32 %v8218, 16
      %v8254 = vshll.u32 %v8218, 16
      %v8256 = vrot.slane %v8254, 1
      %v8257 = vor.u32 %v8252, %v8256
      %v8283 = vunpack.c.l.b16 %v8220
      %v8284 = vunpack.c.h.b16 %v8220
      %v8285 = vunpack.c.l.b16 %v8221
      %v8286 = vunpack.c.h.b16 %v8221
      %v8287 = vunpack.c.l.b16 %v8222
      %v8288 = vunpack.c.h.b16 %v8222
      %v8289 = vunpack.c.l.b16 %v8223
      %v8290 = vunpack.c.h.b16 %v8223
      %v8291 = vunpack.c.l.b16 %v8224
      %v8292 = vunpack.c.h.b16 %v8224
      %v8293 = vunpack.c.l.b16 %v8225
      %v8294 = vunpack.c.h.b16 %v8225
      %v8295 = vunpack.c.l.b16 %v8226
      %v8296 = vunpack.c.h.b16 %v8226
      %v8297 = vunpack.c.l.b16 %v8227
      %v8298 = vunpack.c.h.b16 %v8227
      %v8299 = vunpack.c.l.b16 %v8228
      %v8300 = vunpack.c.h.b16 %v8228
      %v8301 = vunpack.c.l.b16 %v8229
      %v8302 = vunpack.c.h.b16 %v8229
      %v8303 = vunpack.c.l.b16 %v8230
      %v8304 = vunpack.c.h.b16 %v8230
      %v8305 = vunpack.c.l.b16 %v8231
      %v8306 = vunpack.c.h.b16 %v8231
      %v8307 = vunpack.c.l.b16 %v8232
      %v8308 = vunpack.c.h.b16 %v8232
      %v8309 = vunpack.c.l.b16 %v8233
      %v8310 = vunpack.c.h.b16 %v8233
      %v8311 = vunpack.c.l.b16 %v8234
      %v8312 = vunpack.c.h.b16 %v8234
      %v8313 = vunpack.c.l.b16 %v8235
      %v8314 = vunpack.c.h.b16 %v8235
      %v8315 = vunpack.c.l.b16 %v8236
      %v8316 = vunpack.c.h.b16 %v8236
      %v8317 = vunpack.c.l.b16 %v8237
      %v8318 = vunpack.c.h.b16 %v8237
      %v8319 = vunpack.c.l.b16 %v8238
      %v8320 = vunpack.c.h.b16 %v8238
      %v8321 = vunpack.c.l.b16 %v8239
      %v8322 = vunpack.c.h.b16 %v8239
      %v8323 = vunpack.c.l.b16 %v8240
      %v8324 = vunpack.c.h.b16 %v8240
      %v8325 = vunpack.c.l.b16 %v8241
      %v8326 = vunpack.c.h.b16 %v8241
      %v8327 = vunpack.c.l.b16 %v8242
      %v8328 = vunpack.c.h.b16 %v8242
      %v8329 = vunpack.c.l.b16 %v8243
      %v8330 = vunpack.c.h.b16 %v8243
      %v8331 = vpack.c.b16 %v8285, %v8283
      %v8332 = vpack.c.b16 %v8286, %v8284
      %v8333 = vpack.c.b16 %v8289, %v8287
      %v8334 = vpack.c.b16 %v8290, %v8288
      %v8335 = vpack.c.b16 %v8293, %v8291
      %v8336 = vpack.c.b16 %v8294, %v8292
      %v8337 = vpack.c.b16 %v8297, %v8295
      %v8338 = vpack.c.b16 %v8298, %v8296
      %v8339 = vpack.c.b16 %v8301, %v8299
      %v8340 = vpack.c.b16 %v8302, %v8300
      %v8341 = vpack.c.b16 %v8305, %v8303
      %v8342 = vpack.c.b16 %v8306, %v8304
      %v8343 = vpack.c.b16 %v8309, %v8307
      %v8344 = vpack.c.b16 %v8310, %v8308
      %v8345 = vpack.c.b16 %v8313, %v8311
      %v8346 = vpack.c.b16 %v8314, %v8312
      %v8347 = vpack.c.b16 %v8317, %v8315
      %v8348 = vpack.c.b16 %v8318, %v8316
      %v8349 = vpack.c.b16 %v8321, %v8319
      %v8350 = vpack.c.b16 %v8322, %v8320
      %v8351 = vpack.c.b16 %v8325, %v8323
      %v8352 = vpack.c.b16 %v8326, %v8324
      %v8353 = vpack.c.b16 %v8329, %v8327
      %v8354 = vpack.c.b16 %v8330, %v8328
      %v8380 = vsel %vm708, %v8257, 0
      %8382 = vmatprep.subr.bf16.mxu0 %v8332
      %8383 = vmatpush1.bf16.msra.mxu0 %v8331
      %8384 = vmatprep.subr.bf16.mxu0 %v8334
      %8385 = vmatpush1.bf16.msra.mxu0 %v8333
      %8386 = vmatprep.subr.bf16.mxu0 %v8336
      %8387 = vmatpush1.bf16.msra.mxu0 %v8335
      %8388 = vmatprep.subr.bf16.mxu0 %v8338
      %8389 = vmatpush1.bf16.msra.mxu0 %v8337
      %8390 = vmatprep.subr.bf16.mxu0 %v8340
      %8391 = vmatpush1.bf16.msra.mxu0 %v8339
      %8392 = vmatprep.subr.bf16.mxu0 %v8342
      %8393 = vmatpush1.bf16.msra.mxu0 %v8341
      %8394 = vmatprep.subr.bf16.mxu0 %v8344
      %8395 = vmatpush1.bf16.msra.mxu0 %v8343
      %8396 = vmatprep.subr.bf16.mxu0 %v8346
      %8397 = vmatpush1.bf16.msra.mxu0 %v8345
      %8398 = vmatprep.subr.bf16.mxu0 %v8348
      %8399 = vmatpush1.bf16.msra.mxu0 %v8347
      %8400 = vmatprep.subr.bf16.mxu0 %v8350
      %8401 = vmatpush1.bf16.msra.mxu0 %v8349
      %8402 = vmatprep.subr.bf16.mxu0 %v8352
      %8403 = vmatpush1.bf16.msra.mxu0 %v8351
      %8404 = vmatprep.subr.bf16.mxu0 %v8354
      %8405 = vmatpush1.bf16.msra.mxu0 %v8353
      %8406 = vmatprep.subr.bf16.mxu0 0
      %8407 = vmatpush1.bf16.msra.mxu0 0
      %8408 = vmatprep.subr.bf16.mxu0 0
      %8409 = vmatpush1.bf16.msra.mxu0 0
      %8410 = vmatprep.subr.bf16.mxu0 0
      %8411 = vmatpush1.bf16.msra.mxu0 0
      %8412 = vmatprep.subr.bf16.mxu0 0
      %8413 = vmatpush1.bf16.msra.mxu0 0
      %8414 = vmatprep.mubr.bf16.mxu0 %v8380
      %8415 = vmatmul.mubr.bf16.gmra.mrb[0].mxu0 %v8250
      %v8416 = vpop.f32.mrb[0].mxu0
      %v8417 = vadd.f32 0.0, %v8416
      %v8418 = vpop.f32.mrb[0].mxu0
      %v8419 = vadd.f32 0.0, %v8418
      %v8420 = vpop.f32.mrb[0].mxu0
      %v8421 = vpop.f32.mrb[0].mxu0
      %8422 = vdwg.mxu0
      %v8447 = vunpack.c.l.b16 %v8191
      %v8448 = vunpack.c.h.b16 %v8191
      %v8449 = vunpack.c.l.b16 %v8192
      %v8450 = vunpack.c.h.b16 %v8192
      %v8451 = vunpack.c.l.b16 %v8193
      %v8452 = vunpack.c.h.b16 %v8193
      %v8453 = vunpack.c.l.b16 %v8194
      %v8454 = vunpack.c.h.b16 %v8194
      %v8455 = vunpack.c.l.b16 %v8195
      %v8456 = vunpack.c.h.b16 %v8195
      %v8457 = vunpack.c.l.b16 %v8196
      %v8458 = vunpack.c.h.b16 %v8196
      %v8459 = vunpack.c.l.b16 %v8197
      %v8460 = vunpack.c.h.b16 %v8197
      %v8461 = vunpack.c.l.b16 %v8198
      %v8462 = vunpack.c.h.b16 %v8198
      %v8463 = vunpack.c.l.b16 %v8199
      %v8464 = vunpack.c.h.b16 %v8199
      %v8465 = vunpack.c.l.b16 %v8200
      %v8466 = vunpack.c.h.b16 %v8200
      %v8467 = vunpack.c.l.b16 %v8201
      %v8468 = vunpack.c.h.b16 %v8201
      %v8469 = vunpack.c.l.b16 %v8202
      %v8470 = vunpack.c.h.b16 %v8202
      %v8471 = vunpack.c.l.b16 %v8203
      %v8472 = vunpack.c.h.b16 %v8203
      %v8473 = vunpack.c.l.b16 %v8204
      %v8474 = vunpack.c.h.b16 %v8204
      %v8475 = vunpack.c.l.b16 %v8205
      %v8476 = vunpack.c.h.b16 %v8205
      %v8477 = vunpack.c.l.b16 %v8206
      %v8478 = vunpack.c.h.b16 %v8206
      %v8479 = vunpack.c.l.b16 %v8207
      %v8480 = vunpack.c.h.b16 %v8207
      %v8481 = vunpack.c.l.b16 %v8208
      %v8482 = vunpack.c.h.b16 %v8208
      %v8483 = vunpack.c.l.b16 %v8209
      %v8484 = vunpack.c.h.b16 %v8209
      %v8485 = vunpack.c.l.b16 %v8210
      %v8486 = vunpack.c.h.b16 %v8210
      %v8487 = vunpack.c.l.b16 %v8211
      %v8488 = vunpack.c.h.b16 %v8211
      %v8489 = vunpack.c.l.b16 %v8212
      %v8490 = vunpack.c.h.b16 %v8212
      %v8491 = vunpack.c.l.b16 %v8213
      %v8492 = vunpack.c.h.b16 %v8213
      %v8493 = vunpack.c.l.b16 %v8214
      %v8494 = vunpack.c.h.b16 %v8214
      %v8495 = vpack.c.b16 %v8449, %v8447
      %v8496 = vpack.c.b16 %v8450, %v8448
      %v8497 = vpack.c.b16 %v8453, %v8451
      %v8498 = vpack.c.b16 %v8454, %v8452
      %v8499 = vpack.c.b16 %v8457, %v8455
      %v8500 = vpack.c.b16 %v8458, %v8456
      %v8501 = vpack.c.b16 %v8461, %v8459
      %v8502 = vpack.c.b16 %v8462, %v8460
      %v8503 = vpack.c.b16 %v8465, %v8463
      %v8504 = vpack.c.b16 %v8466, %v8464
      %v8505 = vpack.c.b16 %v8469, %v8467
      %v8506 = vpack.c.b16 %v8470, %v8468
      %v8507 = vpack.c.b16 %v8473, %v8471
      %v8508 = vpack.c.b16 %v8474, %v8472
      %v8509 = vpack.c.b16 %v8477, %v8475
      %v8510 = vpack.c.b16 %v8478, %v8476
      %v8511 = vpack.c.b16 %v8481, %v8479
      %v8512 = vpack.c.b16 %v8482, %v8480
      %v8513 = vpack.c.b16 %v8485, %v8483
      %v8514 = vpack.c.b16 %v8486, %v8484
      %v8515 = vpack.c.b16 %v8489, %v8487
      %v8516 = vpack.c.b16 %v8490, %v8488
      %v8517 = vpack.c.b16 %v8493, %v8491
      %v8518 = vpack.c.b16 %v8494, %v8492
      %v8544 = vsel %vm708, %v8190, 0
      %8546 = vmatprep.subr.bf16.mxu0 %v8496
      %8547 = vmatpush1.bf16.msra.mxu0 %v8495
      %8548 = vmatprep.subr.bf16.mxu0 %v8498
      %8549 = vmatpush1.bf16.msra.mxu0 %v8497
      %8550 = vmatprep.subr.bf16.mxu0 %v8500
      %8551 = vmatpush1.bf16.msra.mxu0 %v8499
      %8552 = vmatprep.subr.bf16.mxu0 %v8502
      %8553 = vmatpush1.bf16.msra.mxu0 %v8501
      %8554 = vmatprep.subr.bf16.mxu0 %v8504
      %8555 = vmatpush1.bf16.msra.mxu0 %v8503
      %8556 = vmatprep.subr.bf16.mxu0 %v8506
      %8557 = vmatpush1.bf16.msra.mxu0 %v8505
      %8558 = vmatprep.subr.bf16.mxu0 %v8508
      %8559 = vmatpush1.bf16.msra.mxu0 %v8507
      %8560 = vmatprep.subr.bf16.mxu0 %v8510
      %8561 = vmatpush1.bf16.msra.mxu0 %v8509
      %8562 = vmatprep.subr.bf16.mxu0 %v8512
      %8563 = vmatpush1.bf16.msra.mxu0 %v8511
      %8564 = vmatprep.subr.bf16.mxu0 %v8514
      %8565 = vmatpush1.bf16.msra.mxu0 %v8513
      %8566 = vmatprep.subr.bf16.mxu0 %v8516
      %8567 = vmatpush1.bf16.msra.mxu0 %v8515
      %8568 = vmatprep.subr.bf16.mxu0 %v8518
      %8569 = vmatpush1.bf16.msra.mxu0 %v8517
      %8570 = vmatprep.subr.bf16.mxu0 0
      %8571 = vmatpush1.bf16.msra.mxu0 0
      %8572 = vmatprep.subr.bf16.mxu0 0
      %8573 = vmatpush1.bf16.msra.mxu0 0
      %8574 = vmatprep.subr.bf16.mxu0 0
      %8575 = vmatpush1.bf16.msra.mxu0 0
      %8576 = vmatprep.subr.bf16.mxu0 0
      %8577 = vmatpush1.bf16.msra.mxu0 0
      %8578 = vmatprep.mubr.bf16.mxu0 %v8544
      %8579 = vmatmul.mubr.bf16.gmra.mrb[0].mxu0 %v8189
      %v8580 = vpop.f32.mrb[0].mxu0
      %v8581 = vadd.f32 %v8417, %v8580
      %v8582 = vpop.f32.mrb[0].mxu0
      %v8583 = vadd.f32 %v8419, %v8582
      %v8584 = vpop.f32.mrb[0].mxu0
      %v8585 = vpop.f32.mrb[0].mxu0
      %8586 = vdwg.mxu0
      %v8587 = vld [vmem:[#allocation8] sm:$0x3c]
      %v8588 = vld [vmem:[#allocation8 + $0x8] sm:$0x3c]
      %v8589 = vpack.c.bf16 %v8587, %v8587
      %v8590 = vpack.c.bf16 %v8588, %v8588
      %s8591 = scalar_lea.vmem %s13, 384
      %v8592 = vld [vmem:[%s8591] sm:$0xff]
      %v8593 = vld [vmem:[%s8591 + $0x8] sm:$0xff]
      %v8594 = vld [vmem:[%s8591 + $0x10] sm:$0xff]
      %v8595 = vld [vmem:[%s8591 + $0x18] sm:$0xff]
      %v8596 = vld [vmem:[%s8591 + $0x20] sm:$0xff]
      %v8597 = vld [vmem:[%s8591 + $0x28] sm:$0xff]
      %v8598 = vld [vmem:[%s8591 + $0x30] sm:$0xff]
      %v8599 = vld [vmem:[%s8591 + $0x38] sm:$0xff]
      %v8600 = vld [vmem:[%s8591 + $0x40] sm:$0xff]
      %v8601 = vld [vmem:[%s8591 + $0x48] sm:$0xff]
      %v8602 = vld [vmem:[%s8591 + $0x50] sm:$0xff]
      %v8603 = vld [vmem:[%s8591 + $0x58] sm:$0xff]
      %v8604 = vld [vmem:[%s8591 + $0x60] sm:$0xff]
      %v8605 = vld [vmem:[%s8591 + $0x68] sm:$0xff]
      %v8606 = vld [vmem:[%s8591 + $0x70] sm:$0xff]
      %v8607 = vld [vmem:[%s8591 + $0x78] sm:$0xff]
      %v8608 = vld [vmem:[%s8591 + $0x80] sm:$0xff]
      %v8609 = vld [vmem:[%s8591 + $0x88] sm:$0xff]
      %v8610 = vld [vmem:[%s8591 + $0x90] sm:$0xff]
      %v8611 = vld [vmem:[%s8591 + $0x98] sm:$0xff]
      %v8612 = vld [vmem:[%s8591 + $0xa0] sm:$0xff]
      %v8613 = vld [vmem:[%s8591 + $0xa8] sm:$0xff]
      %v8614 = vld [vmem:[%s8591 + $0xb0] sm:$0xff]
      %v8615 = vld [vmem:[%s8591 + $0xb8] sm:$0xff]
      %v8618 = vrot.slane %v8589, 1
      %v8619 = vrot.slane %v8590, 1
      %v8645 = vunpack.c.l.b16 %v8592
      %v8646 = vunpack.c.h.b16 %v8592
      %v8647 = vunpack.c.l.b16 %v8593
      %v8648 = vunpack.c.h.b16 %v8593
      %v8649 = vunpack.c.l.b16 %v8594
      %v8650 = vunpack.c.h.b16 %v8594
      %v8651 = vunpack.c.l.b16 %v8595
      %v8652 = vunpack.c.h.b16 %v8595
      %v8653 = vunpack.c.l.b16 %v8596
      %v8654 = vunpack.c.h.b16 %v8596
      %v8655 = vunpack.c.l.b16 %v8597
      %v8656 = vunpack.c.h.b16 %v8597
      %v8657 = vunpack.c.l.b16 %v8598
      %v8658 = vunpack.c.h.b16 %v8598
      %v8659 = vunpack.c.l.b16 %v8599
      %v8660 = vunpack.c.h.b16 %v8599
      %v8661 = vunpack.c.l.b16 %v8600
      %v8662 = vunpack.c.h.b16 %v8600
      %v8663 = vunpack.c.l.b16 %v8601
      %v8664 = vunpack.c.h.b16 %v8601
      %v8665 = vunpack.c.l.b16 %v8602
      %v8666 = vunpack.c.h.b16 %v8602
      %v8667 = vunpack.c.l.b16 %v8603
      %v8668 = vunpack.c.h.b16 %v8603
      %v8669 = vunpack.c.l.b16 %v8604
      %v8670 = vunpack.c.h.b16 %v8604
      %v8671 = vunpack.c.l.b16 %v8605
      %v8672 = vunpack.c.h.b16 %v8605
      %v8673 = vunpack.c.l.b16 %v8606
      %v8674 = vunpack.c.h.b16 %v8606
      %v8675 = vunpack.c.l.b16 %v8607
      %v8676 = vunpack.c.h.b16 %v8607
      %v8677 = vunpack.c.l.b16 %v8608
      %v8678 = vunpack.c.h.b16 %v8608
      %v8679 = vunpack.c.l.b16 %v8609
      %v8680 = vunpack.c.h.b16 %v8609
      %v8681 = vunpack.c.l.b16 %v8610
      %v8682 = vunpack.c.h.b16 %v8610
      %v8683 = vunpack.c.l.b16 %v8611
      %v8684 = vunpack.c.h.b16 %v8611
      %v8685 = vunpack.c.l.b16 %v8612
      %v8686 = vunpack.c.h.b16 %v8612
      %v8687 = vunpack.c.l.b16 %v8613
      %v8688 = vunpack.c.h.b16 %v8613
      %v8689 = vunpack.c.l.b16 %v8614
      %v8690 = vunpack.c.h.b16 %v8614
      %v8691 = vunpack.c.l.b16 %v8615
      %v8692 = vunpack.c.h.b16 %v8615
      %v8693 = vpack.c.b16 %v8647, %v8645
      %v8694 = vpack.c.b16 %v8648, %v8646
      %v8695 = vpack.c.b16 %v8651, %v8649
      %v8696 = vpack.c.b16 %v8652, %v8650
      %v8697 = vpack.c.b16 %v8655, %v8653
      %v8698 = vpack.c.b16 %v8656, %v8654
      %v8699 = vpack.c.b16 %v8659, %v8657
      %v8700 = vpack.c.b16 %v8660, %v8658
      %v8701 = vpack.c.b16 %v8663, %v8661
      %v8702 = vpack.c.b16 %v8664, %v8662
      %v8703 = vpack.c.b16 %v8667, %v8665
      %v8704 = vpack.c.b16 %v8668, %v8666
      %v8705 = vpack.c.b16 %v8671, %v8669
      %v8706 = vpack.c.b16 %v8672, %v8670
      %v8707 = vpack.c.b16 %v8675, %v8673
      %v8708 = vpack.c.b16 %v8676, %v8674
      %v8709 = vpack.c.b16 %v8679, %v8677
      %v8710 = vpack.c.b16 %v8680, %v8678
      %v8711 = vpack.c.b16 %v8683, %v8681
      %v8712 = vpack.c.b16 %v8684, %v8682
      %v8713 = vpack.c.b16 %v8687, %v8685
      %v8714 = vpack.c.b16 %v8688, %v8686
      %v8715 = vpack.c.b16 %v8691, %v8689
      %v8716 = vpack.c.b16 %v8692, %v8690
      %v8742 = vsel %vm708, %v8619, 0
      %8744 = vmatprep.subr.bf16.mxu0 %v8694
      %8745 = vmatpush1.bf16.msra.mxu0 %v8693
      %8746 = vmatprep.subr.bf16.mxu0 %v8696
      %8747 = vmatpush1.bf16.msra.mxu0 %v8695
      %8748 = vmatprep.subr.bf16.mxu0 %v8698
      %8749 = vmatpush1.bf16.msra.mxu0 %v8697
      %8750 = vmatprep.subr.bf16.mxu0 %v8700
      %8751 = vmatpush1.bf16.msra.mxu0 %v8699
      %8752 = vmatprep.subr.bf16.mxu0 %v8702
      %8753 = vmatpush1.bf16.msra.mxu0 %v8701
      %8754 = vmatprep.subr.bf16.mxu0 %v8704
      %8755 = vmatpush1.bf16.msra.mxu0 %v8703
      %8756 = vmatprep.subr.bf16.mxu0 %v8706
      %8757 = vmatpush1.bf16.msra.mxu0 %v8705
      %8758 = vmatprep.subr.bf16.mxu0 %v8708
      %8759 = vmatpush1.bf16.msra.mxu0 %v8707
      %8760 = vmatprep.subr.bf16.mxu0 %v8710
      %8761 = vmatpush1.bf16.msra.mxu0 %v8709
      %8762 = vmatprep.subr.bf16.mxu0 %v8712
      %8763 = vmatpush1.bf16.msra.mxu0 %v8711
      %8764 = vmatprep.subr.bf16.mxu0 %v8714
      %8765 = vmatpush1.bf16.msra.mxu0 %v8713
      %8766 = vmatprep.subr.bf16.mxu0 %v8716
      %8767 = vmatpush1.bf16.msra.mxu0 %v8715
      %8768 = vmatprep.subr.bf16.mxu0 0
      %8769 = vmatpush1.bf16.msra.mxu0 0
      %8770 = vmatprep.subr.bf16.mxu0 0
      %8771 = vmatpush1.bf16.msra.mxu0 0
      %8772 = vmatprep.subr.bf16.mxu0 0
      %8773 = vmatpush1.bf16.msra.mxu0 0
      %8774 = vmatprep.subr.bf16.mxu0 0
      %8775 = vmatpush1.bf16.msra.mxu0 0
      %8776 = vmatprep.mubr.bf16.mxu0 %v8742
      %8777 = vmatmul.mubr.bf16.gmra.mrb[0].mxu0 %v8618
      %v8778 = vpop.f32.mrb[0].mxu0
      %v8779 = vadd.f32 0.0, %v8778
      %v8780 = vpop.f32.mrb[0].mxu0
      %v8781 = vadd.f32 0.0, %v8780
      %v8782 = vpop.f32.mrb[0].mxu0
      %v8783 = vpop.f32.mrb[0].mxu0
      %8784 = vdwg.mxu0
      %v8785 = vadd.f32 %v8581, %v8779
      %v8786 = vadd.f32 %v8583, %v8781
      %v8787 = vld [vmem:[%s14] sm:$0x3]
      %v8789 = vlaneseq
      %v8790 = vshrl.u32 %v8789, 7
      %v8791 = vsub.s32 0, %v8790
      %v8792 = vrot.slane %v8787, %v8791
      %v8793 = vlaneseq
      %v8794 = vshrl.u32 %v8793, 7
      %v8795 = vsub.s32 1, %v8794
      %v8796 = vrot.slane %v8787, %v8795
      %v8799 = vadd.f32 %v8785, %v8792
      %v8800 = vadd.f32 %v8786, %v8796
      %vm8801 = vcmp.ge.f32.partialorder %v8799, 0.0
      %vm8802 = vcmp.ge.f32.partialorder %v8800, 0.0
      %v8803 = vmul.f32 %v8799, 0.1
      %v8804 = vmul.f32 %v8800, 0.1
      %v8805 = vsel %vm8801, %v8799, %v8803
      %v8806 = vsel %vm8802, %v8800, %v8804
      %v8809 = vcombine.low %v8805, %v8806
      %8811 = vst [vmem:[#allocation9] sm:$0xff] %v8809
      %v8812 = vld [vmem:[#allocation9] ss:$4 sm:$0x3]
      %v8814 = vlaneseq
      %v8815 = vshrl.u32 %v8814, 7
      %v8816 = vsub.s32 0, %v8815
      %v8817 = vrot.slane %v8812, %v8816
      %v8818 = vlaneseq
      %v8819 = vshrl.u32 %v8818, 7
      %v8820 = vsub.s32 1, %v8819
      %v8821 = vrot.slane %v8812, %v8820
      %v8824 = vpack.c.bf16 %v8817, %v8817
      %v8825 = vpack.c.bf16 %v8821, %v8821
      %v8826 = vld [vmem:[%s15] sm:$0xf]
      %v8827 = vld [vmem:[%s15 + $0x4] sm:$0xf]
      %v8828 = vld [vmem:[%s15 + $0x8] sm:$0xf]
      %v8829 = vld [vmem:[%s15 + $0xc] sm:$0xf]
      %v8830 = vld [vmem:[%s15 + $0x10] sm:$0xf]
      %v8831 = vld [vmem:[%s15 + $0x14] sm:$0xf]
      %v8832 = vld [vmem:[%s15 + $0x18] sm:$0xf]
      %v8833 = vld [vmem:[%s15 + $0x1c] sm:$0xf]
      %v8834 = vld [vmem:[%s15 + $0x20] sm:$0xf]
      %v8835 = vld [vmem:[%s15 + $0x24] sm:$0xf]
      %v8836 = vld [vmem:[%s15 + $0x28] sm:$0xf]
      %v8837 = vld [vmem:[%s15 + $0x2c] sm:$0xf]
      %v8838 = vld [vmem:[%s15 + $0x30] sm:$0xf]
      %v8839 = vld [vmem:[%s15 + $0x34] sm:$0xf]
      %v8840 = vld [vmem:[%s15 + $0x38] sm:$0xf]
      %v8841 = vld [vmem:[%s15 + $0x3c] sm:$0xf]
      %v8842 = vld [vmem:[%s15 + $0x40] sm:$0xf]
      %v8843 = vld [vmem:[%s15 + $0x44] sm:$0xf]
      %v8844 = vld [vmem:[%s15 + $0x48] sm:$0xf]
      %v8845 = vld [vmem:[%s15 + $0x4c] sm:$0xf]
      %v8846 = vld [vmem:[%s15 + $0x50] sm:$0xf]
      %v8847 = vld [vmem:[%s15 + $0x54] sm:$0xf]
      %v8848 = vld [vmem:[%s15 + $0x58] sm:$0xf]
      %v8849 = vld [vmem:[%s15 + $0x5c] sm:$0xf]
      %v8850 = vld [vmem:[%s15 + $0x60] sm:$0xf]
      %v8851 = vld [vmem:[%s15 + $0x64] sm:$0xf]
      %v8852 = vld [vmem:[%s15 + $0x68] sm:$0xf]
      %v8853 = vld [vmem:[%s15 + $0x6c] sm:$0xf]
      %v8854 = vld [vmem:[%s15 + $0x70] sm:$0xf]
      %v8855 = vld [vmem:[%s15 + $0x74] sm:$0xf]
      %v8856 = vld [vmem:[%s15 + $0x78] sm:$0xf]
      %v8857 = vld [vmem:[%s15 + $0x7c] sm:$0xf]
      %s8858 = scalar_lea.vmem [#allocation9], 1
      %v8859 = vld [vmem:[%s8858] ss:$4 sm:$0x3]
      %v8861 = vlaneseq
      %v8862 = vshrl.u32 %v8861, 7
      %v8863 = vsub.s32 0, %v8862
      %v8864 = vrot.slane %v8859, %v8863
      %v8865 = vlaneseq
      %v8866 = vshrl.u32 %v8865, 7
      %v8867 = vsub.s32 1, %v8866
      %v8868 = vrot.slane %v8859, %v8867
      %v8871 = vpack.c.bf16 %v8864, %v8864
      %v8872 = vpack.c.bf16 %v8868, %v8868
      %s8873 = scalar_lea.vmem %s15, 128
      %v8874 = vld [vmem:[%s8873] sm:$0xf]
      %v8875 = vld [vmem:[%s8873 + $0x4] sm:$0xf]
      %v8876 = vld [vmem:[%s8873 + $0x8] sm:$0xf]
      %v8877 = vld [vmem:[%s8873 + $0xc] sm:$0xf]
      %v8878 = vld [vmem:[%s8873 + $0x10] sm:$0xf]
      %v8879 = vld [vmem:[%s8873 + $0x14] sm:$0xf]
      %v8880 = vld [vmem:[%s8873 + $0x18] sm:$0xf]
      %v8881 = vld [vmem:[%s8873 + $0x1c] sm:$0xf]
      %v8882 = vld [vmem:[%s8873 + $0x20] sm:$0xf]
      %v8883 = vld [vmem:[%s8873 + $0x24] sm:$0xf]
      %v8884 = vld [vmem:[%s8873 + $0x28] sm:$0xf]
      %v8885 = vld [vmem:[%s8873 + $0x2c] sm:$0xf]
      %v8886 = vld [vmem:[%s8873 + $0x30] sm:$0xf]
      %v8887 = vld [vmem:[%s8873 + $0x34] sm:$0xf]
      %v8888 = vld [vmem:[%s8873 + $0x38] sm:$0xf]
      %v8889 = vld [vmem:[%s8873 + $0x3c] sm:$0xf]
      %v8890 = vld [vmem:[%s8873 + $0x40] sm:$0xf]
      %v8891 = vld [vmem:[%s8873 + $0x44] sm:$0xf]
      %v8892 = vld [vmem:[%s8873 + $0x48] sm:$0xf]
      %v8893 = vld [vmem:[%s8873 + $0x4c] sm:$0xf]
      %v8894 = vld [vmem:[%s8873 + $0x50] sm:$0xf]
      %v8895 = vld [vmem:[%s8873 + $0x54] sm:$0xf]
      %v8896 = vld [vmem:[%s8873 + $0x58] sm:$0xf]
      %v8897 = vld [vmem:[%s8873 + $0x5c] sm:$0xf]
      %v8898 = vld [vmem:[%s8873 + $0x60] sm:$0xf]
      %v8899 = vld [vmem:[%s8873 + $0x64] sm:$0xf]
      %v8900 = vld [vmem:[%s8873 + $0x68] sm:$0xf]
      %v8901 = vld [vmem:[%s8873 + $0x6c] sm:$0xf]
      %v8902 = vld [vmem:[%s8873 + $0x70] sm:$0xf]
      %v8903 = vld [vmem:[%s8873 + $0x74] sm:$0xf]
      %v8904 = vld [vmem:[%s8873 + $0x78] sm:$0xf]
      %v8905 = vld [vmem:[%s8873 + $0x7c] sm:$0xf]
      %v8938 = vunpack.c.l.b16 %v8874
      %v8939 = vunpack.c.l.b16 %v8875
      %v8940 = vunpack.c.l.b16 %v8876
      %v8941 = vunpack.c.l.b16 %v8877
      %v8942 = vunpack.c.l.b16 %v8878
      %v8943 = vunpack.c.l.b16 %v8879
      %v8944 = vunpack.c.l.b16 %v8880
      %v8945 = vunpack.c.l.b16 %v8881
      %v8946 = vunpack.c.l.b16 %v8882
      %v8947 = vunpack.c.l.b16 %v8883
      %v8948 = vunpack.c.l.b16 %v8884
      %v8949 = vunpack.c.l.b16 %v8885
      %v8950 = vunpack.c.l.b16 %v8886
      %v8951 = vunpack.c.l.b16 %v8887
      %v8952 = vunpack.c.l.b16 %v8888
      %v8953 = vunpack.c.l.b16 %v8889
      %v8954 = vunpack.c.l.b16 %v8890
      %v8955 = vunpack.c.l.b16 %v8891
      %v8956 = vunpack.c.l.b16 %v8892
      %v8957 = vunpack.c.l.b16 %v8893
      %v8958 = vunpack.c.l.b16 %v8894
      %v8959 = vunpack.c.l.b16 %v8895
      %v8960 = vunpack.c.l.b16 %v8896
      %v8961 = vunpack.c.l.b16 %v8897
      %v8962 = vunpack.c.l.b16 %v8898
      %v8963 = vunpack.c.l.b16 %v8899
      %v8964 = vunpack.c.l.b16 %v8900
      %v8965 = vunpack.c.l.b16 %v8901
      %v8966 = vunpack.c.l.b16 %v8902
      %v8967 = vunpack.c.l.b16 %v8903
      %v8968 = vunpack.c.l.b16 %v8904
      %v8969 = vunpack.c.l.b16 %v8905
      %v8970 = vpack.c.b16 %v8939, %v8938
      %v8971 = vpack.c.b16 %v8941, %v8940
      %v8972 = vpack.c.b16 %v8943, %v8942
      %v8973 = vpack.c.b16 %v8945, %v8944
      %v8974 = vpack.c.b16 %v8947, %v8946
      %v8975 = vpack.c.b16 %v8949, %v8948
      %v8976 = vpack.c.b16 %v8951, %v8950
      %v8977 = vpack.c.b16 %v8953, %v8952
      %v8978 = vpack.c.b16 %v8955, %v8954
      %v8979 = vpack.c.b16 %v8957, %v8956
      %v8980 = vpack.c.b16 %v8959, %v8958
      %v8981 = vpack.c.b16 %v8961, %v8960
      %v8982 = vpack.c.b16 %v8963, %v8962
      %v8983 = vpack.c.b16 %v8965, %v8964
      %v8984 = vpack.c.b16 %v8967, %v8966
      %v8985 = vpack.c.b16 %v8969, %v8968
      %9002 = vmatprep.subr.bf16.mxu0 0
      %9003 = vmatpush1.bf16.msra.mxu0 %v8970
      %9004 = vmatprep.subr.bf16.mxu0 0
      %9005 = vmatpush1.bf16.msra.mxu0 %v8971
      %9006 = vmatprep.subr.bf16.mxu0 0
      %9007 = vmatpush1.bf16.msra.mxu0 %v8972
      %9008 = vmatprep.subr.bf16.mxu0 0
      %9009 = vmatpush1.bf16.msra.mxu0 %v8973
      %9010 = vmatprep.subr.bf16.mxu0 0
      %9011 = vmatpush1.bf16.msra.mxu0 %v8974
      %9012 = vmatprep.subr.bf16.mxu0 0
      %9013 = vmatpush1.bf16.msra.mxu0 %v8975
      %9014 = vmatprep.subr.bf16.mxu0 0
      %9015 = vmatpush1.bf16.msra.mxu0 %v8976
      %9016 = vmatprep.subr.bf16.mxu0 0
      %9017 = vmatpush1.bf16.msra.mxu0 %v8977
      %9018 = vmatprep.subr.bf16.mxu0 0
      %9019 = vmatpush1.bf16.msra.mxu0 %v8978
      %9020 = vmatprep.subr.bf16.mxu0 0
      %9021 = vmatpush1.bf16.msra.mxu0 %v8979
      %9022 = vmatprep.subr.bf16.mxu0 0
      %9023 = vmatpush1.bf16.msra.mxu0 %v8980
      %9024 = vmatprep.subr.bf16.mxu0 0
      %9025 = vmatpush1.bf16.msra.mxu0 %v8981
      %9026 = vmatprep.subr.bf16.mxu0 0
      %9027 = vmatpush1.bf16.msra.mxu0 %v8982
      %9028 = vmatprep.subr.bf16.mxu0 0
      %9029 = vmatpush1.bf16.msra.mxu0 %v8983
      %9030 = vmatprep.subr.bf16.mxu0 0
      %9031 = vmatpush1.bf16.msra.mxu0 %v8984
      %9032 = vmatprep.subr.bf16.mxu0 0
      %9033 = vmatpush1.bf16.msra.mxu0 %v8985
      %9034 = vmatprep.mubr.bf16.mxu0 %v8872
      %9035 = vmatmul.mubr.bf16.gmra.mrb[0].mxu0 %v8871
      %v9036 = vpop.f32.mrb[0].mxu0
      %v9037 = vadd.f32 0.0, %v9036
      %v9038 = vpop.f32.mrb[0].mxu0
      %v9039 = vpop.f32.mrb[0].mxu0
      %v9040 = vpop.f32.mrb[0].mxu0
      %9041 = vdwg.mxu0
      %v9074 = vunpack.c.l.b16 %v8826
      %v9075 = vunpack.c.l.b16 %v8827
      %v9076 = vunpack.c.l.b16 %v8828
      %v9077 = vunpack.c.l.b16 %v8829
      %v9078 = vunpack.c.l.b16 %v8830
      %v9079 = vunpack.c.l.b16 %v8831
      %v9080 = vunpack.c.l.b16 %v8832
      %v9081 = vunpack.c.l.b16 %v8833
      %v9082 = vunpack.c.l.b16 %v8834
      %v9083 = vunpack.c.l.b16 %v8835
      %v9084 = vunpack.c.l.b16 %v8836
      %v9085 = vunpack.c.l.b16 %v8837
      %v9086 = vunpack.c.l.b16 %v8838
      %v9087 = vunpack.c.l.b16 %v8839
      %v9088 = vunpack.c.l.b16 %v8840
      %v9089 = vunpack.c.l.b16 %v8841
      %v9090 = vunpack.c.l.b16 %v8842
      %v9091 = vunpack.c.l.b16 %v8843
      %v9092 = vunpack.c.l.b16 %v8844
      %v9093 = vunpack.c.l.b16 %v8845
      %v9094 = vunpack.c.l.b16 %v8846
      %v9095 = vunpack.c.l.b16 %v8847
      %v9096 = vunpack.c.l.b16 %v8848
      %v9097 = vunpack.c.l.b16 %v8849
      %v9098 = vunpack.c.l.b16 %v8850
      %v9099 = vunpack.c.l.b16 %v8851
      %v9100 = vunpack.c.l.b16 %v8852
      %v9101 = vunpack.c.l.b16 %v8853
      %v9102 = vunpack.c.l.b16 %v8854
      %v9103 = vunpack.c.l.b16 %v8855
      %v9104 = vunpack.c.l.b16 %v8856
      %v9105 = vunpack.c.l.b16 %v8857
      %v9106 = vpack.c.b16 %v9075, %v9074
      %v9107 = vpack.c.b16 %v9077, %v9076
      %v9108 = vpack.c.b16 %v9079, %v9078
      %v9109 = vpack.c.b16 %v9081, %v9080
      %v9110 = vpack.c.b16 %v9083, %v9082
      %v9111 = vpack.c.b16 %v9085, %v9084
      %v9112 = vpack.c.b16 %v9087, %v9086
      %v9113 = vpack.c.b16 %v9089, %v9088
      %v9114 = vpack.c.b16 %v9091, %v9090
      %v9115 = vpack.c.b16 %v9093, %v9092
      %v9116 = vpack.c.b16 %v9095, %v9094
      %v9117 = vpack.c.b16 %v9097, %v9096
      %v9118 = vpack.c.b16 %v9099, %v9098
      %v9119 = vpack.c.b16 %v9101, %v9100
      %v9120 = vpack.c.b16 %v9103, %v9102
      %v9121 = vpack.c.b16 %v9105, %v9104
      %9138 = vmatprep.subr.bf16.mxu0 0
      %9139 = vmatpush1.bf16.msra.mxu0 %v9106
      %9140 = vmatprep.subr.bf16.mxu0 0
      %9141 = vmatpush1.bf16.msra.mxu0 %v9107
      %9142 = vmatprep.subr.bf16.mxu0 0
      %9143 = vmatpush1.bf16.msra.mxu0 %v9108
      %9144 = vmatprep.subr.bf16.mxu0 0
      %9145 = vmatpush1.bf16.msra.mxu0 %v9109
      %9146 = vmatprep.subr.bf16.mxu0 0
      %9147 = vmatpush1.bf16.msra.mxu0 %v9110
      %9148 = vmatprep.subr.bf16.mxu0 0
      %9149 = vmatpush1.bf16.msra.mxu0 %v9111
      %9150 = vmatprep.subr.bf16.mxu0 0
      %9151 = vmatpush1.bf16.msra.mxu0 %v9112
      %9152 = vmatprep.subr.bf16.mxu0 0
      %9153 = vmatpush1.bf16.msra.mxu0 %v9113
      %9154 = vmatprep.subr.bf16.mxu0 0
      %9155 = vmatpush1.bf16.msra.mxu0 %v9114
      %9156 = vmatprep.subr.bf16.mxu0 0
      %9157 = vmatpush1.bf16.msra.mxu0 %v9115
      %9158 = vmatprep.subr.bf16.mxu0 0
      %9159 = vmatpush1.bf16.msra.mxu0 %v9116
      %9160 = vmatprep.subr.bf16.mxu0 0
      %9161 = vmatpush1.bf16.msra.mxu0 %v9117
      %9162 = vmatprep.subr.bf16.mxu0 0
      %9163 = vmatpush1.bf16.msra.mxu0 %v9118
      %9164 = vmatprep.subr.bf16.mxu0 0
      %9165 = vmatpush1.bf16.msra.mxu0 %v9119
      %9166 = vmatprep.subr.bf16.mxu0 0
      %9167 = vmatpush1.bf16.msra.mxu0 %v9120
      %9168 = vmatprep.subr.bf16.mxu0 0
      %9169 = vmatpush1.bf16.msra.mxu0 %v9121
      %9170 = vmatprep.mubr.bf16.mxu0 %v8825
      %9171 = vmatmul.mubr.bf16.gmra.mrb[0].mxu0 %v8824
      %v9172 = vpop.f32.mrb[0].mxu0
      %v9173 = vadd.f32 %v9037, %v9172
      %v9174 = vpop.f32.mrb[0].mxu0
      %v9175 = vpop.f32.mrb[0].mxu0
      %v9176 = vpop.f32.mrb[0].mxu0
      %9177 = vdwg.mxu0
      %s9178 = scalar_lea.vmem [#allocation9], 2
      %v9179 = vld [vmem:[%s9178] ss:$4 sm:$0x3]
      %v9181 = vlaneseq
      %v9182 = vshrl.u32 %v9181, 7
      %v9183 = vsub.s32 0, %v9182
      %v9184 = vrot.slane %v9179, %v9183
      %v9185 = vlaneseq
      %v9186 = vshrl.u32 %v9185, 7
      %v9187 = vsub.s32 1, %v9186
      %v9188 = vrot.slane %v9179, %v9187
      %v9191 = vpack.c.bf16 %v9184, %v9184
      %v9192 = vpack.c.bf16 %v9188, %v9188
      %s9193 = scalar_lea.vmem %s15, 256
      %v9194 = vld [vmem:[%s9193] sm:$0xf]
      %v9195 = vld [vmem:[%s9193 + $0x4] sm:$0xf]
      %v9196 = vld [vmem:[%s9193 + $0x8] sm:$0xf]
      %v9197 = vld [vmem:[%s9193 + $0xc] sm:$0xf]
      %v9198 = vld [vmem:[%s9193 + $0x10] sm:$0xf]
      %v9199 = vld [vmem:[%s9193 + $0x14] sm:$0xf]
      %v9200 = vld [vmem:[%s9193 + $0x18] sm:$0xf]
      %v9201 = vld [vmem:[%s9193 + $0x1c] sm:$0xf]
      %v9202 = vld [vmem:[%s9193 + $0x20] sm:$0xf]
      %v9203 = vld [vmem:[%s9193 + $0x24] sm:$0xf]
      %v9204 = vld [vmem:[%s9193 + $0x28] sm:$0xf]
      %v9205 = vld [vmem:[%s9193 + $0x2c] sm:$0xf]
      %v9206 = vld [vmem:[%s9193 + $0x30] sm:$0xf]
      %v9207 = vld [vmem:[%s9193 + $0x34] sm:$0xf]
      %v9208 = vld [vmem:[%s9193 + $0x38] sm:$0xf]
      %v9209 = vld [vmem:[%s9193 + $0x3c] sm:$0xf]
      %v9210 = vld [vmem:[%s9193 + $0x40] sm:$0xf]
      %v9211 = vld [vmem:[%s9193 + $0x44] sm:$0xf]
      %v9212 = vld [vmem:[%s9193 + $0x48] sm:$0xf]
      %v9213 = vld [vmem:[%s9193 + $0x4c] sm:$0xf]
      %v9214 = vld [vmem:[%s9193 + $0x50] sm:$0xf]
      %v9215 = vld [vmem:[%s9193 + $0x54] sm:$0xf]
      %v9216 = vld [vmem:[%s9193 + $0x58] sm:$0xf]
      %v9217 = vld [vmem:[%s9193 + $0x5c] sm:$0xf]
      %v9218 = vld [vmem:[%s9193 + $0x60] sm:$0xf]
      %v9219 = vld [vmem:[%s9193 + $0x64] sm:$0xf]
      %v9220 = vld [vmem:[%s9193 + $0x68] sm:$0xf]
      %v9221 = vld [vmem:[%s9193 + $0x6c] sm:$0xf]
      %v9222 = vld [vmem:[%s9193 + $0x70] sm:$0xf]
      %v9223 = vld [vmem:[%s9193 + $0x74] sm:$0xf]
      %v9224 = vld [vmem:[%s9193 + $0x78] sm:$0xf]
      %v9225 = vld [vmem:[%s9193 + $0x7c] sm:$0xf]
      %v9258 = vunpack.c.l.b16 %v9194
      %v9259 = vunpack.c.l.b16 %v9195
      %v9260 = vunpack.c.l.b16 %v9196
      %v9261 = vunpack.c.l.b16 %v9197
      %v9262 = vunpack.c.l.b16 %v9198
      %v9263 = vunpack.c.l.b16 %v9199
      %v9264 = vunpack.c.l.b16 %v9200
      %v9265 = vunpack.c.l.b16 %v9201
      %v9266 = vunpack.c.l.b16 %v9202
      %v9267 = vunpack.c.l.b16 %v9203
      %v9268 = vunpack.c.l.b16 %v9204
      %v9269 = vunpack.c.l.b16 %v9205
      %v9270 = vunpack.c.l.b16 %v9206
      %v9271 = vunpack.c.l.b16 %v9207
      %v9272 = vunpack.c.l.b16 %v9208
      %v9273 = vunpack.c.l.b16 %v9209
      %v9274 = vunpack.c.l.b16 %v9210
      %v9275 = vunpack.c.l.b16 %v9211
      %v9276 = vunpack.c.l.b16 %v9212
      %v9277 = vunpack.c.l.b16 %v9213
      %v9278 = vunpack.c.l.b16 %v9214
      %v9279 = vunpack.c.l.b16 %v9215
      %v9280 = vunpack.c.l.b16 %v9216
      %v9281 = vunpack.c.l.b16 %v9217
      %v9282 = vunpack.c.l.b16 %v9218
      %v9283 = vunpack.c.l.b16 %v9219
      %v9284 = vunpack.c.l.b16 %v9220
      %v9285 = vunpack.c.l.b16 %v9221
      %v9286 = vunpack.c.l.b16 %v9222
      %v9287 = vunpack.c.l.b16 %v9223
      %v9288 = vunpack.c.l.b16 %v9224
      %v9289 = vunpack.c.l.b16 %v9225
      %v9290 = vpack.c.b16 %v9259, %v9258
      %v9291 = vpack.c.b16 %v9261, %v9260
      %v9292 = vpack.c.b16 %v9263, %v9262
      %v9293 = vpack.c.b16 %v9265, %v9264
      %v9294 = vpack.c.b16 %v9267, %v9266
      %v9295 = vpack.c.b16 %v9269, %v9268
      %v9296 = vpack.c.b16 %v9271, %v9270
      %v9297 = vpack.c.b16 %v9273, %v9272
      %v9298 = vpack.c.b16 %v9275, %v9274
      %v9299 = vpack.c.b16 %v9277, %v9276
      %v9300 = vpack.c.b16 %v9279, %v9278
      %v9301 = vpack.c.b16 %v9281, %v9280
      %v9302 = vpack.c.b16 %v9283, %v9282
      %v9303 = vpack.c.b16 %v9285, %v9284
      %v9304 = vpack.c.b16 %v9287, %v9286
      %v9305 = vpack.c.b16 %v9289, %v9288
      %9322 = vmatprep.subr.bf16.mxu0 0
      %9323 = vmatpush1.bf16.msra.mxu0 %v9290
      %9324 = vmatprep.subr.bf16.mxu0 0
      %9325 = vmatpush1.bf16.msra.mxu0 %v9291
      %9326 = vmatprep.subr.bf16.mxu0 0
      %9327 = vmatpush1.bf16.msra.mxu0 %v9292
      %9328 = vmatprep.subr.bf16.mxu0 0
      %9329 = vmatpush1.bf16.msra.mxu0 %v9293
      %9330 = vmatprep.subr.bf16.mxu0 0
      %9331 = vmatpush1.bf16.msra.mxu0 %v9294
      %9332 = vmatprep.subr.bf16.mxu0 0
      %9333 = vmatpush1.bf16.msra.mxu0 %v9295
      %9334 = vmatprep.subr.bf16.mxu0 0
      %9335 = vmatpush1.bf16.msra.mxu0 %v9296
      %9336 = vmatprep.subr.bf16.mxu0 0
      %9337 = vmatpush1.bf16.msra.mxu0 %v9297
      %9338 = vmatprep.subr.bf16.mxu0 0
      %9339 = vmatpush1.bf16.msra.mxu0 %v9298
      %9340 = vmatprep.subr.bf16.mxu0 0
      %9341 = vmatpush1.bf16.msra.mxu0 %v9299
      %9342 = vmatprep.subr.bf16.mxu0 0
      %9343 = vmatpush1.bf16.msra.mxu0 %v9300
      %9344 = vmatprep.subr.bf16.mxu0 0
      %9345 = vmatpush1.bf16.msra.mxu0 %v9301
      %9346 = vmatprep.subr.bf16.mxu0 0
      %9347 = vmatpush1.bf16.msra.mxu0 %v9302
      %9348 = vmatprep.subr.bf16.mxu0 0
      %9349 = vmatpush1.bf16.msra.mxu0 %v9303
      %9350 = vmatprep.subr.bf16.mxu0 0
      %9351 = vmatpush1.bf16.msra.mxu0 %v9304
      %9352 = vmatprep.subr.bf16.mxu0 0
      %9353 = vmatpush1.bf16.msra.mxu0 %v9305
      %9354 = vmatprep.mubr.bf16.mxu0 %v9192
      %9355 = vmatmul.mubr.bf16.gmra.mrb[0].mxu0 %v9191
      %v9356 = vpop.f32.mrb[0].mxu0
      %v9357 = vadd.f32 0.0, %v9356
      %v9358 = vpop.f32.mrb[0].mxu0
      %v9359 = vpop.f32.mrb[0].mxu0
      %v9360 = vpop.f32.mrb[0].mxu0
      %9361 = vdwg.mxu0
      %v9362 = vadd.f32 %v9173, %v9357
      %s9363 = scalar_lea.vmem [#allocation9], 3
      %v9364 = vld [vmem:[%s9363] ss:$4 sm:$0x3]
      %v9366 = vlaneseq
      %v9367 = vshrl.u32 %v9366, 7
      %v9368 = vsub.s32 0, %v9367
      %v9369 = vrot.slane %v9364, %v9368
      %v9370 = vlaneseq
      %v9371 = vshrl.u32 %v9370, 7
      %v9372 = vsub.s32 1, %v9371
      %v9373 = vrot.slane %v9364, %v9372
      %v9376 = vpack.c.bf16 %v9369, %v9369
      %v9377 = vpack.c.bf16 %v9373, %v9373
      %s9378 = scalar_lea.vmem %s15, 384
      %v9379 = vld [vmem:[%s9378] sm:$0xf]
      %v9380 = vld [vmem:[%s9378 + $0x4] sm:$0xf]
      %v9381 = vld [vmem:[%s9378 + $0x8] sm:$0xf]
      %v9382 = vld [vmem:[%s9378 + $0xc] sm:$0xf]
      %v9383 = vld [vmem:[%s9378 + $0x10] sm:$0xf]
      %v9384 = vld [vmem:[%s9378 + $0x14] sm:$0xf]
      %v9385 = vld [vmem:[%s9378 + $0x18] sm:$0xf]
      %v9386 = vld [vmem:[%s9378 + $0x1c] sm:$0xf]
      %v9387 = vld [vmem:[%s9378 + $0x20] sm:$0xf]
      %v9388 = vld [vmem:[%s9378 + $0x24] sm:$0xf]
      %v9389 = vld [vmem:[%s9378 + $0x28] sm:$0xf]
      %v9390 = vld [vmem:[%s9378 + $0x2c] sm:$0xf]
      %v9391 = vld [vmem:[%s9378 + $0x30] sm:$0xf]
      %v9392 = vld [vmem:[%s9378 + $0x34] sm:$0xf]
      %v9393 = vld [vmem:[%s9378 + $0x38] sm:$0xf]
      %v9394 = vld [vmem:[%s9378 + $0x3c] sm:$0xf]
      %v9395 = vld [vmem:[%s9378 + $0x40] sm:$0xf]
      %v9396 = vld [vmem:[%s9378 + $0x44] sm:$0xf]
      %v9397 = vld [vmem:[%s9378 + $0x48] sm:$0xf]
      %v9398 = vld [vmem:[%s9378 + $0x4c] sm:$0xf]
      %v9399 = vld [vmem:[%s9378 + $0x50] sm:$0xf]
      %v9400 = vld [vmem:[%s9378 + $0x54] sm:$0xf]
      %v9401 = vld [vmem:[%s9378 + $0x58] sm:$0xf]
      %v9402 = vld [vmem:[%s9378 + $0x5c] sm:$0xf]
      %v9403 = vld [vmem:[%s9378 + $0x60] sm:$0xf]
      %v9404 = vld [vmem:[%s9378 + $0x64] sm:$0xf]
      %v9405 = vld [vmem:[%s9378 + $0x68] sm:$0xf]
      %v9406 = vld [vmem:[%s9378 + $0x6c] sm:$0xf]
      %v9407 = vld [vmem:[%s9378 + $0x70] sm:$0xf]
      %v9408 = vld [vmem:[%s9378 + $0x74] sm:$0xf]
      %v9409 = vld [vmem:[%s9378 + $0x78] sm:$0xf]
      %v9410 = vld [vmem:[%s9378 + $0x7c] sm:$0xf]
      %v9443 = vunpack.c.l.b16 %v9379
      %v9444 = vunpack.c.l.b16 %v9380
      %v9445 = vunpack.c.l.b16 %v9381
      %v9446 = vunpack.c.l.b16 %v9382
      %v9447 = vunpack.c.l.b16 %v9383
      %v9448 = vunpack.c.l.b16 %v9384
      %v9449 = vunpack.c.l.b16 %v9385
      %v9450 = vunpack.c.l.b16 %v9386
      %v9451 = vunpack.c.l.b16 %v9387
      %v9452 = vunpack.c.l.b16 %v9388
      %v9453 = vunpack.c.l.b16 %v9389
      %v9454 = vunpack.c.l.b16 %v9390
      %v9455 = vunpack.c.l.b16 %v9391
      %v9456 = vunpack.c.l.b16 %v9392
      %v9457 = vunpack.c.l.b16 %v9393
      %v9458 = vunpack.c.l.b16 %v9394
      %v9459 = vunpack.c.l.b16 %v9395
      %v9460 = vunpack.c.l.b16 %v9396
      %v9461 = vunpack.c.l.b16 %v9397
      %v9462 = vunpack.c.l.b16 %v9398
      %v9463 = vunpack.c.l.b16 %v9399
      %v9464 = vunpack.c.l.b16 %v9400
      %v9465 = vunpack.c.l.b16 %v9401
      %v9466 = vunpack.c.l.b16 %v9402
      %v9467 = vunpack.c.l.b16 %v9403
      %v9468 = vunpack.c.l.b16 %v9404
      %v9469 = vunpack.c.l.b16 %v9405
      %v9470 = vunpack.c.l.b16 %v9406
      %v9471 = vunpack.c.l.b16 %v9407
      %v9472 = vunpack.c.l.b16 %v9408
      %v9473 = vunpack.c.l.b16 %v9409
      %v9474 = vunpack.c.l.b16 %v9410
      %v9475 = vpack.c.b16 %v9444, %v9443
      %v9476 = vpack.c.b16 %v9446, %v9445
      %v9477 = vpack.c.b16 %v9448, %v9447
      %v9478 = vpack.c.b16 %v9450, %v9449
      %v9479 = vpack.c.b16 %v9452, %v9451
      %v9480 = vpack.c.b16 %v9454, %v9453
      %v9481 = vpack.c.b16 %v9456, %v9455
      %v9482 = vpack.c.b16 %v9458, %v9457
      %v9483 = vpack.c.b16 %v9460, %v9459
      %v9484 = vpack.c.b16 %v9462, %v9461
      %v9485 = vpack.c.b16 %v9464, %v9463
      %v9486 = vpack.c.b16 %v9466, %v9465
      %v9487 = vpack.c.b16 %v9468, %v9467
      %v9488 = vpack.c.b16 %v9470, %v9469
      %v9489 = vpack.c.b16 %v9472, %v9471
      %v9490 = vpack.c.b16 %v9474, %v9473
      %9507 = vmatprep.subr.bf16.mxu0 0
      %9508 = vmatpush1.bf16.msra.mxu0 %v9475
      %9509 = vmatprep.subr.bf16.mxu0 0
      %9510 = vmatpush1.bf16.msra.mxu0 %v9476
      %9511 = vmatprep.subr.bf16.mxu0 0
      %9512 = vmatpush1.bf16.msra.mxu0 %v9477
      %9513 = vmatprep.subr.bf16.mxu0 0
      %9514 = vmatpush1.bf16.msra.mxu0 %v9478
      %9515 = vmatprep.subr.bf16.mxu0 0
      %9516 = vmatpush1.bf16.msra.mxu0 %v9479
      %9517 = vmatprep.subr.bf16.mxu0 0
      %9518 = vmatpush1.bf16.msra.mxu0 %v9480
      %9519 = vmatprep.subr.bf16.mxu0 0
      %9520 = vmatpush1.bf16.msra.mxu0 %v9481
      %9521 = vmatprep.subr.bf16.mxu0 0
      %9522 = vmatpush1.bf16.msra.mxu0 %v9482
      %9523 = vmatprep.subr.bf16.mxu0 0
      %9524 = vmatpush1.bf16.msra.mxu0 %v9483
      %9525 = vmatprep.subr.bf16.mxu0 0
      %9526 = vmatpush1.bf16.msra.mxu0 %v9484
      %9527 = vmatprep.subr.bf16.mxu0 0
      %9528 = vmatpush1.bf16.msra.mxu0 %v9485
      %9529 = vmatprep.subr.bf16.mxu0 0
      %9530 = vmatpush1.bf16.msra.mxu0 %v9486
      %9531 = vmatprep.subr.bf16.mxu0 0
      %9532 = vmatpush1.bf16.msra.mxu0 %v9487
      %9533 = vmatprep.subr.bf16.mxu0 0
      %9534 = vmatpush1.bf16.msra.mxu0 %v9488
      %9535 = vmatprep.subr.bf16.mxu0 0
      %9536 = vmatpush1.bf16.msra.mxu0 %v9489
      %9537 = vmatprep.subr.bf16.mxu0 0
      %9538 = vmatpush1.bf16.msra.mxu0 %v9490
      %9539 = vmatprep.mubr.bf16.mxu0 %v9377
      %9540 = vmatmul.mubr.bf16.gmra.mrb[0].mxu0 %v9376
      %v9541 = vpop.f32.mrb[0].mxu0
      %v9542 = vadd.f32 0.0, %v9541
      %v9543 = vpop.f32.mrb[0].mxu0
      %v9544 = vpop.f32.mrb[0].mxu0
      %v9545 = vpop.f32.mrb[0].mxu0
      %9546 = vdwg.mxu0
      %v9547 = vadd.f32 %v9362, %v9542
      %v9548 = vld [vmem:[%s16] sm:$0x1]
      %v9549 = vadd.f32 %v9547, %v9548
      %v9550 = vpack.c.bf16 %v9549, %v9549
      %v9551 = vld [vmem:[%s17] sm:$0xf]
      %v9552 = vld [vmem:[%s17 + $0x4] sm:$0xf]
      %v9553 = vld [vmem:[%s17 + $0x8] sm:$0xf]
      %v9554 = vld [vmem:[%s17 + $0xc] sm:$0xf]
      %v9555 = vld [vmem:[%s17 + $0x10] sm:$0xf]
      %v9556 = vld [vmem:[%s17 + $0x14] sm:$0xf]
      %v9557 = vld [vmem:[%s17 + $0x18] sm:$0xf]
      %v9558 = vld [vmem:[%s17 + $0x1c] sm:$0xf]
      %v9559 = vld [vmem:[%s18] sm:$0x1]
      %v9568 = vunpack.c.l.b16 %v9551
      %v9569 = vunpack.c.l.b16 %v9552
      %v9570 = vunpack.c.l.b16 %v9553
      %v9571 = vunpack.c.l.b16 %v9554
      %v9572 = vunpack.c.l.b16 %v9555
      %v9573 = vunpack.c.l.b16 %v9556
      %v9574 = vunpack.c.l.b16 %v9557
      %v9575 = vunpack.c.l.b16 %v9558
      %v9576 = vpack.c.b16 %v9569, %v9568
      %v9577 = vpack.c.b16 %v9571, %v9570
      %v9578 = vpack.c.b16 %v9573, %v9572
      %v9579 = vpack.c.b16 %v9575, %v9574
      %v9585 = vsel %vm708, %v9550, 0
      %9587 = vmatprep.subr.bf16.mxu0 0
      %9588 = vmatpush1.bf16.msra.mxu0 %v9576
      %9589 = vmatprep.subr.bf16.mxu0 0
      %9590 = vmatpush1.bf16.msra.mxu0 %v9577
      %9591 = vmatprep.subr.bf16.mxu0 0
      %9592 = vmatpush1.bf16.msra.mxu0 %v9578
      %9593 = vmatprep.subr.bf16.mxu0 0
      %9594 = vmatpush1.bf16.msra.mxu0 %v9579
      %9595 = vmatprep.subr.bf16.mxu0 0
      %9596 = vmatpush1.bf16.msra.mxu0 0
      %9597 = vmatprep.subr.bf16.mxu0 0
      %9598 = vmatpush1.bf16.msra.mxu0 0
      %9599 = vmatprep.subr.bf16.mxu0 0
      %9600 = vmatpush1.bf16.msra.mxu0 0
      %9601 = vmatprep.subr.bf16.mxu0 0
      %9602 = vmatpush1.bf16.msra.mxu0 0
      %9603 = vmatprep.subr.bf16.mxu0 0
      %9604 = vmatpush1.bf16.msra.mxu0 0
      %9605 = vmatprep.subr.bf16.mxu0 0
      %9606 = vmatpush1.bf16.msra.mxu0 0
      %9607 = vmatprep.subr.bf16.mxu0 0
      %9608 = vmatpush1.bf16.msra.mxu0 0
      %9609 = vmatprep.subr.bf16.mxu0 0
      %9610 = vmatpush1.bf16.msra.mxu0 0
      %9611 = vmatprep.subr.bf16.mxu0 0
      %9612 = vmatpush1.bf16.msra.mxu0 0
      %9613 = vmatprep.subr.bf16.mxu0 0
      %9614 = vmatpush1.bf16.msra.mxu0 0
      %9615 = vmatprep.subr.bf16.mxu0 0
      %9616 = vmatpush1.bf16.msra.mxu0 0
      %9617 = vmatprep.subr.bf16.mxu0 0
      %9618 = vmatpush1.bf16.msra.mxu0 0
      %9619 = vmatprep.mubr.bf16.mxu0 0
      %9620 = vmatmul.mubr.bf16.gmra.mrb[0].mxu0 %v9585
      %v9621 = vpop.f32.mrb[0].mxu0
      %v9622 = vadd.f32 %v9559, %v9621
      %v9623 = vpop.f32.mrb[0].mxu0
      %v9624 = vpop.f32.mrb[0].mxu0
      %v9625 = vpop.f32.mrb[0].mxu0
      %9626 = vdwg.mxu0
      %vm9627 = vcmp.ge.f32.partialorder %v9622, 0.0
      %v9628 = vmul.f32 %v9622, 0.1
      %v9629 = vsel %vm9627, %v9622, %v9628
      %v9630 = vld [vmem:[%s19] sm:$0x1]
      %v9631 = vmul.f32 %v9629, %v9630
      %v9632 = vsel %vm6712, %v9631, 0.0
      %9633 = vadd.xlane.f32.xlu0 %v9632
      %v9634 = vpop.xlane.xlu0 %9633
      %v9635 = vld [vmem:[#allocation13] sm:$0x1]
      %v9636 = vadd.f32 %v9634, %v9635
      %vm9637 = vcmask 0
      %9638 = vst.msk [vmem:[%s654] sm:$0x1] %vm9637, %v9636
      %p9639 = scmp.lt.s32.totalorder %s34, 1
      %s9640 = scalar_select %p9639, %s34, 1
      %s9641 = scalar_lea.vmem %s21, %s9640
      // Predicated region
      $region105: #{_lambda_.1} parent=103 // pred_check
        %p9642 = pneg %p498
      $region106: #{_lambda_.1} parent=103 // pred_check_branch
        %9644 = sbr.rel (%p9642) target = $region108
      $region107: #{_lambda_.1} parent=103 // pred_region
        _
      $region108: #{_lambda_.1} parent=103 // pred_fallthru
        _
    $region104: #{_lambda_.1} parent=5 // pred_fallthru
      _
    %p9645 = scmp.le.s32.totalorder 2, %s29
    // Predicated region
    $region109: #{_lambda_.1} parent=5 // pred_check
      %p9646 = pneg %p9645
    $region110: #{_lambda_.1} parent=5 // pred_check_branch
      %9648 = sbr.rel (%p9646) target = $region112
    $region111: #{_lambda_.1} parent=5 // pred_region
      %s9649 = ssub.s32 %s29, 2
      // Predicated region
      $region113: #{_lambda_.1} parent=111 // pred_check
        %p9650 = pneg %p504
      $region114: #{_lambda_.1} parent=111 // pred_check_branch
        %9652 = sbr.rel (%p9650) target = $region116
      $region115: #{_lambda_.1} parent=111 // pred_region
        %p9653 = scmp.lt.s32.totalorder %s35, 1
        %s9654 = scalar_select %p9653, %s35, 1
        %s9655 = scalar_lea.vmem %s21, %s9654
      $region116: #{_lambda_.1} parent=111 // pred_fallthru
        _
    $region112: #{_lambda_.1} parent=5 // pred_fallthru
      _
  $region6: #{_lambda_.1} parent=0 // loop_footer
    %s33 = sadd.s32 1, %s29
  $region7: #{_lambda_.1} parent=0 // loop_footer_branch
    %28 = sbr.rel target = $region3
  $region8: #{_lambda_.1} parent=0 // loop_exit
    _

</llo_original>
